<compile_context>
chip_gen: v7x
topology: tpu7x:2x2x1
jax: 0.10.0
libtpu: 0.0.40
codegen_flags: <defaults>
</compile_context>

<pallas_src>
import functools

import numpy as np

import jax
import jax.numpy as jnp
from jax.experimental import pallas as pl
from jax.experimental.pallas import tpu as pltpu


def _pick_time_chunk(T, B, cap=32):
    """Largest divisor of T (<= cap) such that CT*B is sublane (8) aligned."""
    for ct in range(min(cap, T), 0, -1):
        if T % ct == 0 and (ct * B) % 8 == 0:
            return ct
    # No aligned chunk: use the whole sequence (block first dim == full dim,
    # always legal).  Only hit for tiny/awkward T*B.
    return T


def _pick_pool_chunk(M, cap=512):
    """Largest divisor of M that is a multiple of 128 and <= cap."""
    for ck in range(min(cap, M), 127, -1):
        if ck % 128 == 0 and M % ck == 0:
            return ck
    # TODO(synk): pad M for awkward shapes instead of a single full block.
    return M


# ---------------------------------------------------------------------------
# Kernel A: fused input projection + bidirectional LSTM recurrence.
# Rows are time-major: row = t*B + b.  Per grid step, CT timesteps are
# processed: the chunk's gate pre-activations are computed with one MXU matmul
# per direction (off the serial chain, staged in VMEM scratch), then the
# recurrence is statically unrolled over the chunk.  The backward direction
# reads/writes the block at grid index (Tc-1-c) and walks it in reverse.
# Hidden/cell state (f32) lives in VMEM scratch across grid steps.
# ---------------------------------------------------------------------------
def _bilstm_fused_kernel(xf_ref, xb_ref, wif_ref, wib_ref, bf_ref, bb_ref,
                         whf_ref, whb_ref, of_ref, ob_ref,
                         gf_s, gb_s, hf_s, cf_s, hb_s, cb_s,
                         *, hidden, batch, chunk):
    H, B, CT = hidden, batch, chunk
    c = pl.program_id(0)

    @pl.when(c == 0)
    def _():
        hf_s[...] = jnp.zeros_like(hf_s)
        cf_s[...] = jnp.zeros_like(cf_s)
        hb_s[...] = jnp.zeros_like(hb_s)
        cb_s[...] = jnp.zeros_like(cb_s)

    # Chunk-level input projection (bf16 x bf16 -> f32), both directions.
    gf_s[...] = (jnp.dot(xf_ref[...], wif_ref[...],
                         preferred_element_type=jnp.float32) + bf_ref[...])
    gb_s[...] = (jnp.dot(xb_ref[...], wib_ref[...],
                         preferred_element_type=jnp.float32) + bb_ref[...])

    whf = whf_ref[...]   # [H, 4H] bf16
    whb = whb_ref[...]   # [H, 4H] bf16

    # State loaded once per chunk, carried as values through the unroll,
    # written back once after the loop.
    hf = hf_s[...]
    cf = cf_s[...]
    hb = hb_s[...]
    cb = cb_s[...]

    # Static unroll: every slice start is a compile-time constant and the whole
    # chunk is visible to the scheduler.
    for t in range(CT):
        tf0 = t * B                # forward rows for local timestep t
        tb0 = (CT - 1 - t) * B     # backward rows (reverse local time order)

        gf = gf_s[pl.ds(tf0, B), :] + jnp.dot(
            hf.astype(jnp.bfloat16), whf, preferred_element_type=jnp.float32)
        gb = gb_s[pl.ds(tb0, B), :] + jnp.dot(
            hb.astype(jnp.bfloat16), whb, preferred_element_type=jnp.float32)

        i_f = jax.nn.sigmoid(gf[:, 0 * H:1 * H])
        f_f = jax.nn.sigmoid(gf[:, 1 * H:2 * H])
        g_f = jnp.tanh(gf[:, 2 * H:3 * H])
        o_f = jax.nn.sigmoid(gf[:, 3 * H:4 * H])
        cf = f_f * cf + i_f * g_f
        hf = o_f * jnp.tanh(cf)

        i_b = jax.nn.sigmoid(gb[:, 0 * H:1 * H])
        f_b = jax.nn.sigmoid(gb[:, 1 * H:2 * H])
        g_b = jnp.tanh(gb[:, 2 * H:3 * H])
        o_b = jax.nn.sigmoid(gb[:, 3 * H:4 * H])
        cb = f_b * cb + i_b * g_b
        hb = o_b * jnp.tanh(cb)

        of_ref[pl.ds(tf0, B), :] = hf.astype(of_ref.dtype)
        ob_ref[pl.ds(tb0, B), :] = hb.astype(ob_ref.dtype)

    hf_s[...] = hf
    cf_s[...] = cf
    hb_s[...] = hb
    cb_s[...] = cb


# ---------------------------------------------------------------------------
# Kernel B: adaptive-average-pool (as a matmul with a precomputed pooling
# matrix) + output Linear(2H -> O), streamed over T*B row chunks, all pooling
# MXU work in bf16 with f32 accumulation.
#   accf += P_chunk @ hf_chunk ;  accb += P_chunk @ hb_chunk
#   out   = accf @ W_top + accb @ W_bot + b          (on the last chunk)
# ---------------------------------------------------------------------------
def _pool_linear_kernel(hf_ref, hb_ref, p_ref, wt_ref, wb_ref, bl_ref, o_ref,
                        accf, accb):
    k = pl.program_id(0)

    @pl.when(k == 0)
    def _():
        accf[...] = jnp.zeros_like(accf)
        accb[...] = jnp.zeros_like(accb)

    p = p_ref[...]
    accf[...] += jnp.dot(p, hf_ref[...], preferred_element_type=jnp.float32)
    accb[...] += jnp.dot(p, hb_ref[...], preferred_element_type=jnp.float32)

    @pl.when(k == pl.num_programs(0) - 1)
    def _():
        o_ref[...] = (
            jnp.dot(accf[...], wt_ref[...], preferred_element_type=jnp.float32)
            + jnp.dot(accb[...], wb_ref[...], preferred_element_type=jnp.float32)
            + bl_ref[...]
        )


# ---------------------------------------------------------------------------
# Wrapper
# ---------------------------------------------------------------------------
def seqclr_proj_forward(features, params, *, hidden, out_size, pool_w=5):
    if features.ndim == 4:
        B, C, Hh, Ww = features.shape
        features = jnp.transpose(features, (0, 2, 3, 1)).reshape(B, Hh * Ww, C)
    features = features.astype(jnp.float32)
    B, T, I = features.shape
    H, O = hidden, out_size
    M = T * B

    # Time-major rows [T*B, I] (row = t*B + b), bf16 MXU operand.
    x_tm = jnp.transpose(features, (1, 0, 2)).reshape(M, I).astype(jnp.bfloat16)

    wif = params["w_ih_f"].T.astype(jnp.bfloat16)                    # [I, 4H]
    wib = params["w_ih_b"].T.astype(jnp.bfloat16)                    # [I, 4H]
    bf = (params["b_ih_f"] + params["b_hh_f"]).astype(jnp.float32)[None, :]
    bb = (params["b_ih_b"] + params["b_hh_b"]).astype(jnp.float32)[None, :]
    whf = params["w_hh_f"].T.astype(jnp.bfloat16)                    # [H, 4H]
    whb = params["w_hh_b"].T.astype(jnp.bfloat16)                    # [H, 4H]

    # --- Kernel A: fused input projection + bidirectional recurrence --------
    CT = _pick_time_chunk(T, B)
    Tc = T // CT
    out_f, out_b = pl.pallas_call(
        functools.partial(_bilstm_fused_kernel, hidden=H, batch=B, chunk=CT),
        out_shape=(jax.ShapeDtypeStruct((M, H), jnp.bfloat16),
                   jax.ShapeDtypeStruct((M, H), jnp.bfloat16)),
        grid=(Tc,),
        in_specs=[
            pl.BlockSpec((CT * B, I), lambda c: (c, 0)),            # x (fwd chunk)
            pl.BlockSpec((CT * B, I), lambda c: (Tc - 1 - c, 0)),   # x (bwd chunk)
            pl.BlockSpec((I, 4 * H), lambda c: (0, 0)),
            pl.BlockSpec((I, 4 * H), lambda c: (0, 0)),
            pl.BlockSpec((1, 4 * H), lambda c: (0, 0)),
            pl.BlockSpec((1, 4 * H), lambda c: (0, 0)),
            pl.BlockSpec((H, 4 * H), lambda c: (0, 0)),
            pl.BlockSpec((H, 4 * H), lambda c: (0, 0)),
        ],
        out_specs=(pl.BlockSpec((CT * B, H), lambda c: (c, 0)),
                   pl.BlockSpec((CT * B, H), lambda c: (Tc - 1 - c, 0))),
        scratch_shapes=[
            pltpu.VMEM((CT * B, 4 * H), jnp.float32),   # gates fwd chunk
            pltpu.VMEM((CT * B, 4 * H), jnp.float32),   # gates bwd chunk
            pltpu.VMEM((B, H), jnp.float32),            # h fwd
            pltpu.VMEM((B, H), jnp.float32),            # c fwd
            pltpu.VMEM((B, H), jnp.float32),            # h bwd
            pltpu.VMEM((B, H), jnp.float32),            # c bwd
        ],
        compiler_params=pltpu.CompilerParams(
            dimension_semantics=("arbitrary",),
            vmem_limit_bytes=32 * 1024 * 1024),
    )(x_tm, x_tm, wif, wib, bf, bb, whf, whb)

    # --- Kernel B: adaptive average pool (as matmul) + output Linear --------
    # Pooling matrix: pbig[b*pool_w + i, t*B + b] = 1/len(bin_i) for t in bin_i.
    pbig = np.zeros((B * pool_w, M), np.float32)
    for i in range(pool_w):
        s = (i * T) // pool_w
        e = -((-((i + 1) * T)) // pool_w)          # ceil((i+1)*T / pool_w)
        wgt = 1.0 / float(e - s)
        for b in range(B):
            pbig[b * pool_w + i, s * B + b: e * B: B] = wgt
    pbig = jnp.asarray(pbig, dtype=jnp.bfloat16)

    wt = params["w_lin"][:, :H].T.astype(jnp.float32)     # [H, O] (fwd half)
    wb = params["w_lin"][:, H:].T.astype(jnp.float32)     # [H, O] (bwd half)
    bl = params["b_lin"].astype(jnp.float32)[None, :]     # [1, O]

    CK = _pick_pool_chunk(M)
    out2d = pl.pallas_call(
        _pool_linear_kernel,
        out_shape=jax.ShapeDtypeStruct((B * pool_w, O), jnp.float32),
        grid=(M // CK,),
        in_specs=[
            pl.BlockSpec((CK, H), lambda k: (k, 0)),
            pl.BlockSpec((CK, H), lambda k: (k, 0)),
            pl.BlockSpec((B * pool_w, CK), lambda k: (0, k)),
            pl.BlockSpec((H, O), lambda k: (0, 0)),
            pl.BlockSpec((H, O), lambda k: (0, 0)),
            pl.BlockSpec((1, O), lambda k: (0, 0)),
        ],
        out_specs=pl.BlockSpec((B * pool_w, O), lambda k: (0, 0)),
        scratch_shapes=[pltpu.VMEM((B * pool_w, H), jnp.float32),
                        pltpu.VMEM((B * pool_w, H), jnp.float32)],
        compiler_params=pltpu.CompilerParams(
            dimension_semantics=("arbitrary",),
            vmem_limit_bytes=32 * 1024 * 1024),
    )(out_f, out_b, pbig, wt, wb, bl)

    return out2d.reshape(B, pool_w, O)


# ---------------------------------------------------------------------------
# Pure-JAX reference (for correctness check)
# ---------------------------------------------------------------------------
def _reference_forward(features, params, hidden, out_size, pool_w=5):
    if features.ndim == 4:
        B, C, Hh, Ww = features.shape
        features = jnp.transpose(features, (0, 2, 3, 1)).reshape(B, Hh * Ww, C)
    features = features.astype(jnp.float32)
    B, T, I = features.shape
    H = hidden

    def lstm(x_seq, w_ih, w_hh, b_ih, b_hh):
        def step(carry, x_t):
            h, c = carry
            gates = x_t @ w_ih.T + b_ih + h @ w_hh.T + b_hh
            i = jax.nn.sigmoid(gates[:, :H])
            f = jax.nn.sigmoid(gates[:, H:2 * H])
            g = jnp.tanh(gates[:, 2 * H:3 * H])
            o = jax.nn.sigmoid(gates[:, 3 * H:])
            c = f * c + i * g
            h = o * jnp.tanh(c)
            return (h, c), h

        h0 = jnp.zeros((B, H), jnp.float32)
        c0 = jnp.zeros((B, H), jnp.float32)
        _, hs = jax.lax.scan(step, (h0, c0), jnp.transpose(x_seq, (1, 0, 2)))
        return jnp.transpose(hs, (1, 0, 2))  # [B, T, H]

    hf = lstm(features, params["w_ih_f"], params["w_hh_f"],
              params["b_ih_f"], params["b_hh_f"])
    hb = lstm(features[:, ::-1], params["w_ih_b"], params["w_hh_b"],
              params["b_ih_b"], params["b_hh_b"])[:, ::-1]
    y = jnp.concatenate([hf, hb], axis=-1) @ params["w_lin"].T + params["b_lin"]
    pooled = []
    for i in range(pool_w):
        s = (i * T) // pool_w
        e = -((-((i + 1) * T)) // pool_w)
        pooled.append(jnp.mean(y[:, s:e, :], axis=1))
    return jnp.stack(pooled, axis=1)


def init_params(key, input_size, hidden, out_size):
    k = 1.0 / (hidden ** 0.5)
    ks = jax.random.split(key, 10)
    u = lambda kk, shape: jax.random.uniform(kk, shape, jnp.float32, -k, k)
    return dict(
        w_ih_f=u(ks[0], (4 * hidden, input_size)),
        w_hh_f=u(ks[1], (4 * hidden, hidden)),
        b_ih_f=u(ks[2], (4 * hidden,)),
        b_hh_f=u(ks[3], (4 * hidden,)),
        w_ih_b=u(ks[4], (4 * hidden, input_size)),
        w_hh_b=u(ks[5], (4 * hidden, hidden)),
        b_ih_b=u(ks[6], (4 * hidden,)),
        b_hh_b=u(ks[7], (4 * hidden,)),
        w_lin=u(ks[8], (out_size, 2 * hidden)),
        b_lin=u(ks[9], (out_size,)),
    )


if __name__ == "__main__":
    key = jax.random.PRNGKey(0)
    kx, kp = jax.random.split(key)

    # features: NCHW conv output; C = projection_input_size
    B, C, Himg, Wimg = 2, 8, 16, 32          # T = 512 timesteps, M = 1024 rows
    hidden, out_size = 32, 64                # projection_hidden / output sizes

    x = jax.random.normal(kx, (B, C, Himg, Wimg), jnp.float32)
    params = init_params(kp, C, hidden, out_size)

    out = seqclr_proj_forward(x, params, hidden=hidden, out_size=out_size)
    out = jax.block_until_ready(out)

    ref = _reference_forward(x, params, hidden, out_size)
    assert out.shape == (B, 5, out_size), out.shape
    max_err = float(jnp.max(jnp.abs(out - ref)))
    # bf16 MXU operands (input + recurrent matmuls, pooling matmul) with f32
    # state/accumulation -> slightly looser tolerance than pure-f32.
    assert max_err < 3e-2, f"max abs error too large: {max_err}"

    print("KERNEL_OK")
</pallas_src>

<mosaic_0001>
module attributes {stable_mosaic.version = 11 : i64} {
  func.func @_bilstm_fused_kernel(%arg0: i32, %arg1: memref<64x8xbf16, #tpu.memory_space<vmem>>, %arg2: memref<64x8xbf16, #tpu.memory_space<vmem>>, %arg3: memref<8x128xbf16, #tpu.memory_space<vmem>>, %arg4: memref<8x128xbf16, #tpu.memory_space<vmem>>, %arg5: memref<1x128xf32, #tpu.memory_space<vmem>>, %arg6: memref<1x128xf32, #tpu.memory_space<vmem>>, %arg7: memref<32x128xbf16, #tpu.memory_space<vmem>>, %arg8: memref<32x128xbf16, #tpu.memory_space<vmem>>, %arg9: memref<64x32xbf16, #tpu.memory_space<vmem>>, %arg10: memref<64x32xbf16, #tpu.memory_space<vmem>>, %arg11: memref<64x128xf32, #tpu.memory_space<vmem>>, %arg12: memref<64x128xf32, #tpu.memory_space<vmem>>, %arg13: memref<2x32xf32, #tpu.memory_space<vmem>>, %arg14: memref<2x32xf32, #tpu.memory_space<vmem>>, %arg15: memref<2x32xf32, #tpu.memory_space<vmem>>, %arg16: memref<2x32xf32, #tpu.memory_space<vmem>>) attributes {dimension_semantics = [#tpu.dimension_semantics<arbitrary>], iteration_bounds = array<i64: 16>, scalar_prefetch = 0 : i64, scratch_operands = 6 : i64, tpu.core_type = #tpu.core_type<tc>, window_params = [{transform_indices = @transform_0, window_bounds = array<i64: 64, 8>}, {transform_indices = @transform_1, window_bounds = array<i64: 64, 8>}, {pipeline_mode = #tpu.pipeline_mode<synchronous>, transform_indices = @transform_2, window_bounds = array<i64: 8, 128>}, {pipeline_mode = #tpu.pipeline_mode<synchronous>, transform_indices = @transform_3, window_bounds = array<i64: 8, 128>}, {pipeline_mode = #tpu.pipeline_mode<synchronous>, transform_indices = @transform_4, window_bounds = array<i64: 1, 128>}, {pipeline_mode = #tpu.pipeline_mode<synchronous>, transform_indices = @transform_5, window_bounds = array<i64: 1, 128>}, {pipeline_mode = #tpu.pipeline_mode<synchronous>, transform_indices = @transform_6, window_bounds = array<i64: 32, 128>}, {pipeline_mode = #tpu.pipeline_mode<synchronous>, transform_indices = @transform_7, window_bounds = array<i64: 32, 128>}, {transform_indices = @transform_8, window_bounds = array<i64: 64, 32>}, {transform_indices = @transform_9, window_bounds = array<i64: 64, 32>}]} {
    %c0_i32 = arith.constant 0 : i32
    %0 = arith.cmpi eq, %arg0, %c0_i32 : i32
    %1 = arith.extui %0 : i1 to i32
    %c0_i32_0 = arith.constant 0 : i32
    %2 = arith.cmpi ne, %1, %c0_i32_0 : i32
    scf.if %2 {
      %cst_518 = arith.constant 0.000000e+00 : f32
      %2011 = vector.broadcast %cst_518 : f32 to vector<2x32xf32>
      %c0_519 = arith.constant 0 : index
      %c0_520 = arith.constant 0 : index
      %2012 = vector.load %arg13[%c0_519, %c0_520] : memref<2x32xf32, #tpu.memory_space<vmem>>, vector<2x32xf32>
      tpu.vector_store %arg13[%c0_519, %c0_520], %2011 {strides = array<i32>} : memref<2x32xf32, #tpu.memory_space<vmem>>, vector<2x32xf32>,
      %cst_521 = arith.constant 0.000000e+00 : f32
      %2013 = vector.broadcast %cst_521 : f32 to vector<2x32xf32>
      %c0_522 = arith.constant 0 : index
      %c0_523 = arith.constant 0 : index
      %2014 = vector.load %arg14[%c0_522, %c0_523] : memref<2x32xf32, #tpu.memory_space<vmem>>, vector<2x32xf32>
      tpu.vector_store %arg14[%c0_522, %c0_523], %2013 {strides = array<i32>} : memref<2x32xf32, #tpu.memory_space<vmem>>, vector<2x32xf32>,
      %cst_524 = arith.constant 0.000000e+00 : f32
      %2015 = vector.broadcast %cst_524 : f32 to vector<2x32xf32>
      %c0_525 = arith.constant 0 : index
      %c0_526 = arith.constant 0 : index
      %2016 = vector.load %arg15[%c0_525, %c0_526] : memref<2x32xf32, #tpu.memory_space<vmem>>, vector<2x32xf32>
      tpu.vector_store %arg15[%c0_525, %c0_526], %2015 {strides = array<i32>} : memref<2x32xf32, #tpu.memory_space<vmem>>, vector<2x32xf32>,
      %cst_527 = arith.constant 0.000000e+00 : f32
      %2017 = vector.broadcast %cst_527 : f32 to vector<2x32xf32>
      %c0_528 = arith.constant 0 : index
      %c0_529 = arith.constant 0 : index
      %2018 = vector.load %arg16[%c0_528, %c0_529] : memref<2x32xf32, #tpu.memory_space<vmem>>, vector<2x32xf32>
      tpu.vector_store %arg16[%c0_528, %c0_529], %2017 {strides = array<i32>} : memref<2x32xf32, #tpu.memory_space<vmem>>, vector<2x32xf32>,
    } else {
    }
    %c0 = arith.constant 0 : index
    %c0_1 = arith.constant 0 : index
    %3 = vector.load %arg1[%c0, %c0_1] : memref<64x8xbf16, #tpu.memory_space<vmem>>, vector<64x8xbf16>
    %c0_2 = arith.constant 0 : index
    %c0_3 = arith.constant 0 : index
    %4 = vector.load %arg3[%c0_2, %c0_3] : memref<8x128xbf16, #tpu.memory_space<vmem>>, vector<8x128xbf16>
    %cst = arith.constant dense<0.000000e+00> : vector<64x128xf32>
    %5 = tpu.matmul %3, %4, %cst {dimension_numbers = #tpu.dot_dimension_numbers<[1], [0], [0], [1], [0, 0, 1, 1], [], []>} : vector<64x8xbf16>, vector<8x128xbf16>, vector<64x128xf32> -> vector<64x128xf32>
    %c0_4 = arith.constant 0 : index
    %c0_5 = arith.constant 0 : index
    %6 = vector.load %arg5[%c0_4, %c0_5] : memref<1x128xf32, #tpu.memory_space<vmem>>, vector<1x128xf32>
    %7 = vector.broadcast %6 : vector<1x128xf32> to vector<64x128xf32>
    %8 = arith.addf %5, %7 : vector<64x128xf32>
    %c0_6 = arith.constant 0 : index
    %c0_7 = arith.constant 0 : index
    %9 = vector.load %arg11[%c0_6, %c0_7] : memref<64x128xf32, #tpu.memory_space<vmem>>, vector<64x128xf32>
    tpu.vector_store %arg11[%c0_6, %c0_7], %8 {strides = array<i32>} : memref<64x128xf32, #tpu.memory_space<vmem>>, vector<64x128xf32>,
    %c0_8 = arith.constant 0 : index
    %c0_9 = arith.constant 0 : index
    %10 = vector.load %arg2[%c0_8, %c0_9] : memref<64x8xbf16, #tpu.memory_space<vmem>>, vector<64x8xbf16>
    %c0_10 = arith.constant 0 : index
    %c0_11 = arith.constant 0 : index
    %11 = vector.load %arg4[%c0_10, %c0_11] : memref<8x128xbf16, #tpu.memory_space<vmem>>, vector<8x128xbf16>
    %cst_12 = arith.constant dense<0.000000e+00> : vector<64x128xf32>
    %12 = tpu.matmul %10, %11, %cst_12 {dimension_numbers = #tpu.dot_dimension_numbers<[1], [0], [0], [1], [0, 0, 1, 1], [], []>} : vector<64x8xbf16>, vector<8x128xbf16>, vector<64x128xf32> -> vector<64x128xf32>
    %c0_13 = arith.constant 0 : index
    %c0_14 = arith.constant 0 : index
    %13 = vector.load %arg6[%c0_13, %c0_14] : memref<1x128xf32, #tpu.memory_space<vmem>>, vector<1x128xf32>
    %14 = vector.broadcast %13 : vector<1x128xf32> to vector<64x128xf32>
    %15 = arith.addf %12, %14 : vector<64x128xf32>
    %c0_15 = arith.constant 0 : index
    %c0_16 = arith.constant 0 : index
    %16 = vector.load %arg12[%c0_15, %c0_16] : memref<64x128xf32, #tpu.memory_space<vmem>>, vector<64x128xf32>
    tpu.vector_store %arg12[%c0_15, %c0_16], %15 {strides = array<i32>} : memref<64x128xf32, #tpu.memory_space<vmem>>, vector<64x128xf32>,
    %c0_17 = arith.constant 0 : index
    %c0_18 = arith.constant 0 : index
    %17 = vector.load %arg7[%c0_17, %c0_18] : memref<32x128xbf16, #tpu.memory_space<vmem>>, vector<32x128xbf16>
    %c0_19 = arith.constant 0 : index
    %c0_20 = arith.constant 0 : index
    %18 = vector.load %arg8[%c0_19, %c0_20] : memref<32x128xbf16, #tpu.memory_space<vmem>>, vector<32x128xbf16>
    %c0_21 = arith.constant 0 : index
    %c0_22 = arith.constant 0 : index
    %19 = vector.load %arg13[%c0_21, %c0_22] : memref<2x32xf32, #tpu.memory_space<vmem>>, vector<2x32xf32>
    %c0_23 = arith.constant 0 : index
    %c0_24 = arith.constant 0 : index
    %20 = vector.load %arg14[%c0_23, %c0_24] : memref<2x32xf32, #tpu.memory_space<vmem>>, vector<2x32xf32>
    %c0_25 = arith.constant 0 : index
    %c0_26 = arith.constant 0 : index
    %21 = vector.load %arg15[%c0_25, %c0_26] : memref<2x32xf32, #tpu.memory_space<vmem>>, vector<2x32xf32>
    %c0_27 = arith.constant 0 : index
    %c0_28 = arith.constant 0 : index
    %22 = vector.load %arg16[%c0_27, %c0_28] : memref<2x32xf32, #tpu.memory_space<vmem>>, vector<2x32xf32>
    %c0_29 = arith.constant 0 : index
    %c0_30 = arith.constant 0 : index
    %23 = vector.load %arg11[%c0_29, %c0_30] : memref<64x128xf32, #tpu.memory_space<vmem>>, vector<2x128xf32>
    %24 = arith.truncf %19 : vector<2x32xf32> to vector<2x32xbf16>
    %cst_31 = arith.constant dense<0.000000e+00> : vector<2x128xf32>
    %25 = tpu.matmul %24, %17, %cst_31 {dimension_numbers = #tpu.dot_dimension_numbers<[1], [0], [0], [1], [0, 0, 1, 1], [], []>} : vector<2x32xbf16>, vector<32x128xbf16>, vector<2x128xf32> -> vector<2x128xf32>
    %26 = arith.addf %23, %25 : vector<2x128xf32>
    %c62 = arith.constant 62 : index
    %c0_32 = arith.constant 0 : index
    %27 = vector.load %arg12[%c62, %c0_32] : memref<64x128xf32, #tpu.memory_space<vmem>>, vector<2x128xf32>
    %28 = arith.truncf %21 : vector<2x32xf32> to vector<2x32xbf16>
    %cst_33 = arith.constant dense<0.000000e+00> : vector<2x128xf32>
    %29 = tpu.matmul %28, %18, %cst_33 {dimension_numbers = #tpu.dot_dimension_numbers<[1], [0], [0], [1], [0, 0, 1, 1], [], []>} : vector<2x32xbf16>, vector<32x128xbf16>, vector<2x128xf32> -> vector<2x128xf32>
    %30 = arith.addf %27, %29 : vector<2x128xf32>
    %31 = vector.extract_strided_slice %26 {offsets = [0, 0], sizes = [2, 32], strides = [1, 1]} : vector<2x128xf32> to vector<2x32xf32>
    %32 = arith.negf %31 : vector<2x32xf32>
    %33 = math.exp %32 : vector<2x32xf32>
    %cst_34 = arith.constant 1.000000e+00 : f32
    %34 = vector.broadcast %cst_34 : f32 to vector<2x32xf32>
    %35 = arith.addf %34, %33 : vector<2x32xf32>
    %36 = arith.divf %34, %35 : vector<2x32xf32>
    %37 = vector.extract_strided_slice %26 {offsets = [0, 32], sizes = [2, 32], strides = [1, 1]} : vector<2x128xf32> to vector<2x32xf32>
    %38 = arith.negf %37 : vector<2x32xf32>
    %39 = math.exp %38 : vector<2x32xf32>
    %cst_35 = arith.constant 1.000000e+00 : f32
    %40 = vector.broadcast %cst_35 : f32 to vector<2x32xf32>
    %41 = arith.addf %40, %39 : vector<2x32xf32>
    %42 = arith.divf %40, %41 : vector<2x32xf32>
    %43 = vector.extract_strided_slice %26 {offsets = [0, 64], sizes = [2, 32], strides = [1, 1]} : vector<2x128xf32> to vector<2x32xf32>
    %44 = math.tanh %43 : vector<2x32xf32>
    %45 = vector.extract_strided_slice %26 {offsets = [0, 96], sizes = [2, 32], strides = [1, 1]} : vector<2x128xf32> to vector<2x32xf32>
    %46 = arith.negf %45 : vector<2x32xf32>
    %47 = math.exp %46 : vector<2x32xf32>
    %cst_36 = arith.constant 1.000000e+00 : f32
    %48 = vector.broadcast %cst_36 : f32 to vector<2x32xf32>
    %49 = arith.addf %48, %47 : vector<2x32xf32>
    %50 = arith.divf %48, %49 : vector<2x32xf32>
    %51 = arith.mulf %42, %20 : vector<2x32xf32>
    %52 = arith.mulf %36, %44 : vector<2x32xf32>
    %53 = arith.addf %51, %52 : vector<2x32xf32>
    %54 = math.tanh %53 : vector<2x32xf32>
    %55 = arith.mulf %50, %54 : vector<2x32xf32>
    %56 = vector.extract_strided_slice %30 {offsets = [0, 0], sizes = [2, 32], strides = [1, 1]} : vector<2x128xf32> to vector<2x32xf32>
    %57 = arith.negf %56 : vector<2x32xf32>
    %58 = math.exp %57 : vector<2x32xf32>
    %cst_37 = arith.constant 1.000000e+00 : f32
    %59 = vector.broadcast %cst_37 : f32 to vector<2x32xf32>
    %60 = arith.addf %59, %58 : vector<2x32xf32>
    %61 = arith.divf %59, %60 : vector<2x32xf32>
    %62 = vector.extract_strided_slice %30 {offsets = [0, 32], sizes = [2, 32], strides = [1, 1]} : vector<2x128xf32> to vector<2x32xf32>
    %63 = arith.negf %62 : vector<2x32xf32>
    %64 = math.exp %63 : vector<2x32xf32>
    %cst_38 = arith.constant 1.000000e+00 : f32
    %65 = vector.broadcast %cst_38 : f32 to vector<2x32xf32>
    %66 = arith.addf %65, %64 : vector<2x32xf32>
    %67 = arith.divf %65, %66 : vector<2x32xf32>
    %68 = vector.extract_strided_slice %30 {offsets = [0, 64], sizes = [2, 32], strides = [1, 1]} : vector<2x128xf32> to vector<2x32xf32>
    %69 = math.tanh %68 : vector<2x32xf32>
    %70 = vector.extract_strided_slice %30 {offsets = [0, 96], sizes = [2, 32], strides = [1, 1]} : vector<2x128xf32> to vector<2x32xf32>
    %71 = arith.negf %70 : vector<2x32xf32>
    %72 = math.exp %71 : vector<2x32xf32>
    %cst_39 = arith.constant 1.000000e+00 : f32
    %73 = vector.broadcast %cst_39 : f32 to vector<2x32xf32>
    %74 = arith.addf %73, %72 : vector<2x32xf32>
    %75 = arith.divf %73, %74 : vector<2x32xf32>
    %76 = arith.mulf %67, %22 : vector<2x32xf32>
    %77 = arith.mulf %61, %69 : vector<2x32xf32>
    %78 = arith.addf %76, %77 : vector<2x32xf32>
    %79 = math.tanh %78 : vector<2x32xf32>
    %80 = arith.mulf %75, %79 : vector<2x32xf32>
    %81 = arith.truncf %55 : vector<2x32xf32> to vector<2x32xbf16>
    %c0_40 = arith.constant 0 : index
    %c0_41 = arith.constant 0 : index
    %82 = vector.load %arg9[%c0_40, %c0_41] : memref<64x32xbf16, #tpu.memory_space<vmem>>, vector<2x32xbf16>
    tpu.vector_store %arg9[%c0_40, %c0_41], %81 {strides = array<i32>} : memref<64x32xbf16, #tpu.memory_space<vmem>>, vector<2x32xbf16>,
    %83 = arith.truncf %80 : vector<2x32xf32> to vector<2x32xbf16>
    %c62_42 = arith.constant 62 : index
    %c0_43 = arith.constant 0 : index
    %84 = vector.load %arg10[%c62_42, %c0_43] : memref<64x32xbf16, #tpu.memory_space<vmem>>, vector<2x32xbf16>
    tpu.vector_store %arg10[%c62_42, %c0_43], %83 {strides = array<i32>} : memref<64x32xbf16, #tpu.memory_space<vmem>>, vector<2x32xbf16>,
    %c2 = arith.constant 2 : index
    %c0_44 = arith.constant 0 : index
    %85 = vector.load %arg11[%c2, %c0_44] : memref<64x128xf32, #tpu.memory_space<vmem>>, vector<2x128xf32>
    %86 = arith.truncf %55 : vector<2x32xf32> to vector<2x32xbf16>
    %cst_45 = arith.constant dense<0.000000e+00> : vector<2x128xf32>
    %87 = tpu.matmul %86, %17, %cst_45 {dimension_numbers = #tpu.dot_dimension_numbers<[1], [0], [0], [1], [0, 0, 1, 1], [], []>} : vector<2x32xbf16>, vector<32x128xbf16>, vector<2x128xf32> -> vector<2x128xf32>
    %88 = arith.addf %85, %87 : vector<2x128xf32>
    %c60 = arith.constant 60 : index
    %c0_46 = arith.constant 0 : index
    %89 = vector.load %arg12[%c60, %c0_46] : memref<64x128xf32, #tpu.memory_space<vmem>>, vector<2x128xf32>
    %90 = arith.truncf %80 : vector<2x32xf32> to vector<2x32xbf16>
    %cst_47 = arith.constant dense<0.000000e+00> : vector<2x128xf32>
    %91 = tpu.matmul %90, %18, %cst_47 {dimension_numbers = #tpu.dot_dimension_numbers<[1], [0], [0], [1], [0, 0, 1, 1], [], []>} : vector<2x32xbf16>, vector<32x128xbf16>, vector<2x128xf32> -> vector<2x128xf32>
    %92 = arith.addf %89, %91 : vector<2x128xf32>
    %93 = vector.extract_strided_slice %88 {offsets = [0, 0], sizes = [2, 32], strides = [1, 1]} : vector<2x128xf32> to vector<2x32xf32>
    %94 = arith.negf %93 : vector<2x32xf32>
    %95 = math.exp %94 : vector<2x32xf32>
    %cst_48 = arith.constant 1.000000e+00 : f32
    %96 = vector.broadcast %cst_48 : f32 to vector<2x32xf32>
    %97 = arith.addf %96, %95 : vector<2x32xf32>
    %98 = arith.divf %96, %97 : vector<2x32xf32>
    %99 = vector.extract_strided_slice %88 {offsets = [0, 32], sizes = [2, 32], strides = [1, 1]} : vector<2x128xf32> to vector<2x32xf32>
    %100 = arith.negf %99 : vector<2x32xf32>
    %101 = math.exp %100 : vector<2x32xf32>
    %cst_49 = arith.constant 1.000000e+00 : f32
    %102 = vector.broadcast %cst_49 : f32 to vector<2x32xf32>
    %103 = arith.addf %102, %101 : vector<2x32xf32>
    %104 = arith.divf %102, %103 : vector<2x32xf32>
    %105 = vector.extract_strided_slice %88 {offsets = [0, 64], sizes = [2, 32], strides = [1, 1]} : vector<2x128xf32> to vector<2x32xf32>
    %106 = math.tanh %105 : vector<2x32xf32>
    %107 = vector.extract_strided_slice %88 {offsets = [0, 96], sizes = [2, 32], strides = [1, 1]} : vector<2x128xf32> to vector<2x32xf32>
    %108 = arith.negf %107 : vector<2x32xf32>
    %109 = math.exp %108 : vector<2x32xf32>
    %cst_50 = arith.constant 1.000000e+00 : f32
    %110 = vector.broadcast %cst_50 : f32 to vector<2x32xf32>
    %111 = arith.addf %110, %109 : vector<2x32xf32>
    %112 = arith.divf %110, %111 : vector<2x32xf32>
    %113 = arith.mulf %104, %53 : vector<2x32xf32>
    %114 = arith.mulf %98, %106 : vector<2x32xf32>
    %115 = arith.addf %113, %114 : vector<2x32xf32>
    %116 = math.tanh %115 : vector<2x32xf32>
    %117 = arith.mulf %112, %116 : vector<2x32xf32>
    %118 = vector.extract_strided_slice %92 {offsets = [0, 0], sizes = [2, 32], strides = [1, 1]} : vector<2x128xf32> to vector<2x32xf32>
    %119 = arith.negf %118 : vector<2x32xf32>
    %120 = math.exp %119 : vector<2x32xf32>
    %cst_51 = arith.constant 1.000000e+00 : f32
    %121 = vector.broadcast %cst_51 : f32 to vector<2x32xf32>
    %122 = arith.addf %121, %120 : vector<2x32xf32>
    %123 = arith.divf %121, %122 : vector<2x32xf32>
    %124 = vector.extract_strided_slice %92 {offsets = [0, 32], sizes = [2, 32], strides = [1, 1]} : vector<2x128xf32> to vector<2x32xf32>
    %125 = arith.negf %124 : vector<2x32xf32>
    %126 = math.exp %125 : vector<2x32xf32>
    %cst_52 = arith.constant 1.000000e+00 : f32
    %127 = vector.broadcast %cst_52 : f32 to vector<2x32xf32>
    %128 = arith.addf %127, %126 : vector<2x32xf32>
    %129 = arith.divf %127, %128 : vector<2x32xf32>
    %130 = vector.extract_strided_slice %92 {offsets = [0, 64], sizes = [2, 32], strides = [1, 1]} : vector<2x128xf32> to vector<2x32xf32>
    %131 = math.tanh %130 : vector<2x32xf32>
    %132 = vector.extract_strided_slice %92 {offsets = [0, 96], sizes = [2, 32], strides = [1, 1]} : vector<2x128xf32> to vector<2x32xf32>
    %133 = arith.negf %132 : vector<2x32xf32>
    %134 = math.exp %133 : vector<2x32xf32>
    %cst_53 = arith.constant 1.000000e+00 : f32
    %135 = vector.broadcast %cst_53 : f32 to vector<2x32xf32>
    %136 = arith.addf %135, %134 : vector<2x32xf32>
    %137 = arith.divf %135, %136 : vector<2x32xf32>
    %138 = arith.mulf %129, %78 : vector<2x32xf32>
    %139 = arith.mulf %123, %131 : vector<2x32xf32>
    %140 = arith.addf %138, %139 : vector<2x32xf32>
    %141 = math.tanh %140 : vector<2x32xf32>
    %142 = arith.mulf %137, %141 : vector<2x32xf32>
    %143 = arith.truncf %117 : vector<2x32xf32> to vector<2x32xbf16>
    %c2_54 = arith.constant 2 : index
    %c0_55 = arith.constant 0 : index
    %144 = vector.load %arg9[%c2_54, %c0_55] : memref<64x32xbf16, #tpu.memory_space<vmem>>, vector<2x32xbf16>
    tpu.vector_store %arg9[%c2_54, %c0_55], %143 {strides = array<i32>} : memref<64x32xbf16, #tpu.memory_space<vmem>>, vector<2x32xbf16>,
    %145 = arith.truncf %142 : vector<2x32xf32> to vector<2x32xbf16>
    %c60_56 = arith.constant 60 : index
    %c0_57 = arith.constant 0 : index
    %146 = vector.load %arg10[%c60_56, %c0_57] : memref<64x32xbf16, #tpu.memory_space<vmem>>, vector<2x32xbf16>
    tpu.vector_store %arg10[%c60_56, %c0_57], %145 {strides = array<i32>} : memref<64x32xbf16, #tpu.memory_space<vmem>>, vector<2x32xbf16>,
    %c4 = arith.constant 4 : index
    %c0_58 = arith.constant 0 : index
    %147 = vector.load %arg11[%c4, %c0_58] : memref<64x128xf32, #tpu.memory_space<vmem>>, vector<2x128xf32>
    %148 = arith.truncf %117 : vector<2x32xf32> to vector<2x32xbf16>
    %cst_59 = arith.constant dense<0.000000e+00> : vector<2x128xf32>
    %149 = tpu.matmul %148, %17, %cst_59 {dimension_numbers = #tpu.dot_dimension_numbers<[1], [0], [0], [1], [0, 0, 1, 1], [], []>} : vector<2x32xbf16>, vector<32x128xbf16>, vector<2x128xf32> -> vector<2x128xf32>
    %150 = arith.addf %147, %149 : vector<2x128xf32>
    %c58 = arith.constant 58 : index
    %c0_60 = arith.constant 0 : index
    %151 = vector.load %arg12[%c58, %c0_60] : memref<64x128xf32, #tpu.memory_space<vmem>>, vector<2x128xf32>
    %152 = arith.truncf %142 : vector<2x32xf32> to vector<2x32xbf16>
    %cst_61 = arith.constant dense<0.000000e+00> : vector<2x128xf32>
    %153 = tpu.matmul %152, %18, %cst_61 {dimension_numbers = #tpu.dot_dimension_numbers<[1], [0], [0], [1], [0, 0, 1, 1], [], []>} : vector<2x32xbf16>, vector<32x128xbf16>, vector<2x128xf32> -> vector<2x128xf32>
    %154 = arith.addf %151, %153 : vector<2x128xf32>
    %155 = vector.extract_strided_slice %150 {offsets = [0, 0], sizes = [2, 32], strides = [1, 1]} : vector<2x128xf32> to vector<2x32xf32>
    %156 = arith.negf %155 : vector<2x32xf32>
    %157 = math.exp %156 : vector<2x32xf32>
    %cst_62 = arith.constant 1.000000e+00 : f32
    %158 = vector.broadcast %cst_62 : f32 to vector<2x32xf32>
    %159 = arith.addf %158, %157 : vector<2x32xf32>
    %160 = arith.divf %158, %159 : vector<2x32xf32>
    %161 = vector.extract_strided_slice %150 {offsets = [0, 32], sizes = [2, 32], strides = [1, 1]} : vector<2x128xf32> to vector<2x32xf32>
    %162 = arith.negf %161 : vector<2x32xf32>
    %163 = math.exp %162 : vector<2x32xf32>
    %cst_63 = arith.constant 1.000000e+00 : f32
    %164 = vector.broadcast %cst_63 : f32 to vector<2x32xf32>
    %165 = arith.addf %164, %163 : vector<2x32xf32>
    %166 = arith.divf %164, %165 : vector<2x32xf32>
    %167 = vector.extract_strided_slice %150 {offsets = [0, 64], sizes = [2, 32], strides = [1, 1]} : vector<2x128xf32> to vector<2x32xf32>
    %168 = math.tanh %167 : vector<2x32xf32>
    %169 = vector.extract_strided_slice %150 {offsets = [0, 96], sizes = [2, 32], strides = [1, 1]} : vector<2x128xf32> to vector<2x32xf32>
    %170 = arith.negf %169 : vector<2x32xf32>
    %171 = math.exp %170 : vector<2x32xf32>
    %cst_64 = arith.constant 1.000000e+00 : f32
    %172 = vector.broadcast %cst_64 : f32 to vector<2x32xf32>
    %173 = arith.addf %172, %171 : vector<2x32xf32>
    %174 = arith.divf %172, %173 : vector<2x32xf32>
    %175 = arith.mulf %166, %115 : vector<2x32xf32>
    %176 = arith.mulf %160, %168 : vector<2x32xf32>
    %177 = arith.addf %175, %176 : vector<2x32xf32>
    %178 = math.tanh %177 : vector<2x32xf32>
    %179 = arith.mulf %174, %178 : vector<2x32xf32>
    %180 = vector.extract_strided_slice %154 {offsets = [0, 0], sizes = [2, 32], strides = [1, 1]} : vector<2x128xf32> to vector<2x32xf32>
    %181 = arith.negf %180 : vector<2x32xf32>
    %182 = math.exp %181 : vector<2x32xf32>
    %cst_65 = arith.constant 1.000000e+00 : f32
    %183 = vector.broadcast %cst_65 : f32 to vector<2x32xf32>
    %184 = arith.addf %183, %182 : vector<2x32xf32>
    %185 = arith.divf %183, %184 : vector<2x32xf32>
    %186 = vector.extract_strided_slice %154 {offsets = [0, 32], sizes = [2, 32], strides = [1, 1]} : vector<2x128xf32> to vector<2x32xf32>
    %187 = arith.negf %186 : vector<2x32xf32>
    %188 = math.exp %187 : vector<2x32xf32>
    %cst_66 = arith.constant 1.000000e+00 : f32
    %189 = vector.broadcast %cst_66 : f32 to vector<2x32xf32>
    %190 = arith.addf %189, %188 : vector<2x32xf32>
    %191 = arith.divf %189, %190 : vector<2x32xf32>
    %192 = vector.extract_strided_slice %154 {offsets = [0, 64], sizes = [2, 32], strides = [1, 1]} : vector<2x128xf32> to vector<2x32xf32>
    %193 = math.tanh %192 : vector<2x32xf32>
    %194 = vector.extract_strided_slice %154 {offsets = [0, 96], sizes = [2, 32], strides = [1, 1]} : vector<2x128xf32> to vector<2x32xf32>
    %195 = arith.negf %194 : vector<2x32xf32>
    %196 = math.exp %195 : vector<2x32xf32>
    %cst_67 = arith.constant 1.000000e+00 : f32
    %197 = vector.broadcast %cst_67 : f32 to vector<2x32xf32>
    %198 = arith.addf %197, %196 : vector<2x32xf32>
    %199 = arith.divf %197, %198 : vector<2x32xf32>
    %200 = arith.mulf %191, %140 : vector<2x32xf32>
    %201 = arith.mulf %185, %193 : vector<2x32xf32>
    %202 = arith.addf %200, %201 : vector<2x32xf32>
    %203 = math.tanh %202 : vector<2x32xf32>
    %204 = arith.mulf %199, %203 : vector<2x32xf32>
    %205 = arith.truncf %179 : vector<2x32xf32> to vector<2x32xbf16>
    %c4_68 = arith.constant 4 : index
    %c0_69 = arith.constant 0 : index
    %206 = vector.load %arg9[%c4_68, %c0_69] : memref<64x32xbf16, #tpu.memory_space<vmem>>, vector<2x32xbf16>
    tpu.vector_store %arg9[%c4_68, %c0_69], %205 {strides = array<i32>} : memref<64x32xbf16, #tpu.memory_space<vmem>>, vector<2x32xbf16>,
    %207 = arith.truncf %204 : vector<2x32xf32> to vector<2x32xbf16>
    %c58_70 = arith.constant 58 : index
    %c0_71 = arith.constant 0 : index
    %208 = vector.load %arg10[%c58_70, %c0_71] : memref<64x32xbf16, #tpu.memory_space<vmem>>, vector<2x32xbf16>
    tpu.vector_store %arg10[%c58_70, %c0_71], %207 {strides = array<i32>} : memref<64x32xbf16, #tpu.memory_space<vmem>>, vector<2x32xbf16>,
    %c6 = arith.constant 6 : index
    %c0_72 = arith.constant 0 : index
    %209 = vector.load %arg11[%c6, %c0_72] : memref<64x128xf32, #tpu.memory_space<vmem>>, vector<2x128xf32>
    %210 = arith.truncf %179 : vector<2x32xf32> to vector<2x32xbf16>
    %cst_73 = arith.constant dense<0.000000e+00> : vector<2x128xf32>
    %211 = tpu.matmul %210, %17, %cst_73 {dimension_numbers = #tpu.dot_dimension_numbers<[1], [0], [0], [1], [0, 0, 1, 1], [], []>} : vector<2x32xbf16>, vector<32x128xbf16>, vector<2x128xf32> -> vector<2x128xf32>
    %212 = arith.addf %209, %211 : vector<2x128xf32>
    %c56 = arith.constant 56 : index
    %c0_74 = arith.constant 0 : index
    %213 = vector.load %arg12[%c56, %c0_74] : memref<64x128xf32, #tpu.memory_space<vmem>>, vector<2x128xf32>
    %214 = arith.truncf %204 : vector<2x32xf32> to vector<2x32xbf16>
    %cst_75 = arith.constant dense<0.000000e+00> : vector<2x128xf32>
    %215 = tpu.matmul %214, %18, %cst_75 {dimension_numbers = #tpu.dot_dimension_numbers<[1], [0], [0], [1], [0, 0, 1, 1], [], []>} : vector<2x32xbf16>, vector<32x128xbf16>, vector<2x128xf32> -> vector<2x128xf32>
    %216 = arith.addf %213, %215 : vector<2x128xf32>
    %217 = vector.extract_strided_slice %212 {offsets = [0, 0], sizes = [2, 32], strides = [1, 1]} : vector<2x128xf32> to vector<2x32xf32>
    %218 = arith.negf %217 : vector<2x32xf32>
    %219 = math.exp %218 : vector<2x32xf32>
    %cst_76 = arith.constant 1.000000e+00 : f32
    %220 = vector.broadcast %cst_76 : f32 to vector<2x32xf32>
    %221 = arith.addf %220, %219 : vector<2x32xf32>
    %222 = arith.divf %220, %221 : vector<2x32xf32>
    %223 = vector.extract_strided_slice %212 {offsets = [0, 32], sizes = [2, 32], strides = [1, 1]} : vector<2x128xf32> to vector<2x32xf32>
    %224 = arith.negf %223 : vector<2x32xf32>
    %225 = math.exp %224 : vector<2x32xf32>
    %cst_77 = arith.constant 1.000000e+00 : f32
    %226 = vector.broadcast %cst_77 : f32 to vector<2x32xf32>
    %227 = arith.addf %226, %225 : vector<2x32xf32>
    %228 = arith.divf %226, %227 : vector<2x32xf32>
    %229 = vector.extract_strided_slice %212 {offsets = [0, 64], sizes = [2, 32], strides = [1, 1]} : vector<2x128xf32> to vector<2x32xf32>
    %230 = math.tanh %229 : vector<2x32xf32>
    %231 = vector.extract_strided_slice %212 {offsets = [0, 96], sizes = [2, 32], strides = [1, 1]} : vector<2x128xf32> to vector<2x32xf32>
    %232 = arith.negf %231 : vector<2x32xf32>
    %233 = math.exp %232 : vector<2x32xf32>
    %cst_78 = arith.constant 1.000000e+00 : f32
    %234 = vector.broadcast %cst_78 : f32 to vector<2x32xf32>
    %235 = arith.addf %234, %233 : vector<2x32xf32>
    %236 = arith.divf %234, %235 : vector<2x32xf32>
    %237 = arith.mulf %228, %177 : vector<2x32xf32>
    %238 = arith.mulf %222, %230 : vector<2x32xf32>
    %239 = arith.addf %237, %238 : vector<2x32xf32>
    %240 = math.tanh %239 : vector<2x32xf32>
    %241 = arith.mulf %236, %240 : vector<2x32xf32>
    %242 = vector.extract_strided_slice %216 {offsets = [0, 0], sizes = [2, 32], strides = [1, 1]} : vector<2x128xf32> to vector<2x32xf32>
    %243 = arith.negf %242 : vector<2x32xf32>
    %244 = math.exp %243 : vector<2x32xf32>
    %cst_79 = arith.constant 1.000000e+00 : f32
    %245 = vector.broadcast %cst_79 : f32 to vector<2x32xf32>
    %246 = arith.addf %245, %244 : vector<2x32xf32>
    %247 = arith.divf %245, %246 : vector<2x32xf32>
    %248 = vector.extract_strided_slice %216 {offsets = [0, 32], sizes = [2, 32], strides = [1, 1]} : vector<2x128xf32> to vector<2x32xf32>
    %249 = arith.negf %248 : vector<2x32xf32>
    %250 = math.exp %249 : vector<2x32xf32>
    %cst_80 = arith.constant 1.000000e+00 : f32
    %251 = vector.broadcast %cst_80 : f32 to vector<2x32xf32>
    %252 = arith.addf %251, %250 : vector<2x32xf32>
    %253 = arith.divf %251, %252 : vector<2x32xf32>
    %254 = vector.extract_strided_slice %216 {offsets = [0, 64], sizes = [2, 32], strides = [1, 1]} : vector<2x128xf32> to vector<2x32xf32>
    %255 = math.tanh %254 : vector<2x32xf32>
    %256 = vector.extract_strided_slice %216 {offsets = [0, 96], sizes = [2, 32], strides = [1, 1]} : vector<2x128xf32> to vector<2x32xf32>
    %257 = arith.negf %256 : vector<2x32xf32>
    %258 = math.exp %257 : vector<2x32xf32>
    %cst_81 = arith.constant 1.000000e+00 : f32
    %259 = vector.broadcast %cst_81 : f32 to vector<2x32xf32>
    %260 = arith.addf %259, %258 : vector<2x32xf32>
    %261 = arith.divf %259, %260 : vector<2x32xf32>
    %262 = arith.mulf %253, %202 : vector<2x32xf32>
    %263 = arith.mulf %247, %255 : vector<2x32xf32>
    %264 = arith.addf %262, %263 : vector<2x32xf32>
    %265 = math.tanh %264 : vector<2x32xf32>
    %266 = arith.mulf %261, %265 : vector<2x32xf32>
    %267 = arith.truncf %241 : vector<2x32xf32> to vector<2x32xbf16>
    %c6_82 = arith.constant 6 : index
    %c0_83 = arith.constant 0 : index
    %268 = vector.load %arg9[%c6_82, %c0_83] : memref<64x32xbf16, #tpu.memory_space<vmem>>, vector<2x32xbf16>
    tpu.vector_store %arg9[%c6_82, %c0_83], %267 {strides = array<i32>} : memref<64x32xbf16, #tpu.memory_space<vmem>>, vector<2x32xbf16>,
    %269 = arith.truncf %266 : vector<2x32xf32> to vector<2x32xbf16>
    %c56_84 = arith.constant 56 : index
    %c0_85 = arith.constant 0 : index
    %270 = vector.load %arg10[%c56_84, %c0_85] : memref<64x32xbf16, #tpu.memory_space<vmem>>, vector<2x32xbf16>
    tpu.vector_store %arg10[%c56_84, %c0_85], %269 {strides = array<i32>} : memref<64x32xbf16, #tpu.memory_space<vmem>>, vector<2x32xbf16>,
    %c8 = arith.constant 8 : index
    %c0_86 = arith.constant 0 : index
    %271 = vector.load %arg11[%c8, %c0_86] : memref<64x128xf32, #tpu.memory_space<vmem>>, vector<2x128xf32>
    %272 = arith.truncf %241 : vector<2x32xf32> to vector<2x32xbf16>
    %cst_87 = arith.constant dense<0.000000e+00> : vector<2x128xf32>
    %273 = tpu.matmul %272, %17, %cst_87 {dimension_numbers = #tpu.dot_dimension_numbers<[1], [0], [0], [1], [0, 0, 1, 1], [], []>} : vector<2x32xbf16>, vector<32x128xbf16>, vector<2x128xf32> -> vector<2x128xf32>
    %274 = arith.addf %271, %273 : vector<2x128xf32>
    %c54 = arith.constant 54 : index
    %c0_88 = arith.constant 0 : index
    %275 = vector.load %arg12[%c54, %c0_88] : memref<64x128xf32, #tpu.memory_space<vmem>>, vector<2x128xf32>
    %276 = arith.truncf %266 : vector<2x32xf32> to vector<2x32xbf16>
    %cst_89 = arith.constant dense<0.000000e+00> : vector<2x128xf32>
    %277 = tpu.matmul %276, %18, %cst_89 {dimension_numbers = #tpu.dot_dimension_numbers<[1], [0], [0], [1], [0, 0, 1, 1], [], []>} : vector<2x32xbf16>, vector<32x128xbf16>, vector<2x128xf32> -> vector<2x128xf32>
    %278 = arith.addf %275, %277 : vector<2x128xf32>
    %279 = vector.extract_strided_slice %274 {offsets = [0, 0], sizes = [2, 32], strides = [1, 1]} : vector<2x128xf32> to vector<2x32xf32>
    %280 = arith.negf %279 : vector<2x32xf32>
    %281 = math.exp %280 : vector<2x32xf32>
    %cst_90 = arith.constant 1.000000e+00 : f32
    %282 = vector.broadcast %cst_90 : f32 to vector<2x32xf32>
    %283 = arith.addf %282, %281 : vector<2x32xf32>
    %284 = arith.divf %282, %283 : vector<2x32xf32>
    %285 = vector.extract_strided_slice %274 {offsets = [0, 32], sizes = [2, 32], strides = [1, 1]} : vector<2x128xf32> to vector<2x32xf32>
    %286 = arith.negf %285 : vector<2x32xf32>
    %287 = math.exp %286 : vector<2x32xf32>
    %cst_91 = arith.constant 1.000000e+00 : f32
    %288 = vector.broadcast %cst_91 : f32 to vector<2x32xf32>
    %289 = arith.addf %288, %287 : vector<2x32xf32>
    %290 = arith.divf %288, %289 : vector<2x32xf32>
    %291 = vector.extract_strided_slice %274 {offsets = [0, 64], sizes = [2, 32], strides = [1, 1]} : vector<2x128xf32> to vector<2x32xf32>
    %292 = math.tanh %291 : vector<2x32xf32>
    %293 = vector.extract_strided_slice %274 {offsets = [0, 96], sizes = [2, 32], strides = [1, 1]} : vector<2x128xf32> to vector<2x32xf32>
    %294 = arith.negf %293 : vector<2x32xf32>
    %295 = math.exp %294 : vector<2x32xf32>
    %cst_92 = arith.constant 1.000000e+00 : f32
    %296 = vector.broadcast %cst_92 : f32 to vector<2x32xf32>
    %297 = arith.addf %296, %295 : vector<2x32xf32>
    %298 = arith.divf %296, %297 : vector<2x32xf32>
    %299 = arith.mulf %290, %239 : vector<2x32xf32>
    %300 = arith.mulf %284, %292 : vector<2x32xf32>
    %301 = arith.addf %299, %300 : vector<2x32xf32>
    %302 = math.tanh %301 : vector<2x32xf32>
    %303 = arith.mulf %298, %302 : vector<2x32xf32>
    %304 = vector.extract_strided_slice %278 {offsets = [0, 0], sizes = [2, 32], strides = [1, 1]} : vector<2x128xf32> to vector<2x32xf32>
    %305 = arith.negf %304 : vector<2x32xf32>
    %306 = math.exp %305 : vector<2x32xf32>
    %cst_93 = arith.constant 1.000000e+00 : f32
    %307 = vector.broadcast %cst_93 : f32 to vector<2x32xf32>
    %308 = arith.addf %307, %306 : vector<2x32xf32>
    %309 = arith.divf %307, %308 : vector<2x32xf32>
    %310 = vector.extract_strided_slice %278 {offsets = [0, 32], sizes = [2, 32], strides = [1, 1]} : vector<2x128xf32> to vector<2x32xf32>
    %311 = arith.negf %310 : vector<2x32xf32>
    %312 = math.exp %311 : vector<2x32xf32>
    %cst_94 = arith.constant 1.000000e+00 : f32
    %313 = vector.broadcast %cst_94 : f32 to vector<2x32xf32>
    %314 = arith.addf %313, %312 : vector<2x32xf32>
    %315 = arith.divf %313, %314 : vector<2x32xf32>
    %316 = vector.extract_strided_slice %278 {offsets = [0, 64], sizes = [2, 32], strides = [1, 1]} : vector<2x128xf32> to vector<2x32xf32>
    %317 = math.tanh %316 : vector<2x32xf32>
    %318 = vector.extract_strided_slice %278 {offsets = [0, 96], sizes = [2, 32], strides = [1, 1]} : vector<2x128xf32> to vector<2x32xf32>
    %319 = arith.negf %318 : vector<2x32xf32>
    %320 = math.exp %319 : vector<2x32xf32>
    %cst_95 = arith.constant 1.000000e+00 : f32
    %321 = vector.broadcast %cst_95 : f32 to vector<2x32xf32>
    %322 = arith.addf %321, %320 : vector<2x32xf32>
    %323 = arith.divf %321, %322 : vector<2x32xf32>
    %324 = arith.mulf %315, %264 : vector<2x32xf32>
    %325 = arith.mulf %309, %317 : vector<2x32xf32>
    %326 = arith.addf %324, %325 : vector<2x32xf32>
    %327 = math.tanh %326 : vector<2x32xf32>
    %328 = arith.mulf %323, %327 : vector<2x32xf32>
    %329 = arith.truncf %303 : vector<2x32xf32> to vector<2x32xbf16>
    %c8_96 = arith.constant 8 : index
    %c0_97 = arith.constant 0 : index
    %330 = vector.load %arg9[%c8_96, %c0_97] : memref<64x32xbf16, #tpu.memory_space<vmem>>, vector<2x32xbf16>
    tpu.vector_store %arg9[%c8_96, %c0_97], %329 {strides = array<i32>} : memref<64x32xbf16, #tpu.memory_space<vmem>>, vector<2x32xbf16>,
    %331 = arith.truncf %328 : vector<2x32xf32> to vector<2x32xbf16>
    %c54_98 = arith.constant 54 : index
    %c0_99 = arith.constant 0 : index
    %332 = vector.load %arg10[%c54_98, %c0_99] : memref<64x32xbf16, #tpu.memory_space<vmem>>, vector<2x32xbf16>
    tpu.vector_store %arg10[%c54_98, %c0_99], %331 {strides = array<i32>} : memref<64x32xbf16, #tpu.memory_space<vmem>>, vector<2x32xbf16>,
    %c10 = arith.constant 10 : index
    %c0_100 = arith.constant 0 : index
    %333 = vector.load %arg11[%c10, %c0_100] : memref<64x128xf32, #tpu.memory_space<vmem>>, vector<2x128xf32>
    %334 = arith.truncf %303 : vector<2x32xf32> to vector<2x32xbf16>
    %cst_101 = arith.constant dense<0.000000e+00> : vector<2x128xf32>
    %335 = tpu.matmul %334, %17, %cst_101 {dimension_numbers = #tpu.dot_dimension_numbers<[1], [0], [0], [1], [0, 0, 1, 1], [], []>} : vector<2x32xbf16>, vector<32x128xbf16>, vector<2x128xf32> -> vector<2x128xf32>
    %336 = arith.addf %333, %335 : vector<2x128xf32>
    %c52 = arith.constant 52 : index
    %c0_102 = arith.constant 0 : index
    %337 = vector.load %arg12[%c52, %c0_102] : memref<64x128xf32, #tpu.memory_space<vmem>>, vector<2x128xf32>
    %338 = arith.truncf %328 : vector<2x32xf32> to vector<2x32xbf16>
    %cst_103 = arith.constant dense<0.000000e+00> : vector<2x128xf32>
    %339 = tpu.matmul %338, %18, %cst_103 {dimension_numbers = #tpu.dot_dimension_numbers<[1], [0], [0], [1], [0, 0, 1, 1], [], []>} : vector<2x32xbf16>, vector<32x128xbf16>, vector<2x128xf32> -> vector<2x128xf32>
    %340 = arith.addf %337, %339 : vector<2x128xf32>
    %341 = vector.extract_strided_slice %336 {offsets = [0, 0], sizes = [2, 32], strides = [1, 1]} : vector<2x128xf32> to vector<2x32xf32>
    %342 = arith.negf %341 : vector<2x32xf32>
    %343 = math.exp %342 : vector<2x32xf32>
    %cst_104 = arith.constant 1.000000e+00 : f32
    %344 = vector.broadcast %cst_104 : f32 to vector<2x32xf32>
    %345 = arith.addf %344, %343 : vector<2x32xf32>
    %346 = arith.divf %344, %345 : vector<2x32xf32>
    %347 = vector.extract_strided_slice %336 {offsets = [0, 32], sizes = [2, 32], strides = [1, 1]} : vector<2x128xf32> to vector<2x32xf32>
    %348 = arith.negf %347 : vector<2x32xf32>
    %349 = math.exp %348 : vector<2x32xf32>
    %cst_105 = arith.constant 1.000000e+00 : f32
    %350 = vector.broadcast %cst_105 : f32 to vector<2x32xf32>
    %351 = arith.addf %350, %349 : vector<2x32xf32>
    %352 = arith.divf %350, %351 : vector<2x32xf32>
    %353 = vector.extract_strided_slice %336 {offsets = [0, 64], sizes = [2, 32], strides = [1, 1]} : vector<2x128xf32> to vector<2x32xf32>
    %354 = math.tanh %353 : vector<2x32xf32>
    %355 = vector.extract_strided_slice %336 {offsets = [0, 96], sizes = [2, 32], strides = [1, 1]} : vector<2x128xf32> to vector<2x32xf32>
    %356 = arith.negf %355 : vector<2x32xf32>
    %357 = math.exp %356 : vector<2x32xf32>
    %cst_106 = arith.constant 1.000000e+00 : f32
    %358 = vector.broadcast %cst_106 : f32 to vector<2x32xf32>
    %359 = arith.addf %358, %357 : vector<2x32xf32>
    %360 = arith.divf %358, %359 : vector<2x32xf32>
    %361 = arith.mulf %352, %301 : vector<2x32xf32>
    %362 = arith.mulf %346, %354 : vector<2x32xf32>
    %363 = arith.addf %361, %362 : vector<2x32xf32>
    %364 = math.tanh %363 : vector<2x32xf32>
    %365 = arith.mulf %360, %364 : vector<2x32xf32>
    %366 = vector.extract_strided_slice %340 {offsets = [0, 0], sizes = [2, 32], strides = [1, 1]} : vector<2x128xf32> to vector<2x32xf32>
    %367 = arith.negf %366 : vector<2x32xf32>
    %368 = math.exp %367 : vector<2x32xf32>
    %cst_107 = arith.constant 1.000000e+00 : f32
    %369 = vector.broadcast %cst_107 : f32 to vector<2x32xf32>
    %370 = arith.addf %369, %368 : vector<2x32xf32>
    %371 = arith.divf %369, %370 : vector<2x32xf32>
    %372 = vector.extract_strided_slice %340 {offsets = [0, 32], sizes = [2, 32], strides = [1, 1]} : vector<2x128xf32> to vector<2x32xf32>
    %373 = arith.negf %372 : vector<2x32xf32>
    %374 = math.exp %373 : vector<2x32xf32>
    %cst_108 = arith.constant 1.000000e+00 : f32
    %375 = vector.broadcast %cst_108 : f32 to vector<2x32xf32>
    %376 = arith.addf %375, %374 : vector<2x32xf32>
    %377 = arith.divf %375, %376 : vector<2x32xf32>
    %378 = vector.extract_strided_slice %340 {offsets = [0, 64], sizes = [2, 32], strides = [1, 1]} : vector<2x128xf32> to vector<2x32xf32>
    %379 = math.tanh %378 : vector<2x32xf32>
    %380 = vector.extract_strided_slice %340 {offsets = [0, 96], sizes = [2, 32], strides = [1, 1]} : vector<2x128xf32> to vector<2x32xf32>
    %381 = arith.negf %380 : vector<2x32xf32>
    %382 = math.exp %381 : vector<2x32xf32>
    %cst_109 = arith.constant 1.000000e+00 : f32
    %383 = vector.broadcast %cst_109 : f32 to vector<2x32xf32>
    %384 = arith.addf %383, %382 : vector<2x32xf32>
    %385 = arith.divf %383, %384 : vector<2x32xf32>
    %386 = arith.mulf %377, %326 : vector<2x32xf32>
    %387 = arith.mulf %371, %379 : vector<2x32xf32>
    %388 = arith.addf %386, %387 : vector<2x32xf32>
    %389 = math.tanh %388 : vector<2x32xf32>
    %390 = arith.mulf %385, %389 : vector<2x32xf32>
    %391 = arith.truncf %365 : vector<2x32xf32> to vector<2x32xbf16>
    %c10_110 = arith.constant 10 : index
    %c0_111 = arith.constant 0 : index
    %392 = vector.load %arg9[%c10_110, %c0_111] : memref<64x32xbf16, #tpu.memory_space<vmem>>, vector<2x32xbf16>
    tpu.vector_store %arg9[%c10_110, %c0_111], %391 {strides = array<i32>} : memref<64x32xbf16, #tpu.memory_space<vmem>>, vector<2x32xbf16>,
    %393 = arith.truncf %390 : vector<2x32xf32> to vector<2x32xbf16>
    %c52_112 = arith.constant 52 : index
    %c0_113 = arith.constant 0 : index
    %394 = vector.load %arg10[%c52_112, %c0_113] : memref<64x32xbf16, #tpu.memory_space<vmem>>, vector<2x32xbf16>
    tpu.vector_store %arg10[%c52_112, %c0_113], %393 {strides = array<i32>} : memref<64x32xbf16, #tpu.memory_space<vmem>>, vector<2x32xbf16>,
    %c12 = arith.constant 12 : index
    %c0_114 = arith.constant 0 : index
    %395 = vector.load %arg11[%c12, %c0_114] : memref<64x128xf32, #tpu.memory_space<vmem>>, vector<2x128xf32>
    %396 = arith.truncf %365 : vector<2x32xf32> to vector<2x32xbf16>
    %cst_115 = arith.constant dense<0.000000e+00> : vector<2x128xf32>
    %397 = tpu.matmul %396, %17, %cst_115 {dimension_numbers = #tpu.dot_dimension_numbers<[1], [0], [0], [1], [0, 0, 1, 1], [], []>} : vector<2x32xbf16>, vector<32x128xbf16>, vector<2x128xf32> -> vector<2x128xf32>
    %398 = arith.addf %395, %397 : vector<2x128xf32>
    %c50 = arith.constant 50 : index
    %c0_116 = arith.constant 0 : index
    %399 = vector.load %arg12[%c50, %c0_116] : memref<64x128xf32, #tpu.memory_space<vmem>>, vector<2x128xf32>
    %400 = arith.truncf %390 : vector<2x32xf32> to vector<2x32xbf16>
    %cst_117 = arith.constant dense<0.000000e+00> : vector<2x128xf32>
    %401 = tpu.matmul %400, %18, %cst_117 {dimension_numbers = #tpu.dot_dimension_numbers<[1], [0], [0], [1], [0, 0, 1, 1], [], []>} : vector<2x32xbf16>, vector<32x128xbf16>, vector<2x128xf32> -> vector<2x128xf32>
    %402 = arith.addf %399, %401 : vector<2x128xf32>
    %403 = vector.extract_strided_slice %398 {offsets = [0, 0], sizes = [2, 32], strides = [1, 1]} : vector<2x128xf32> to vector<2x32xf32>
    %404 = arith.negf %403 : vector<2x32xf32>
    %405 = math.exp %404 : vector<2x32xf32>
    %cst_118 = arith.constant 1.000000e+00 : f32
    %406 = vector.broadcast %cst_118 : f32 to vector<2x32xf32>
    %407 = arith.addf %406, %405 : vector<2x32xf32>
    %408 = arith.divf %406, %407 : vector<2x32xf32>
    %409 = vector.extract_strided_slice %398 {offsets = [0, 32], sizes = [2, 32], strides = [1, 1]} : vector<2x128xf32> to vector<2x32xf32>
    %410 = arith.negf %409 : vector<2x32xf32>
    %411 = math.exp %410 : vector<2x32xf32>
    %cst_119 = arith.constant 1.000000e+00 : f32
    %412 = vector.broadcast %cst_119 : f32 to vector<2x32xf32>
    %413 = arith.addf %412, %411 : vector<2x32xf32>
    %414 = arith.divf %412, %413 : vector<2x32xf32>
    %415 = vector.extract_strided_slice %398 {offsets = [0, 64], sizes = [2, 32], strides = [1, 1]} : vector<2x128xf32> to vector<2x32xf32>
    %416 = math.tanh %415 : vector<2x32xf32>
    %417 = vector.extract_strided_slice %398 {offsets = [0, 96], sizes = [2, 32], strides = [1, 1]} : vector<2x128xf32> to vector<2x32xf32>
    %418 = arith.negf %417 : vector<2x32xf32>
    %419 = math.exp %418 : vector<2x32xf32>
    %cst_120 = arith.constant 1.000000e+00 : f32
    %420 = vector.broadcast %cst_120 : f32 to vector<2x32xf32>
    %421 = arith.addf %420, %419 : vector<2x32xf32>
    %422 = arith.divf %420, %421 : vector<2x32xf32>
    %423 = arith.mulf %414, %363 : vector<2x32xf32>
    %424 = arith.mulf %408, %416 : vector<2x32xf32>
    %425 = arith.addf %423, %424 : vector<2x32xf32>
    %426 = math.tanh %425 : vector<2x32xf32>
    %427 = arith.mulf %422, %426 : vector<2x32xf32>
    %428 = vector.extract_strided_slice %402 {offsets = [0, 0], sizes = [2, 32], strides = [1, 1]} : vector<2x128xf32> to vector<2x32xf32>
    %429 = arith.negf %428 : vector<2x32xf32>
    %430 = math.exp %429 : vector<2x32xf32>
    %cst_121 = arith.constant 1.000000e+00 : f32
    %431 = vector.broadcast %cst_121 : f32 to vector<2x32xf32>
    %432 = arith.addf %431, %430 : vector<2x32xf32>
    %433 = arith.divf %431, %432 : vector<2x32xf32>
    %434 = vector.extract_strided_slice %402 {offsets = [0, 32], sizes = [2, 32], strides = [1, 1]} : vector<2x128xf32> to vector<2x32xf32>
    %435 = arith.negf %434 : vector<2x32xf32>
    %436 = math.exp %435 : vector<2x32xf32>
    %cst_122 = arith.constant 1.000000e+00 : f32
    %437 = vector.broadcast %cst_122 : f32 to vector<2x32xf32>
    %438 = arith.addf %437, %436 : vector<2x32xf32>
    %439 = arith.divf %437, %438 : vector<2x32xf32>
    %440 = vector.extract_strided_slice %402 {offsets = [0, 64], sizes = [2, 32], strides = [1, 1]} : vector<2x128xf32> to vector<2x32xf32>
    %441 = math.tanh %440 : vector<2x32xf32>
    %442 = vector.extract_strided_slice %402 {offsets = [0, 96], sizes = [2, 32], strides = [1, 1]} : vector<2x128xf32> to vector<2x32xf32>
    %443 = arith.negf %442 : vector<2x32xf32>
    %444 = math.exp %443 : vector<2x32xf32>
    %cst_123 = arith.constant 1.000000e+00 : f32
    %445 = vector.broadcast %cst_123 : f32 to vector<2x32xf32>
    %446 = arith.addf %445, %444 : vector<2x32xf32>
    %447 = arith.divf %445, %446 : vector<2x32xf32>
    %448 = arith.mulf %439, %388 : vector<2x32xf32>
    %449 = arith.mulf %433, %441 : vector<2x32xf32>
    %450 = arith.addf %448, %449 : vector<2x32xf32>
    %451 = math.tanh %450 : vector<2x32xf32>
    %452 = arith.mulf %447, %451 : vector<2x32xf32>
    %453 = arith.truncf %427 : vector<2x32xf32> to vector<2x32xbf16>
    %c12_124 = arith.constant 12 : index
    %c0_125 = arith.constant 0 : index
    %454 = vector.load %arg9[%c12_124, %c0_125] : memref<64x32xbf16, #tpu.memory_space<vmem>>, vector<2x32xbf16>
    tpu.vector_store %arg9[%c12_124, %c0_125], %453 {strides = array<i32>} : memref<64x32xbf16, #tpu.memory_space<vmem>>, vector<2x32xbf16>,
    %455 = arith.truncf %452 : vector<2x32xf32> to vector<2x32xbf16>
    %c50_126 = arith.constant 50 : index
    %c0_127 = arith.constant 0 : index
    %456 = vector.load %arg10[%c50_126, %c0_127] : memref<64x32xbf16, #tpu.memory_space<vmem>>, vector<2x32xbf16>
    tpu.vector_store %arg10[%c50_126, %c0_127], %455 {strides = array<i32>} : memref<64x32xbf16, #tpu.memory_space<vmem>>, vector<2x32xbf16>,
    %c14 = arith.constant 14 : index
    %c0_128 = arith.constant 0 : index
    %457 = vector.load %arg11[%c14, %c0_128] : memref<64x128xf32, #tpu.memory_space<vmem>>, vector<2x128xf32>
    %458 = arith.truncf %427 : vector<2x32xf32> to vector<2x32xbf16>
    %cst_129 = arith.constant dense<0.000000e+00> : vector<2x128xf32>
    %459 = tpu.matmul %458, %17, %cst_129 {dimension_numbers = #tpu.dot_dimension_numbers<[1], [0], [0], [1], [0, 0, 1, 1], [], []>} : vector<2x32xbf16>, vector<32x128xbf16>, vector<2x128xf32> -> vector<2x128xf32>
    %460 = arith.addf %457, %459 : vector<2x128xf32>
    %c48 = arith.constant 48 : index
    %c0_130 = arith.constant 0 : index
    %461 = vector.load %arg12[%c48, %c0_130] : memref<64x128xf32, #tpu.memory_space<vmem>>, vector<2x128xf32>
    %462 = arith.truncf %452 : vector<2x32xf32> to vector<2x32xbf16>
    %cst_131 = arith.constant dense<0.000000e+00> : vector<2x128xf32>
    %463 = tpu.matmul %462, %18, %cst_131 {dimension_numbers = #tpu.dot_dimension_numbers<[1], [0], [0], [1], [0, 0, 1, 1], [], []>} : vector<2x32xbf16>, vector<32x128xbf16>, vector<2x128xf32> -> vector<2x128xf32>
    %464 = arith.addf %461, %463 : vector<2x128xf32>
    %465 = vector.extract_strided_slice %460 {offsets = [0, 0], sizes = [2, 32], strides = [1, 1]} : vector<2x128xf32> to vector<2x32xf32>
    %466 = arith.negf %465 : vector<2x32xf32>
    %467 = math.exp %466 : vector<2x32xf32>
    %cst_132 = arith.constant 1.000000e+00 : f32
    %468 = vector.broadcast %cst_132 : f32 to vector<2x32xf32>
    %469 = arith.addf %468, %467 : vector<2x32xf32>
    %470 = arith.divf %468, %469 : vector<2x32xf32>
    %471 = vector.extract_strided_slice %460 {offsets = [0, 32], sizes = [2, 32], strides = [1, 1]} : vector<2x128xf32> to vector<2x32xf32>
    %472 = arith.negf %471 : vector<2x32xf32>
    %473 = math.exp %472 : vector<2x32xf32>
    %cst_133 = arith.constant 1.000000e+00 : f32
    %474 = vector.broadcast %cst_133 : f32 to vector<2x32xf32>
    %475 = arith.addf %474, %473 : vector<2x32xf32>
    %476 = arith.divf %474, %475 : vector<2x32xf32>
    %477 = vector.extract_strided_slice %460 {offsets = [0, 64], sizes = [2, 32], strides = [1, 1]} : vector<2x128xf32> to vector<2x32xf32>
    %478 = math.tanh %477 : vector<2x32xf32>
    %479 = vector.extract_strided_slice %460 {offsets = [0, 96], sizes = [2, 32], strides = [1, 1]} : vector<2x128xf32> to vector<2x32xf32>
    %480 = arith.negf %479 : vector<2x32xf32>
    %481 = math.exp %480 : vector<2x32xf32>
    %cst_134 = arith.constant 1.000000e+00 : f32
    %482 = vector.broadcast %cst_134 : f32 to vector<2x32xf32>
    %483 = arith.addf %482, %481 : vector<2x32xf32>
    %484 = arith.divf %482, %483 : vector<2x32xf32>
    %485 = arith.mulf %476, %425 : vector<2x32xf32>
    %486 = arith.mulf %470, %478 : vector<2x32xf32>
    %487 = arith.addf %485, %486 : vector<2x32xf32>
    %488 = math.tanh %487 : vector<2x32xf32>
    %489 = arith.mulf %484, %488 : vector<2x32xf32>
    %490 = vector.extract_strided_slice %464 {offsets = [0, 0], sizes = [2, 32], strides = [1, 1]} : vector<2x128xf32> to vector<2x32xf32>
    %491 = arith.negf %490 : vector<2x32xf32>
    %492 = math.exp %491 : vector<2x32xf32>
    %cst_135 = arith.constant 1.000000e+00 : f32
    %493 = vector.broadcast %cst_135 : f32 to vector<2x32xf32>
    %494 = arith.addf %493, %492 : vector<2x32xf32>
    %495 = arith.divf %493, %494 : vector<2x32xf32>
    %496 = vector.extract_strided_slice %464 {offsets = [0, 32], sizes = [2, 32], strides = [1, 1]} : vector<2x128xf32> to vector<2x32xf32>
    %497 = arith.negf %496 : vector<2x32xf32>
    %498 = math.exp %497 : vector<2x32xf32>
    %cst_136 = arith.constant 1.000000e+00 : f32
    %499 = vector.broadcast %cst_136 : f32 to vector<2x32xf32>
    %500 = arith.addf %499, %498 : vector<2x32xf32>
    %501 = arith.divf %499, %500 : vector<2x32xf32>
    %502 = vector.extract_strided_slice %464 {offsets = [0, 64], sizes = [2, 32], strides = [1, 1]} : vector<2x128xf32> to vector<2x32xf32>
    %503 = math.tanh %502 : vector<2x32xf32>
    %504 = vector.extract_strided_slice %464 {offsets = [0, 96], sizes = [2, 32], strides = [1, 1]} : vector<2x128xf32> to vector<2x32xf32>
    %505 = arith.negf %504 : vector<2x32xf32>
    %506 = math.exp %505 : vector<2x32xf32>
    %cst_137 = arith.constant 1.000000e+00 : f32
    %507 = vector.broadcast %cst_137 : f32 to vector<2x32xf32>
    %508 = arith.addf %507, %506 : vector<2x32xf32>
    %509 = arith.divf %507, %508 : vector<2x32xf32>
    %510 = arith.mulf %501, %450 : vector<2x32xf32>
    %511 = arith.mulf %495, %503 : vector<2x32xf32>
    %512 = arith.addf %510, %511 : vector<2x32xf32>
    %513 = math.tanh %512 : vector<2x32xf32>
    %514 = arith.mulf %509, %513 : vector<2x32xf32>
    %515 = arith.truncf %489 : vector<2x32xf32> to vector<2x32xbf16>
    %c14_138 = arith.constant 14 : index
    %c0_139 = arith.constant 0 : index
    %516 = vector.load %arg9[%c14_138, %c0_139] : memref<64x32xbf16, #tpu.memory_space<vmem>>, vector<2x32xbf16>
    tpu.vector_store %arg9[%c14_138, %c0_139], %515 {strides = array<i32>} : memref<64x32xbf16, #tpu.memory_space<vmem>>, vector<2x32xbf16>,
    %517 = arith.truncf %514 : vector<2x32xf32> to vector<2x32xbf16>
    %c48_140 = arith.constant 48 : index
    %c0_141 = arith.constant 0 : index
    %518 = vector.load %arg10[%c48_140, %c0_141] : memref<64x32xbf16, #tpu.memory_space<vmem>>, vector<2x32xbf16>
    tpu.vector_store %arg10[%c48_140, %c0_141], %517 {strides = array<i32>} : memref<64x32xbf16, #tpu.memory_space<vmem>>, vector<2x32xbf16>,
    %c16 = arith.constant 16 : index
    %c0_142 = arith.constant 0 : index
    %519 = vector.load %arg11[%c16, %c0_142] : memref<64x128xf32, #tpu.memory_space<vmem>>, vector<2x128xf32>
    %520 = arith.truncf %489 : vector<2x32xf32> to vector<2x32xbf16>
    %cst_143 = arith.constant dense<0.000000e+00> : vector<2x128xf32>
    %521 = tpu.matmul %520, %17, %cst_143 {dimension_numbers = #tpu.dot_dimension_numbers<[1], [0], [0], [1], [0, 0, 1, 1], [], []>} : vector<2x32xbf16>, vector<32x128xbf16>, vector<2x128xf32> -> vector<2x128xf32>
    %522 = arith.addf %519, %521 : vector<2x128xf32>
    %c46 = arith.constant 46 : index
    %c0_144 = arith.constant 0 : index
    %523 = vector.load %arg12[%c46, %c0_144] : memref<64x128xf32, #tpu.memory_space<vmem>>, vector<2x128xf32>
    %524 = arith.truncf %514 : vector<2x32xf32> to vector<2x32xbf16>
    %cst_145 = arith.constant dense<0.000000e+00> : vector<2x128xf32>
    %525 = tpu.matmul %524, %18, %cst_145 {dimension_numbers = #tpu.dot_dimension_numbers<[1], [0], [0], [1], [0, 0, 1, 1], [], []>} : vector<2x32xbf16>, vector<32x128xbf16>, vector<2x128xf32> -> vector<2x128xf32>
    %526 = arith.addf %523, %525 : vector<2x128xf32>
    %527 = vector.extract_strided_slice %522 {offsets = [0, 0], sizes = [2, 32], strides = [1, 1]} : vector<2x128xf32> to vector<2x32xf32>
    %528 = arith.negf %527 : vector<2x32xf32>
    %529 = math.exp %528 : vector<2x32xf32>
    %cst_146 = arith.constant 1.000000e+00 : f32
    %530 = vector.broadcast %cst_146 : f32 to vector<2x32xf32>
    %531 = arith.addf %530, %529 : vector<2x32xf32>
    %532 = arith.divf %530, %531 : vector<2x32xf32>
    %533 = vector.extract_strided_slice %522 {offsets = [0, 32], sizes = [2, 32], strides = [1, 1]} : vector<2x128xf32> to vector<2x32xf32>
    %534 = arith.negf %533 : vector<2x32xf32>
    %535 = math.exp %534 : vector<2x32xf32>
    %cst_147 = arith.constant 1.000000e+00 : f32
    %536 = vector.broadcast %cst_147 : f32 to vector<2x32xf32>
    %537 = arith.addf %536, %535 : vector<2x32xf32>
    %538 = arith.divf %536, %537 : vector<2x32xf32>
    %539 = vector.extract_strided_slice %522 {offsets = [0, 64], sizes = [2, 32], strides = [1, 1]} : vector<2x128xf32> to vector<2x32xf32>
    %540 = math.tanh %539 : vector<2x32xf32>
    %541 = vector.extract_strided_slice %522 {offsets = [0, 96], sizes = [2, 32], strides = [1, 1]} : vector<2x128xf32> to vector<2x32xf32>
    %542 = arith.negf %541 : vector<2x32xf32>
    %543 = math.exp %542 : vector<2x32xf32>
    %cst_148 = arith.constant 1.000000e+00 : f32
    %544 = vector.broadcast %cst_148 : f32 to vector<2x32xf32>
    %545 = arith.addf %544, %543 : vector<2x32xf32>
    %546 = arith.divf %544, %545 : vector<2x32xf32>
    %547 = arith.mulf %538, %487 : vector<2x32xf32>
    %548 = arith.mulf %532, %540 : vector<2x32xf32>
    %549 = arith.addf %547, %548 : vector<2x32xf32>
    %550 = math.tanh %549 : vector<2x32xf32>
    %551 = arith.mulf %546, %550 : vector<2x32xf32>
    %552 = vector.extract_strided_slice %526 {offsets = [0, 0], sizes = [2, 32], strides = [1, 1]} : vector<2x128xf32> to vector<2x32xf32>
    %553 = arith.negf %552 : vector<2x32xf32>
    %554 = math.exp %553 : vector<2x32xf32>
    %cst_149 = arith.constant 1.000000e+00 : f32
    %555 = vector.broadcast %cst_149 : f32 to vector<2x32xf32>
    %556 = arith.addf %555, %554 : vector<2x32xf32>
    %557 = arith.divf %555, %556 : vector<2x32xf32>
    %558 = vector.extract_strided_slice %526 {offsets = [0, 32], sizes = [2, 32], strides = [1, 1]} : vector<2x128xf32> to vector<2x32xf32>
    %559 = arith.negf %558 : vector<2x32xf32>
    %560 = math.exp %559 : vector<2x32xf32>
    %cst_150 = arith.constant 1.000000e+00 : f32
    %561 = vector.broadcast %cst_150 : f32 to vector<2x32xf32>
    %562 = arith.addf %561, %560 : vector<2x32xf32>
    %563 = arith.divf %561, %562 : vector<2x32xf32>
    %564 = vector.extract_strided_slice %526 {offsets = [0, 64], sizes = [2, 32], strides = [1, 1]} : vector<2x128xf32> to vector<2x32xf32>
    %565 = math.tanh %564 : vector<2x32xf32>
    %566 = vector.extract_strided_slice %526 {offsets = [0, 96], sizes = [2, 32], strides = [1, 1]} : vector<2x128xf32> to vector<2x32xf32>
    %567 = arith.negf %566 : vector<2x32xf32>
    %568 = math.exp %567 : vector<2x32xf32>
    %cst_151 = arith.constant 1.000000e+00 : f32
    %569 = vector.broadcast %cst_151 : f32 to vector<2x32xf32>
    %570 = arith.addf %569, %568 : vector<2x32xf32>
    %571 = arith.divf %569, %570 : vector<2x32xf32>
    %572 = arith.mulf %563, %512 : vector<2x32xf32>
    %573 = arith.mulf %557, %565 : vector<2x32xf32>
    %574 = arith.addf %572, %573 : vector<2x32xf32>
    %575 = math.tanh %574 : vector<2x32xf32>
    %576 = arith.mulf %571, %575 : vector<2x32xf32>
    %577 = arith.truncf %551 : vector<2x32xf32> to vector<2x32xbf16>
    %c16_152 = arith.constant 16 : index
    %c0_153 = arith.constant 0 : index
    %578 = vector.load %arg9[%c16_152, %c0_153] : memref<64x32xbf16, #tpu.memory_space<vmem>>, vector<2x32xbf16>
    tpu.vector_store %arg9[%c16_152, %c0_153], %577 {strides = array<i32>} : memref<64x32xbf16, #tpu.memory_space<vmem>>, vector<2x32xbf16>,
    %579 = arith.truncf %576 : vector<2x32xf32> to vector<2x32xbf16>
    %c46_154 = arith.constant 46 : index
    %c0_155 = arith.constant 0 : index
    %580 = vector.load %arg10[%c46_154, %c0_155] : memref<64x32xbf16, #tpu.memory_space<vmem>>, vector<2x32xbf16>
    tpu.vector_store %arg10[%c46_154, %c0_155], %579 {strides = array<i32>} : memref<64x32xbf16, #tpu.memory_space<vmem>>, vector<2x32xbf16>,
    %c18 = arith.constant 18 : index
    %c0_156 = arith.constant 0 : index
    %581 = vector.load %arg11[%c18, %c0_156] : memref<64x128xf32, #tpu.memory_space<vmem>>, vector<2x128xf32>
    %582 = arith.truncf %551 : vector<2x32xf32> to vector<2x32xbf16>
    %cst_157 = arith.constant dense<0.000000e+00> : vector<2x128xf32>
    %583 = tpu.matmul %582, %17, %cst_157 {dimension_numbers = #tpu.dot_dimension_numbers<[1], [0], [0], [1], [0, 0, 1, 1], [], []>} : vector<2x32xbf16>, vector<32x128xbf16>, vector<2x128xf32> -> vector<2x128xf32>
    %584 = arith.addf %581, %583 : vector<2x128xf32>
    %c44 = arith.constant 44 : index
    %c0_158 = arith.constant 0 : index
    %585 = vector.load %arg12[%c44, %c0_158] : memref<64x128xf32, #tpu.memory_space<vmem>>, vector<2x128xf32>
    %586 = arith.truncf %576 : vector<2x32xf32> to vector<2x32xbf16>
    %cst_159 = arith.constant dense<0.000000e+00> : vector<2x128xf32>
    %587 = tpu.matmul %586, %18, %cst_159 {dimension_numbers = #tpu.dot_dimension_numbers<[1], [0], [0], [1], [0, 0, 1, 1], [], []>} : vector<2x32xbf16>, vector<32x128xbf16>, vector<2x128xf32> -> vector<2x128xf32>
    %588 = arith.addf %585, %587 : vector<2x128xf32>
    %589 = vector.extract_strided_slice %584 {offsets = [0, 0], sizes = [2, 32], strides = [1, 1]} : vector<2x128xf32> to vector<2x32xf32>
    %590 = arith.negf %589 : vector<2x32xf32>
    %591 = math.exp %590 : vector<2x32xf32>
    %cst_160 = arith.constant 1.000000e+00 : f32
    %592 = vector.broadcast %cst_160 : f32 to vector<2x32xf32>
    %593 = arith.addf %592, %591 : vector<2x32xf32>
    %594 = arith.divf %592, %593 : vector<2x32xf32>
    %595 = vector.extract_strided_slice %584 {offsets = [0, 32], sizes = [2, 32], strides = [1, 1]} : vector<2x128xf32> to vector<2x32xf32>
    %596 = arith.negf %595 : vector<2x32xf32>
    %597 = math.exp %596 : vector<2x32xf32>
    %cst_161 = arith.constant 1.000000e+00 : f32
    %598 = vector.broadcast %cst_161 : f32 to vector<2x32xf32>
    %599 = arith.addf %598, %597 : vector<2x32xf32>
    %600 = arith.divf %598, %599 : vector<2x32xf32>
    %601 = vector.extract_strided_slice %584 {offsets = [0, 64], sizes = [2, 32], strides = [1, 1]} : vector<2x128xf32> to vector<2x32xf32>
    %602 = math.tanh %601 : vector<2x32xf32>
    %603 = vector.extract_strided_slice %584 {offsets = [0, 96], sizes = [2, 32], strides = [1, 1]} : vector<2x128xf32> to vector<2x32xf32>
    %604 = arith.negf %603 : vector<2x32xf32>
    %605 = math.exp %604 : vector<2x32xf32>
    %cst_162 = arith.constant 1.000000e+00 : f32
    %606 = vector.broadcast %cst_162 : f32 to vector<2x32xf32>
    %607 = arith.addf %606, %605 : vector<2x32xf32>
    %608 = arith.divf %606, %607 : vector<2x32xf32>
    %609 = arith.mulf %600, %549 : vector<2x32xf32>
    %610 = arith.mulf %594, %602 : vector<2x32xf32>
    %611 = arith.addf %609, %610 : vector<2x32xf32>
    %612 = math.tanh %611 : vector<2x32xf32>
    %613 = arith.mulf %608, %612 : vector<2x32xf32>
    %614 = vector.extract_strided_slice %588 {offsets = [0, 0], sizes = [2, 32], strides = [1, 1]} : vector<2x128xf32> to vector<2x32xf32>
    %615 = arith.negf %614 : vector<2x32xf32>
    %616 = math.exp %615 : vector<2x32xf32>
    %cst_163 = arith.constant 1.000000e+00 : f32
    %617 = vector.broadcast %cst_163 : f32 to vector<2x32xf32>
    %618 = arith.addf %617, %616 : vector<2x32xf32>
    %619 = arith.divf %617, %618 : vector<2x32xf32>
    %620 = vector.extract_strided_slice %588 {offsets = [0, 32], sizes = [2, 32], strides = [1, 1]} : vector<2x128xf32> to vector<2x32xf32>
    %621 = arith.negf %620 : vector<2x32xf32>
    %622 = math.exp %621 : vector<2x32xf32>
    %cst_164 = arith.constant 1.000000e+00 : f32
    %623 = vector.broadcast %cst_164 : f32 to vector<2x32xf32>
    %624 = arith.addf %623, %622 : vector<2x32xf32>
    %625 = arith.divf %623, %624 : vector<2x32xf32>
    %626 = vector.extract_strided_slice %588 {offsets = [0, 64], sizes = [2, 32], strides = [1, 1]} : vector<2x128xf32> to vector<2x32xf32>
    %627 = math.tanh %626 : vector<2x32xf32>
    %628 = vector.extract_strided_slice %588 {offsets = [0, 96], sizes = [2, 32], strides = [1, 1]} : vector<2x128xf32> to vector<2x32xf32>
    %629 = arith.negf %628 : vector<2x32xf32>
    %630 = math.exp %629 : vector<2x32xf32>
    %cst_165 = arith.constant 1.000000e+00 : f32
    %631 = vector.broadcast %cst_165 : f32 to vector<2x32xf32>
    %632 = arith.addf %631, %630 : vector<2x32xf32>
    %633 = arith.divf %631, %632 : vector<2x32xf32>
    %634 = arith.mulf %625, %574 : vector<2x32xf32>
    %635 = arith.mulf %619, %627 : vector<2x32xf32>
    %636 = arith.addf %634, %635 : vector<2x32xf32>
    %637 = math.tanh %636 : vector<2x32xf32>
    %638 = arith.mulf %633, %637 : vector<2x32xf32>
    %639 = arith.truncf %613 : vector<2x32xf32> to vector<2x32xbf16>
    %c18_166 = arith.constant 18 : index
    %c0_167 = arith.constant 0 : index
    %640 = vector.load %arg9[%c18_166, %c0_167] : memref<64x32xbf16, #tpu.memory_space<vmem>>, vector<2x32xbf16>
    tpu.vector_store %arg9[%c18_166, %c0_167], %639 {strides = array<i32>} : memref<64x32xbf16, #tpu.memory_space<vmem>>, vector<2x32xbf16>,
    %641 = arith.truncf %638 : vector<2x32xf32> to vector<2x32xbf16>
    %c44_168 = arith.constant 44 : index
    %c0_169 = arith.constant 0 : index
    %642 = vector.load %arg10[%c44_168, %c0_169] : memref<64x32xbf16, #tpu.memory_space<vmem>>, vector<2x32xbf16>
    tpu.vector_store %arg10[%c44_168, %c0_169], %641 {strides = array<i32>} : memref<64x32xbf16, #tpu.memory_space<vmem>>, vector<2x32xbf16>,
    %c20 = arith.constant 20 : index
    %c0_170 = arith.constant 0 : index
    %643 = vector.load %arg11[%c20, %c0_170] : memref<64x128xf32, #tpu.memory_space<vmem>>, vector<2x128xf32>
    %644 = arith.truncf %613 : vector<2x32xf32> to vector<2x32xbf16>
    %cst_171 = arith.constant dense<0.000000e+00> : vector<2x128xf32>
    %645 = tpu.matmul %644, %17, %cst_171 {dimension_numbers = #tpu.dot_dimension_numbers<[1], [0], [0], [1], [0, 0, 1, 1], [], []>} : vector<2x32xbf16>, vector<32x128xbf16>, vector<2x128xf32> -> vector<2x128xf32>
    %646 = arith.addf %643, %645 : vector<2x128xf32>
    %c42 = arith.constant 42 : index
    %c0_172 = arith.constant 0 : index
    %647 = vector.load %arg12[%c42, %c0_172] : memref<64x128xf32, #tpu.memory_space<vmem>>, vector<2x128xf32>
    %648 = arith.truncf %638 : vector<2x32xf32> to vector<2x32xbf16>
    %cst_173 = arith.constant dense<0.000000e+00> : vector<2x128xf32>
    %649 = tpu.matmul %648, %18, %cst_173 {dimension_numbers = #tpu.dot_dimension_numbers<[1], [0], [0], [1], [0, 0, 1, 1], [], []>} : vector<2x32xbf16>, vector<32x128xbf16>, vector<2x128xf32> -> vector<2x128xf32>
    %650 = arith.addf %647, %649 : vector<2x128xf32>
    %651 = vector.extract_strided_slice %646 {offsets = [0, 0], sizes = [2, 32], strides = [1, 1]} : vector<2x128xf32> to vector<2x32xf32>
    %652 = arith.negf %651 : vector<2x32xf32>
    %653 = math.exp %652 : vector<2x32xf32>
    %cst_174 = arith.constant 1.000000e+00 : f32
    %654 = vector.broadcast %cst_174 : f32 to vector<2x32xf32>
    %655 = arith.addf %654, %653 : vector<2x32xf32>
    %656 = arith.divf %654, %655 : vector<2x32xf32>
    %657 = vector.extract_strided_slice %646 {offsets = [0, 32], sizes = [2, 32], strides = [1, 1]} : vector<2x128xf32> to vector<2x32xf32>
    %658 = arith.negf %657 : vector<2x32xf32>
    %659 = math.exp %658 : vector<2x32xf32>
    %cst_175 = arith.constant 1.000000e+00 : f32
    %660 = vector.broadcast %cst_175 : f32 to vector<2x32xf32>
    %661 = arith.addf %660, %659 : vector<2x32xf32>
    %662 = arith.divf %660, %661 : vector<2x32xf32>
    %663 = vector.extract_strided_slice %646 {offsets = [0, 64], sizes = [2, 32], strides = [1, 1]} : vector<2x128xf32> to vector<2x32xf32>
    %664 = math.tanh %663 : vector<2x32xf32>
    %665 = vector.extract_strided_slice %646 {offsets = [0, 96], sizes = [2, 32], strides = [1, 1]} : vector<2x128xf32> to vector<2x32xf32>
    %666 = arith.negf %665 : vector<2x32xf32>
    %667 = math.exp %666 : vector<2x32xf32>
    %cst_176 = arith.constant 1.000000e+00 : f32
    %668 = vector.broadcast %cst_176 : f32 to vector<2x32xf32>
    %669 = arith.addf %668, %667 : vector<2x32xf32>
    %670 = arith.divf %668, %669 : vector<2x32xf32>
    %671 = arith.mulf %662, %611 : vector<2x32xf32>
    %672 = arith.mulf %656, %664 : vector<2x32xf32>
    %673 = arith.addf %671, %672 : vector<2x32xf32>
    %674 = math.tanh %673 : vector<2x32xf32>
    %675 = arith.mulf %670, %674 : vector<2x32xf32>
    %676 = vector.extract_strided_slice %650 {offsets = [0, 0], sizes = [2, 32], strides = [1, 1]} : vector<2x128xf32> to vector<2x32xf32>
    %677 = arith.negf %676 : vector<2x32xf32>
    %678 = math.exp %677 : vector<2x32xf32>
    %cst_177 = arith.constant 1.000000e+00 : f32
    %679 = vector.broadcast %cst_177 : f32 to vector<2x32xf32>
    %680 = arith.addf %679, %678 : vector<2x32xf32>
    %681 = arith.divf %679, %680 : vector<2x32xf32>
    %682 = vector.extract_strided_slice %650 {offsets = [0, 32], sizes = [2, 32], strides = [1, 1]} : vector<2x128xf32> to vector<2x32xf32>
    %683 = arith.negf %682 : vector<2x32xf32>
    %684 = math.exp %683 : vector<2x32xf32>
    %cst_178 = arith.constant 1.000000e+00 : f32
    %685 = vector.broadcast %cst_178 : f32 to vector<2x32xf32>
    %686 = arith.addf %685, %684 : vector<2x32xf32>
    %687 = arith.divf %685, %686 : vector<2x32xf32>
    %688 = vector.extract_strided_slice %650 {offsets = [0, 64], sizes = [2, 32], strides = [1, 1]} : vector<2x128xf32> to vector<2x32xf32>
    %689 = math.tanh %688 : vector<2x32xf32>
    %690 = vector.extract_strided_slice %650 {offsets = [0, 96], sizes = [2, 32], strides = [1, 1]} : vector<2x128xf32> to vector<2x32xf32>
    %691 = arith.negf %690 : vector<2x32xf32>
    %692 = math.exp %691 : vector<2x32xf32>
    %cst_179 = arith.constant 1.000000e+00 : f32
    %693 = vector.broadcast %cst_179 : f32 to vector<2x32xf32>
    %694 = arith.addf %693, %692 : vector<2x32xf32>
    %695 = arith.divf %693, %694 : vector<2x32xf32>
    %696 = arith.mulf %687, %636 : vector<2x32xf32>
    %697 = arith.mulf %681, %689 : vector<2x32xf32>
    %698 = arith.addf %696, %697 : vector<2x32xf32>
    %699 = math.tanh %698 : vector<2x32xf32>
    %700 = arith.mulf %695, %699 : vector<2x32xf32>
    %701 = arith.truncf %675 : vector<2x32xf32> to vector<2x32xbf16>
    %c20_180 = arith.constant 20 : index
    %c0_181 = arith.constant 0 : index
    %702 = vector.load %arg9[%c20_180, %c0_181] : memref<64x32xbf16, #tpu.memory_space<vmem>>, vector<2x32xbf16>
    tpu.vector_store %arg9[%c20_180, %c0_181], %701 {strides = array<i32>} : memref<64x32xbf16, #tpu.memory_space<vmem>>, vector<2x32xbf16>,
    %703 = arith.truncf %700 : vector<2x32xf32> to vector<2x32xbf16>
    %c42_182 = arith.constant 42 : index
    %c0_183 = arith.constant 0 : index
    %704 = vector.load %arg10[%c42_182, %c0_183] : memref<64x32xbf16, #tpu.memory_space<vmem>>, vector<2x32xbf16>
    tpu.vector_store %arg10[%c42_182, %c0_183], %703 {strides = array<i32>} : memref<64x32xbf16, #tpu.memory_space<vmem>>, vector<2x32xbf16>,
    %c22 = arith.constant 22 : index
    %c0_184 = arith.constant 0 : index
    %705 = vector.load %arg11[%c22, %c0_184] : memref<64x128xf32, #tpu.memory_space<vmem>>, vector<2x128xf32>
    %706 = arith.truncf %675 : vector<2x32xf32> to vector<2x32xbf16>
    %cst_185 = arith.constant dense<0.000000e+00> : vector<2x128xf32>
    %707 = tpu.matmul %706, %17, %cst_185 {dimension_numbers = #tpu.dot_dimension_numbers<[1], [0], [0], [1], [0, 0, 1, 1], [], []>} : vector<2x32xbf16>, vector<32x128xbf16>, vector<2x128xf32> -> vector<2x128xf32>
    %708 = arith.addf %705, %707 : vector<2x128xf32>
    %c40 = arith.constant 40 : index
    %c0_186 = arith.constant 0 : index
    %709 = vector.load %arg12[%c40, %c0_186] : memref<64x128xf32, #tpu.memory_space<vmem>>, vector<2x128xf32>
    %710 = arith.truncf %700 : vector<2x32xf32> to vector<2x32xbf16>
    %cst_187 = arith.constant dense<0.000000e+00> : vector<2x128xf32>
    %711 = tpu.matmul %710, %18, %cst_187 {dimension_numbers = #tpu.dot_dimension_numbers<[1], [0], [0], [1], [0, 0, 1, 1], [], []>} : vector<2x32xbf16>, vector<32x128xbf16>, vector<2x128xf32> -> vector<2x128xf32>
    %712 = arith.addf %709, %711 : vector<2x128xf32>
    %713 = vector.extract_strided_slice %708 {offsets = [0, 0], sizes = [2, 32], strides = [1, 1]} : vector<2x128xf32> to vector<2x32xf32>
    %714 = arith.negf %713 : vector<2x32xf32>
    %715 = math.exp %714 : vector<2x32xf32>
    %cst_188 = arith.constant 1.000000e+00 : f32
    %716 = vector.broadcast %cst_188 : f32 to vector<2x32xf32>
    %717 = arith.addf %716, %715 : vector<2x32xf32>
    %718 = arith.divf %716, %717 : vector<2x32xf32>
    %719 = vector.extract_strided_slice %708 {offsets = [0, 32], sizes = [2, 32], strides = [1, 1]} : vector<2x128xf32> to vector<2x32xf32>
    %720 = arith.negf %719 : vector<2x32xf32>
    %721 = math.exp %720 : vector<2x32xf32>
    %cst_189 = arith.constant 1.000000e+00 : f32
    %722 = vector.broadcast %cst_189 : f32 to vector<2x32xf32>
    %723 = arith.addf %722, %721 : vector<2x32xf32>
    %724 = arith.divf %722, %723 : vector<2x32xf32>
    %725 = vector.extract_strided_slice %708 {offsets = [0, 64], sizes = [2, 32], strides = [1, 1]} : vector<2x128xf32> to vector<2x32xf32>
    %726 = math.tanh %725 : vector<2x32xf32>
    %727 = vector.extract_strided_slice %708 {offsets = [0, 96], sizes = [2, 32], strides = [1, 1]} : vector<2x128xf32> to vector<2x32xf32>
    %728 = arith.negf %727 : vector<2x32xf32>
    %729 = math.exp %728 : vector<2x32xf32>
    %cst_190 = arith.constant 1.000000e+00 : f32
    %730 = vector.broadcast %cst_190 : f32 to vector<2x32xf32>
    %731 = arith.addf %730, %729 : vector<2x32xf32>
    %732 = arith.divf %730, %731 : vector<2x32xf32>
    %733 = arith.mulf %724, %673 : vector<2x32xf32>
    %734 = arith.mulf %718, %726 : vector<2x32xf32>
    %735 = arith.addf %733, %734 : vector<2x32xf32>
    %736 = math.tanh %735 : vector<2x32xf32>
    %737 = arith.mulf %732, %736 : vector<2x32xf32>
    %738 = vector.extract_strided_slice %712 {offsets = [0, 0], sizes = [2, 32], strides = [1, 1]} : vector<2x128xf32> to vector<2x32xf32>
    %739 = arith.negf %738 : vector<2x32xf32>
    %740 = math.exp %739 : vector<2x32xf32>
    %cst_191 = arith.constant 1.000000e+00 : f32
    %741 = vector.broadcast %cst_191 : f32 to vector<2x32xf32>
    %742 = arith.addf %741, %740 : vector<2x32xf32>
    %743 = arith.divf %741, %742 : vector<2x32xf32>
    %744 = vector.extract_strided_slice %712 {offsets = [0, 32], sizes = [2, 32], strides = [1, 1]} : vector<2x128xf32> to vector<2x32xf32>
    %745 = arith.negf %744 : vector<2x32xf32>
    %746 = math.exp %745 : vector<2x32xf32>
    %cst_192 = arith.constant 1.000000e+00 : f32
    %747 = vector.broadcast %cst_192 : f32 to vector<2x32xf32>
    %748 = arith.addf %747, %746 : vector<2x32xf32>
    %749 = arith.divf %747, %748 : vector<2x32xf32>
    %750 = vector.extract_strided_slice %712 {offsets = [0, 64], sizes = [2, 32], strides = [1, 1]} : vector<2x128xf32> to vector<2x32xf32>
    %751 = math.tanh %750 : vector<2x32xf32>
    %752 = vector.extract_strided_slice %712 {offsets = [0, 96], sizes = [2, 32], strides = [1, 1]} : vector<2x128xf32> to vector<2x32xf32>
    %753 = arith.negf %752 : vector<2x32xf32>
    %754 = math.exp %753 : vector<2x32xf32>
    %cst_193 = arith.constant 1.000000e+00 : f32
    %755 = vector.broadcast %cst_193 : f32 to vector<2x32xf32>
    %756 = arith.addf %755, %754 : vector<2x32xf32>
    %757 = arith.divf %755, %756 : vector<2x32xf32>
    %758 = arith.mulf %749, %698 : vector<2x32xf32>
    %759 = arith.mulf %743, %751 : vector<2x32xf32>
    %760 = arith.addf %758, %759 : vector<2x32xf32>
    %761 = math.tanh %760 : vector<2x32xf32>
    %762 = arith.mulf %757, %761 : vector<2x32xf32>
    %763 = arith.truncf %737 : vector<2x32xf32> to vector<2x32xbf16>
    %c22_194 = arith.constant 22 : index
    %c0_195 = arith.constant 0 : index
    %764 = vector.load %arg9[%c22_194, %c0_195] : memref<64x32xbf16, #tpu.memory_space<vmem>>, vector<2x32xbf16>
    tpu.vector_store %arg9[%c22_194, %c0_195], %763 {strides = array<i32>} : memref<64x32xbf16, #tpu.memory_space<vmem>>, vector<2x32xbf16>,
    %765 = arith.truncf %762 : vector<2x32xf32> to vector<2x32xbf16>
    %c40_196 = arith.constant 40 : index
    %c0_197 = arith.constant 0 : index
    %766 = vector.load %arg10[%c40_196, %c0_197] : memref<64x32xbf16, #tpu.memory_space<vmem>>, vector<2x32xbf16>
    tpu.vector_store %arg10[%c40_196, %c0_197], %765 {strides = array<i32>} : memref<64x32xbf16, #tpu.memory_space<vmem>>, vector<2x32xbf16>,
    %c24 = arith.constant 24 : index
    %c0_198 = arith.constant 0 : index
    %767 = vector.load %arg11[%c24, %c0_198] : memref<64x128xf32, #tpu.memory_space<vmem>>, vector<2x128xf32>
    %768 = arith.truncf %737 : vector<2x32xf32> to vector<2x32xbf16>
    %cst_199 = arith.constant dense<0.000000e+00> : vector<2x128xf32>
    %769 = tpu.matmul %768, %17, %cst_199 {dimension_numbers = #tpu.dot_dimension_numbers<[1], [0], [0], [1], [0, 0, 1, 1], [], []>} : vector<2x32xbf16>, vector<32x128xbf16>, vector<2x128xf32> -> vector<2x128xf32>
    %770 = arith.addf %767, %769 : vector<2x128xf32>
    %c38 = arith.constant 38 : index
    %c0_200 = arith.constant 0 : index
    %771 = vector.load %arg12[%c38, %c0_200] : memref<64x128xf32, #tpu.memory_space<vmem>>, vector<2x128xf32>
    %772 = arith.truncf %762 : vector<2x32xf32> to vector<2x32xbf16>
    %cst_201 = arith.constant dense<0.000000e+00> : vector<2x128xf32>
    %773 = tpu.matmul %772, %18, %cst_201 {dimension_numbers = #tpu.dot_dimension_numbers<[1], [0], [0], [1], [0, 0, 1, 1], [], []>} : vector<2x32xbf16>, vector<32x128xbf16>, vector<2x128xf32> -> vector<2x128xf32>
    %774 = arith.addf %771, %773 : vector<2x128xf32>
    %775 = vector.extract_strided_slice %770 {offsets = [0, 0], sizes = [2, 32], strides = [1, 1]} : vector<2x128xf32> to vector<2x32xf32>
    %776 = arith.negf %775 : vector<2x32xf32>
    %777 = math.exp %776 : vector<2x32xf32>
    %cst_202 = arith.constant 1.000000e+00 : f32
    %778 = vector.broadcast %cst_202 : f32 to vector<2x32xf32>
    %779 = arith.addf %778, %777 : vector<2x32xf32>
    %780 = arith.divf %778, %779 : vector<2x32xf32>
    %781 = vector.extract_strided_slice %770 {offsets = [0, 32], sizes = [2, 32], strides = [1, 1]} : vector<2x128xf32> to vector<2x32xf32>
    %782 = arith.negf %781 : vector<2x32xf32>
    %783 = math.exp %782 : vector<2x32xf32>
    %cst_203 = arith.constant 1.000000e+00 : f32
    %784 = vector.broadcast %cst_203 : f32 to vector<2x32xf32>
    %785 = arith.addf %784, %783 : vector<2x32xf32>
    %786 = arith.divf %784, %785 : vector<2x32xf32>
    %787 = vector.extract_strided_slice %770 {offsets = [0, 64], sizes = [2, 32], strides = [1, 1]} : vector<2x128xf32> to vector<2x32xf32>
    %788 = math.tanh %787 : vector<2x32xf32>
    %789 = vector.extract_strided_slice %770 {offsets = [0, 96], sizes = [2, 32], strides = [1, 1]} : vector<2x128xf32> to vector<2x32xf32>
    %790 = arith.negf %789 : vector<2x32xf32>
    %791 = math.exp %790 : vector<2x32xf32>
    %cst_204 = arith.constant 1.000000e+00 : f32
    %792 = vector.broadcast %cst_204 : f32 to vector<2x32xf32>
    %793 = arith.addf %792, %791 : vector<2x32xf32>
    %794 = arith.divf %792, %793 : vector<2x32xf32>
    %795 = arith.mulf %786, %735 : vector<2x32xf32>
    %796 = arith.mulf %780, %788 : vector<2x32xf32>
    %797 = arith.addf %795, %796 : vector<2x32xf32>
    %798 = math.tanh %797 : vector<2x32xf32>
    %799 = arith.mulf %794, %798 : vector<2x32xf32>
    %800 = vector.extract_strided_slice %774 {offsets = [0, 0], sizes = [2, 32], strides = [1, 1]} : vector<2x128xf32> to vector<2x32xf32>
    %801 = arith.negf %800 : vector<2x32xf32>
    %802 = math.exp %801 : vector<2x32xf32>
    %cst_205 = arith.constant 1.000000e+00 : f32
    %803 = vector.broadcast %cst_205 : f32 to vector<2x32xf32>
    %804 = arith.addf %803, %802 : vector<2x32xf32>
    %805 = arith.divf %803, %804 : vector<2x32xf32>
    %806 = vector.extract_strided_slice %774 {offsets = [0, 32], sizes = [2, 32], strides = [1, 1]} : vector<2x128xf32> to vector<2x32xf32>
    %807 = arith.negf %806 : vector<2x32xf32>
    %808 = math.exp %807 : vector<2x32xf32>
    %cst_206 = arith.constant 1.000000e+00 : f32
    %809 = vector.broadcast %cst_206 : f32 to vector<2x32xf32>
    %810 = arith.addf %809, %808 : vector<2x32xf32>
    %811 = arith.divf %809, %810 : vector<2x32xf32>
    %812 = vector.extract_strided_slice %774 {offsets = [0, 64], sizes = [2, 32], strides = [1, 1]} : vector<2x128xf32> to vector<2x32xf32>
    %813 = math.tanh %812 : vector<2x32xf32>
    %814 = vector.extract_strided_slice %774 {offsets = [0, 96], sizes = [2, 32], strides = [1, 1]} : vector<2x128xf32> to vector<2x32xf32>
    %815 = arith.negf %814 : vector<2x32xf32>
    %816 = math.exp %815 : vector<2x32xf32>
    %cst_207 = arith.constant 1.000000e+00 : f32
    %817 = vector.broadcast %cst_207 : f32 to vector<2x32xf32>
    %818 = arith.addf %817, %816 : vector<2x32xf32>
    %819 = arith.divf %817, %818 : vector<2x32xf32>
    %820 = arith.mulf %811, %760 : vector<2x32xf32>
    %821 = arith.mulf %805, %813 : vector<2x32xf32>
    %822 = arith.addf %820, %821 : vector<2x32xf32>
    %823 = math.tanh %822 : vector<2x32xf32>
    %824 = arith.mulf %819, %823 : vector<2x32xf32>
    %825 = arith.truncf %799 : vector<2x32xf32> to vector<2x32xbf16>
    %c24_208 = arith.constant 24 : index
    %c0_209 = arith.constant 0 : index
    %826 = vector.load %arg9[%c24_208, %c0_209] : memref<64x32xbf16, #tpu.memory_space<vmem>>, vector<2x32xbf16>
    tpu.vector_store %arg9[%c24_208, %c0_209], %825 {strides = array<i32>} : memref<64x32xbf16, #tpu.memory_space<vmem>>, vector<2x32xbf16>,
    %827 = arith.truncf %824 : vector<2x32xf32> to vector<2x32xbf16>
    %c38_210 = arith.constant 38 : index
    %c0_211 = arith.constant 0 : index
    %828 = vector.load %arg10[%c38_210, %c0_211] : memref<64x32xbf16, #tpu.memory_space<vmem>>, vector<2x32xbf16>
    tpu.vector_store %arg10[%c38_210, %c0_211], %827 {strides = array<i32>} : memref<64x32xbf16, #tpu.memory_space<vmem>>, vector<2x32xbf16>,
    %c26 = arith.constant 26 : index
    %c0_212 = arith.constant 0 : index
    %829 = vector.load %arg11[%c26, %c0_212] : memref<64x128xf32, #tpu.memory_space<vmem>>, vector<2x128xf32>
    %830 = arith.truncf %799 : vector<2x32xf32> to vector<2x32xbf16>
    %cst_213 = arith.constant dense<0.000000e+00> : vector<2x128xf32>
    %831 = tpu.matmul %830, %17, %cst_213 {dimension_numbers = #tpu.dot_dimension_numbers<[1], [0], [0], [1], [0, 0, 1, 1], [], []>} : vector<2x32xbf16>, vector<32x128xbf16>, vector<2x128xf32> -> vector<2x128xf32>
    %832 = arith.addf %829, %831 : vector<2x128xf32>
    %c36 = arith.constant 36 : index
    %c0_214 = arith.constant 0 : index
    %833 = vector.load %arg12[%c36, %c0_214] : memref<64x128xf32, #tpu.memory_space<vmem>>, vector<2x128xf32>
    %834 = arith.truncf %824 : vector<2x32xf32> to vector<2x32xbf16>
    %cst_215 = arith.constant dense<0.000000e+00> : vector<2x128xf32>
    %835 = tpu.matmul %834, %18, %cst_215 {dimension_numbers = #tpu.dot_dimension_numbers<[1], [0], [0], [1], [0, 0, 1, 1], [], []>} : vector<2x32xbf16>, vector<32x128xbf16>, vector<2x128xf32> -> vector<2x128xf32>
    %836 = arith.addf %833, %835 : vector<2x128xf32>
    %837 = vector.extract_strided_slice %832 {offsets = [0, 0], sizes = [2, 32], strides = [1, 1]} : vector<2x128xf32> to vector<2x32xf32>
    %838 = arith.negf %837 : vector<2x32xf32>
    %839 = math.exp %838 : vector<2x32xf32>
    %cst_216 = arith.constant 1.000000e+00 : f32
    %840 = vector.broadcast %cst_216 : f32 to vector<2x32xf32>
    %841 = arith.addf %840, %839 : vector<2x32xf32>
    %842 = arith.divf %840, %841 : vector<2x32xf32>
    %843 = vector.extract_strided_slice %832 {offsets = [0, 32], sizes = [2, 32], strides = [1, 1]} : vector<2x128xf32> to vector<2x32xf32>
    %844 = arith.negf %843 : vector<2x32xf32>
    %845 = math.exp %844 : vector<2x32xf32>
    %cst_217 = arith.constant 1.000000e+00 : f32
    %846 = vector.broadcast %cst_217 : f32 to vector<2x32xf32>
    %847 = arith.addf %846, %845 : vector<2x32xf32>
    %848 = arith.divf %846, %847 : vector<2x32xf32>
    %849 = vector.extract_strided_slice %832 {offsets = [0, 64], sizes = [2, 32], strides = [1, 1]} : vector<2x128xf32> to vector<2x32xf32>
    %850 = math.tanh %849 : vector<2x32xf32>
    %851 = vector.extract_strided_slice %832 {offsets = [0, 96], sizes = [2, 32], strides = [1, 1]} : vector<2x128xf32> to vector<2x32xf32>
    %852 = arith.negf %851 : vector<2x32xf32>
    %853 = math.exp %852 : vector<2x32xf32>
    %cst_218 = arith.constant 1.000000e+00 : f32
    %854 = vector.broadcast %cst_218 : f32 to vector<2x32xf32>
    %855 = arith.addf %854, %853 : vector<2x32xf32>
    %856 = arith.divf %854, %855 : vector<2x32xf32>
    %857 = arith.mulf %848, %797 : vector<2x32xf32>
    %858 = arith.mulf %842, %850 : vector<2x32xf32>
    %859 = arith.addf %857, %858 : vector<2x32xf32>
    %860 = math.tanh %859 : vector<2x32xf32>
    %861 = arith.mulf %856, %860 : vector<2x32xf32>
    %862 = vector.extract_strided_slice %836 {offsets = [0, 0], sizes = [2, 32], strides = [1, 1]} : vector<2x128xf32> to vector<2x32xf32>
    %863 = arith.negf %862 : vector<2x32xf32>
    %864 = math.exp %863 : vector<2x32xf32>
    %cst_219 = arith.constant 1.000000e+00 : f32
    %865 = vector.broadcast %cst_219 : f32 to vector<2x32xf32>
    %866 = arith.addf %865, %864 : vector<2x32xf32>
    %867 = arith.divf %865, %866 : vector<2x32xf32>
    %868 = vector.extract_strided_slice %836 {offsets = [0, 32], sizes = [2, 32], strides = [1, 1]} : vector<2x128xf32> to vector<2x32xf32>
    %869 = arith.negf %868 : vector<2x32xf32>
    %870 = math.exp %869 : vector<2x32xf32>
    %cst_220 = arith.constant 1.000000e+00 : f32
    %871 = vector.broadcast %cst_220 : f32 to vector<2x32xf32>
    %872 = arith.addf %871, %870 : vector<2x32xf32>
    %873 = arith.divf %871, %872 : vector<2x32xf32>
    %874 = vector.extract_strided_slice %836 {offsets = [0, 64], sizes = [2, 32], strides = [1, 1]} : vector<2x128xf32> to vector<2x32xf32>
    %875 = math.tanh %874 : vector<2x32xf32>
    %876 = vector.extract_strided_slice %836 {offsets = [0, 96], sizes = [2, 32], strides = [1, 1]} : vector<2x128xf32> to vector<2x32xf32>
    %877 = arith.negf %876 : vector<2x32xf32>
    %878 = math.exp %877 : vector<2x32xf32>
    %cst_221 = arith.constant 1.000000e+00 : f32
    %879 = vector.broadcast %cst_221 : f32 to vector<2x32xf32>
    %880 = arith.addf %879, %878 : vector<2x32xf32>
    %881 = arith.divf %879, %880 : vector<2x32xf32>
    %882 = arith.mulf %873, %822 : vector<2x32xf32>
    %883 = arith.mulf %867, %875 : vector<2x32xf32>
    %884 = arith.addf %882, %883 : vector<2x32xf32>
    %885 = math.tanh %884 : vector<2x32xf32>
    %886 = arith.mulf %881, %885 : vector<2x32xf32>
    %887 = arith.truncf %861 : vector<2x32xf32> to vector<2x32xbf16>
    %c26_222 = arith.constant 26 : index
    %c0_223 = arith.constant 0 : index
    %888 = vector.load %arg9[%c26_222, %c0_223] : memref<64x32xbf16, #tpu.memory_space<vmem>>, vector<2x32xbf16>
    tpu.vector_store %arg9[%c26_222, %c0_223], %887 {strides = array<i32>} : memref<64x32xbf16, #tpu.memory_space<vmem>>, vector<2x32xbf16>,
    %889 = arith.truncf %886 : vector<2x32xf32> to vector<2x32xbf16>
    %c36_224 = arith.constant 36 : index
    %c0_225 = arith.constant 0 : index
    %890 = vector.load %arg10[%c36_224, %c0_225] : memref<64x32xbf16, #tpu.memory_space<vmem>>, vector<2x32xbf16>
    tpu.vector_store %arg10[%c36_224, %c0_225], %889 {strides = array<i32>} : memref<64x32xbf16, #tpu.memory_space<vmem>>, vector<2x32xbf16>,
    %c28 = arith.constant 28 : index
    %c0_226 = arith.constant 0 : index
    %891 = vector.load %arg11[%c28, %c0_226] : memref<64x128xf32, #tpu.memory_space<vmem>>, vector<2x128xf32>
    %892 = arith.truncf %861 : vector<2x32xf32> to vector<2x32xbf16>
    %cst_227 = arith.constant dense<0.000000e+00> : vector<2x128xf32>
    %893 = tpu.matmul %892, %17, %cst_227 {dimension_numbers = #tpu.dot_dimension_numbers<[1], [0], [0], [1], [0, 0, 1, 1], [], []>} : vector<2x32xbf16>, vector<32x128xbf16>, vector<2x128xf32> -> vector<2x128xf32>
    %894 = arith.addf %891, %893 : vector<2x128xf32>
    %c34 = arith.constant 34 : index
    %c0_228 = arith.constant 0 : index
    %895 = vector.load %arg12[%c34, %c0_228] : memref<64x128xf32, #tpu.memory_space<vmem>>, vector<2x128xf32>
    %896 = arith.truncf %886 : vector<2x32xf32> to vector<2x32xbf16>
    %cst_229 = arith.constant dense<0.000000e+00> : vector<2x128xf32>
    %897 = tpu.matmul %896, %18, %cst_229 {dimension_numbers = #tpu.dot_dimension_numbers<[1], [0], [0], [1], [0, 0, 1, 1], [], []>} : vector<2x32xbf16>, vector<32x128xbf16>, vector<2x128xf32> -> vector<2x128xf32>
    %898 = arith.addf %895, %897 : vector<2x128xf32>
    %899 = vector.extract_strided_slice %894 {offsets = [0, 0], sizes = [2, 32], strides = [1, 1]} : vector<2x128xf32> to vector<2x32xf32>
    %900 = arith.negf %899 : vector<2x32xf32>
    %901 = math.exp %900 : vector<2x32xf32>
    %cst_230 = arith.constant 1.000000e+00 : f32
    %902 = vector.broadcast %cst_230 : f32 to vector<2x32xf32>
    %903 = arith.addf %902, %901 : vector<2x32xf32>
    %904 = arith.divf %902, %903 : vector<2x32xf32>
    %905 = vector.extract_strided_slice %894 {offsets = [0, 32], sizes = [2, 32], strides = [1, 1]} : vector<2x128xf32> to vector<2x32xf32>
    %906 = arith.negf %905 : vector<2x32xf32>
    %907 = math.exp %906 : vector<2x32xf32>
    %cst_231 = arith.constant 1.000000e+00 : f32
    %908 = vector.broadcast %cst_231 : f32 to vector<2x32xf32>
    %909 = arith.addf %908, %907 : vector<2x32xf32>
    %910 = arith.divf %908, %909 : vector<2x32xf32>
    %911 = vector.extract_strided_slice %894 {offsets = [0, 64], sizes = [2, 32], strides = [1, 1]} : vector<2x128xf32> to vector<2x32xf32>
    %912 = math.tanh %911 : vector<2x32xf32>
    %913 = vector.extract_strided_slice %894 {offsets = [0, 96], sizes = [2, 32], strides = [1, 1]} : vector<2x128xf32> to vector<2x32xf32>
    %914 = arith.negf %913 : vector<2x32xf32>
    %915 = math.exp %914 : vector<2x32xf32>
    %cst_232 = arith.constant 1.000000e+00 : f32
    %916 = vector.broadcast %cst_232 : f32 to vector<2x32xf32>
    %917 = arith.addf %916, %915 : vector<2x32xf32>
    %918 = arith.divf %916, %917 : vector<2x32xf32>
    %919 = arith.mulf %910, %859 : vector<2x32xf32>
    %920 = arith.mulf %904, %912 : vector<2x32xf32>
    %921 = arith.addf %919, %920 : vector<2x32xf32>
    %922 = math.tanh %921 : vector<2x32xf32>
    %923 = arith.mulf %918, %922 : vector<2x32xf32>
    %924 = vector.extract_strided_slice %898 {offsets = [0, 0], sizes = [2, 32], strides = [1, 1]} : vector<2x128xf32> to vector<2x32xf32>
    %925 = arith.negf %924 : vector<2x32xf32>
    %926 = math.exp %925 : vector<2x32xf32>
    %cst_233 = arith.constant 1.000000e+00 : f32
    %927 = vector.broadcast %cst_233 : f32 to vector<2x32xf32>
    %928 = arith.addf %927, %926 : vector<2x32xf32>
    %929 = arith.divf %927, %928 : vector<2x32xf32>
    %930 = vector.extract_strided_slice %898 {offsets = [0, 32], sizes = [2, 32], strides = [1, 1]} : vector<2x128xf32> to vector<2x32xf32>
    %931 = arith.negf %930 : vector<2x32xf32>
    %932 = math.exp %931 : vector<2x32xf32>
    %cst_234 = arith.constant 1.000000e+00 : f32
    %933 = vector.broadcast %cst_234 : f32 to vector<2x32xf32>
    %934 = arith.addf %933, %932 : vector<2x32xf32>
    %935 = arith.divf %933, %934 : vector<2x32xf32>
    %936 = vector.extract_strided_slice %898 {offsets = [0, 64], sizes = [2, 32], strides = [1, 1]} : vector<2x128xf32> to vector<2x32xf32>
    %937 = math.tanh %936 : vector<2x32xf32>
    %938 = vector.extract_strided_slice %898 {offsets = [0, 96], sizes = [2, 32], strides = [1, 1]} : vector<2x128xf32> to vector<2x32xf32>
    %939 = arith.negf %938 : vector<2x32xf32>
    %940 = math.exp %939 : vector<2x32xf32>
    %cst_235 = arith.constant 1.000000e+00 : f32
    %941 = vector.broadcast %cst_235 : f32 to vector<2x32xf32>
    %942 = arith.addf %941, %940 : vector<2x32xf32>
    %943 = arith.divf %941, %942 : vector<2x32xf32>
    %944 = arith.mulf %935, %884 : vector<2x32xf32>
    %945 = arith.mulf %929, %937 : vector<2x32xf32>
    %946 = arith.addf %944, %945 : vector<2x32xf32>
    %947 = math.tanh %946 : vector<2x32xf32>
    %948 = arith.mulf %943, %947 : vector<2x32xf32>
    %949 = arith.truncf %923 : vector<2x32xf32> to vector<2x32xbf16>
    %c28_236 = arith.constant 28 : index
    %c0_237 = arith.constant 0 : index
    %950 = vector.load %arg9[%c28_236, %c0_237] : memref<64x32xbf16, #tpu.memory_space<vmem>>, vector<2x32xbf16>
    tpu.vector_store %arg9[%c28_236, %c0_237], %949 {strides = array<i32>} : memref<64x32xbf16, #tpu.memory_space<vmem>>, vector<2x32xbf16>,
    %951 = arith.truncf %948 : vector<2x32xf32> to vector<2x32xbf16>
    %c34_238 = arith.constant 34 : index
    %c0_239 = arith.constant 0 : index
    %952 = vector.load %arg10[%c34_238, %c0_239] : memref<64x32xbf16, #tpu.memory_space<vmem>>, vector<2x32xbf16>
    tpu.vector_store %arg10[%c34_238, %c0_239], %951 {strides = array<i32>} : memref<64x32xbf16, #tpu.memory_space<vmem>>, vector<2x32xbf16>,
    %c30 = arith.constant 30 : index
    %c0_240 = arith.constant 0 : index
    %953 = vector.load %arg11[%c30, %c0_240] : memref<64x128xf32, #tpu.memory_space<vmem>>, vector<2x128xf32>
    %954 = arith.truncf %923 : vector<2x32xf32> to vector<2x32xbf16>
    %cst_241 = arith.constant dense<0.000000e+00> : vector<2x128xf32>
    %955 = tpu.matmul %954, %17, %cst_241 {dimension_numbers = #tpu.dot_dimension_numbers<[1], [0], [0], [1], [0, 0, 1, 1], [], []>} : vector<2x32xbf16>, vector<32x128xbf16>, vector<2x128xf32> -> vector<2x128xf32>
    %956 = arith.addf %953, %955 : vector<2x128xf32>
    %c32 = arith.constant 32 : index
    %c0_242 = arith.constant 0 : index
    %957 = vector.load %arg12[%c32, %c0_242] : memref<64x128xf32, #tpu.memory_space<vmem>>, vector<2x128xf32>
    %958 = arith.truncf %948 : vector<2x32xf32> to vector<2x32xbf16>
    %cst_243 = arith.constant dense<0.000000e+00> : vector<2x128xf32>
    %959 = tpu.matmul %958, %18, %cst_243 {dimension_numbers = #tpu.dot_dimension_numbers<[1], [0], [0], [1], [0, 0, 1, 1], [], []>} : vector<2x32xbf16>, vector<32x128xbf16>, vector<2x128xf32> -> vector<2x128xf32>
    %960 = arith.addf %957, %959 : vector<2x128xf32>
    %961 = vector.extract_strided_slice %956 {offsets = [0, 0], sizes = [2, 32], strides = [1, 1]} : vector<2x128xf32> to vector<2x32xf32>
    %962 = arith.negf %961 : vector<2x32xf32>
    %963 = math.exp %962 : vector<2x32xf32>
    %cst_244 = arith.constant 1.000000e+00 : f32
    %964 = vector.broadcast %cst_244 : f32 to vector<2x32xf32>
    %965 = arith.addf %964, %963 : vector<2x32xf32>
    %966 = arith.divf %964, %965 : vector<2x32xf32>
    %967 = vector.extract_strided_slice %956 {offsets = [0, 32], sizes = [2, 32], strides = [1, 1]} : vector<2x128xf32> to vector<2x32xf32>
    %968 = arith.negf %967 : vector<2x32xf32>
    %969 = math.exp %968 : vector<2x32xf32>
    %cst_245 = arith.constant 1.000000e+00 : f32
    %970 = vector.broadcast %cst_245 : f32 to vector<2x32xf32>
    %971 = arith.addf %970, %969 : vector<2x32xf32>
    %972 = arith.divf %970, %971 : vector<2x32xf32>
    %973 = vector.extract_strided_slice %956 {offsets = [0, 64], sizes = [2, 32], strides = [1, 1]} : vector<2x128xf32> to vector<2x32xf32>
    %974 = math.tanh %973 : vector<2x32xf32>
    %975 = vector.extract_strided_slice %956 {offsets = [0, 96], sizes = [2, 32], strides = [1, 1]} : vector<2x128xf32> to vector<2x32xf32>
    %976 = arith.negf %975 : vector<2x32xf32>
    %977 = math.exp %976 : vector<2x32xf32>
    %cst_246 = arith.constant 1.000000e+00 : f32
    %978 = vector.broadcast %cst_246 : f32 to vector<2x32xf32>
    %979 = arith.addf %978, %977 : vector<2x32xf32>
    %980 = arith.divf %978, %979 : vector<2x32xf32>
    %981 = arith.mulf %972, %921 : vector<2x32xf32>
    %982 = arith.mulf %966, %974 : vector<2x32xf32>
    %983 = arith.addf %981, %982 : vector<2x32xf32>
    %984 = math.tanh %983 : vector<2x32xf32>
    %985 = arith.mulf %980, %984 : vector<2x32xf32>
    %986 = vector.extract_strided_slice %960 {offsets = [0, 0], sizes = [2, 32], strides = [1, 1]} : vector<2x128xf32> to vector<2x32xf32>
    %987 = arith.negf %986 : vector<2x32xf32>
    %988 = math.exp %987 : vector<2x32xf32>
    %cst_247 = arith.constant 1.000000e+00 : f32
    %989 = vector.broadcast %cst_247 : f32 to vector<2x32xf32>
    %990 = arith.addf %989, %988 : vector<2x32xf32>
    %991 = arith.divf %989, %990 : vector<2x32xf32>
    %992 = vector.extract_strided_slice %960 {offsets = [0, 32], sizes = [2, 32], strides = [1, 1]} : vector<2x128xf32> to vector<2x32xf32>
    %993 = arith.negf %992 : vector<2x32xf32>
    %994 = math.exp %993 : vector<2x32xf32>
    %cst_248 = arith.constant 1.000000e+00 : f32
    %995 = vector.broadcast %cst_248 : f32 to vector<2x32xf32>
    %996 = arith.addf %995, %994 : vector<2x32xf32>
    %997 = arith.divf %995, %996 : vector<2x32xf32>
    %998 = vector.extract_strided_slice %960 {offsets = [0, 64], sizes = [2, 32], strides = [1, 1]} : vector<2x128xf32> to vector<2x32xf32>
    %999 = math.tanh %998 : vector<2x32xf32>
    %1000 = vector.extract_strided_slice %960 {offsets = [0, 96], sizes = [2, 32], strides = [1, 1]} : vector<2x128xf32> to vector<2x32xf32>
    %1001 = arith.negf %1000 : vector<2x32xf32>
    %1002 = math.exp %1001 : vector<2x32xf32>
    %cst_249 = arith.constant 1.000000e+00 : f32
    %1003 = vector.broadcast %cst_249 : f32 to vector<2x32xf32>
    %1004 = arith.addf %1003, %1002 : vector<2x32xf32>
    %1005 = arith.divf %1003, %1004 : vector<2x32xf32>
    %1006 = arith.mulf %997, %946 : vector<2x32xf32>
    %1007 = arith.mulf %991, %999 : vector<2x32xf32>
    %1008 = arith.addf %1006, %1007 : vector<2x32xf32>
    %1009 = math.tanh %1008 : vector<2x32xf32>
    %1010 = arith.mulf %1005, %1009 : vector<2x32xf32>
    %1011 = arith.truncf %985 : vector<2x32xf32> to vector<2x32xbf16>
    %c30_250 = arith.constant 30 : index
    %c0_251 = arith.constant 0 : index
    %1012 = vector.load %arg9[%c30_250, %c0_251] : memref<64x32xbf16, #tpu.memory_space<vmem>>, vector<2x32xbf16>
    tpu.vector_store %arg9[%c30_250, %c0_251], %1011 {strides = array<i32>} : memref<64x32xbf16, #tpu.memory_space<vmem>>, vector<2x32xbf16>,
    %1013 = arith.truncf %1010 : vector<2x32xf32> to vector<2x32xbf16>
    %c32_252 = arith.constant 32 : index
    %c0_253 = arith.constant 0 : index
    %1014 = vector.load %arg10[%c32_252, %c0_253] : memref<64x32xbf16, #tpu.memory_space<vmem>>, vector<2x32xbf16>
    tpu.vector_store %arg10[%c32_252, %c0_253], %1013 {strides = array<i32>} : memref<64x32xbf16, #tpu.memory_space<vmem>>, vector<2x32xbf16>,
    %c32_254 = arith.constant 32 : index
    %c0_255 = arith.constant 0 : index
    %1015 = vector.load %arg11[%c32_254, %c0_255] : memref<64x128xf32, #tpu.memory_space<vmem>>, vector<2x128xf32>
    %1016 = arith.truncf %985 : vector<2x32xf32> to vector<2x32xbf16>
    %cst_256 = arith.constant dense<0.000000e+00> : vector<2x128xf32>
    %1017 = tpu.matmul %1016, %17, %cst_256 {dimension_numbers = #tpu.dot_dimension_numbers<[1], [0], [0], [1], [0, 0, 1, 1], [], []>} : vector<2x32xbf16>, vector<32x128xbf16>, vector<2x128xf32> -> vector<2x128xf32>
    %1018 = arith.addf %1015, %1017 : vector<2x128xf32>
    %c30_257 = arith.constant 30 : index
    %c0_258 = arith.constant 0 : index
    %1019 = vector.load %arg12[%c30_257, %c0_258] : memref<64x128xf32, #tpu.memory_space<vmem>>, vector<2x128xf32>
    %1020 = arith.truncf %1010 : vector<2x32xf32> to vector<2x32xbf16>
    %cst_259 = arith.constant dense<0.000000e+00> : vector<2x128xf32>
    %1021 = tpu.matmul %1020, %18, %cst_259 {dimension_numbers = #tpu.dot_dimension_numbers<[1], [0], [0], [1], [0, 0, 1, 1], [], []>} : vector<2x32xbf16>, vector<32x128xbf16>, vector<2x128xf32> -> vector<2x128xf32>
    %1022 = arith.addf %1019, %1021 : vector<2x128xf32>
    %1023 = vector.extract_strided_slice %1018 {offsets = [0, 0], sizes = [2, 32], strides = [1, 1]} : vector<2x128xf32> to vector<2x32xf32>
    %1024 = arith.negf %1023 : vector<2x32xf32>
    %1025 = math.exp %1024 : vector<2x32xf32>
    %cst_260 = arith.constant 1.000000e+00 : f32
    %1026 = vector.broadcast %cst_260 : f32 to vector<2x32xf32>
    %1027 = arith.addf %1026, %1025 : vector<2x32xf32>
    %1028 = arith.divf %1026, %1027 : vector<2x32xf32>
    %1029 = vector.extract_strided_slice %1018 {offsets = [0, 32], sizes = [2, 32], strides = [1, 1]} : vector<2x128xf32> to vector<2x32xf32>
    %1030 = arith.negf %1029 : vector<2x32xf32>
    %1031 = math.exp %1030 : vector<2x32xf32>
    %cst_261 = arith.constant 1.000000e+00 : f32
    %1032 = vector.broadcast %cst_261 : f32 to vector<2x32xf32>
    %1033 = arith.addf %1032, %1031 : vector<2x32xf32>
    %1034 = arith.divf %1032, %1033 : vector<2x32xf32>
    %1035 = vector.extract_strided_slice %1018 {offsets = [0, 64], sizes = [2, 32], strides = [1, 1]} : vector<2x128xf32> to vector<2x32xf32>
    %1036 = math.tanh %1035 : vector<2x32xf32>
    %1037 = vector.extract_strided_slice %1018 {offsets = [0, 96], sizes = [2, 32], strides = [1, 1]} : vector<2x128xf32> to vector<2x32xf32>
    %1038 = arith.negf %1037 : vector<2x32xf32>
    %1039 = math.exp %1038 : vector<2x32xf32>
    %cst_262 = arith.constant 1.000000e+00 : f32
    %1040 = vector.broadcast %cst_262 : f32 to vector<2x32xf32>
    %1041 = arith.addf %1040, %1039 : vector<2x32xf32>
    %1042 = arith.divf %1040, %1041 : vector<2x32xf32>
    %1043 = arith.mulf %1034, %983 : vector<2x32xf32>
    %1044 = arith.mulf %1028, %1036 : vector<2x32xf32>
    %1045 = arith.addf %1043, %1044 : vector<2x32xf32>
    %1046 = math.tanh %1045 : vector<2x32xf32>
    %1047 = arith.mulf %1042, %1046 : vector<2x32xf32>
    %1048 = vector.extract_strided_slice %1022 {offsets = [0, 0], sizes = [2, 32], strides = [1, 1]} : vector<2x128xf32> to vector<2x32xf32>
    %1049 = arith.negf %1048 : vector<2x32xf32>
    %1050 = math.exp %1049 : vector<2x32xf32>
    %cst_263 = arith.constant 1.000000e+00 : f32
    %1051 = vector.broadcast %cst_263 : f32 to vector<2x32xf32>
    %1052 = arith.addf %1051, %1050 : vector<2x32xf32>
    %1053 = arith.divf %1051, %1052 : vector<2x32xf32>
    %1054 = vector.extract_strided_slice %1022 {offsets = [0, 32], sizes = [2, 32], strides = [1, 1]} : vector<2x128xf32> to vector<2x32xf32>
    %1055 = arith.negf %1054 : vector<2x32xf32>
    %1056 = math.exp %1055 : vector<2x32xf32>
    %cst_264 = arith.constant 1.000000e+00 : f32
    %1057 = vector.broadcast %cst_264 : f32 to vector<2x32xf32>
    %1058 = arith.addf %1057, %1056 : vector<2x32xf32>
    %1059 = arith.divf %1057, %1058 : vector<2x32xf32>
    %1060 = vector.extract_strided_slice %1022 {offsets = [0, 64], sizes = [2, 32], strides = [1, 1]} : vector<2x128xf32> to vector<2x32xf32>
    %1061 = math.tanh %1060 : vector<2x32xf32>
    %1062 = vector.extract_strided_slice %1022 {offsets = [0, 96], sizes = [2, 32], strides = [1, 1]} : vector<2x128xf32> to vector<2x32xf32>
    %1063 = arith.negf %1062 : vector<2x32xf32>
    %1064 = math.exp %1063 : vector<2x32xf32>
    %cst_265 = arith.constant 1.000000e+00 : f32
    %1065 = vector.broadcast %cst_265 : f32 to vector<2x32xf32>
    %1066 = arith.addf %1065, %1064 : vector<2x32xf32>
    %1067 = arith.divf %1065, %1066 : vector<2x32xf32>
    %1068 = arith.mulf %1059, %1008 : vector<2x32xf32>
    %1069 = arith.mulf %1053, %1061 : vector<2x32xf32>
    %1070 = arith.addf %1068, %1069 : vector<2x32xf32>
    %1071 = math.tanh %1070 : vector<2x32xf32>
    %1072 = arith.mulf %1067, %1071 : vector<2x32xf32>
    %1073 = arith.truncf %1047 : vector<2x32xf32> to vector<2x32xbf16>
    %c32_266 = arith.constant 32 : index
    %c0_267 = arith.constant 0 : index
    %1074 = vector.load %arg9[%c32_266, %c0_267] : memref<64x32xbf16, #tpu.memory_space<vmem>>, vector<2x32xbf16>
    tpu.vector_store %arg9[%c32_266, %c0_267], %1073 {strides = array<i32>} : memref<64x32xbf16, #tpu.memory_space<vmem>>, vector<2x32xbf16>,
    %1075 = arith.truncf %1072 : vector<2x32xf32> to vector<2x32xbf16>
    %c30_268 = arith.constant 30 : index
    %c0_269 = arith.constant 0 : index
    %1076 = vector.load %arg10[%c30_268, %c0_269] : memref<64x32xbf16, #tpu.memory_space<vmem>>, vector<2x32xbf16>
    tpu.vector_store %arg10[%c30_268, %c0_269], %1075 {strides = array<i32>} : memref<64x32xbf16, #tpu.memory_space<vmem>>, vector<2x32xbf16>,
    %c34_270 = arith.constant 34 : index
    %c0_271 = arith.constant 0 : index
    %1077 = vector.load %arg11[%c34_270, %c0_271] : memref<64x128xf32, #tpu.memory_space<vmem>>, vector<2x128xf32>
    %1078 = arith.truncf %1047 : vector<2x32xf32> to vector<2x32xbf16>
    %cst_272 = arith.constant dense<0.000000e+00> : vector<2x128xf32>
    %1079 = tpu.matmul %1078, %17, %cst_272 {dimension_numbers = #tpu.dot_dimension_numbers<[1], [0], [0], [1], [0, 0, 1, 1], [], []>} : vector<2x32xbf16>, vector<32x128xbf16>, vector<2x128xf32> -> vector<2x128xf32>
    %1080 = arith.addf %1077, %1079 : vector<2x128xf32>
    %c28_273 = arith.constant 28 : index
    %c0_274 = arith.constant 0 : index
    %1081 = vector.load %arg12[%c28_273, %c0_274] : memref<64x128xf32, #tpu.memory_space<vmem>>, vector<2x128xf32>
    %1082 = arith.truncf %1072 : vector<2x32xf32> to vector<2x32xbf16>
    %cst_275 = arith.constant dense<0.000000e+00> : vector<2x128xf32>
    %1083 = tpu.matmul %1082, %18, %cst_275 {dimension_numbers = #tpu.dot_dimension_numbers<[1], [0], [0], [1], [0, 0, 1, 1], [], []>} : vector<2x32xbf16>, vector<32x128xbf16>, vector<2x128xf32> -> vector<2x128xf32>
    %1084 = arith.addf %1081, %1083 : vector<2x128xf32>
    %1085 = vector.extract_strided_slice %1080 {offsets = [0, 0], sizes = [2, 32], strides = [1, 1]} : vector<2x128xf32> to vector<2x32xf32>
    %1086 = arith.negf %1085 : vector<2x32xf32>
    %1087 = math.exp %1086 : vector<2x32xf32>
    %cst_276 = arith.constant 1.000000e+00 : f32
    %1088 = vector.broadcast %cst_276 : f32 to vector<2x32xf32>
    %1089 = arith.addf %1088, %1087 : vector<2x32xf32>
    %1090 = arith.divf %1088, %1089 : vector<2x32xf32>
    %1091 = vector.extract_strided_slice %1080 {offsets = [0, 32], sizes = [2, 32], strides = [1, 1]} : vector<2x128xf32> to vector<2x32xf32>
    %1092 = arith.negf %1091 : vector<2x32xf32>
    %1093 = math.exp %1092 : vector<2x32xf32>
    %cst_277 = arith.constant 1.000000e+00 : f32
    %1094 = vector.broadcast %cst_277 : f32 to vector<2x32xf32>
    %1095 = arith.addf %1094, %1093 : vector<2x32xf32>
    %1096 = arith.divf %1094, %1095 : vector<2x32xf32>
    %1097 = vector.extract_strided_slice %1080 {offsets = [0, 64], sizes = [2, 32], strides = [1, 1]} : vector<2x128xf32> to vector<2x32xf32>
    %1098 = math.tanh %1097 : vector<2x32xf32>
    %1099 = vector.extract_strided_slice %1080 {offsets = [0, 96], sizes = [2, 32], strides = [1, 1]} : vector<2x128xf32> to vector<2x32xf32>
    %1100 = arith.negf %1099 : vector<2x32xf32>
    %1101 = math.exp %1100 : vector<2x32xf32>
    %cst_278 = arith.constant 1.000000e+00 : f32
    %1102 = vector.broadcast %cst_278 : f32 to vector<2x32xf32>
    %1103 = arith.addf %1102, %1101 : vector<2x32xf32>
    %1104 = arith.divf %1102, %1103 : vector<2x32xf32>
    %1105 = arith.mulf %1096, %1045 : vector<2x32xf32>
    %1106 = arith.mulf %1090, %1098 : vector<2x32xf32>
    %1107 = arith.addf %1105, %1106 : vector<2x32xf32>
    %1108 = math.tanh %1107 : vector<2x32xf32>
    %1109 = arith.mulf %1104, %1108 : vector<2x32xf32>
    %1110 = vector.extract_strided_slice %1084 {offsets = [0, 0], sizes = [2, 32], strides = [1, 1]} : vector<2x128xf32> to vector<2x32xf32>
    %1111 = arith.negf %1110 : vector<2x32xf32>
    %1112 = math.exp %1111 : vector<2x32xf32>
    %cst_279 = arith.constant 1.000000e+00 : f32
    %1113 = vector.broadcast %cst_279 : f32 to vector<2x32xf32>
    %1114 = arith.addf %1113, %1112 : vector<2x32xf32>
    %1115 = arith.divf %1113, %1114 : vector<2x32xf32>
    %1116 = vector.extract_strided_slice %1084 {offsets = [0, 32], sizes = [2, 32], strides = [1, 1]} : vector<2x128xf32> to vector<2x32xf32>
    %1117 = arith.negf %1116 : vector<2x32xf32>
    %1118 = math.exp %1117 : vector<2x32xf32>
    %cst_280 = arith.constant 1.000000e+00 : f32
    %1119 = vector.broadcast %cst_280 : f32 to vector<2x32xf32>
    %1120 = arith.addf %1119, %1118 : vector<2x32xf32>
    %1121 = arith.divf %1119, %1120 : vector<2x32xf32>
    %1122 = vector.extract_strided_slice %1084 {offsets = [0, 64], sizes = [2, 32], strides = [1, 1]} : vector<2x128xf32> to vector<2x32xf32>
    %1123 = math.tanh %1122 : vector<2x32xf32>
    %1124 = vector.extract_strided_slice %1084 {offsets = [0, 96], sizes = [2, 32], strides = [1, 1]} : vector<2x128xf32> to vector<2x32xf32>
    %1125 = arith.negf %1124 : vector<2x32xf32>
    %1126 = math.exp %1125 : vector<2x32xf32>
    %cst_281 = arith.constant 1.000000e+00 : f32
    %1127 = vector.broadcast %cst_281 : f32 to vector<2x32xf32>
    %1128 = arith.addf %1127, %1126 : vector<2x32xf32>
    %1129 = arith.divf %1127, %1128 : vector<2x32xf32>
    %1130 = arith.mulf %1121, %1070 : vector<2x32xf32>
    %1131 = arith.mulf %1115, %1123 : vector<2x32xf32>
    %1132 = arith.addf %1130, %1131 : vector<2x32xf32>
    %1133 = math.tanh %1132 : vector<2x32xf32>
    %1134 = arith.mulf %1129, %1133 : vector<2x32xf32>
    %1135 = arith.truncf %1109 : vector<2x32xf32> to vector<2x32xbf16>
    %c34_282 = arith.constant 34 : index
    %c0_283 = arith.constant 0 : index
    %1136 = vector.load %arg9[%c34_282, %c0_283] : memref<64x32xbf16, #tpu.memory_space<vmem>>, vector<2x32xbf16>
    tpu.vector_store %arg9[%c34_282, %c0_283], %1135 {strides = array<i32>} : memref<64x32xbf16, #tpu.memory_space<vmem>>, vector<2x32xbf16>,
    %1137 = arith.truncf %1134 : vector<2x32xf32> to vector<2x32xbf16>
    %c28_284 = arith.constant 28 : index
    %c0_285 = arith.constant 0 : index
    %1138 = vector.load %arg10[%c28_284, %c0_285] : memref<64x32xbf16, #tpu.memory_space<vmem>>, vector<2x32xbf16>
    tpu.vector_store %arg10[%c28_284, %c0_285], %1137 {strides = array<i32>} : memref<64x32xbf16, #tpu.memory_space<vmem>>, vector<2x32xbf16>,
    %c36_286 = arith.constant 36 : index
    %c0_287 = arith.constant 0 : index
    %1139 = vector.load %arg11[%c36_286, %c0_287] : memref<64x128xf32, #tpu.memory_space<vmem>>, vector<2x128xf32>
    %1140 = arith.truncf %1109 : vector<2x32xf32> to vector<2x32xbf16>
    %cst_288 = arith.constant dense<0.000000e+00> : vector<2x128xf32>
    %1141 = tpu.matmul %1140, %17, %cst_288 {dimension_numbers = #tpu.dot_dimension_numbers<[1], [0], [0], [1], [0, 0, 1, 1], [], []>} : vector<2x32xbf16>, vector<32x128xbf16>, vector<2x128xf32> -> vector<2x128xf32>
    %1142 = arith.addf %1139, %1141 : vector<2x128xf32>
    %c26_289 = arith.constant 26 : index
    %c0_290 = arith.constant 0 : index
    %1143 = vector.load %arg12[%c26_289, %c0_290] : memref<64x128xf32, #tpu.memory_space<vmem>>, vector<2x128xf32>
    %1144 = arith.truncf %1134 : vector<2x32xf32> to vector<2x32xbf16>
    %cst_291 = arith.constant dense<0.000000e+00> : vector<2x128xf32>
    %1145 = tpu.matmul %1144, %18, %cst_291 {dimension_numbers = #tpu.dot_dimension_numbers<[1], [0], [0], [1], [0, 0, 1, 1], [], []>} : vector<2x32xbf16>, vector<32x128xbf16>, vector<2x128xf32> -> vector<2x128xf32>
    %1146 = arith.addf %1143, %1145 : vector<2x128xf32>
    %1147 = vector.extract_strided_slice %1142 {offsets = [0, 0], sizes = [2, 32], strides = [1, 1]} : vector<2x128xf32> to vector<2x32xf32>
    %1148 = arith.negf %1147 : vector<2x32xf32>
    %1149 = math.exp %1148 : vector<2x32xf32>
    %cst_292 = arith.constant 1.000000e+00 : f32
    %1150 = vector.broadcast %cst_292 : f32 to vector<2x32xf32>
    %1151 = arith.addf %1150, %1149 : vector<2x32xf32>
    %1152 = arith.divf %1150, %1151 : vector<2x32xf32>
    %1153 = vector.extract_strided_slice %1142 {offsets = [0, 32], sizes = [2, 32], strides = [1, 1]} : vector<2x128xf32> to vector<2x32xf32>
    %1154 = arith.negf %1153 : vector<2x32xf32>
    %1155 = math.exp %1154 : vector<2x32xf32>
    %cst_293 = arith.constant 1.000000e+00 : f32
    %1156 = vector.broadcast %cst_293 : f32 to vector<2x32xf32>
    %1157 = arith.addf %1156, %1155 : vector<2x32xf32>
    %1158 = arith.divf %1156, %1157 : vector<2x32xf32>
    %1159 = vector.extract_strided_slice %1142 {offsets = [0, 64], sizes = [2, 32], strides = [1, 1]} : vector<2x128xf32> to vector<2x32xf32>
    %1160 = math.tanh %1159 : vector<2x32xf32>
    %1161 = vector.extract_strided_slice %1142 {offsets = [0, 96], sizes = [2, 32], strides = [1, 1]} : vector<2x128xf32> to vector<2x32xf32>
    %1162 = arith.negf %1161 : vector<2x32xf32>
    %1163 = math.exp %1162 : vector<2x32xf32>
    %cst_294 = arith.constant 1.000000e+00 : f32
    %1164 = vector.broadcast %cst_294 : f32 to vector<2x32xf32>
    %1165 = arith.addf %1164, %1163 : vector<2x32xf32>
    %1166 = arith.divf %1164, %1165 : vector<2x32xf32>
    %1167 = arith.mulf %1158, %1107 : vector<2x32xf32>
    %1168 = arith.mulf %1152, %1160 : vector<2x32xf32>
    %1169 = arith.addf %1167, %1168 : vector<2x32xf32>
    %1170 = math.tanh %1169 : vector<2x32xf32>
    %1171 = arith.mulf %1166, %1170 : vector<2x32xf32>
    %1172 = vector.extract_strided_slice %1146 {offsets = [0, 0], sizes = [2, 32], strides = [1, 1]} : vector<2x128xf32> to vector<2x32xf32>
    %1173 = arith.negf %1172 : vector<2x32xf32>
    %1174 = math.exp %1173 : vector<2x32xf32>
    %cst_295 = arith.constant 1.000000e+00 : f32
    %1175 = vector.broadcast %cst_295 : f32 to vector<2x32xf32>
    %1176 = arith.addf %1175, %1174 : vector<2x32xf32>
    %1177 = arith.divf %1175, %1176 : vector<2x32xf32>
    %1178 = vector.extract_strided_slice %1146 {offsets = [0, 32], sizes = [2, 32], strides = [1, 1]} : vector<2x128xf32> to vector<2x32xf32>
    %1179 = arith.negf %1178 : vector<2x32xf32>
    %1180 = math.exp %1179 : vector<2x32xf32>
    %cst_296 = arith.constant 1.000000e+00 : f32
    %1181 = vector.broadcast %cst_296 : f32 to vector<2x32xf32>
    %1182 = arith.addf %1181, %1180 : vector<2x32xf32>
    %1183 = arith.divf %1181, %1182 : vector<2x32xf32>
    %1184 = vector.extract_strided_slice %1146 {offsets = [0, 64], sizes = [2, 32], strides = [1, 1]} : vector<2x128xf32> to vector<2x32xf32>
    %1185 = math.tanh %1184 : vector<2x32xf32>
    %1186 = vector.extract_strided_slice %1146 {offsets = [0, 96], sizes = [2, 32], strides = [1, 1]} : vector<2x128xf32> to vector<2x32xf32>
    %1187 = arith.negf %1186 : vector<2x32xf32>
    %1188 = math.exp %1187 : vector<2x32xf32>
    %cst_297 = arith.constant 1.000000e+00 : f32
    %1189 = vector.broadcast %cst_297 : f32 to vector<2x32xf32>
    %1190 = arith.addf %1189, %1188 : vector<2x32xf32>
    %1191 = arith.divf %1189, %1190 : vector<2x32xf32>
    %1192 = arith.mulf %1183, %1132 : vector<2x32xf32>
    %1193 = arith.mulf %1177, %1185 : vector<2x32xf32>
    %1194 = arith.addf %1192, %1193 : vector<2x32xf32>
    %1195 = math.tanh %1194 : vector<2x32xf32>
    %1196 = arith.mulf %1191, %1195 : vector<2x32xf32>
    %1197 = arith.truncf %1171 : vector<2x32xf32> to vector<2x32xbf16>
    %c36_298 = arith.constant 36 : index
    %c0_299 = arith.constant 0 : index
    %1198 = vector.load %arg9[%c36_298, %c0_299] : memref<64x32xbf16, #tpu.memory_space<vmem>>, vector<2x32xbf16>
    tpu.vector_store %arg9[%c36_298, %c0_299], %1197 {strides = array<i32>} : memref<64x32xbf16, #tpu.memory_space<vmem>>, vector<2x32xbf16>,
    %1199 = arith.truncf %1196 : vector<2x32xf32> to vector<2x32xbf16>
    %c26_300 = arith.constant 26 : index
    %c0_301 = arith.constant 0 : index
    %1200 = vector.load %arg10[%c26_300, %c0_301] : memref<64x32xbf16, #tpu.memory_space<vmem>>, vector<2x32xbf16>
    tpu.vector_store %arg10[%c26_300, %c0_301], %1199 {strides = array<i32>} : memref<64x32xbf16, #tpu.memory_space<vmem>>, vector<2x32xbf16>,
    %c38_302 = arith.constant 38 : index
    %c0_303 = arith.constant 0 : index
    %1201 = vector.load %arg11[%c38_302, %c0_303] : memref<64x128xf32, #tpu.memory_space<vmem>>, vector<2x128xf32>
    %1202 = arith.truncf %1171 : vector<2x32xf32> to vector<2x32xbf16>
    %cst_304 = arith.constant dense<0.000000e+00> : vector<2x128xf32>
    %1203 = tpu.matmul %1202, %17, %cst_304 {dimension_numbers = #tpu.dot_dimension_numbers<[1], [0], [0], [1], [0, 0, 1, 1], [], []>} : vector<2x32xbf16>, vector<32x128xbf16>, vector<2x128xf32> -> vector<2x128xf32>
    %1204 = arith.addf %1201, %1203 : vector<2x128xf32>
    %c24_305 = arith.constant 24 : index
    %c0_306 = arith.constant 0 : index
    %1205 = vector.load %arg12[%c24_305, %c0_306] : memref<64x128xf32, #tpu.memory_space<vmem>>, vector<2x128xf32>
    %1206 = arith.truncf %1196 : vector<2x32xf32> to vector<2x32xbf16>
    %cst_307 = arith.constant dense<0.000000e+00> : vector<2x128xf32>
    %1207 = tpu.matmul %1206, %18, %cst_307 {dimension_numbers = #tpu.dot_dimension_numbers<[1], [0], [0], [1], [0, 0, 1, 1], [], []>} : vector<2x32xbf16>, vector<32x128xbf16>, vector<2x128xf32> -> vector<2x128xf32>
    %1208 = arith.addf %1205, %1207 : vector<2x128xf32>
    %1209 = vector.extract_strided_slice %1204 {offsets = [0, 0], sizes = [2, 32], strides = [1, 1]} : vector<2x128xf32> to vector<2x32xf32>
    %1210 = arith.negf %1209 : vector<2x32xf32>
    %1211 = math.exp %1210 : vector<2x32xf32>
    %cst_308 = arith.constant 1.000000e+00 : f32
    %1212 = vector.broadcast %cst_308 : f32 to vector<2x32xf32>
    %1213 = arith.addf %1212, %1211 : vector<2x32xf32>
    %1214 = arith.divf %1212, %1213 : vector<2x32xf32>
    %1215 = vector.extract_strided_slice %1204 {offsets = [0, 32], sizes = [2, 32], strides = [1, 1]} : vector<2x128xf32> to vector<2x32xf32>
    %1216 = arith.negf %1215 : vector<2x32xf32>
    %1217 = math.exp %1216 : vector<2x32xf32>
    %cst_309 = arith.constant 1.000000e+00 : f32
    %1218 = vector.broadcast %cst_309 : f32 to vector<2x32xf32>
    %1219 = arith.addf %1218, %1217 : vector<2x32xf32>
    %1220 = arith.divf %1218, %1219 : vector<2x32xf32>
    %1221 = vector.extract_strided_slice %1204 {offsets = [0, 64], sizes = [2, 32], strides = [1, 1]} : vector<2x128xf32> to vector<2x32xf32>
    %1222 = math.tanh %1221 : vector<2x32xf32>
    %1223 = vector.extract_strided_slice %1204 {offsets = [0, 96], sizes = [2, 32], strides = [1, 1]} : vector<2x128xf32> to vector<2x32xf32>
    %1224 = arith.negf %1223 : vector<2x32xf32>
    %1225 = math.exp %1224 : vector<2x32xf32>
    %cst_310 = arith.constant 1.000000e+00 : f32
    %1226 = vector.broadcast %cst_310 : f32 to vector<2x32xf32>
    %1227 = arith.addf %1226, %1225 : vector<2x32xf32>
    %1228 = arith.divf %1226, %1227 : vector<2x32xf32>
    %1229 = arith.mulf %1220, %1169 : vector<2x32xf32>
    %1230 = arith.mulf %1214, %1222 : vector<2x32xf32>
    %1231 = arith.addf %1229, %1230 : vector<2x32xf32>
    %1232 = math.tanh %1231 : vector<2x32xf32>
    %1233 = arith.mulf %1228, %1232 : vector<2x32xf32>
    %1234 = vector.extract_strided_slice %1208 {offsets = [0, 0], sizes = [2, 32], strides = [1, 1]} : vector<2x128xf32> to vector<2x32xf32>
    %1235 = arith.negf %1234 : vector<2x32xf32>
    %1236 = math.exp %1235 : vector<2x32xf32>
    %cst_311 = arith.constant 1.000000e+00 : f32
    %1237 = vector.broadcast %cst_311 : f32 to vector<2x32xf32>
    %1238 = arith.addf %1237, %1236 : vector<2x32xf32>
    %1239 = arith.divf %1237, %1238 : vector<2x32xf32>
    %1240 = vector.extract_strided_slice %1208 {offsets = [0, 32], sizes = [2, 32], strides = [1, 1]} : vector<2x128xf32> to vector<2x32xf32>
    %1241 = arith.negf %1240 : vector<2x32xf32>
    %1242 = math.exp %1241 : vector<2x32xf32>
    %cst_312 = arith.constant 1.000000e+00 : f32
    %1243 = vector.broadcast %cst_312 : f32 to vector<2x32xf32>
    %1244 = arith.addf %1243, %1242 : vector<2x32xf32>
    %1245 = arith.divf %1243, %1244 : vector<2x32xf32>
    %1246 = vector.extract_strided_slice %1208 {offsets = [0, 64], sizes = [2, 32], strides = [1, 1]} : vector<2x128xf32> to vector<2x32xf32>
    %1247 = math.tanh %1246 : vector<2x32xf32>
    %1248 = vector.extract_strided_slice %1208 {offsets = [0, 96], sizes = [2, 32], strides = [1, 1]} : vector<2x128xf32> to vector<2x32xf32>
    %1249 = arith.negf %1248 : vector<2x32xf32>
    %1250 = math.exp %1249 : vector<2x32xf32>
    %cst_313 = arith.constant 1.000000e+00 : f32
    %1251 = vector.broadcast %cst_313 : f32 to vector<2x32xf32>
    %1252 = arith.addf %1251, %1250 : vector<2x32xf32>
    %1253 = arith.divf %1251, %1252 : vector<2x32xf32>
    %1254 = arith.mulf %1245, %1194 : vector<2x32xf32>
    %1255 = arith.mulf %1239, %1247 : vector<2x32xf32>
    %1256 = arith.addf %1254, %1255 : vector<2x32xf32>
    %1257 = math.tanh %1256 : vector<2x32xf32>
    %1258 = arith.mulf %1253, %1257 : vector<2x32xf32>
    %1259 = arith.truncf %1233 : vector<2x32xf32> to vector<2x32xbf16>
    %c38_314 = arith.constant 38 : index
    %c0_315 = arith.constant 0 : index
    %1260 = vector.load %arg9[%c38_314, %c0_315] : memref<64x32xbf16, #tpu.memory_space<vmem>>, vector<2x32xbf16>
    tpu.vector_store %arg9[%c38_314, %c0_315], %1259 {strides = array<i32>} : memref<64x32xbf16, #tpu.memory_space<vmem>>, vector<2x32xbf16>,
    %1261 = arith.truncf %1258 : vector<2x32xf32> to vector<2x32xbf16>
    %c24_316 = arith.constant 24 : index
    %c0_317 = arith.constant 0 : index
    %1262 = vector.load %arg10[%c24_316, %c0_317] : memref<64x32xbf16, #tpu.memory_space<vmem>>, vector<2x32xbf16>
    tpu.vector_store %arg10[%c24_316, %c0_317], %1261 {strides = array<i32>} : memref<64x32xbf16, #tpu.memory_space<vmem>>, vector<2x32xbf16>,
    %c40_318 = arith.constant 40 : index
    %c0_319 = arith.constant 0 : index
    %1263 = vector.load %arg11[%c40_318, %c0_319] : memref<64x128xf32, #tpu.memory_space<vmem>>, vector<2x128xf32>
    %1264 = arith.truncf %1233 : vector<2x32xf32> to vector<2x32xbf16>
    %cst_320 = arith.constant dense<0.000000e+00> : vector<2x128xf32>
    %1265 = tpu.matmul %1264, %17, %cst_320 {dimension_numbers = #tpu.dot_dimension_numbers<[1], [0], [0], [1], [0, 0, 1, 1], [], []>} : vector<2x32xbf16>, vector<32x128xbf16>, vector<2x128xf32> -> vector<2x128xf32>
    %1266 = arith.addf %1263, %1265 : vector<2x128xf32>
    %c22_321 = arith.constant 22 : index
    %c0_322 = arith.constant 0 : index
    %1267 = vector.load %arg12[%c22_321, %c0_322] : memref<64x128xf32, #tpu.memory_space<vmem>>, vector<2x128xf32>
    %1268 = arith.truncf %1258 : vector<2x32xf32> to vector<2x32xbf16>
    %cst_323 = arith.constant dense<0.000000e+00> : vector<2x128xf32>
    %1269 = tpu.matmul %1268, %18, %cst_323 {dimension_numbers = #tpu.dot_dimension_numbers<[1], [0], [0], [1], [0, 0, 1, 1], [], []>} : vector<2x32xbf16>, vector<32x128xbf16>, vector<2x128xf32> -> vector<2x128xf32>
    %1270 = arith.addf %1267, %1269 : vector<2x128xf32>
    %1271 = vector.extract_strided_slice %1266 {offsets = [0, 0], sizes = [2, 32], strides = [1, 1]} : vector<2x128xf32> to vector<2x32xf32>
    %1272 = arith.negf %1271 : vector<2x32xf32>
    %1273 = math.exp %1272 : vector<2x32xf32>
    %cst_324 = arith.constant 1.000000e+00 : f32
    %1274 = vector.broadcast %cst_324 : f32 to vector<2x32xf32>
    %1275 = arith.addf %1274, %1273 : vector<2x32xf32>
    %1276 = arith.divf %1274, %1275 : vector<2x32xf32>
    %1277 = vector.extract_strided_slice %1266 {offsets = [0, 32], sizes = [2, 32], strides = [1, 1]} : vector<2x128xf32> to vector<2x32xf32>
    %1278 = arith.negf %1277 : vector<2x32xf32>
    %1279 = math.exp %1278 : vector<2x32xf32>
    %cst_325 = arith.constant 1.000000e+00 : f32
    %1280 = vector.broadcast %cst_325 : f32 to vector<2x32xf32>
    %1281 = arith.addf %1280, %1279 : vector<2x32xf32>
    %1282 = arith.divf %1280, %1281 : vector<2x32xf32>
    %1283 = vector.extract_strided_slice %1266 {offsets = [0, 64], sizes = [2, 32], strides = [1, 1]} : vector<2x128xf32> to vector<2x32xf32>
    %1284 = math.tanh %1283 : vector<2x32xf32>
    %1285 = vector.extract_strided_slice %1266 {offsets = [0, 96], sizes = [2, 32], strides = [1, 1]} : vector<2x128xf32> to vector<2x32xf32>
    %1286 = arith.negf %1285 : vector<2x32xf32>
    %1287 = math.exp %1286 : vector<2x32xf32>
    %cst_326 = arith.constant 1.000000e+00 : f32
    %1288 = vector.broadcast %cst_326 : f32 to vector<2x32xf32>
    %1289 = arith.addf %1288, %1287 : vector<2x32xf32>
    %1290 = arith.divf %1288, %1289 : vector<2x32xf32>
    %1291 = arith.mulf %1282, %1231 : vector<2x32xf32>
    %1292 = arith.mulf %1276, %1284 : vector<2x32xf32>
    %1293 = arith.addf %1291, %1292 : vector<2x32xf32>
    %1294 = math.tanh %1293 : vector<2x32xf32>
    %1295 = arith.mulf %1290, %1294 : vector<2x32xf32>
    %1296 = vector.extract_strided_slice %1270 {offsets = [0, 0], sizes = [2, 32], strides = [1, 1]} : vector<2x128xf32> to vector<2x32xf32>
    %1297 = arith.negf %1296 : vector<2x32xf32>
    %1298 = math.exp %1297 : vector<2x32xf32>
    %cst_327 = arith.constant 1.000000e+00 : f32
    %1299 = vector.broadcast %cst_327 : f32 to vector<2x32xf32>
    %1300 = arith.addf %1299, %1298 : vector<2x32xf32>
    %1301 = arith.divf %1299, %1300 : vector<2x32xf32>
    %1302 = vector.extract_strided_slice %1270 {offsets = [0, 32], sizes = [2, 32], strides = [1, 1]} : vector<2x128xf32> to vector<2x32xf32>
    %1303 = arith.negf %1302 : vector<2x32xf32>
    %1304 = math.exp %1303 : vector<2x32xf32>
    %cst_328 = arith.constant 1.000000e+00 : f32
    %1305 = vector.broadcast %cst_328 : f32 to vector<2x32xf32>
    %1306 = arith.addf %1305, %1304 : vector<2x32xf32>
    %1307 = arith.divf %1305, %1306 : vector<2x32xf32>
    %1308 = vector.extract_strided_slice %1270 {offsets = [0, 64], sizes = [2, 32], strides = [1, 1]} : vector<2x128xf32> to vector<2x32xf32>
    %1309 = math.tanh %1308 : vector<2x32xf32>
    %1310 = vector.extract_strided_slice %1270 {offsets = [0, 96], sizes = [2, 32], strides = [1, 1]} : vector<2x128xf32> to vector<2x32xf32>
    %1311 = arith.negf %1310 : vector<2x32xf32>
    %1312 = math.exp %1311 : vector<2x32xf32>
    %cst_329 = arith.constant 1.000000e+00 : f32
    %1313 = vector.broadcast %cst_329 : f32 to vector<2x32xf32>
    %1314 = arith.addf %1313, %1312 : vector<2x32xf32>
    %1315 = arith.divf %1313, %1314 : vector<2x32xf32>
    %1316 = arith.mulf %1307, %1256 : vector<2x32xf32>
    %1317 = arith.mulf %1301, %1309 : vector<2x32xf32>
    %1318 = arith.addf %1316, %1317 : vector<2x32xf32>
    %1319 = math.tanh %1318 : vector<2x32xf32>
    %1320 = arith.mulf %1315, %1319 : vector<2x32xf32>
    %1321 = arith.truncf %1295 : vector<2x32xf32> to vector<2x32xbf16>
    %c40_330 = arith.constant 40 : index
    %c0_331 = arith.constant 0 : index
    %1322 = vector.load %arg9[%c40_330, %c0_331] : memref<64x32xbf16, #tpu.memory_space<vmem>>, vector<2x32xbf16>
    tpu.vector_store %arg9[%c40_330, %c0_331], %1321 {strides = array<i32>} : memref<64x32xbf16, #tpu.memory_space<vmem>>, vector<2x32xbf16>,
    %1323 = arith.truncf %1320 : vector<2x32xf32> to vector<2x32xbf16>
    %c22_332 = arith.constant 22 : index
    %c0_333 = arith.constant 0 : index
    %1324 = vector.load %arg10[%c22_332, %c0_333] : memref<64x32xbf16, #tpu.memory_space<vmem>>, vector<2x32xbf16>
    tpu.vector_store %arg10[%c22_332, %c0_333], %1323 {strides = array<i32>} : memref<64x32xbf16, #tpu.memory_space<vmem>>, vector<2x32xbf16>,
    %c42_334 = arith.constant 42 : index
    %c0_335 = arith.constant 0 : index
    %1325 = vector.load %arg11[%c42_334, %c0_335] : memref<64x128xf32, #tpu.memory_space<vmem>>, vector<2x128xf32>
    %1326 = arith.truncf %1295 : vector<2x32xf32> to vector<2x32xbf16>
    %cst_336 = arith.constant dense<0.000000e+00> : vector<2x128xf32>
    %1327 = tpu.matmul %1326, %17, %cst_336 {dimension_numbers = #tpu.dot_dimension_numbers<[1], [0], [0], [1], [0, 0, 1, 1], [], []>} : vector<2x32xbf16>, vector<32x128xbf16>, vector<2x128xf32> -> vector<2x128xf32>
    %1328 = arith.addf %1325, %1327 : vector<2x128xf32>
    %c20_337 = arith.constant 20 : index
    %c0_338 = arith.constant 0 : index
    %1329 = vector.load %arg12[%c20_337, %c0_338] : memref<64x128xf32, #tpu.memory_space<vmem>>, vector<2x128xf32>
    %1330 = arith.truncf %1320 : vector<2x32xf32> to vector<2x32xbf16>
    %cst_339 = arith.constant dense<0.000000e+00> : vector<2x128xf32>
    %1331 = tpu.matmul %1330, %18, %cst_339 {dimension_numbers = #tpu.dot_dimension_numbers<[1], [0], [0], [1], [0, 0, 1, 1], [], []>} : vector<2x32xbf16>, vector<32x128xbf16>, vector<2x128xf32> -> vector<2x128xf32>
    %1332 = arith.addf %1329, %1331 : vector<2x128xf32>
    %1333 = vector.extract_strided_slice %1328 {offsets = [0, 0], sizes = [2, 32], strides = [1, 1]} : vector<2x128xf32> to vector<2x32xf32>
    %1334 = arith.negf %1333 : vector<2x32xf32>
    %1335 = math.exp %1334 : vector<2x32xf32>
    %cst_340 = arith.constant 1.000000e+00 : f32
    %1336 = vector.broadcast %cst_340 : f32 to vector<2x32xf32>
    %1337 = arith.addf %1336, %1335 : vector<2x32xf32>
    %1338 = arith.divf %1336, %1337 : vector<2x32xf32>
    %1339 = vector.extract_strided_slice %1328 {offsets = [0, 32], sizes = [2, 32], strides = [1, 1]} : vector<2x128xf32> to vector<2x32xf32>
    %1340 = arith.negf %1339 : vector<2x32xf32>
    %1341 = math.exp %1340 : vector<2x32xf32>
    %cst_341 = arith.constant 1.000000e+00 : f32
    %1342 = vector.broadcast %cst_341 : f32 to vector<2x32xf32>
    %1343 = arith.addf %1342, %1341 : vector<2x32xf32>
    %1344 = arith.divf %1342, %1343 : vector<2x32xf32>
    %1345 = vector.extract_strided_slice %1328 {offsets = [0, 64], sizes = [2, 32], strides = [1, 1]} : vector<2x128xf32> to vector<2x32xf32>
    %1346 = math.tanh %1345 : vector<2x32xf32>
    %1347 = vector.extract_strided_slice %1328 {offsets = [0, 96], sizes = [2, 32], strides = [1, 1]} : vector<2x128xf32> to vector<2x32xf32>
    %1348 = arith.negf %1347 : vector<2x32xf32>
    %1349 = math.exp %1348 : vector<2x32xf32>
    %cst_342 = arith.constant 1.000000e+00 : f32
    %1350 = vector.broadcast %cst_342 : f32 to vector<2x32xf32>
    %1351 = arith.addf %1350, %1349 : vector<2x32xf32>
    %1352 = arith.divf %1350, %1351 : vector<2x32xf32>
    %1353 = arith.mulf %1344, %1293 : vector<2x32xf32>
    %1354 = arith.mulf %1338, %1346 : vector<2x32xf32>
    %1355 = arith.addf %1353, %1354 : vector<2x32xf32>
    %1356 = math.tanh %1355 : vector<2x32xf32>
    %1357 = arith.mulf %1352, %1356 : vector<2x32xf32>
    %1358 = vector.extract_strided_slice %1332 {offsets = [0, 0], sizes = [2, 32], strides = [1, 1]} : vector<2x128xf32> to vector<2x32xf32>
    %1359 = arith.negf %1358 : vector<2x32xf32>
    %1360 = math.exp %1359 : vector<2x32xf32>
    %cst_343 = arith.constant 1.000000e+00 : f32
    %1361 = vector.broadcast %cst_343 : f32 to vector<2x32xf32>
    %1362 = arith.addf %1361, %1360 : vector<2x32xf32>
    %1363 = arith.divf %1361, %1362 : vector<2x32xf32>
    %1364 = vector.extract_strided_slice %1332 {offsets = [0, 32], sizes = [2, 32], strides = [1, 1]} : vector<2x128xf32> to vector<2x32xf32>
    %1365 = arith.negf %1364 : vector<2x32xf32>
    %1366 = math.exp %1365 : vector<2x32xf32>
    %cst_344 = arith.constant 1.000000e+00 : f32
    %1367 = vector.broadcast %cst_344 : f32 to vector<2x32xf32>
    %1368 = arith.addf %1367, %1366 : vector<2x32xf32>
    %1369 = arith.divf %1367, %1368 : vector<2x32xf32>
    %1370 = vector.extract_strided_slice %1332 {offsets = [0, 64], sizes = [2, 32], strides = [1, 1]} : vector<2x128xf32> to vector<2x32xf32>
    %1371 = math.tanh %1370 : vector<2x32xf32>
    %1372 = vector.extract_strided_slice %1332 {offsets = [0, 96], sizes = [2, 32], strides = [1, 1]} : vector<2x128xf32> to vector<2x32xf32>
    %1373 = arith.negf %1372 : vector<2x32xf32>
    %1374 = math.exp %1373 : vector<2x32xf32>
    %cst_345 = arith.constant 1.000000e+00 : f32
    %1375 = vector.broadcast %cst_345 : f32 to vector<2x32xf32>
    %1376 = arith.addf %1375, %1374 : vector<2x32xf32>
    %1377 = arith.divf %1375, %1376 : vector<2x32xf32>
    %1378 = arith.mulf %1369, %1318 : vector<2x32xf32>
    %1379 = arith.mulf %1363, %1371 : vector<2x32xf32>
    %1380 = arith.addf %1378, %1379 : vector<2x32xf32>
    %1381 = math.tanh %1380 : vector<2x32xf32>
    %1382 = arith.mulf %1377, %1381 : vector<2x32xf32>
    %1383 = arith.truncf %1357 : vector<2x32xf32> to vector<2x32xbf16>
    %c42_346 = arith.constant 42 : index
    %c0_347 = arith.constant 0 : index
    %1384 = vector.load %arg9[%c42_346, %c0_347] : memref<64x32xbf16, #tpu.memory_space<vmem>>, vector<2x32xbf16>
    tpu.vector_store %arg9[%c42_346, %c0_347], %1383 {strides = array<i32>} : memref<64x32xbf16, #tpu.memory_space<vmem>>, vector<2x32xbf16>,
    %1385 = arith.truncf %1382 : vector<2x32xf32> to vector<2x32xbf16>
    %c20_348 = arith.constant 20 : index
    %c0_349 = arith.constant 0 : index
    %1386 = vector.load %arg10[%c20_348, %c0_349] : memref<64x32xbf16, #tpu.memory_space<vmem>>, vector<2x32xbf16>
    tpu.vector_store %arg10[%c20_348, %c0_349], %1385 {strides = array<i32>} : memref<64x32xbf16, #tpu.memory_space<vmem>>, vector<2x32xbf16>,
    %c44_350 = arith.constant 44 : index
    %c0_351 = arith.constant 0 : index
    %1387 = vector.load %arg11[%c44_350, %c0_351] : memref<64x128xf32, #tpu.memory_space<vmem>>, vector<2x128xf32>
    %1388 = arith.truncf %1357 : vector<2x32xf32> to vector<2x32xbf16>
    %cst_352 = arith.constant dense<0.000000e+00> : vector<2x128xf32>
    %1389 = tpu.matmul %1388, %17, %cst_352 {dimension_numbers = #tpu.dot_dimension_numbers<[1], [0], [0], [1], [0, 0, 1, 1], [], []>} : vector<2x32xbf16>, vector<32x128xbf16>, vector<2x128xf32> -> vector<2x128xf32>
    %1390 = arith.addf %1387, %1389 : vector<2x128xf32>
    %c18_353 = arith.constant 18 : index
    %c0_354 = arith.constant 0 : index
    %1391 = vector.load %arg12[%c18_353, %c0_354] : memref<64x128xf32, #tpu.memory_space<vmem>>, vector<2x128xf32>
    %1392 = arith.truncf %1382 : vector<2x32xf32> to vector<2x32xbf16>
    %cst_355 = arith.constant dense<0.000000e+00> : vector<2x128xf32>
    %1393 = tpu.matmul %1392, %18, %cst_355 {dimension_numbers = #tpu.dot_dimension_numbers<[1], [0], [0], [1], [0, 0, 1, 1], [], []>} : vector<2x32xbf16>, vector<32x128xbf16>, vector<2x128xf32> -> vector<2x128xf32>
    %1394 = arith.addf %1391, %1393 : vector<2x128xf32>
    %1395 = vector.extract_strided_slice %1390 {offsets = [0, 0], sizes = [2, 32], strides = [1, 1]} : vector<2x128xf32> to vector<2x32xf32>
    %1396 = arith.negf %1395 : vector<2x32xf32>
    %1397 = math.exp %1396 : vector<2x32xf32>
    %cst_356 = arith.constant 1.000000e+00 : f32
    %1398 = vector.broadcast %cst_356 : f32 to vector<2x32xf32>
    %1399 = arith.addf %1398, %1397 : vector<2x32xf32>
    %1400 = arith.divf %1398, %1399 : vector<2x32xf32>
    %1401 = vector.extract_strided_slice %1390 {offsets = [0, 32], sizes = [2, 32], strides = [1, 1]} : vector<2x128xf32> to vector<2x32xf32>
    %1402 = arith.negf %1401 : vector<2x32xf32>
    %1403 = math.exp %1402 : vector<2x32xf32>
    %cst_357 = arith.constant 1.000000e+00 : f32
    %1404 = vector.broadcast %cst_357 : f32 to vector<2x32xf32>
    %1405 = arith.addf %1404, %1403 : vector<2x32xf32>
    %1406 = arith.divf %1404, %1405 : vector<2x32xf32>
    %1407 = vector.extract_strided_slice %1390 {offsets = [0, 64], sizes = [2, 32], strides = [1, 1]} : vector<2x128xf32> to vector<2x32xf32>
    %1408 = math.tanh %1407 : vector<2x32xf32>
    %1409 = vector.extract_strided_slice %1390 {offsets = [0, 96], sizes = [2, 32], strides = [1, 1]} : vector<2x128xf32> to vector<2x32xf32>
    %1410 = arith.negf %1409 : vector<2x32xf32>
    %1411 = math.exp %1410 : vector<2x32xf32>
    %cst_358 = arith.constant 1.000000e+00 : f32
    %1412 = vector.broadcast %cst_358 : f32 to vector<2x32xf32>
    %1413 = arith.addf %1412, %1411 : vector<2x32xf32>
    %1414 = arith.divf %1412, %1413 : vector<2x32xf32>
    %1415 = arith.mulf %1406, %1355 : vector<2x32xf32>
    %1416 = arith.mulf %1400, %1408 : vector<2x32xf32>
    %1417 = arith.addf %1415, %1416 : vector<2x32xf32>
    %1418 = math.tanh %1417 : vector<2x32xf32>
    %1419 = arith.mulf %1414, %1418 : vector<2x32xf32>
    %1420 = vector.extract_strided_slice %1394 {offsets = [0, 0], sizes = [2, 32], strides = [1, 1]} : vector<2x128xf32> to vector<2x32xf32>
    %1421 = arith.negf %1420 : vector<2x32xf32>
    %1422 = math.exp %1421 : vector<2x32xf32>
    %cst_359 = arith.constant 1.000000e+00 : f32
    %1423 = vector.broadcast %cst_359 : f32 to vector<2x32xf32>
    %1424 = arith.addf %1423, %1422 : vector<2x32xf32>
    %1425 = arith.divf %1423, %1424 : vector<2x32xf32>
    %1426 = vector.extract_strided_slice %1394 {offsets = [0, 32], sizes = [2, 32], strides = [1, 1]} : vector<2x128xf32> to vector<2x32xf32>
    %1427 = arith.negf %1426 : vector<2x32xf32>
    %1428 = math.exp %1427 : vector<2x32xf32>
    %cst_360 = arith.constant 1.000000e+00 : f32
    %1429 = vector.broadcast %cst_360 : f32 to vector<2x32xf32>
    %1430 = arith.addf %1429, %1428 : vector<2x32xf32>
    %1431 = arith.divf %1429, %1430 : vector<2x32xf32>
    %1432 = vector.extract_strided_slice %1394 {offsets = [0, 64], sizes = [2, 32], strides = [1, 1]} : vector<2x128xf32> to vector<2x32xf32>
    %1433 = math.tanh %1432 : vector<2x32xf32>
    %1434 = vector.extract_strided_slice %1394 {offsets = [0, 96], sizes = [2, 32], strides = [1, 1]} : vector<2x128xf32> to vector<2x32xf32>
    %1435 = arith.negf %1434 : vector<2x32xf32>
    %1436 = math.exp %1435 : vector<2x32xf32>
    %cst_361 = arith.constant 1.000000e+00 : f32
    %1437 = vector.broadcast %cst_361 : f32 to vector<2x32xf32>
    %1438 = arith.addf %1437, %1436 : vector<2x32xf32>
    %1439 = arith.divf %1437, %1438 : vector<2x32xf32>
    %1440 = arith.mulf %1431, %1380 : vector<2x32xf32>
    %1441 = arith.mulf %1425, %1433 : vector<2x32xf32>
    %1442 = arith.addf %1440, %1441 : vector<2x32xf32>
    %1443 = math.tanh %1442 : vector<2x32xf32>
    %1444 = arith.mulf %1439, %1443 : vector<2x32xf32>
    %1445 = arith.truncf %1419 : vector<2x32xf32> to vector<2x32xbf16>
    %c44_362 = arith.constant 44 : index
    %c0_363 = arith.constant 0 : index
    %1446 = vector.load %arg9[%c44_362, %c0_363] : memref<64x32xbf16, #tpu.memory_space<vmem>>, vector<2x32xbf16>
    tpu.vector_store %arg9[%c44_362, %c0_363], %1445 {strides = array<i32>} : memref<64x32xbf16, #tpu.memory_space<vmem>>, vector<2x32xbf16>,
    %1447 = arith.truncf %1444 : vector<2x32xf32> to vector<2x32xbf16>
    %c18_364 = arith.constant 18 : index
    %c0_365 = arith.constant 0 : index
    %1448 = vector.load %arg10[%c18_364, %c0_365] : memref<64x32xbf16, #tpu.memory_space<vmem>>, vector<2x32xbf16>
    tpu.vector_store %arg10[%c18_364, %c0_365], %1447 {strides = array<i32>} : memref<64x32xbf16, #tpu.memory_space<vmem>>, vector<2x32xbf16>,
    %c46_366 = arith.constant 46 : index
    %c0_367 = arith.constant 0 : index
    %1449 = vector.load %arg11[%c46_366, %c0_367] : memref<64x128xf32, #tpu.memory_space<vmem>>, vector<2x128xf32>
    %1450 = arith.truncf %1419 : vector<2x32xf32> to vector<2x32xbf16>
    %cst_368 = arith.constant dense<0.000000e+00> : vector<2x128xf32>
    %1451 = tpu.matmul %1450, %17, %cst_368 {dimension_numbers = #tpu.dot_dimension_numbers<[1], [0], [0], [1], [0, 0, 1, 1], [], []>} : vector<2x32xbf16>, vector<32x128xbf16>, vector<2x128xf32> -> vector<2x128xf32>
    %1452 = arith.addf %1449, %1451 : vector<2x128xf32>
    %c16_369 = arith.constant 16 : index
    %c0_370 = arith.constant 0 : index
    %1453 = vector.load %arg12[%c16_369, %c0_370] : memref<64x128xf32, #tpu.memory_space<vmem>>, vector<2x128xf32>
    %1454 = arith.truncf %1444 : vector<2x32xf32> to vector<2x32xbf16>
    %cst_371 = arith.constant dense<0.000000e+00> : vector<2x128xf32>
    %1455 = tpu.matmul %1454, %18, %cst_371 {dimension_numbers = #tpu.dot_dimension_numbers<[1], [0], [0], [1], [0, 0, 1, 1], [], []>} : vector<2x32xbf16>, vector<32x128xbf16>, vector<2x128xf32> -> vector<2x128xf32>
    %1456 = arith.addf %1453, %1455 : vector<2x128xf32>
    %1457 = vector.extract_strided_slice %1452 {offsets = [0, 0], sizes = [2, 32], strides = [1, 1]} : vector<2x128xf32> to vector<2x32xf32>
    %1458 = arith.negf %1457 : vector<2x32xf32>
    %1459 = math.exp %1458 : vector<2x32xf32>
    %cst_372 = arith.constant 1.000000e+00 : f32
    %1460 = vector.broadcast %cst_372 : f32 to vector<2x32xf32>
    %1461 = arith.addf %1460, %1459 : vector<2x32xf32>
    %1462 = arith.divf %1460, %1461 : vector<2x32xf32>
    %1463 = vector.extract_strided_slice %1452 {offsets = [0, 32], sizes = [2, 32], strides = [1, 1]} : vector<2x128xf32> to vector<2x32xf32>
    %1464 = arith.negf %1463 : vector<2x32xf32>
    %1465 = math.exp %1464 : vector<2x32xf32>
    %cst_373 = arith.constant 1.000000e+00 : f32
    %1466 = vector.broadcast %cst_373 : f32 to vector<2x32xf32>
    %1467 = arith.addf %1466, %1465 : vector<2x32xf32>
    %1468 = arith.divf %1466, %1467 : vector<2x32xf32>
    %1469 = vector.extract_strided_slice %1452 {offsets = [0, 64], sizes = [2, 32], strides = [1, 1]} : vector<2x128xf32> to vector<2x32xf32>
    %1470 = math.tanh %1469 : vector<2x32xf32>
    %1471 = vector.extract_strided_slice %1452 {offsets = [0, 96], sizes = [2, 32], strides = [1, 1]} : vector<2x128xf32> to vector<2x32xf32>
    %1472 = arith.negf %1471 : vector<2x32xf32>
    %1473 = math.exp %1472 : vector<2x32xf32>
    %cst_374 = arith.constant 1.000000e+00 : f32
    %1474 = vector.broadcast %cst_374 : f32 to vector<2x32xf32>
    %1475 = arith.addf %1474, %1473 : vector<2x32xf32>
    %1476 = arith.divf %1474, %1475 : vector<2x32xf32>
    %1477 = arith.mulf %1468, %1417 : vector<2x32xf32>
    %1478 = arith.mulf %1462, %1470 : vector<2x32xf32>
    %1479 = arith.addf %1477, %1478 : vector<2x32xf32>
    %1480 = math.tanh %1479 : vector<2x32xf32>
    %1481 = arith.mulf %1476, %1480 : vector<2x32xf32>
    %1482 = vector.extract_strided_slice %1456 {offsets = [0, 0], sizes = [2, 32], strides = [1, 1]} : vector<2x128xf32> to vector<2x32xf32>
    %1483 = arith.negf %1482 : vector<2x32xf32>
    %1484 = math.exp %1483 : vector<2x32xf32>
    %cst_375 = arith.constant 1.000000e+00 : f32
    %1485 = vector.broadcast %cst_375 : f32 to vector<2x32xf32>
    %1486 = arith.addf %1485, %1484 : vector<2x32xf32>
    %1487 = arith.divf %1485, %1486 : vector<2x32xf32>
    %1488 = vector.extract_strided_slice %1456 {offsets = [0, 32], sizes = [2, 32], strides = [1, 1]} : vector<2x128xf32> to vector<2x32xf32>
    %1489 = arith.negf %1488 : vector<2x32xf32>
    %1490 = math.exp %1489 : vector<2x32xf32>
    %cst_376 = arith.constant 1.000000e+00 : f32
    %1491 = vector.broadcast %cst_376 : f32 to vector<2x32xf32>
    %1492 = arith.addf %1491, %1490 : vector<2x32xf32>
    %1493 = arith.divf %1491, %1492 : vector<2x32xf32>
    %1494 = vector.extract_strided_slice %1456 {offsets = [0, 64], sizes = [2, 32], strides = [1, 1]} : vector<2x128xf32> to vector<2x32xf32>
    %1495 = math.tanh %1494 : vector<2x32xf32>
    %1496 = vector.extract_strided_slice %1456 {offsets = [0, 96], sizes = [2, 32], strides = [1, 1]} : vector<2x128xf32> to vector<2x32xf32>
    %1497 = arith.negf %1496 : vector<2x32xf32>
    %1498 = math.exp %1497 : vector<2x32xf32>
    %cst_377 = arith.constant 1.000000e+00 : f32
    %1499 = vector.broadcast %cst_377 : f32 to vector<2x32xf32>
    %1500 = arith.addf %1499, %1498 : vector<2x32xf32>
    %1501 = arith.divf %1499, %1500 : vector<2x32xf32>
    %1502 = arith.mulf %1493, %1442 : vector<2x32xf32>
    %1503 = arith.mulf %1487, %1495 : vector<2x32xf32>
    %1504 = arith.addf %1502, %1503 : vector<2x32xf32>
    %1505 = math.tanh %1504 : vector<2x32xf32>
    %1506 = arith.mulf %1501, %1505 : vector<2x32xf32>
    %1507 = arith.truncf %1481 : vector<2x32xf32> to vector<2x32xbf16>
    %c46_378 = arith.constant 46 : index
    %c0_379 = arith.constant 0 : index
    %1508 = vector.load %arg9[%c46_378, %c0_379] : memref<64x32xbf16, #tpu.memory_space<vmem>>, vector<2x32xbf16>
    tpu.vector_store %arg9[%c46_378, %c0_379], %1507 {strides = array<i32>} : memref<64x32xbf16, #tpu.memory_space<vmem>>, vector<2x32xbf16>,
    %1509 = arith.truncf %1506 : vector<2x32xf32> to vector<2x32xbf16>
    %c16_380 = arith.constant 16 : index
    %c0_381 = arith.constant 0 : index
    %1510 = vector.load %arg10[%c16_380, %c0_381] : memref<64x32xbf16, #tpu.memory_space<vmem>>, vector<2x32xbf16>
    tpu.vector_store %arg10[%c16_380, %c0_381], %1509 {strides = array<i32>} : memref<64x32xbf16, #tpu.memory_space<vmem>>, vector<2x32xbf16>,
    %c48_382 = arith.constant 48 : index
    %c0_383 = arith.constant 0 : index
    %1511 = vector.load %arg11[%c48_382, %c0_383] : memref<64x128xf32, #tpu.memory_space<vmem>>, vector<2x128xf32>
    %1512 = arith.truncf %1481 : vector<2x32xf32> to vector<2x32xbf16>
    %cst_384 = arith.constant dense<0.000000e+00> : vector<2x128xf32>
    %1513 = tpu.matmul %1512, %17, %cst_384 {dimension_numbers = #tpu.dot_dimension_numbers<[1], [0], [0], [1], [0, 0, 1, 1], [], []>} : vector<2x32xbf16>, vector<32x128xbf16>, vector<2x128xf32> -> vector<2x128xf32>
    %1514 = arith.addf %1511, %1513 : vector<2x128xf32>
    %c14_385 = arith.constant 14 : index
    %c0_386 = arith.constant 0 : index
    %1515 = vector.load %arg12[%c14_385, %c0_386] : memref<64x128xf32, #tpu.memory_space<vmem>>, vector<2x128xf32>
    %1516 = arith.truncf %1506 : vector<2x32xf32> to vector<2x32xbf16>
    %cst_387 = arith.constant dense<0.000000e+00> : vector<2x128xf32>
    %1517 = tpu.matmul %1516, %18, %cst_387 {dimension_numbers = #tpu.dot_dimension_numbers<[1], [0], [0], [1], [0, 0, 1, 1], [], []>} : vector<2x32xbf16>, vector<32x128xbf16>, vector<2x128xf32> -> vector<2x128xf32>
    %1518 = arith.addf %1515, %1517 : vector<2x128xf32>
    %1519 = vector.extract_strided_slice %1514 {offsets = [0, 0], sizes = [2, 32], strides = [1, 1]} : vector<2x128xf32> to vector<2x32xf32>
    %1520 = arith.negf %1519 : vector<2x32xf32>
    %1521 = math.exp %1520 : vector<2x32xf32>
    %cst_388 = arith.constant 1.000000e+00 : f32
    %1522 = vector.broadcast %cst_388 : f32 to vector<2x32xf32>
    %1523 = arith.addf %1522, %1521 : vector<2x32xf32>
    %1524 = arith.divf %1522, %1523 : vector<2x32xf32>
    %1525 = vector.extract_strided_slice %1514 {offsets = [0, 32], sizes = [2, 32], strides = [1, 1]} : vector<2x128xf32> to vector<2x32xf32>
    %1526 = arith.negf %1525 : vector<2x32xf32>
    %1527 = math.exp %1526 : vector<2x32xf32>
    %cst_389 = arith.constant 1.000000e+00 : f32
    %1528 = vector.broadcast %cst_389 : f32 to vector<2x32xf32>
    %1529 = arith.addf %1528, %1527 : vector<2x32xf32>
    %1530 = arith.divf %1528, %1529 : vector<2x32xf32>
    %1531 = vector.extract_strided_slice %1514 {offsets = [0, 64], sizes = [2, 32], strides = [1, 1]} : vector<2x128xf32> to vector<2x32xf32>
    %1532 = math.tanh %1531 : vector<2x32xf32>
    %1533 = vector.extract_strided_slice %1514 {offsets = [0, 96], sizes = [2, 32], strides = [1, 1]} : vector<2x128xf32> to vector<2x32xf32>
    %1534 = arith.negf %1533 : vector<2x32xf32>
    %1535 = math.exp %1534 : vector<2x32xf32>
    %cst_390 = arith.constant 1.000000e+00 : f32
    %1536 = vector.broadcast %cst_390 : f32 to vector<2x32xf32>
    %1537 = arith.addf %1536, %1535 : vector<2x32xf32>
    %1538 = arith.divf %1536, %1537 : vector<2x32xf32>
    %1539 = arith.mulf %1530, %1479 : vector<2x32xf32>
    %1540 = arith.mulf %1524, %1532 : vector<2x32xf32>
    %1541 = arith.addf %1539, %1540 : vector<2x32xf32>
    %1542 = math.tanh %1541 : vector<2x32xf32>
    %1543 = arith.mulf %1538, %1542 : vector<2x32xf32>
    %1544 = vector.extract_strided_slice %1518 {offsets = [0, 0], sizes = [2, 32], strides = [1, 1]} : vector<2x128xf32> to vector<2x32xf32>
    %1545 = arith.negf %1544 : vector<2x32xf32>
    %1546 = math.exp %1545 : vector<2x32xf32>
    %cst_391 = arith.constant 1.000000e+00 : f32
    %1547 = vector.broadcast %cst_391 : f32 to vector<2x32xf32>
    %1548 = arith.addf %1547, %1546 : vector<2x32xf32>
    %1549 = arith.divf %1547, %1548 : vector<2x32xf32>
    %1550 = vector.extract_strided_slice %1518 {offsets = [0, 32], sizes = [2, 32], strides = [1, 1]} : vector<2x128xf32> to vector<2x32xf32>
    %1551 = arith.negf %1550 : vector<2x32xf32>
    %1552 = math.exp %1551 : vector<2x32xf32>
    %cst_392 = arith.constant 1.000000e+00 : f32
    %1553 = vector.broadcast %cst_392 : f32 to vector<2x32xf32>
    %1554 = arith.addf %1553, %1552 : vector<2x32xf32>
    %1555 = arith.divf %1553, %1554 : vector<2x32xf32>
    %1556 = vector.extract_strided_slice %1518 {offsets = [0, 64], sizes = [2, 32], strides = [1, 1]} : vector<2x128xf32> to vector<2x32xf32>
    %1557 = math.tanh %1556 : vector<2x32xf32>
    %1558 = vector.extract_strided_slice %1518 {offsets = [0, 96], sizes = [2, 32], strides = [1, 1]} : vector<2x128xf32> to vector<2x32xf32>
    %1559 = arith.negf %1558 : vector<2x32xf32>
    %1560 = math.exp %1559 : vector<2x32xf32>
    %cst_393 = arith.constant 1.000000e+00 : f32
    %1561 = vector.broadcast %cst_393 : f32 to vector<2x32xf32>
    %1562 = arith.addf %1561, %1560 : vector<2x32xf32>
    %1563 = arith.divf %1561, %1562 : vector<2x32xf32>
    %1564 = arith.mulf %1555, %1504 : vector<2x32xf32>
    %1565 = arith.mulf %1549, %1557 : vector<2x32xf32>
    %1566 = arith.addf %1564, %1565 : vector<2x32xf32>
    %1567 = math.tanh %1566 : vector<2x32xf32>
    %1568 = arith.mulf %1563, %1567 : vector<2x32xf32>
    %1569 = arith.truncf %1543 : vector<2x32xf32> to vector<2x32xbf16>
    %c48_394 = arith.constant 48 : index
    %c0_395 = arith.constant 0 : index
    %1570 = vector.load %arg9[%c48_394, %c0_395] : memref<64x32xbf16, #tpu.memory_space<vmem>>, vector<2x32xbf16>
    tpu.vector_store %arg9[%c48_394, %c0_395], %1569 {strides = array<i32>} : memref<64x32xbf16, #tpu.memory_space<vmem>>, vector<2x32xbf16>,
    %1571 = arith.truncf %1568 : vector<2x32xf32> to vector<2x32xbf16>
    %c14_396 = arith.constant 14 : index
    %c0_397 = arith.constant 0 : index
    %1572 = vector.load %arg10[%c14_396, %c0_397] : memref<64x32xbf16, #tpu.memory_space<vmem>>, vector<2x32xbf16>
    tpu.vector_store %arg10[%c14_396, %c0_397], %1571 {strides = array<i32>} : memref<64x32xbf16, #tpu.memory_space<vmem>>, vector<2x32xbf16>,
    %c50_398 = arith.constant 50 : index
    %c0_399 = arith.constant 0 : index
    %1573 = vector.load %arg11[%c50_398, %c0_399] : memref<64x128xf32, #tpu.memory_space<vmem>>, vector<2x128xf32>
    %1574 = arith.truncf %1543 : vector<2x32xf32> to vector<2x32xbf16>
    %cst_400 = arith.constant dense<0.000000e+00> : vector<2x128xf32>
    %1575 = tpu.matmul %1574, %17, %cst_400 {dimension_numbers = #tpu.dot_dimension_numbers<[1], [0], [0], [1], [0, 0, 1, 1], [], []>} : vector<2x32xbf16>, vector<32x128xbf16>, vector<2x128xf32> -> vector<2x128xf32>
    %1576 = arith.addf %1573, %1575 : vector<2x128xf32>
    %c12_401 = arith.constant 12 : index
    %c0_402 = arith.constant 0 : index
    %1577 = vector.load %arg12[%c12_401, %c0_402] : memref<64x128xf32, #tpu.memory_space<vmem>>, vector<2x128xf32>
    %1578 = arith.truncf %1568 : vector<2x32xf32> to vector<2x32xbf16>
    %cst_403 = arith.constant dense<0.000000e+00> : vector<2x128xf32>
    %1579 = tpu.matmul %1578, %18, %cst_403 {dimension_numbers = #tpu.dot_dimension_numbers<[1], [0], [0], [1], [0, 0, 1, 1], [], []>} : vector<2x32xbf16>, vector<32x128xbf16>, vector<2x128xf32> -> vector<2x128xf32>
    %1580 = arith.addf %1577, %1579 : vector<2x128xf32>
    %1581 = vector.extract_strided_slice %1576 {offsets = [0, 0], sizes = [2, 32], strides = [1, 1]} : vector<2x128xf32> to vector<2x32xf32>
    %1582 = arith.negf %1581 : vector<2x32xf32>
    %1583 = math.exp %1582 : vector<2x32xf32>
    %cst_404 = arith.constant 1.000000e+00 : f32
    %1584 = vector.broadcast %cst_404 : f32 to vector<2x32xf32>
    %1585 = arith.addf %1584, %1583 : vector<2x32xf32>
    %1586 = arith.divf %1584, %1585 : vector<2x32xf32>
    %1587 = vector.extract_strided_slice %1576 {offsets = [0, 32], sizes = [2, 32], strides = [1, 1]} : vector<2x128xf32> to vector<2x32xf32>
    %1588 = arith.negf %1587 : vector<2x32xf32>
    %1589 = math.exp %1588 : vector<2x32xf32>
    %cst_405 = arith.constant 1.000000e+00 : f32
    %1590 = vector.broadcast %cst_405 : f32 to vector<2x32xf32>
    %1591 = arith.addf %1590, %1589 : vector<2x32xf32>
    %1592 = arith.divf %1590, %1591 : vector<2x32xf32>
    %1593 = vector.extract_strided_slice %1576 {offsets = [0, 64], sizes = [2, 32], strides = [1, 1]} : vector<2x128xf32> to vector<2x32xf32>
    %1594 = math.tanh %1593 : vector<2x32xf32>
    %1595 = vector.extract_strided_slice %1576 {offsets = [0, 96], sizes = [2, 32], strides = [1, 1]} : vector<2x128xf32> to vector<2x32xf32>
    %1596 = arith.negf %1595 : vector<2x32xf32>
    %1597 = math.exp %1596 : vector<2x32xf32>
    %cst_406 = arith.constant 1.000000e+00 : f32
    %1598 = vector.broadcast %cst_406 : f32 to vector<2x32xf32>
    %1599 = arith.addf %1598, %1597 : vector<2x32xf32>
    %1600 = arith.divf %1598, %1599 : vector<2x32xf32>
    %1601 = arith.mulf %1592, %1541 : vector<2x32xf32>
    %1602 = arith.mulf %1586, %1594 : vector<2x32xf32>
    %1603 = arith.addf %1601, %1602 : vector<2x32xf32>
    %1604 = math.tanh %1603 : vector<2x32xf32>
    %1605 = arith.mulf %1600, %1604 : vector<2x32xf32>
    %1606 = vector.extract_strided_slice %1580 {offsets = [0, 0], sizes = [2, 32], strides = [1, 1]} : vector<2x128xf32> to vector<2x32xf32>
    %1607 = arith.negf %1606 : vector<2x32xf32>
    %1608 = math.exp %1607 : vector<2x32xf32>
    %cst_407 = arith.constant 1.000000e+00 : f32
    %1609 = vector.broadcast %cst_407 : f32 to vector<2x32xf32>
    %1610 = arith.addf %1609, %1608 : vector<2x32xf32>
    %1611 = arith.divf %1609, %1610 : vector<2x32xf32>
    %1612 = vector.extract_strided_slice %1580 {offsets = [0, 32], sizes = [2, 32], strides = [1, 1]} : vector<2x128xf32> to vector<2x32xf32>
    %1613 = arith.negf %1612 : vector<2x32xf32>
    %1614 = math.exp %1613 : vector<2x32xf32>
    %cst_408 = arith.constant 1.000000e+00 : f32
    %1615 = vector.broadcast %cst_408 : f32 to vector<2x32xf32>
    %1616 = arith.addf %1615, %1614 : vector<2x32xf32>
    %1617 = arith.divf %1615, %1616 : vector<2x32xf32>
    %1618 = vector.extract_strided_slice %1580 {offsets = [0, 64], sizes = [2, 32], strides = [1, 1]} : vector<2x128xf32> to vector<2x32xf32>
    %1619 = math.tanh %1618 : vector<2x32xf32>
    %1620 = vector.extract_strided_slice %1580 {offsets = [0, 96], sizes = [2, 32], strides = [1, 1]} : vector<2x128xf32> to vector<2x32xf32>
    %1621 = arith.negf %1620 : vector<2x32xf32>
    %1622 = math.exp %1621 : vector<2x32xf32>
    %cst_409 = arith.constant 1.000000e+00 : f32
    %1623 = vector.broadcast %cst_409 : f32 to vector<2x32xf32>
    %1624 = arith.addf %1623, %1622 : vector<2x32xf32>
    %1625 = arith.divf %1623, %1624 : vector<2x32xf32>
    %1626 = arith.mulf %1617, %1566 : vector<2x32xf32>
    %1627 = arith.mulf %1611, %1619 : vector<2x32xf32>
    %1628 = arith.addf %1626, %1627 : vector<2x32xf32>
    %1629 = math.tanh %1628 : vector<2x32xf32>
    %1630 = arith.mulf %1625, %1629 : vector<2x32xf32>
    %1631 = arith.truncf %1605 : vector<2x32xf32> to vector<2x32xbf16>
    %c50_410 = arith.constant 50 : index
    %c0_411 = arith.constant 0 : index
    %1632 = vector.load %arg9[%c50_410, %c0_411] : memref<64x32xbf16, #tpu.memory_space<vmem>>, vector<2x32xbf16>
    tpu.vector_store %arg9[%c50_410, %c0_411], %1631 {strides = array<i32>} : memref<64x32xbf16, #tpu.memory_space<vmem>>, vector<2x32xbf16>,
    %1633 = arith.truncf %1630 : vector<2x32xf32> to vector<2x32xbf16>
    %c12_412 = arith.constant 12 : index
    %c0_413 = arith.constant 0 : index
    %1634 = vector.load %arg10[%c12_412, %c0_413] : memref<64x32xbf16, #tpu.memory_space<vmem>>, vector<2x32xbf16>
    tpu.vector_store %arg10[%c12_412, %c0_413], %1633 {strides = array<i32>} : memref<64x32xbf16, #tpu.memory_space<vmem>>, vector<2x32xbf16>,
    %c52_414 = arith.constant 52 : index
    %c0_415 = arith.constant 0 : index
    %1635 = vector.load %arg11[%c52_414, %c0_415] : memref<64x128xf32, #tpu.memory_space<vmem>>, vector<2x128xf32>
    %1636 = arith.truncf %1605 : vector<2x32xf32> to vector<2x32xbf16>
    %cst_416 = arith.constant dense<0.000000e+00> : vector<2x128xf32>
    %1637 = tpu.matmul %1636, %17, %cst_416 {dimension_numbers = #tpu.dot_dimension_numbers<[1], [0], [0], [1], [0, 0, 1, 1], [], []>} : vector<2x32xbf16>, vector<32x128xbf16>, vector<2x128xf32> -> vector<2x128xf32>
    %1638 = arith.addf %1635, %1637 : vector<2x128xf32>
    %c10_417 = arith.constant 10 : index
    %c0_418 = arith.constant 0 : index
    %1639 = vector.load %arg12[%c10_417, %c0_418] : memref<64x128xf32, #tpu.memory_space<vmem>>, vector<2x128xf32>
    %1640 = arith.truncf %1630 : vector<2x32xf32> to vector<2x32xbf16>
    %cst_419 = arith.constant dense<0.000000e+00> : vector<2x128xf32>
    %1641 = tpu.matmul %1640, %18, %cst_419 {dimension_numbers = #tpu.dot_dimension_numbers<[1], [0], [0], [1], [0, 0, 1, 1], [], []>} : vector<2x32xbf16>, vector<32x128xbf16>, vector<2x128xf32> -> vector<2x128xf32>
    %1642 = arith.addf %1639, %1641 : vector<2x128xf32>
    %1643 = vector.extract_strided_slice %1638 {offsets = [0, 0], sizes = [2, 32], strides = [1, 1]} : vector<2x128xf32> to vector<2x32xf32>
    %1644 = arith.negf %1643 : vector<2x32xf32>
    %1645 = math.exp %1644 : vector<2x32xf32>
    %cst_420 = arith.constant 1.000000e+00 : f32
    %1646 = vector.broadcast %cst_420 : f32 to vector<2x32xf32>
    %1647 = arith.addf %1646, %1645 : vector<2x32xf32>
    %1648 = arith.divf %1646, %1647 : vector<2x32xf32>
    %1649 = vector.extract_strided_slice %1638 {offsets = [0, 32], sizes = [2, 32], strides = [1, 1]} : vector<2x128xf32> to vector<2x32xf32>
    %1650 = arith.negf %1649 : vector<2x32xf32>
    %1651 = math.exp %1650 : vector<2x32xf32>
    %cst_421 = arith.constant 1.000000e+00 : f32
    %1652 = vector.broadcast %cst_421 : f32 to vector<2x32xf32>
    %1653 = arith.addf %1652, %1651 : vector<2x32xf32>
    %1654 = arith.divf %1652, %1653 : vector<2x32xf32>
    %1655 = vector.extract_strided_slice %1638 {offsets = [0, 64], sizes = [2, 32], strides = [1, 1]} : vector<2x128xf32> to vector<2x32xf32>
    %1656 = math.tanh %1655 : vector<2x32xf32>
    %1657 = vector.extract_strided_slice %1638 {offsets = [0, 96], sizes = [2, 32], strides = [1, 1]} : vector<2x128xf32> to vector<2x32xf32>
    %1658 = arith.negf %1657 : vector<2x32xf32>
    %1659 = math.exp %1658 : vector<2x32xf32>
    %cst_422 = arith.constant 1.000000e+00 : f32
    %1660 = vector.broadcast %cst_422 : f32 to vector<2x32xf32>
    %1661 = arith.addf %1660, %1659 : vector<2x32xf32>
    %1662 = arith.divf %1660, %1661 : vector<2x32xf32>
    %1663 = arith.mulf %1654, %1603 : vector<2x32xf32>
    %1664 = arith.mulf %1648, %1656 : vector<2x32xf32>
    %1665 = arith.addf %1663, %1664 : vector<2x32xf32>
    %1666 = math.tanh %1665 : vector<2x32xf32>
    %1667 = arith.mulf %1662, %1666 : vector<2x32xf32>
    %1668 = vector.extract_strided_slice %1642 {offsets = [0, 0], sizes = [2, 32], strides = [1, 1]} : vector<2x128xf32> to vector<2x32xf32>
    %1669 = arith.negf %1668 : vector<2x32xf32>
    %1670 = math.exp %1669 : vector<2x32xf32>
    %cst_423 = arith.constant 1.000000e+00 : f32
    %1671 = vector.broadcast %cst_423 : f32 to vector<2x32xf32>
    %1672 = arith.addf %1671, %1670 : vector<2x32xf32>
    %1673 = arith.divf %1671, %1672 : vector<2x32xf32>
    %1674 = vector.extract_strided_slice %1642 {offsets = [0, 32], sizes = [2, 32], strides = [1, 1]} : vector<2x128xf32> to vector<2x32xf32>
    %1675 = arith.negf %1674 : vector<2x32xf32>
    %1676 = math.exp %1675 : vector<2x32xf32>
    %cst_424 = arith.constant 1.000000e+00 : f32
    %1677 = vector.broadcast %cst_424 : f32 to vector<2x32xf32>
    %1678 = arith.addf %1677, %1676 : vector<2x32xf32>
    %1679 = arith.divf %1677, %1678 : vector<2x32xf32>
    %1680 = vector.extract_strided_slice %1642 {offsets = [0, 64], sizes = [2, 32], strides = [1, 1]} : vector<2x128xf32> to vector<2x32xf32>
    %1681 = math.tanh %1680 : vector<2x32xf32>
    %1682 = vector.extract_strided_slice %1642 {offsets = [0, 96], sizes = [2, 32], strides = [1, 1]} : vector<2x128xf32> to vector<2x32xf32>
    %1683 = arith.negf %1682 : vector<2x32xf32>
    %1684 = math.exp %1683 : vector<2x32xf32>
    %cst_425 = arith.constant 1.000000e+00 : f32
    %1685 = vector.broadcast %cst_425 : f32 to vector<2x32xf32>
    %1686 = arith.addf %1685, %1684 : vector<2x32xf32>
    %1687 = arith.divf %1685, %1686 : vector<2x32xf32>
    %1688 = arith.mulf %1679, %1628 : vector<2x32xf32>
    %1689 = arith.mulf %1673, %1681 : vector<2x32xf32>
    %1690 = arith.addf %1688, %1689 : vector<2x32xf32>
    %1691 = math.tanh %1690 : vector<2x32xf32>
    %1692 = arith.mulf %1687, %1691 : vector<2x32xf32>
    %1693 = arith.truncf %1667 : vector<2x32xf32> to vector<2x32xbf16>
    %c52_426 = arith.constant 52 : index
    %c0_427 = arith.constant 0 : index
    %1694 = vector.load %arg9[%c52_426, %c0_427] : memref<64x32xbf16, #tpu.memory_space<vmem>>, vector<2x32xbf16>
    tpu.vector_store %arg9[%c52_426, %c0_427], %1693 {strides = array<i32>} : memref<64x32xbf16, #tpu.memory_space<vmem>>, vector<2x32xbf16>,
    %1695 = arith.truncf %1692 : vector<2x32xf32> to vector<2x32xbf16>
    %c10_428 = arith.constant 10 : index
    %c0_429 = arith.constant 0 : index
    %1696 = vector.load %arg10[%c10_428, %c0_429] : memref<64x32xbf16, #tpu.memory_space<vmem>>, vector<2x32xbf16>
    tpu.vector_store %arg10[%c10_428, %c0_429], %1695 {strides = array<i32>} : memref<64x32xbf16, #tpu.memory_space<vmem>>, vector<2x32xbf16>,
    %c54_430 = arith.constant 54 : index
    %c0_431 = arith.constant 0 : index
    %1697 = vector.load %arg11[%c54_430, %c0_431] : memref<64x128xf32, #tpu.memory_space<vmem>>, vector<2x128xf32>
    %1698 = arith.truncf %1667 : vector<2x32xf32> to vector<2x32xbf16>
    %cst_432 = arith.constant dense<0.000000e+00> : vector<2x128xf32>
    %1699 = tpu.matmul %1698, %17, %cst_432 {dimension_numbers = #tpu.dot_dimension_numbers<[1], [0], [0], [1], [0, 0, 1, 1], [], []>} : vector<2x32xbf16>, vector<32x128xbf16>, vector<2x128xf32> -> vector<2x128xf32>
    %1700 = arith.addf %1697, %1699 : vector<2x128xf32>
    %c8_433 = arith.constant 8 : index
    %c0_434 = arith.constant 0 : index
    %1701 = vector.load %arg12[%c8_433, %c0_434] : memref<64x128xf32, #tpu.memory_space<vmem>>, vector<2x128xf32>
    %1702 = arith.truncf %1692 : vector<2x32xf32> to vector<2x32xbf16>
    %cst_435 = arith.constant dense<0.000000e+00> : vector<2x128xf32>
    %1703 = tpu.matmul %1702, %18, %cst_435 {dimension_numbers = #tpu.dot_dimension_numbers<[1], [0], [0], [1], [0, 0, 1, 1], [], []>} : vector<2x32xbf16>, vector<32x128xbf16>, vector<2x128xf32> -> vector<2x128xf32>
    %1704 = arith.addf %1701, %1703 : vector<2x128xf32>
    %1705 = vector.extract_strided_slice %1700 {offsets = [0, 0], sizes = [2, 32], strides = [1, 1]} : vector<2x128xf32> to vector<2x32xf32>
    %1706 = arith.negf %1705 : vector<2x32xf32>
    %1707 = math.exp %1706 : vector<2x32xf32>
    %cst_436 = arith.constant 1.000000e+00 : f32
    %1708 = vector.broadcast %cst_436 : f32 to vector<2x32xf32>
    %1709 = arith.addf %1708, %1707 : vector<2x32xf32>
    %1710 = arith.divf %1708, %1709 : vector<2x32xf32>
    %1711 = vector.extract_strided_slice %1700 {offsets = [0, 32], sizes = [2, 32], strides = [1, 1]} : vector<2x128xf32> to vector<2x32xf32>
    %1712 = arith.negf %1711 : vector<2x32xf32>
    %1713 = math.exp %1712 : vector<2x32xf32>
    %cst_437 = arith.constant 1.000000e+00 : f32
    %1714 = vector.broadcast %cst_437 : f32 to vector<2x32xf32>
    %1715 = arith.addf %1714, %1713 : vector<2x32xf32>
    %1716 = arith.divf %1714, %1715 : vector<2x32xf32>
    %1717 = vector.extract_strided_slice %1700 {offsets = [0, 64], sizes = [2, 32], strides = [1, 1]} : vector<2x128xf32> to vector<2x32xf32>
    %1718 = math.tanh %1717 : vector<2x32xf32>
    %1719 = vector.extract_strided_slice %1700 {offsets = [0, 96], sizes = [2, 32], strides = [1, 1]} : vector<2x128xf32> to vector<2x32xf32>
    %1720 = arith.negf %1719 : vector<2x32xf32>
    %1721 = math.exp %1720 : vector<2x32xf32>
    %cst_438 = arith.constant 1.000000e+00 : f32
    %1722 = vector.broadcast %cst_438 : f32 to vector<2x32xf32>
    %1723 = arith.addf %1722, %1721 : vector<2x32xf32>
    %1724 = arith.divf %1722, %1723 : vector<2x32xf32>
    %1725 = arith.mulf %1716, %1665 : vector<2x32xf32>
    %1726 = arith.mulf %1710, %1718 : vector<2x32xf32>
    %1727 = arith.addf %1725, %1726 : vector<2x32xf32>
    %1728 = math.tanh %1727 : vector<2x32xf32>
    %1729 = arith.mulf %1724, %1728 : vector<2x32xf32>
    %1730 = vector.extract_strided_slice %1704 {offsets = [0, 0], sizes = [2, 32], strides = [1, 1]} : vector<2x128xf32> to vector<2x32xf32>
    %1731 = arith.negf %1730 : vector<2x32xf32>
    %1732 = math.exp %1731 : vector<2x32xf32>
    %cst_439 = arith.constant 1.000000e+00 : f32
    %1733 = vector.broadcast %cst_439 : f32 to vector<2x32xf32>
    %1734 = arith.addf %1733, %1732 : vector<2x32xf32>
    %1735 = arith.divf %1733, %1734 : vector<2x32xf32>
    %1736 = vector.extract_strided_slice %1704 {offsets = [0, 32], sizes = [2, 32], strides = [1, 1]} : vector<2x128xf32> to vector<2x32xf32>
    %1737 = arith.negf %1736 : vector<2x32xf32>
    %1738 = math.exp %1737 : vector<2x32xf32>
    %cst_440 = arith.constant 1.000000e+00 : f32
    %1739 = vector.broadcast %cst_440 : f32 to vector<2x32xf32>
    %1740 = arith.addf %1739, %1738 : vector<2x32xf32>
    %1741 = arith.divf %1739, %1740 : vector<2x32xf32>
    %1742 = vector.extract_strided_slice %1704 {offsets = [0, 64], sizes = [2, 32], strides = [1, 1]} : vector<2x128xf32> to vector<2x32xf32>
    %1743 = math.tanh %1742 : vector<2x32xf32>
    %1744 = vector.extract_strided_slice %1704 {offsets = [0, 96], sizes = [2, 32], strides = [1, 1]} : vector<2x128xf32> to vector<2x32xf32>
    %1745 = arith.negf %1744 : vector<2x32xf32>
    %1746 = math.exp %1745 : vector<2x32xf32>
    %cst_441 = arith.constant 1.000000e+00 : f32
    %1747 = vector.broadcast %cst_441 : f32 to vector<2x32xf32>
    %1748 = arith.addf %1747, %1746 : vector<2x32xf32>
    %1749 = arith.divf %1747, %1748 : vector<2x32xf32>
    %1750 = arith.mulf %1741, %1690 : vector<2x32xf32>
    %1751 = arith.mulf %1735, %1743 : vector<2x32xf32>
    %1752 = arith.addf %1750, %1751 : vector<2x32xf32>
    %1753 = math.tanh %1752 : vector<2x32xf32>
    %1754 = arith.mulf %1749, %1753 : vector<2x32xf32>
    %1755 = arith.truncf %1729 : vector<2x32xf32> to vector<2x32xbf16>
    %c54_442 = arith.constant 54 : index
    %c0_443 = arith.constant 0 : index
    %1756 = vector.load %arg9[%c54_442, %c0_443] : memref<64x32xbf16, #tpu.memory_space<vmem>>, vector<2x32xbf16>
    tpu.vector_store %arg9[%c54_442, %c0_443], %1755 {strides = array<i32>} : memref<64x32xbf16, #tpu.memory_space<vmem>>, vector<2x32xbf16>,
    %1757 = arith.truncf %1754 : vector<2x32xf32> to vector<2x32xbf16>
    %c8_444 = arith.constant 8 : index
    %c0_445 = arith.constant 0 : index
    %1758 = vector.load %arg10[%c8_444, %c0_445] : memref<64x32xbf16, #tpu.memory_space<vmem>>, vector<2x32xbf16>
    tpu.vector_store %arg10[%c8_444, %c0_445], %1757 {strides = array<i32>} : memref<64x32xbf16, #tpu.memory_space<vmem>>, vector<2x32xbf16>,
    %c56_446 = arith.constant 56 : index
    %c0_447 = arith.constant 0 : index
    %1759 = vector.load %arg11[%c56_446, %c0_447] : memref<64x128xf32, #tpu.memory_space<vmem>>, vector<2x128xf32>
    %1760 = arith.truncf %1729 : vector<2x32xf32> to vector<2x32xbf16>
    %cst_448 = arith.constant dense<0.000000e+00> : vector<2x128xf32>
    %1761 = tpu.matmul %1760, %17, %cst_448 {dimension_numbers = #tpu.dot_dimension_numbers<[1], [0], [0], [1], [0, 0, 1, 1], [], []>} : vector<2x32xbf16>, vector<32x128xbf16>, vector<2x128xf32> -> vector<2x128xf32>
    %1762 = arith.addf %1759, %1761 : vector<2x128xf32>
    %c6_449 = arith.constant 6 : index
    %c0_450 = arith.constant 0 : index
    %1763 = vector.load %arg12[%c6_449, %c0_450] : memref<64x128xf32, #tpu.memory_space<vmem>>, vector<2x128xf32>
    %1764 = arith.truncf %1754 : vector<2x32xf32> to vector<2x32xbf16>
    %cst_451 = arith.constant dense<0.000000e+00> : vector<2x128xf32>
    %1765 = tpu.matmul %1764, %18, %cst_451 {dimension_numbers = #tpu.dot_dimension_numbers<[1], [0], [0], [1], [0, 0, 1, 1], [], []>} : vector<2x32xbf16>, vector<32x128xbf16>, vector<2x128xf32> -> vector<2x128xf32>
    %1766 = arith.addf %1763, %1765 : vector<2x128xf32>
    %1767 = vector.extract_strided_slice %1762 {offsets = [0, 0], sizes = [2, 32], strides = [1, 1]} : vector<2x128xf32> to vector<2x32xf32>
    %1768 = arith.negf %1767 : vector<2x32xf32>
    %1769 = math.exp %1768 : vector<2x32xf32>
    %cst_452 = arith.constant 1.000000e+00 : f32
    %1770 = vector.broadcast %cst_452 : f32 to vector<2x32xf32>
    %1771 = arith.addf %1770, %1769 : vector<2x32xf32>
    %1772 = arith.divf %1770, %1771 : vector<2x32xf32>
    %1773 = vector.extract_strided_slice %1762 {offsets = [0, 32], sizes = [2, 32], strides = [1, 1]} : vector<2x128xf32> to vector<2x32xf32>
    %1774 = arith.negf %1773 : vector<2x32xf32>
    %1775 = math.exp %1774 : vector<2x32xf32>
    %cst_453 = arith.constant 1.000000e+00 : f32
    %1776 = vector.broadcast %cst_453 : f32 to vector<2x32xf32>
    %1777 = arith.addf %1776, %1775 : vector<2x32xf32>
    %1778 = arith.divf %1776, %1777 : vector<2x32xf32>
    %1779 = vector.extract_strided_slice %1762 {offsets = [0, 64], sizes = [2, 32], strides = [1, 1]} : vector<2x128xf32> to vector<2x32xf32>
    %1780 = math.tanh %1779 : vector<2x32xf32>
    %1781 = vector.extract_strided_slice %1762 {offsets = [0, 96], sizes = [2, 32], strides = [1, 1]} : vector<2x128xf32> to vector<2x32xf32>
    %1782 = arith.negf %1781 : vector<2x32xf32>
    %1783 = math.exp %1782 : vector<2x32xf32>
    %cst_454 = arith.constant 1.000000e+00 : f32
    %1784 = vector.broadcast %cst_454 : f32 to vector<2x32xf32>
    %1785 = arith.addf %1784, %1783 : vector<2x32xf32>
    %1786 = arith.divf %1784, %1785 : vector<2x32xf32>
    %1787 = arith.mulf %1778, %1727 : vector<2x32xf32>
    %1788 = arith.mulf %1772, %1780 : vector<2x32xf32>
    %1789 = arith.addf %1787, %1788 : vector<2x32xf32>
    %1790 = math.tanh %1789 : vector<2x32xf32>
    %1791 = arith.mulf %1786, %1790 : vector<2x32xf32>
    %1792 = vector.extract_strided_slice %1766 {offsets = [0, 0], sizes = [2, 32], strides = [1, 1]} : vector<2x128xf32> to vector<2x32xf32>
    %1793 = arith.negf %1792 : vector<2x32xf32>
    %1794 = math.exp %1793 : vector<2x32xf32>
    %cst_455 = arith.constant 1.000000e+00 : f32
    %1795 = vector.broadcast %cst_455 : f32 to vector<2x32xf32>
    %1796 = arith.addf %1795, %1794 : vector<2x32xf32>
    %1797 = arith.divf %1795, %1796 : vector<2x32xf32>
    %1798 = vector.extract_strided_slice %1766 {offsets = [0, 32], sizes = [2, 32], strides = [1, 1]} : vector<2x128xf32> to vector<2x32xf32>
    %1799 = arith.negf %1798 : vector<2x32xf32>
    %1800 = math.exp %1799 : vector<2x32xf32>
    %cst_456 = arith.constant 1.000000e+00 : f32
    %1801 = vector.broadcast %cst_456 : f32 to vector<2x32xf32>
    %1802 = arith.addf %1801, %1800 : vector<2x32xf32>
    %1803 = arith.divf %1801, %1802 : vector<2x32xf32>
    %1804 = vector.extract_strided_slice %1766 {offsets = [0, 64], sizes = [2, 32], strides = [1, 1]} : vector<2x128xf32> to vector<2x32xf32>
    %1805 = math.tanh %1804 : vector<2x32xf32>
    %1806 = vector.extract_strided_slice %1766 {offsets = [0, 96], sizes = [2, 32], strides = [1, 1]} : vector<2x128xf32> to vector<2x32xf32>
    %1807 = arith.negf %1806 : vector<2x32xf32>
    %1808 = math.exp %1807 : vector<2x32xf32>
    %cst_457 = arith.constant 1.000000e+00 : f32
    %1809 = vector.broadcast %cst_457 : f32 to vector<2x32xf32>
    %1810 = arith.addf %1809, %1808 : vector<2x32xf32>
    %1811 = arith.divf %1809, %1810 : vector<2x32xf32>
    %1812 = arith.mulf %1803, %1752 : vector<2x32xf32>
    %1813 = arith.mulf %1797, %1805 : vector<2x32xf32>
    %1814 = arith.addf %1812, %1813 : vector<2x32xf32>
    %1815 = math.tanh %1814 : vector<2x32xf32>
    %1816 = arith.mulf %1811, %1815 : vector<2x32xf32>
    %1817 = arith.truncf %1791 : vector<2x32xf32> to vector<2x32xbf16>
    %c56_458 = arith.constant 56 : index
    %c0_459 = arith.constant 0 : index
    %1818 = vector.load %arg9[%c56_458, %c0_459] : memref<64x32xbf16, #tpu.memory_space<vmem>>, vector<2x32xbf16>
    tpu.vector_store %arg9[%c56_458, %c0_459], %1817 {strides = array<i32>} : memref<64x32xbf16, #tpu.memory_space<vmem>>, vector<2x32xbf16>,
    %1819 = arith.truncf %1816 : vector<2x32xf32> to vector<2x32xbf16>
    %c6_460 = arith.constant 6 : index
    %c0_461 = arith.constant 0 : index
    %1820 = vector.load %arg10[%c6_460, %c0_461] : memref<64x32xbf16, #tpu.memory_space<vmem>>, vector<2x32xbf16>
    tpu.vector_store %arg10[%c6_460, %c0_461], %1819 {strides = array<i32>} : memref<64x32xbf16, #tpu.memory_space<vmem>>, vector<2x32xbf16>,
    %c58_462 = arith.constant 58 : index
    %c0_463 = arith.constant 0 : index
    %1821 = vector.load %arg11[%c58_462, %c0_463] : memref<64x128xf32, #tpu.memory_space<vmem>>, vector<2x128xf32>
    %1822 = arith.truncf %1791 : vector<2x32xf32> to vector<2x32xbf16>
    %cst_464 = arith.constant dense<0.000000e+00> : vector<2x128xf32>
    %1823 = tpu.matmul %1822, %17, %cst_464 {dimension_numbers = #tpu.dot_dimension_numbers<[1], [0], [0], [1], [0, 0, 1, 1], [], []>} : vector<2x32xbf16>, vector<32x128xbf16>, vector<2x128xf32> -> vector<2x128xf32>
    %1824 = arith.addf %1821, %1823 : vector<2x128xf32>
    %c4_465 = arith.constant 4 : index
    %c0_466 = arith.constant 0 : index
    %1825 = vector.load %arg12[%c4_465, %c0_466] : memref<64x128xf32, #tpu.memory_space<vmem>>, vector<2x128xf32>
    %1826 = arith.truncf %1816 : vector<2x32xf32> to vector<2x32xbf16>
    %cst_467 = arith.constant dense<0.000000e+00> : vector<2x128xf32>
    %1827 = tpu.matmul %1826, %18, %cst_467 {dimension_numbers = #tpu.dot_dimension_numbers<[1], [0], [0], [1], [0, 0, 1, 1], [], []>} : vector<2x32xbf16>, vector<32x128xbf16>, vector<2x128xf32> -> vector<2x128xf32>
    %1828 = arith.addf %1825, %1827 : vector<2x128xf32>
    %1829 = vector.extract_strided_slice %1824 {offsets = [0, 0], sizes = [2, 32], strides = [1, 1]} : vector<2x128xf32> to vector<2x32xf32>
    %1830 = arith.negf %1829 : vector<2x32xf32>
    %1831 = math.exp %1830 : vector<2x32xf32>
    %cst_468 = arith.constant 1.000000e+00 : f32
    %1832 = vector.broadcast %cst_468 : f32 to vector<2x32xf32>
    %1833 = arith.addf %1832, %1831 : vector<2x32xf32>
    %1834 = arith.divf %1832, %1833 : vector<2x32xf32>
    %1835 = vector.extract_strided_slice %1824 {offsets = [0, 32], sizes = [2, 32], strides = [1, 1]} : vector<2x128xf32> to vector<2x32xf32>
    %1836 = arith.negf %1835 : vector<2x32xf32>
    %1837 = math.exp %1836 : vector<2x32xf32>
    %cst_469 = arith.constant 1.000000e+00 : f32
    %1838 = vector.broadcast %cst_469 : f32 to vector<2x32xf32>
    %1839 = arith.addf %1838, %1837 : vector<2x32xf32>
    %1840 = arith.divf %1838, %1839 : vector<2x32xf32>
    %1841 = vector.extract_strided_slice %1824 {offsets = [0, 64], sizes = [2, 32], strides = [1, 1]} : vector<2x128xf32> to vector<2x32xf32>
    %1842 = math.tanh %1841 : vector<2x32xf32>
    %1843 = vector.extract_strided_slice %1824 {offsets = [0, 96], sizes = [2, 32], strides = [1, 1]} : vector<2x128xf32> to vector<2x32xf32>
    %1844 = arith.negf %1843 : vector<2x32xf32>
    %1845 = math.exp %1844 : vector<2x32xf32>
    %cst_470 = arith.constant 1.000000e+00 : f32
    %1846 = vector.broadcast %cst_470 : f32 to vector<2x32xf32>
    %1847 = arith.addf %1846, %1845 : vector<2x32xf32>
    %1848 = arith.divf %1846, %1847 : vector<2x32xf32>
    %1849 = arith.mulf %1840, %1789 : vector<2x32xf32>
    %1850 = arith.mulf %1834, %1842 : vector<2x32xf32>
    %1851 = arith.addf %1849, %1850 : vector<2x32xf32>
    %1852 = math.tanh %1851 : vector<2x32xf32>
    %1853 = arith.mulf %1848, %1852 : vector<2x32xf32>
    %1854 = vector.extract_strided_slice %1828 {offsets = [0, 0], sizes = [2, 32], strides = [1, 1]} : vector<2x128xf32> to vector<2x32xf32>
    %1855 = arith.negf %1854 : vector<2x32xf32>
    %1856 = math.exp %1855 : vector<2x32xf32>
    %cst_471 = arith.constant 1.000000e+00 : f32
    %1857 = vector.broadcast %cst_471 : f32 to vector<2x32xf32>
    %1858 = arith.addf %1857, %1856 : vector<2x32xf32>
    %1859 = arith.divf %1857, %1858 : vector<2x32xf32>
    %1860 = vector.extract_strided_slice %1828 {offsets = [0, 32], sizes = [2, 32], strides = [1, 1]} : vector<2x128xf32> to vector<2x32xf32>
    %1861 = arith.negf %1860 : vector<2x32xf32>
    %1862 = math.exp %1861 : vector<2x32xf32>
    %cst_472 = arith.constant 1.000000e+00 : f32
    %1863 = vector.broadcast %cst_472 : f32 to vector<2x32xf32>
    %1864 = arith.addf %1863, %1862 : vector<2x32xf32>
    %1865 = arith.divf %1863, %1864 : vector<2x32xf32>
    %1866 = vector.extract_strided_slice %1828 {offsets = [0, 64], sizes = [2, 32], strides = [1, 1]} : vector<2x128xf32> to vector<2x32xf32>
    %1867 = math.tanh %1866 : vector<2x32xf32>
    %1868 = vector.extract_strided_slice %1828 {offsets = [0, 96], sizes = [2, 32], strides = [1, 1]} : vector<2x128xf32> to vector<2x32xf32>
    %1869 = arith.negf %1868 : vector<2x32xf32>
    %1870 = math.exp %1869 : vector<2x32xf32>
    %cst_473 = arith.constant 1.000000e+00 : f32
    %1871 = vector.broadcast %cst_473 : f32 to vector<2x32xf32>
    %1872 = arith.addf %1871, %1870 : vector<2x32xf32>
    %1873 = arith.divf %1871, %1872 : vector<2x32xf32>
    %1874 = arith.mulf %1865, %1814 : vector<2x32xf32>
    %1875 = arith.mulf %1859, %1867 : vector<2x32xf32>
    %1876 = arith.addf %1874, %1875 : vector<2x32xf32>
    %1877 = math.tanh %1876 : vector<2x32xf32>
    %1878 = arith.mulf %1873, %1877 : vector<2x32xf32>
    %1879 = arith.truncf %1853 : vector<2x32xf32> to vector<2x32xbf16>
    %c58_474 = arith.constant 58 : index
    %c0_475 = arith.constant 0 : index
    %1880 = vector.load %arg9[%c58_474, %c0_475] : memref<64x32xbf16, #tpu.memory_space<vmem>>, vector<2x32xbf16>
    tpu.vector_store %arg9[%c58_474, %c0_475], %1879 {strides = array<i32>} : memref<64x32xbf16, #tpu.memory_space<vmem>>, vector<2x32xbf16>,
    %1881 = arith.truncf %1878 : vector<2x32xf32> to vector<2x32xbf16>
    %c4_476 = arith.constant 4 : index
    %c0_477 = arith.constant 0 : index
    %1882 = vector.load %arg10[%c4_476, %c0_477] : memref<64x32xbf16, #tpu.memory_space<vmem>>, vector<2x32xbf16>
    tpu.vector_store %arg10[%c4_476, %c0_477], %1881 {strides = array<i32>} : memref<64x32xbf16, #tpu.memory_space<vmem>>, vector<2x32xbf16>,
    %c60_478 = arith.constant 60 : index
    %c0_479 = arith.constant 0 : index
    %1883 = vector.load %arg11[%c60_478, %c0_479] : memref<64x128xf32, #tpu.memory_space<vmem>>, vector<2x128xf32>
    %1884 = arith.truncf %1853 : vector<2x32xf32> to vector<2x32xbf16>
    %cst_480 = arith.constant dense<0.000000e+00> : vector<2x128xf32>
    %1885 = tpu.matmul %1884, %17, %cst_480 {dimension_numbers = #tpu.dot_dimension_numbers<[1], [0], [0], [1], [0, 0, 1, 1], [], []>} : vector<2x32xbf16>, vector<32x128xbf16>, vector<2x128xf32> -> vector<2x128xf32>
    %1886 = arith.addf %1883, %1885 : vector<2x128xf32>
    %c2_481 = arith.constant 2 : index
    %c0_482 = arith.constant 0 : index
    %1887 = vector.load %arg12[%c2_481, %c0_482] : memref<64x128xf32, #tpu.memory_space<vmem>>, vector<2x128xf32>
    %1888 = arith.truncf %1878 : vector<2x32xf32> to vector<2x32xbf16>
    %cst_483 = arith.constant dense<0.000000e+00> : vector<2x128xf32>
    %1889 = tpu.matmul %1888, %18, %cst_483 {dimension_numbers = #tpu.dot_dimension_numbers<[1], [0], [0], [1], [0, 0, 1, 1], [], []>} : vector<2x32xbf16>, vector<32x128xbf16>, vector<2x128xf32> -> vector<2x128xf32>
    %1890 = arith.addf %1887, %1889 : vector<2x128xf32>
    %1891 = vector.extract_strided_slice %1886 {offsets = [0, 0], sizes = [2, 32], strides = [1, 1]} : vector<2x128xf32> to vector<2x32xf32>
    %1892 = arith.negf %1891 : vector<2x32xf32>
    %1893 = math.exp %1892 : vector<2x32xf32>
    %cst_484 = arith.constant 1.000000e+00 : f32
    %1894 = vector.broadcast %cst_484 : f32 to vector<2x32xf32>
    %1895 = arith.addf %1894, %1893 : vector<2x32xf32>
    %1896 = arith.divf %1894, %1895 : vector<2x32xf32>
    %1897 = vector.extract_strided_slice %1886 {offsets = [0, 32], sizes = [2, 32], strides = [1, 1]} : vector<2x128xf32> to vector<2x32xf32>
    %1898 = arith.negf %1897 : vector<2x32xf32>
    %1899 = math.exp %1898 : vector<2x32xf32>
    %cst_485 = arith.constant 1.000000e+00 : f32
    %1900 = vector.broadcast %cst_485 : f32 to vector<2x32xf32>
    %1901 = arith.addf %1900, %1899 : vector<2x32xf32>
    %1902 = arith.divf %1900, %1901 : vector<2x32xf32>
    %1903 = vector.extract_strided_slice %1886 {offsets = [0, 64], sizes = [2, 32], strides = [1, 1]} : vector<2x128xf32> to vector<2x32xf32>
    %1904 = math.tanh %1903 : vector<2x32xf32>
    %1905 = vector.extract_strided_slice %1886 {offsets = [0, 96], sizes = [2, 32], strides = [1, 1]} : vector<2x128xf32> to vector<2x32xf32>
    %1906 = arith.negf %1905 : vector<2x32xf32>
    %1907 = math.exp %1906 : vector<2x32xf32>
    %cst_486 = arith.constant 1.000000e+00 : f32
    %1908 = vector.broadcast %cst_486 : f32 to vector<2x32xf32>
    %1909 = arith.addf %1908, %1907 : vector<2x32xf32>
    %1910 = arith.divf %1908, %1909 : vector<2x32xf32>
    %1911 = arith.mulf %1902, %1851 : vector<2x32xf32>
    %1912 = arith.mulf %1896, %1904 : vector<2x32xf32>
    %1913 = arith.addf %1911, %1912 : vector<2x32xf32>
    %1914 = math.tanh %1913 : vector<2x32xf32>
    %1915 = arith.mulf %1910, %1914 : vector<2x32xf32>
    %1916 = vector.extract_strided_slice %1890 {offsets = [0, 0], sizes = [2, 32], strides = [1, 1]} : vector<2x128xf32> to vector<2x32xf32>
    %1917 = arith.negf %1916 : vector<2x32xf32>
    %1918 = math.exp %1917 : vector<2x32xf32>
    %cst_487 = arith.constant 1.000000e+00 : f32
    %1919 = vector.broadcast %cst_487 : f32 to vector<2x32xf32>
    %1920 = arith.addf %1919, %1918 : vector<2x32xf32>
    %1921 = arith.divf %1919, %1920 : vector<2x32xf32>
    %1922 = vector.extract_strided_slice %1890 {offsets = [0, 32], sizes = [2, 32], strides = [1, 1]} : vector<2x128xf32> to vector<2x32xf32>
    %1923 = arith.negf %1922 : vector<2x32xf32>
    %1924 = math.exp %1923 : vector<2x32xf32>
    %cst_488 = arith.constant 1.000000e+00 : f32
    %1925 = vector.broadcast %cst_488 : f32 to vector<2x32xf32>
    %1926 = arith.addf %1925, %1924 : vector<2x32xf32>
    %1927 = arith.divf %1925, %1926 : vector<2x32xf32>
    %1928 = vector.extract_strided_slice %1890 {offsets = [0, 64], sizes = [2, 32], strides = [1, 1]} : vector<2x128xf32> to vector<2x32xf32>
    %1929 = math.tanh %1928 : vector<2x32xf32>
    %1930 = vector.extract_strided_slice %1890 {offsets = [0, 96], sizes = [2, 32], strides = [1, 1]} : vector<2x128xf32> to vector<2x32xf32>
    %1931 = arith.negf %1930 : vector<2x32xf32>
    %1932 = math.exp %1931 : vector<2x32xf32>
    %cst_489 = arith.constant 1.000000e+00 : f32
    %1933 = vector.broadcast %cst_489 : f32 to vector<2x32xf32>
    %1934 = arith.addf %1933, %1932 : vector<2x32xf32>
    %1935 = arith.divf %1933, %1934 : vector<2x32xf32>
    %1936 = arith.mulf %1927, %1876 : vector<2x32xf32>
    %1937 = arith.mulf %1921, %1929 : vector<2x32xf32>
    %1938 = arith.addf %1936, %1937 : vector<2x32xf32>
    %1939 = math.tanh %1938 : vector<2x32xf32>
    %1940 = arith.mulf %1935, %1939 : vector<2x32xf32>
    %1941 = arith.truncf %1915 : vector<2x32xf32> to vector<2x32xbf16>
    %c60_490 = arith.constant 60 : index
    %c0_491 = arith.constant 0 : index
    %1942 = vector.load %arg9[%c60_490, %c0_491] : memref<64x32xbf16, #tpu.memory_space<vmem>>, vector<2x32xbf16>
    tpu.vector_store %arg9[%c60_490, %c0_491], %1941 {strides = array<i32>} : memref<64x32xbf16, #tpu.memory_space<vmem>>, vector<2x32xbf16>,
    %1943 = arith.truncf %1940 : vector<2x32xf32> to vector<2x32xbf16>
    %c2_492 = arith.constant 2 : index
    %c0_493 = arith.constant 0 : index
    %1944 = vector.load %arg10[%c2_492, %c0_493] : memref<64x32xbf16, #tpu.memory_space<vmem>>, vector<2x32xbf16>
    tpu.vector_store %arg10[%c2_492, %c0_493], %1943 {strides = array<i32>} : memref<64x32xbf16, #tpu.memory_space<vmem>>, vector<2x32xbf16>,
    %c62_494 = arith.constant 62 : index
    %c0_495 = arith.constant 0 : index
    %1945 = vector.load %arg11[%c62_494, %c0_495] : memref<64x128xf32, #tpu.memory_space<vmem>>, vector<2x128xf32>
    %1946 = arith.truncf %1915 : vector<2x32xf32> to vector<2x32xbf16>
    %cst_496 = arith.constant dense<0.000000e+00> : vector<2x128xf32>
    %1947 = tpu.matmul %1946, %17, %cst_496 {dimension_numbers = #tpu.dot_dimension_numbers<[1], [0], [0], [1], [0, 0, 1, 1], [], []>} : vector<2x32xbf16>, vector<32x128xbf16>, vector<2x128xf32> -> vector<2x128xf32>
    %1948 = arith.addf %1945, %1947 : vector<2x128xf32>
    %c0_497 = arith.constant 0 : index
    %c0_498 = arith.constant 0 : index
    %1949 = vector.load %arg12[%c0_497, %c0_498] : memref<64x128xf32, #tpu.memory_space<vmem>>, vector<2x128xf32>
    %1950 = arith.truncf %1940 : vector<2x32xf32> to vector<2x32xbf16>
    %cst_499 = arith.constant dense<0.000000e+00> : vector<2x128xf32>
    %1951 = tpu.matmul %1950, %18, %cst_499 {dimension_numbers = #tpu.dot_dimension_numbers<[1], [0], [0], [1], [0, 0, 1, 1], [], []>} : vector<2x32xbf16>, vector<32x128xbf16>, vector<2x128xf32> -> vector<2x128xf32>
    %1952 = arith.addf %1949, %1951 : vector<2x128xf32>
    %1953 = vector.extract_strided_slice %1948 {offsets = [0, 0], sizes = [2, 32], strides = [1, 1]} : vector<2x128xf32> to vector<2x32xf32>
    %1954 = arith.negf %1953 : vector<2x32xf32>
    %1955 = math.exp %1954 : vector<2x32xf32>
    %cst_500 = arith.constant 1.000000e+00 : f32
    %1956 = vector.broadcast %cst_500 : f32 to vector<2x32xf32>
    %1957 = arith.addf %1956, %1955 : vector<2x32xf32>
    %1958 = arith.divf %1956, %1957 : vector<2x32xf32>
    %1959 = vector.extract_strided_slice %1948 {offsets = [0, 32], sizes = [2, 32], strides = [1, 1]} : vector<2x128xf32> to vector<2x32xf32>
    %1960 = arith.negf %1959 : vector<2x32xf32>
    %1961 = math.exp %1960 : vector<2x32xf32>
    %cst_501 = arith.constant 1.000000e+00 : f32
    %1962 = vector.broadcast %cst_501 : f32 to vector<2x32xf32>
    %1963 = arith.addf %1962, %1961 : vector<2x32xf32>
    %1964 = arith.divf %1962, %1963 : vector<2x32xf32>
    %1965 = vector.extract_strided_slice %1948 {offsets = [0, 64], sizes = [2, 32], strides = [1, 1]} : vector<2x128xf32> to vector<2x32xf32>
    %1966 = math.tanh %1965 : vector<2x32xf32>
    %1967 = vector.extract_strided_slice %1948 {offsets = [0, 96], sizes = [2, 32], strides = [1, 1]} : vector<2x128xf32> to vector<2x32xf32>
    %1968 = arith.negf %1967 : vector<2x32xf32>
    %1969 = math.exp %1968 : vector<2x32xf32>
    %cst_502 = arith.constant 1.000000e+00 : f32
    %1970 = vector.broadcast %cst_502 : f32 to vector<2x32xf32>
    %1971 = arith.addf %1970, %1969 : vector<2x32xf32>
    %1972 = arith.divf %1970, %1971 : vector<2x32xf32>
    %1973 = arith.mulf %1964, %1913 : vector<2x32xf32>
    %1974 = arith.mulf %1958, %1966 : vector<2x32xf32>
    %1975 = arith.addf %1973, %1974 : vector<2x32xf32>
    %1976 = math.tanh %1975 : vector<2x32xf32>
    %1977 = arith.mulf %1972, %1976 : vector<2x32xf32>
    %1978 = vector.extract_strided_slice %1952 {offsets = [0, 0], sizes = [2, 32], strides = [1, 1]} : vector<2x128xf32> to vector<2x32xf32>
    %1979 = arith.negf %1978 : vector<2x32xf32>
    %1980 = math.exp %1979 : vector<2x32xf32>
    %cst_503 = arith.constant 1.000000e+00 : f32
    %1981 = vector.broadcast %cst_503 : f32 to vector<2x32xf32>
    %1982 = arith.addf %1981, %1980 : vector<2x32xf32>
    %1983 = arith.divf %1981, %1982 : vector<2x32xf32>
    %1984 = vector.extract_strided_slice %1952 {offsets = [0, 32], sizes = [2, 32], strides = [1, 1]} : vector<2x128xf32> to vector<2x32xf32>
    %1985 = arith.negf %1984 : vector<2x32xf32>
    %1986 = math.exp %1985 : vector<2x32xf32>
    %cst_504 = arith.constant 1.000000e+00 : f32
    %1987 = vector.broadcast %cst_504 : f32 to vector<2x32xf32>
    %1988 = arith.addf %1987, %1986 : vector<2x32xf32>
    %1989 = arith.divf %1987, %1988 : vector<2x32xf32>
    %1990 = vector.extract_strided_slice %1952 {offsets = [0, 64], sizes = [2, 32], strides = [1, 1]} : vector<2x128xf32> to vector<2x32xf32>
    %1991 = math.tanh %1990 : vector<2x32xf32>
    %1992 = vector.extract_strided_slice %1952 {offsets = [0, 96], sizes = [2, 32], strides = [1, 1]} : vector<2x128xf32> to vector<2x32xf32>
    %1993 = arith.negf %1992 : vector<2x32xf32>
    %1994 = math.exp %1993 : vector<2x32xf32>
    %cst_505 = arith.constant 1.000000e+00 : f32
    %1995 = vector.broadcast %cst_505 : f32 to vector<2x32xf32>
    %1996 = arith.addf %1995, %1994 : vector<2x32xf32>
    %1997 = arith.divf %1995, %1996 : vector<2x32xf32>
    %1998 = arith.mulf %1989, %1938 : vector<2x32xf32>
    %1999 = arith.mulf %1983, %1991 : vector<2x32xf32>
    %2000 = arith.addf %1998, %1999 : vector<2x32xf32>
    %2001 = math.tanh %2000 : vector<2x32xf32>
    %2002 = arith.mulf %1997, %2001 : vector<2x32xf32>
    %2003 = arith.truncf %1977 : vector<2x32xf32> to vector<2x32xbf16>
    %c62_506 = arith.constant 62 : index
    %c0_507 = arith.constant 0 : index
    %2004 = vector.load %arg9[%c62_506, %c0_507] : memref<64x32xbf16, #tpu.memory_space<vmem>>, vector<2x32xbf16>
    tpu.vector_store %arg9[%c62_506, %c0_507], %2003 {strides = array<i32>} : memref<64x32xbf16, #tpu.memory_space<vmem>>, vector<2x32xbf16>,
    %2005 = arith.truncf %2002 : vector<2x32xf32> to vector<2x32xbf16>
    %c0_508 = arith.constant 0 : index
    %c0_509 = arith.constant 0 : index
    %2006 = vector.load %arg10[%c0_508, %c0_509] : memref<64x32xbf16, #tpu.memory_space<vmem>>, vector<2x32xbf16>
    tpu.vector_store %arg10[%c0_508, %c0_509], %2005 {strides = array<i32>} : memref<64x32xbf16, #tpu.memory_space<vmem>>, vector<2x32xbf16>,
    %c0_510 = arith.constant 0 : index
    %c0_511 = arith.constant 0 : index
    %2007 = vector.load %arg13[%c0_510, %c0_511] : memref<2x32xf32, #tpu.memory_space<vmem>>, vector<2x32xf32>
    tpu.vector_store %arg13[%c0_510, %c0_511], %1977 {strides = array<i32>} : memref<2x32xf32, #tpu.memory_space<vmem>>, vector<2x32xf32>,
    %c0_512 = arith.constant 0 : index
    %c0_513 = arith.constant 0 : index
    %2008 = vector.load %arg14[%c0_512, %c0_513] : memref<2x32xf32, #tpu.memory_space<vmem>>, vector<2x32xf32>
    tpu.vector_store %arg14[%c0_512, %c0_513], %1975 {strides = array<i32>} : memref<2x32xf32, #tpu.memory_space<vmem>>, vector<2x32xf32>,
    %c0_514 = arith.constant 0 : index
    %c0_515 = arith.constant 0 : index
    %2009 = vector.load %arg15[%c0_514, %c0_515] : memref<2x32xf32, #tpu.memory_space<vmem>>, vector<2x32xf32>
    tpu.vector_store %arg15[%c0_514, %c0_515], %2002 {strides = array<i32>} : memref<2x32xf32, #tpu.memory_space<vmem>>, vector<2x32xf32>,
    %c0_516 = arith.constant 0 : index
    %c0_517 = arith.constant 0 : index
    %2010 = vector.load %arg16[%c0_516, %c0_517] : memref<2x32xf32, #tpu.memory_space<vmem>>, vector<2x32xf32>
    tpu.vector_store %arg16[%c0_516, %c0_517], %2000 {strides = array<i32>} : memref<2x32xf32, #tpu.memory_space<vmem>>, vector<2x32xf32>,
    return
  }
  func.func @transform_0(%arg0: i32) -> (i32, i32) {
    %c0_i32 = arith.constant 0 : i32
    %c0_i32_0 = arith.constant 0 : i32
    return %arg0, %c0_i32 : i32, i32
  }
  func.func @transform_1(%arg0: i32) -> (i32, i32) {
    %c15_i32 = arith.constant 15 : i32
    %0 = arith.subi %c15_i32, %arg0 : i32
    %c0_i32 = arith.constant 0 : i32
    %c0_i32_0 = arith.constant 0 : i32
    return %0, %c0_i32 : i32, i32
  }
  func.func @transform_2(%arg0: i32) -> (i32, i32) {
    %c0_i32 = arith.constant 0 : i32
    %c0_i32_0 = arith.constant 0 : i32
    %c0_i32_1 = arith.constant 0 : i32
    return %c0_i32, %c0_i32_0 : i32, i32
  }
  func.func @transform_3(%arg0: i32) -> (i32, i32) {
    %c0_i32 = arith.constant 0 : i32
    %c0_i32_0 = arith.constant 0 : i32
    %c0_i32_1 = arith.constant 0 : i32
    return %c0_i32, %c0_i32_0 : i32, i32
  }
  func.func @transform_4(%arg0: i32) -> (i32, i32) {
    %c0_i32 = arith.constant 0 : i32
    %c0_i32_0 = arith.constant 0 : i32
    %c0_i32_1 = arith.constant 0 : i32
    return %c0_i32, %c0_i32_0 : i32, i32
  }
  func.func @transform_5(%arg0: i32) -> (i32, i32) {
    %c0_i32 = arith.constant 0 : i32
    %c0_i32_0 = arith.constant 0 : i32
    %c0_i32_1 = arith.constant 0 : i32
    return %c0_i32, %c0_i32_0 : i32, i32
  }
  func.func @transform_6(%arg0: i32) -> (i32, i32) {
    %c0_i32 = arith.constant 0 : i32
    %c0_i32_0 = arith.constant 0 : i32
    %c0_i32_1 = arith.constant 0 : i32
    return %c0_i32, %c0_i32_0 : i32, i32
  }
  func.func @transform_7(%arg0: i32) -> (i32, i32) {
    %c0_i32 = arith.constant 0 : i32
    %c0_i32_0 = arith.constant 0 : i32
    %c0_i32_1 = arith.constant 0 : i32
    return %c0_i32, %c0_i32_0 : i32, i32
  }
  func.func @transform_8(%arg0: i32) -> (i32, i32) {
    %c0_i32 = arith.constant 0 : i32
    %c0_i32_0 = arith.constant 0 : i32
    return %arg0, %c0_i32 : i32, i32
  }
  func.func @transform_9(%arg0: i32) -> (i32, i32) {
    %c15_i32 = arith.constant 15 : i32
    %0 = arith.subi %c15_i32, %arg0 : i32
    %c0_i32 = arith.constant 0 : i32
    %c0_i32_0 = arith.constant 0 : i32
    return %0, %c0_i32 : i32, i32
  }
}

</mosaic_0001>

<llo_original>
// kernel: tpu_custom_call.1
$region0: #{tpu_custom_call.1}
  #allocation0 [shape = 'u32[]', space=smem, size = 0x4, offset = 0x4, fixed_abs, tag = 'smem constant byte address 0x4 - core index']
  #allocation1 [shape = 'u32[144,128]{1,0:T(1,128)}', space=vmem, size = 0x12000, scoped, tag = 'internal scratch']
  #allocation2 [shape = 'f32[64,128]{1,0:T(8,128)}', space=vmem, size = 0x8000, scoped, tag = 'scratch operand']
  #allocation3 [shape = 'f32[64,128]{1,0:T(8,128)}', space=vmem, size = 0x8000, scoped, tag = 'scratch operand']
  #allocation4 [shape = 'f32[2,32]{1,0:T(2,128)}', space=vmem, size = 0x400, scoped, tag = 'scratch operand']
  #allocation5 [shape = 'f32[2,32]{1,0:T(2,128)}', space=vmem, size = 0x400, scoped, tag = 'scratch operand']
  #allocation6 [shape = 'f32[2,32]{1,0:T(2,128)}', space=vmem, size = 0x400, scoped, tag = 'scratch operand']
  #allocation7 [shape = 'f32[2,32]{1,0:T(2,128)}', space=vmem, size = 0x400, scoped, tag = 'scratch operand']
  %s0 = inlined_call_operand.vmem [shape: bf16[1024,8], index: 0, kind: input, shape index: {}]
  %s1 = inlined_call_operand.vmem [shape: bf16[1024,8], index: 1, kind: input, shape index: {}]
  %s2 = inlined_call_operand.vmem [shape: bf16[8,128], index: 2, kind: input, shape index: {}]
  %s3 = inlined_call_operand.vmem [shape: bf16[8,128], index: 3, kind: input, shape index: {}]
  %s4 = inlined_call_operand.vmem [shape: f32[1,128], index: 4, kind: input, shape index: {}]
  %s5 = inlined_call_operand.vmem [shape: f32[1,128], index: 5, kind: input, shape index: {}]
  %s6 = inlined_call_operand.vmem [shape: bf16[32,128], index: 6, kind: input, shape index: {}]
  %s7 = inlined_call_operand.vmem [shape: bf16[32,128], index: 7, kind: input, shape index: {}]
  %s8 = inlined_call_operand.vmem [shape: bf16[1024,32], index: 8, kind: output, shape index: {0}]
  %s9 = inlined_call_operand.vmem [shape: bf16[1024,32], index: 9, kind: output, shape index: {1}]
  %10 = xla_tuple %s8, %s9
  %s11 = sld [smem:[#allocation0]]
  $region77: #{tpu_custom_call.1} parent=0
    _
  %s13 = ssub.s32 1, %s11
  %s14 = scalar_select 0, %s13, %s11
  loop: start=0, step=1, limit=18
  $region2: #{tpu_custom_call.1} parent=0 // loop_pre_header
    _
  $region3: #{tpu_custom_call.1} parent=0 // loop_header
    %s16 = sphi 0, %s20
    %p17 = scmp.ge.s32.totalorder %s16, 18
    %s26 = sphi 0, %s28
    %s29 = sphi 0, %s26
    %s30 = sphi 0, %s29
    %s46 = sphi 0, %s30
    %s54 = sphi 0, %s56
    %s57 = sphi 0, %s54
    %s58 = sphi 0, %s57
    %s74 = sphi 0, %s58
    %s78 = sphi 0, %s78
    %s80 = sphi 0, %s78
    %s81 = sphi 0, %s80
    %s95 = sphi 0, %s81
    %s99 = sphi 0, %s99
    %s101 = sphi 0, %s99
    %s102 = sphi 0, %s101
    %s116 = sphi 0, %s102
    %s120 = sphi 0, %s120
    %s122 = sphi 0, %s120
    %s123 = sphi 0, %s122
    %s137 = sphi 0, %s123
    %s141 = sphi 0, %s141
    %s143 = sphi 0, %s141
    %s144 = sphi 0, %s143
    %s158 = sphi 0, %s144
    %s162 = sphi 0, %s162
    %s164 = sphi 0, %s162
    %s165 = sphi 0, %s164
    %s179 = sphi 0, %s165
    %s183 = sphi 0, %s183
    %s185 = sphi 0, %s183
    %s186 = sphi 0, %s185
    %s200 = sphi 0, %s186
    %s206 = sphi 0, %s208
    %s209 = sphi 0, %s206
    %s210 = sphi 0, %s209
    %s226 = sphi 0, %s210
    %s234 = sphi 0, %s236
    %s237 = sphi 0, %s234
    %s238 = sphi 0, %s237
    %s254 = sphi 0, %s238
  $region4: #{tpu_custom_call.1} parent=0 // loop_header_branch
    %19 = sbr.rel (%p17) target = $region8
  $region5: #{tpu_custom_call.1} parent=0 // loop_body
    %s21 = ssub.s32 %s16, 1
    %s22 = ssub.s32 %s16, 2
    %s23 = sadd.s32 %s16, 1
    %s24 = ssub.s32 %s16, %s23
    %p25 = scmp.eq.s32.totalorder %s24, 0
    %s27 = sadd.s32 %s26, 1
    %s28 = scalar_select %p25, %s26, %s27
    %p31 = pneg %p25
    %p32 = scmp.eq.s32.totalorder %s16, 15
    %p33 = por %p31, %p32
    %p34 = scmp.ne.s32.totalorder %s26, %s29
    %p35 = scmp.eq.s32.totalorder %s16, 0
    %p36 = por %p34, %p35
    %p37 = scmp.ne.s32.totalorder %s26, %s29
    %p38 = scmp.eq.s32.totalorder %s21, 15
    %p39 = por %p37, %p38
    %p40 = scmp.ne.s32.totalorder %s29, %s30
    %p41 = scmp.eq.s32.totalorder %s21, 0
    %p42 = por %p40, %p41
    %p43 = scmp.ne.s32.totalorder %s29, %s30
    %p44 = scmp.eq.s32.totalorder %s22, 15
    %p45 = por %p43, %p44
    %p47 = scmp.ne.s32.totalorder %s30, %s46
    %p48 = scmp.eq.s32.totalorder %s22, 0
    %p49 = por %p47, %p48
    %s50 = ssub.s32 15, %s16
    %s51 = ssub.s32 15, %s23
    %s52 = ssub.s32 %s50, %s51
    %p53 = scmp.eq.s32.totalorder %s52, 0
    %s55 = sadd.s32 %s54, 1
    %s56 = scalar_select %p53, %s54, %s55
    %p59 = pneg %p53
    %p60 = scmp.eq.s32.totalorder %s16, 15
    %p61 = por %p59, %p60
    %p62 = scmp.ne.s32.totalorder %s54, %s57
    %p63 = scmp.eq.s32.totalorder %s16, 0
    %p64 = por %p62, %p63
    %p65 = scmp.ne.s32.totalorder %s54, %s57
    %p66 = scmp.eq.s32.totalorder %s21, 15
    %p67 = por %p65, %p66
    %p68 = scmp.ne.s32.totalorder %s57, %s58
    %p69 = scmp.eq.s32.totalorder %s21, 0
    %p70 = por %p68, %p69
    %p71 = scmp.ne.s32.totalorder %s57, %s58
    %p72 = scmp.eq.s32.totalorder %s22, 15
    %p73 = por %p71, %p72
    %p75 = scmp.ne.s32.totalorder %s58, %s74
    %p76 = scmp.eq.s32.totalorder %s22, 0
    %p77 = por %p75, %p76
    %s79 = sadd.s32 %s78, 1
    %p82 = scmp.eq.s32.totalorder %s16, 15
    %p83 = scmp.ne.s32.totalorder %s78, %s80
    %p84 = scmp.eq.s32.totalorder %s16, 0
    %p85 = por %p83, %p84
    %p86 = scmp.ne.s32.totalorder %s78, %s80
    %p87 = scmp.eq.s32.totalorder %s21, 15
    %p88 = por %p86, %p87
    %p89 = scmp.ne.s32.totalorder %s80, %s81
    %p90 = scmp.eq.s32.totalorder %s21, 0
    %p91 = por %p89, %p90
    %p92 = scmp.ne.s32.totalorder %s80, %s81
    %p93 = scmp.eq.s32.totalorder %s22, 15
    %p94 = por %p92, %p93
    %p96 = scmp.ne.s32.totalorder %s81, %s95
    %p97 = scmp.eq.s32.totalorder %s22, 0
    %p98 = por %p96, %p97
    %s100 = sadd.s32 %s99, 1
    %p103 = scmp.eq.s32.totalorder %s16, 15
    %p104 = scmp.ne.s32.totalorder %s99, %s101
    %p105 = scmp.eq.s32.totalorder %s16, 0
    %p106 = por %p104, %p105
    %p107 = scmp.ne.s32.totalorder %s99, %s101
    %p108 = scmp.eq.s32.totalorder %s21, 15
    %p109 = por %p107, %p108
    %p110 = scmp.ne.s32.totalorder %s101, %s102
    %p111 = scmp.eq.s32.totalorder %s21, 0
    %p112 = por %p110, %p111
    %p113 = scmp.ne.s32.totalorder %s101, %s102
    %p114 = scmp.eq.s32.totalorder %s22, 15
    %p115 = por %p113, %p114
    %p117 = scmp.ne.s32.totalorder %s102, %s116
    %p118 = scmp.eq.s32.totalorder %s22, 0
    %p119 = por %p117, %p118
    %s121 = sadd.s32 %s120, 1
    %p124 = scmp.eq.s32.totalorder %s16, 15
    %p125 = scmp.ne.s32.totalorder %s120, %s122
    %p126 = scmp.eq.s32.totalorder %s16, 0
    %p127 = por %p125, %p126
    %p128 = scmp.ne.s32.totalorder %s120, %s122
    %p129 = scmp.eq.s32.totalorder %s21, 15
    %p130 = por %p128, %p129
    %p131 = scmp.ne.s32.totalorder %s122, %s123
    %p132 = scmp.eq.s32.totalorder %s21, 0
    %p133 = por %p131, %p132
    %p134 = scmp.ne.s32.totalorder %s122, %s123
    %p135 = scmp.eq.s32.totalorder %s22, 15
    %p136 = por %p134, %p135
    %p138 = scmp.ne.s32.totalorder %s123, %s137
    %p139 = scmp.eq.s32.totalorder %s22, 0
    %p140 = por %p138, %p139
    %s142 = sadd.s32 %s141, 1
    %p145 = scmp.eq.s32.totalorder %s16, 15
    %p146 = scmp.ne.s32.totalorder %s141, %s143
    %p147 = scmp.eq.s32.totalorder %s16, 0
    %p148 = por %p146, %p147
    %p149 = scmp.ne.s32.totalorder %s141, %s143
    %p150 = scmp.eq.s32.totalorder %s21, 15
    %p151 = por %p149, %p150
    %p152 = scmp.ne.s32.totalorder %s143, %s144
    %p153 = scmp.eq.s32.totalorder %s21, 0
    %p154 = por %p152, %p153
    %p155 = scmp.ne.s32.totalorder %s143, %s144
    %p156 = scmp.eq.s32.totalorder %s22, 15
    %p157 = por %p155, %p156
    %p159 = scmp.ne.s32.totalorder %s144, %s158
    %p160 = scmp.eq.s32.totalorder %s22, 0
    %p161 = por %p159, %p160
    %s163 = sadd.s32 %s162, 1
    %p166 = scmp.eq.s32.totalorder %s16, 15
    %p167 = scmp.ne.s32.totalorder %s162, %s164
    %p168 = scmp.eq.s32.totalorder %s16, 0
    %p169 = por %p167, %p168
    %p170 = scmp.ne.s32.totalorder %s162, %s164
    %p171 = scmp.eq.s32.totalorder %s21, 15
    %p172 = por %p170, %p171
    %p173 = scmp.ne.s32.totalorder %s164, %s165
    %p174 = scmp.eq.s32.totalorder %s21, 0
    %p175 = por %p173, %p174
    %p176 = scmp.ne.s32.totalorder %s164, %s165
    %p177 = scmp.eq.s32.totalorder %s22, 15
    %p178 = por %p176, %p177
    %p180 = scmp.ne.s32.totalorder %s165, %s179
    %p181 = scmp.eq.s32.totalorder %s22, 0
    %p182 = por %p180, %p181
    %s184 = sadd.s32 %s183, 1
    %p187 = scmp.eq.s32.totalorder %s16, 15
    %p188 = scmp.ne.s32.totalorder %s183, %s185
    %p189 = scmp.eq.s32.totalorder %s16, 0
    %p190 = por %p188, %p189
    %p191 = scmp.ne.s32.totalorder %s183, %s185
    %p192 = scmp.eq.s32.totalorder %s21, 15
    %p193 = por %p191, %p192
    %p194 = scmp.ne.s32.totalorder %s185, %s186
    %p195 = scmp.eq.s32.totalorder %s21, 0
    %p196 = por %p194, %p195
    %p197 = scmp.ne.s32.totalorder %s185, %s186
    %p198 = scmp.eq.s32.totalorder %s22, 15
    %p199 = por %p197, %p198
    %p201 = scmp.ne.s32.totalorder %s186, %s200
    %p202 = scmp.eq.s32.totalorder %s22, 0
    %p203 = por %p201, %p202
    %s204 = ssub.s32 %s16, %s23
    %p205 = scmp.eq.s32.totalorder %s204, 0
    %s207 = sadd.s32 %s206, 1
    %s208 = scalar_select %p205, %s206, %s207
    %p211 = pneg %p205
    %p212 = scmp.eq.s32.totalorder %s16, 15
    %p213 = por %p211, %p212
    %p214 = scmp.ne.s32.totalorder %s206, %s209
    %p215 = scmp.eq.s32.totalorder %s16, 0
    %p216 = por %p214, %p215
    %p217 = scmp.ne.s32.totalorder %s206, %s209
    %p218 = scmp.eq.s32.totalorder %s21, 15
    %p219 = por %p217, %p218
    %p220 = scmp.ne.s32.totalorder %s209, %s210
    %p221 = scmp.eq.s32.totalorder %s21, 0
    %p222 = por %p220, %p221
    %p223 = scmp.ne.s32.totalorder %s209, %s210
    %p224 = scmp.eq.s32.totalorder %s22, 15
    %p225 = por %p223, %p224
    %p227 = scmp.ne.s32.totalorder %s210, %s226
    %p228 = scmp.eq.s32.totalorder %s22, 0
    %p229 = por %p227, %p228
    %s230 = ssub.s32 15, %s16
    %s231 = ssub.s32 15, %s23
    %s232 = ssub.s32 %s230, %s231
    %p233 = scmp.eq.s32.totalorder %s232, 0
    %s235 = sadd.s32 %s234, 1
    %s236 = scalar_select %p233, %s234, %s235
    %p239 = pneg %p233
    %p240 = scmp.eq.s32.totalorder %s16, 15
    %p241 = por %p239, %p240
    %p242 = scmp.ne.s32.totalorder %s234, %s237
    %p243 = scmp.eq.s32.totalorder %s16, 0
    %p244 = por %p242, %p243
    %p245 = scmp.ne.s32.totalorder %s234, %s237
    %p246 = scmp.eq.s32.totalorder %s21, 15
    %p247 = por %p245, %p246
    %p248 = scmp.ne.s32.totalorder %s237, %s238
    %p249 = scmp.eq.s32.totalorder %s21, 0
    %p250 = por %p248, %p249
    %p251 = scmp.ne.s32.totalorder %s237, %s238
    %p252 = scmp.eq.s32.totalorder %s22, 15
    %p253 = por %p251, %p252
    %p255 = scmp.ne.s32.totalorder %s238, %s254
    %p256 = scmp.eq.s32.totalorder %s22, 0
    %p257 = por %p255, %p256
    %p258 = scmp.le.s32.totalorder 1, %s16
    %p259 = scmp.lt.s32.totalorder %s16, 17
    %p260 = pnand %p258, %p259
    %p261 = pneg %p260
    // Predicated region
    $region9: #{tpu_custom_call.1} parent=5 // pred_check
      _
    $region10: #{tpu_custom_call.1} parent=5 // pred_check_branch
      %263 = sbr.rel (%p260) target = $region12
    $region11: #{tpu_custom_call.1} parent=5 // pred_region
      %s264 = ssub.s32 %s16, 1
      // Predicated region
      $region13: #{tpu_custom_call.1} parent=11 // pred_check
        %p265 = pneg %p91
      $region14: #{tpu_custom_call.1} parent=11 // pred_check_branch
        %267 = sbr.rel (%p265) target = $region16
      $region15: #{tpu_custom_call.1} parent=11 // pred_region
        _
      $region16: #{tpu_custom_call.1} parent=11 // pred_fallthru
        _
      // Predicated region
      $region17: #{tpu_custom_call.1} parent=11 // pred_check
        %p268 = pneg %p112
      $region18: #{tpu_custom_call.1} parent=11 // pred_check_branch
        %270 = sbr.rel (%p268) target = $region20
      $region19: #{tpu_custom_call.1} parent=11 // pred_region
        _
      $region20: #{tpu_custom_call.1} parent=11 // pred_fallthru
        _
      // Predicated region
      $region21: #{tpu_custom_call.1} parent=11 // pred_check
        %p271 = pneg %p133
      $region22: #{tpu_custom_call.1} parent=11 // pred_check_branch
        %273 = sbr.rel (%p271) target = $region24
      $region23: #{tpu_custom_call.1} parent=11 // pred_region
        _
      $region24: #{tpu_custom_call.1} parent=11 // pred_fallthru
        _
      // Predicated region
      $region25: #{tpu_custom_call.1} parent=11 // pred_check
        %p274 = pneg %p154
      $region26: #{tpu_custom_call.1} parent=11 // pred_check_branch
        %276 = sbr.rel (%p274) target = $region28
      $region27: #{tpu_custom_call.1} parent=11 // pred_region
        _
      $region28: #{tpu_custom_call.1} parent=11 // pred_fallthru
        _
      // Predicated region
      $region29: #{tpu_custom_call.1} parent=11 // pred_check
        %p277 = pneg %p175
      $region30: #{tpu_custom_call.1} parent=11 // pred_check_branch
        %279 = sbr.rel (%p277) target = $region32
      $region31: #{tpu_custom_call.1} parent=11 // pred_region
        _
      $region32: #{tpu_custom_call.1} parent=11 // pred_fallthru
        _
      // Predicated region
      $region33: #{tpu_custom_call.1} parent=11 // pred_check
        %p280 = pneg %p196
      $region34: #{tpu_custom_call.1} parent=11 // pred_check_branch
        %282 = sbr.rel (%p280) target = $region36
      $region35: #{tpu_custom_call.1} parent=11 // pred_region
        _
      $region36: #{tpu_custom_call.1} parent=11 // pred_fallthru
        _
    $region12: #{tpu_custom_call.1} parent=5 // pred_fallthru
      _
    %p283 = scmp.lt.s32.totalorder %s16, 16
    // Predicated region
    $region37: #{tpu_custom_call.1} parent=5 // pred_check
      %p284 = pneg %p283
    $region38: #{tpu_custom_call.1} parent=5 // pred_check_branch
      %286 = sbr.rel (%p284) target = $region40
    $region39: #{tpu_custom_call.1} parent=5 // pred_region
      // Predicated region
      $region41: #{tpu_custom_call.1} parent=39 // pred_check
        %p287 = pneg %p36
      $region42: #{tpu_custom_call.1} parent=39 // pred_check_branch
        %289 = sbr.rel (%p287) target = $region44
      $region43: #{tpu_custom_call.1} parent=39 // pred_region
        %s290 = smul.u32 8, %s16
        %p291 = scmp.lt.s32.totalorder %s290, 127
        %s292 = scalar_select %p291, %s290, 127
        %s293 = smul.addr %s292, 4
        %s294 = scalar_lea.vmem %s0, %s293
        %s295 = smul.u32 8, %s16
      $region44: #{tpu_custom_call.1} parent=39 // pred_fallthru
        _
      // Predicated region
      $region45: #{tpu_custom_call.1} parent=39 // pred_check
        %p296 = pneg %p64
      $region46: #{tpu_custom_call.1} parent=39 // pred_check_branch
        %298 = sbr.rel (%p296) target = $region48
      $region47: #{tpu_custom_call.1} parent=39 // pred_region
        %s299 = ssub.s32 15, %s16
        %s300 = smul.u32 8, %s299
        %p301 = scmp.lt.s32.totalorder %s300, 127
        %s302 = scalar_select %p301, %s300, 127
        %s303 = smul.addr %s302, 4
        %s304 = scalar_lea.vmem %s1, %s303
        %s305 = ssub.s32 15, %s16
        %s306 = smul.u32 8, %s305
      $region48: #{tpu_custom_call.1} parent=39 // pred_fallthru
        _
    $region40: #{tpu_custom_call.1} parent=5 // pred_fallthru
      _
    %p307 = scmp.le.s32.totalorder 1, %s16
    %p308 = scmp.lt.s32.totalorder %s16, 17
    %p309 = pnand %p307, %p308
    %p310 = pneg %p309
    // Predicated region
    $region49: #{tpu_custom_call.1} parent=5 // pred_check
      _
    $region50: #{tpu_custom_call.1} parent=5 // pred_check_branch
      %312 = sbr.rel (%p309) target = $region52
    $region51: #{tpu_custom_call.1} parent=5 // pred_region
      %s313 = ssub.s32 %s16, 1
      %s314 = smul.u32 8, %s21
      %p315 = scmp.lt.s32.totalorder %s314, 127
      %s316 = scalar_select %p315, %s314, 127
      %s317 = smul.addr %s316, 4
      %s318 = scalar_lea.vmem %s0, %s317
      %p319 = pneg %p42
      %p320 = pneg %p39
      %s321 = ssub.s32 15, %s21
      %s322 = smul.u32 8, %s321
      %p323 = scmp.lt.s32.totalorder %s322, 127
      %s324 = scalar_select %p323, %s322, 127
      %s325 = smul.addr %s324, 4
      %s326 = scalar_lea.vmem %s1, %s325
      %p327 = pneg %p70
      %p328 = pneg %p67
      %p329 = pneg %p91
      %p330 = pneg %p88
      %p331 = pneg %p112
      %p332 = pneg %p109
      %p333 = pneg %p133
      %p334 = pneg %p130
      %p335 = pneg %p154
      %p336 = pneg %p151
      %p337 = pneg %p175
      %p338 = pneg %p172
      %p339 = pneg %p196
      %p340 = pneg %p193
      %p341 = pneg %p222
      %p342 = pneg %p219
      %s343 = smul.u32 8, %s21
      %p344 = scmp.lt.s32.totalorder %s343, 127
      %s345 = scalar_select %p344, %s343, 127
      %s346 = smul.addr %s345, 4
      %s347 = scalar_lea.vmem %s8, %s346
      %p348 = pneg %p250
      %p349 = pneg %p247
      %s350 = ssub.s32 15, %s21
      %s351 = smul.u32 8, %s350
      %p352 = scmp.lt.s32.totalorder %s351, 127
      %s353 = scalar_select %p352, %s351, 127
      %s354 = smul.addr %s353, 4
      %s355 = scalar_lea.vmem %s9, %s354
      %s356 = smul.u32 8, %s21
      %p357 = scmp.lt.s32.totalorder %s356, 127
      %s358 = scalar_select %p357, %s356, 127
      %s359 = smul.addr %s358, 4
      %s360 = scalar_lea.vmem %s0, %s359
      %s361 = smul.u32 8, %s21
      %s362 = ssub.s32 15, %s21
      %s363 = smul.u32 8, %s362
      %p364 = scmp.lt.s32.totalorder %s363, 127
      %s365 = scalar_select %p364, %s363, 127
      %s366 = smul.addr %s365, 4
      %s367 = scalar_lea.vmem %s1, %s366
      %s368 = ssub.s32 15, %s21
      %s369 = smul.u32 8, %s368
      %s370 = smul.u32 8, %s21
      %p371 = scmp.lt.s32.totalorder %s370, 127
      %s372 = scalar_select %p371, %s370, 127
      %s373 = smul.addr %s372, 4
      %s374 = scalar_lea.vmem %s8, %s373
      %s375 = smul.u32 8, %s21
      %s376 = ssub.s32 15, %s21
      %s377 = smul.u32 8, %s376
      %p378 = scmp.lt.s32.totalorder %s377, 127
      %s379 = scalar_select %p378, %s377, 127
      %s380 = smul.addr %s379, 4
      %s381 = scalar_lea.vmem %s9, %s380
      %s382 = ssub.s32 15, %s21
      %s383 = smul.u32 8, %s382
      %p385 = scmp.eq.s32.totalorder %s21, 0
      // Predicated region
      $region53: #{tpu_custom_call.1} parent=51 // pred_check
        %p386 = pneg %p385
      $region54: #{tpu_custom_call.1} parent=51 // pred_check_branch
        %388 = sbr.rel (%p386) target = $region56
      $region55: #{tpu_custom_call.1} parent=51 // pred_region
        %vm389 = vcmask 254976
        %390 = vst.msk [vmem:[#allocation4] sm:$0x3] %vm389, 0.0
        %391 = vst.msk [vmem:[#allocation5] sm:$0x3] %vm389, 0.0
        %392 = vst.msk [vmem:[#allocation6] sm:$0x3] %vm389, 0.0
        %393 = vst.msk [vmem:[#allocation7] sm:$0x3] %vm389, 0.0
      $region56: #{tpu_custom_call.1} parent=51 // pred_fallthru
        _
      %v394 = vld [vmem:[%s360] sm:$0xf]
      %v395 = vld [vmem:[%s360 + $0x4] sm:$0xf]
      %v396 = vld [vmem:[%s360 + $0x8] sm:$0xf]
      %v397 = vld [vmem:[%s360 + $0xc] sm:$0xf]
      %v398 = vld [vmem:[%s360 + $0x10] sm:$0xf]
      %v399 = vld [vmem:[%s360 + $0x14] sm:$0xf]
      %v400 = vld [vmem:[%s360 + $0x18] sm:$0xf]
      %v401 = vld [vmem:[%s360 + $0x1c] sm:$0xf]
      %v402 = vld [vmem:[%s2] sm:$0xf]
      %v403 = vld [vmem:[%s4] sm:$0x1]
      %v405 = vlaneseq
      %v406 = vshrl.u32 %v405, 7
      %v407 = vsub.s32 0, %v406
      %v408 = vrot.slane %v403, %v407
      %v418 = vunpack.c.l.b16 %v394
      %v419 = vunpack.c.l.b16 %v395
      %v420 = vunpack.c.l.b16 %v396
      %v421 = vunpack.c.l.b16 %v397
      %v422 = vunpack.c.l.b16 %v398
      %v423 = vunpack.c.l.b16 %v399
      %v424 = vunpack.c.l.b16 %v400
      %v425 = vunpack.c.l.b16 %v401
      %v426 = vpack.c.b16 %v419, %v418
      %v427 = vpack.c.b16 %v421, %v420
      %v428 = vpack.c.b16 %v423, %v422
      %v429 = vpack.c.b16 %v425, %v424
      %vm430 = vcmask 64512
      %v432 = vsel %vm430, %v426, 0
      %v435 = vsel %vm430, %v427, 0
      %v438 = vsel %vm430, %v428, 0
      %v441 = vsel %vm430, %v429, 0
      %vm443 = vcmask 1043456
      %v445 = vsel %vm443, %v402, 0
      %447 = vmatprep.subr.bf16.mxu0 0
      %448 = vmatpush1.bf16.msra.mxu0 %v445
      %449 = vmatprep.subr.bf16.mxu0 0
      %450 = vmatpush1.bf16.msra.mxu0 0
      %451 = vmatprep.subr.bf16.mxu0 0
      %452 = vmatpush1.bf16.msra.mxu0 0
      %453 = vmatprep.subr.bf16.mxu0 0
      %454 = vmatpush1.bf16.msra.mxu0 0
      %455 = vmatprep.subr.bf16.mxu0 0
      %456 = vmatpush1.bf16.msra.mxu0 0
      %457 = vmatprep.subr.bf16.mxu0 0
      %458 = vmatpush1.bf16.msra.mxu0 0
      %459 = vmatprep.subr.bf16.mxu0 0
      %460 = vmatpush1.bf16.msra.mxu0 0
      %461 = vmatprep.subr.bf16.mxu0 0
      %462 = vmatpush1.bf16.msra.mxu0 0
      %463 = vmatprep.subr.bf16.mxu0 0
      %464 = vmatpush1.bf16.msra.mxu0 0
      %465 = vmatprep.subr.bf16.mxu0 0
      %466 = vmatpush1.bf16.msra.mxu0 0
      %467 = vmatprep.subr.bf16.mxu0 0
      %468 = vmatpush1.bf16.msra.mxu0 0
      %469 = vmatprep.subr.bf16.mxu0 0
      %470 = vmatpush1.bf16.msra.mxu0 0
      %471 = vmatprep.subr.bf16.mxu0 0
      %472 = vmatpush1.bf16.msra.mxu0 0
      %473 = vmatprep.subr.bf16.mxu0 0
      %474 = vmatpush1.bf16.msra.mxu0 0
      %475 = vmatprep.subr.bf16.mxu0 0
      %476 = vmatpush1.bf16.msra.mxu0 0
      %477 = vmatprep.subr.bf16.mxu0 0
      %478 = vmatpush1.bf16.msra.mxu0 0
      %479 = vmatprep.mubr.bf16.mxu0 0
      %480 = vmatmul.mubr.bf16.gmra.mrb[0].mxu0 %v432
      %v481 = vpop.f32.mrb[0].mxu0
      %v482 = vadd.f32 %v408, %v481
      %v483 = vpop.f32.mrb[0].mxu0
      %v484 = vpop.f32.mrb[0].mxu0
      %v485 = vadd.f32 %v408, %v484
      %v486 = vpop.f32.mrb[0].mxu0
      %487 = vmatprep.mubr.bf16.mxu0 0
      %488 = vmatmul.mubr.bf16.gmra.mrb[0].mxu0 %v435
      %v489 = vpop.f32.mrb[0].mxu0
      %v490 = vadd.f32 %v408, %v489
      %v491 = vpop.f32.mrb[0].mxu0
      %v492 = vpop.f32.mrb[0].mxu0
      %v493 = vadd.f32 %v408, %v492
      %v494 = vpop.f32.mrb[0].mxu0
      %495 = vmatprep.mubr.bf16.mxu0 0
      %496 = vmatmul.mubr.bf16.gmra.mrb[0].mxu0 %v438
      %v497 = vpop.f32.mrb[0].mxu0
      %v498 = vadd.f32 %v408, %v497
      %v499 = vpop.f32.mrb[0].mxu0
      %v500 = vpop.f32.mrb[0].mxu0
      %v501 = vadd.f32 %v408, %v500
      %v502 = vpop.f32.mrb[0].mxu0
      %503 = vmatprep.mubr.bf16.mxu0 0
      %504 = vmatmul.mubr.bf16.gmra.mrb[0].mxu0 %v441
      %v505 = vpop.f32.mrb[0].mxu0
      %v506 = vadd.f32 %v408, %v505
      %v507 = vpop.f32.mrb[0].mxu0
      %v508 = vpop.f32.mrb[0].mxu0
      %v509 = vadd.f32 %v408, %v508
      %v510 = vpop.f32.mrb[0].mxu0
      %511 = vdwg.mxu0
      %512 = vst [vmem:[#allocation2] sm:$0xff] %v482
      %513 = vst [vmem:[#allocation2 + $0x8] sm:$0xff] %v485
      %514 = vst [vmem:[#allocation2 + $0x10] sm:$0xff] %v490
      %515 = vst [vmem:[#allocation2 + $0x18] sm:$0xff] %v493
      %516 = vst [vmem:[#allocation2 + $0x20] sm:$0xff] %v498
      %517 = vst [vmem:[#allocation2 + $0x28] sm:$0xff] %v501
      %518 = vst [vmem:[#allocation2 + $0x30] sm:$0xff] %v506
      %519 = vst [vmem:[#allocation2 + $0x38] sm:$0xff] %v509
      %v520 = vld [vmem:[%s367] sm:$0xf]
      %v521 = vld [vmem:[%s367 + $0x4] sm:$0xf]
      %v522 = vld [vmem:[%s367 + $0x8] sm:$0xf]
      %v523 = vld [vmem:[%s367 + $0xc] sm:$0xf]
      %v524 = vld [vmem:[%s367 + $0x10] sm:$0xf]
      %v525 = vld [vmem:[%s367 + $0x14] sm:$0xf]
      %v526 = vld [vmem:[%s367 + $0x18] sm:$0xf]
      %v527 = vld [vmem:[%s367 + $0x1c] sm:$0xf]
      %v528 = vld [vmem:[%s3] sm:$0xf]
      %v529 = vld [vmem:[%s5] sm:$0x1]
      %v531 = vlaneseq
      %v532 = vshrl.u32 %v531, 7
      %v533 = vsub.s32 0, %v532
      %v534 = vrot.slane %v529, %v533
      %v544 = vunpack.c.l.b16 %v520
      %v545 = vunpack.c.l.b16 %v521
      %v546 = vunpack.c.l.b16 %v522
      %v547 = vunpack.c.l.b16 %v523
      %v548 = vunpack.c.l.b16 %v524
      %v549 = vunpack.c.l.b16 %v525
      %v550 = vunpack.c.l.b16 %v526
      %v551 = vunpack.c.l.b16 %v527
      %v552 = vpack.c.b16 %v545, %v544
      %v553 = vpack.c.b16 %v547, %v546
      %v554 = vpack.c.b16 %v549, %v548
      %v555 = vpack.c.b16 %v551, %v550
      %v557 = vsel %vm430, %v552, 0
      %v560 = vsel %vm430, %v553, 0
      %v563 = vsel %vm430, %v554, 0
      %v566 = vsel %vm430, %v555, 0
      %v569 = vsel %vm443, %v528, 0
      %571 = vmatprep.subr.bf16.mxu0 0
      %572 = vmatpush1.bf16.msra.mxu0 %v569
      %573 = vmatprep.subr.bf16.mxu0 0
      %574 = vmatpush1.bf16.msra.mxu0 0
      %575 = vmatprep.subr.bf16.mxu0 0
      %576 = vmatpush1.bf16.msra.mxu0 0
      %577 = vmatprep.subr.bf16.mxu0 0
      %578 = vmatpush1.bf16.msra.mxu0 0
      %579 = vmatprep.subr.bf16.mxu0 0
      %580 = vmatpush1.bf16.msra.mxu0 0
      %581 = vmatprep.subr.bf16.mxu0 0
      %582 = vmatpush1.bf16.msra.mxu0 0
      %583 = vmatprep.subr.bf16.mxu0 0
      %584 = vmatpush1.bf16.msra.mxu0 0
      %585 = vmatprep.subr.bf16.mxu0 0
      %586 = vmatpush1.bf16.msra.mxu0 0
      %587 = vmatprep.subr.bf16.mxu0 0
      %588 = vmatpush1.bf16.msra.mxu0 0
      %589 = vmatprep.subr.bf16.mxu0 0
      %590 = vmatpush1.bf16.msra.mxu0 0
      %591 = vmatprep.subr.bf16.mxu0 0
      %592 = vmatpush1.bf16.msra.mxu0 0
      %593 = vmatprep.subr.bf16.mxu0 0
      %594 = vmatpush1.bf16.msra.mxu0 0
      %595 = vmatprep.subr.bf16.mxu0 0
      %596 = vmatpush1.bf16.msra.mxu0 0
      %597 = vmatprep.subr.bf16.mxu0 0
      %598 = vmatpush1.bf16.msra.mxu0 0
      %599 = vmatprep.subr.bf16.mxu0 0
      %600 = vmatpush1.bf16.msra.mxu0 0
      %601 = vmatprep.subr.bf16.mxu0 0
      %602 = vmatpush1.bf16.msra.mxu0 0
      %603 = vmatprep.mubr.bf16.mxu0 0
      %604 = vmatmul.mubr.bf16.gmra.mrb[0].mxu0 %v557
      %v605 = vpop.f32.mrb[0].mxu0
      %v606 = vadd.f32 %v534, %v605
      %v607 = vpop.f32.mrb[0].mxu0
      %v608 = vpop.f32.mrb[0].mxu0
      %v609 = vadd.f32 %v534, %v608
      %v610 = vpop.f32.mrb[0].mxu0
      %611 = vmatprep.mubr.bf16.mxu0 0
      %612 = vmatmul.mubr.bf16.gmra.mrb[0].mxu0 %v560
      %v613 = vpop.f32.mrb[0].mxu0
      %v614 = vadd.f32 %v534, %v613
      %v615 = vpop.f32.mrb[0].mxu0
      %v616 = vpop.f32.mrb[0].mxu0
      %v617 = vadd.f32 %v534, %v616
      %v618 = vpop.f32.mrb[0].mxu0
      %619 = vmatprep.mubr.bf16.mxu0 0
      %620 = vmatmul.mubr.bf16.gmra.mrb[0].mxu0 %v563
      %v621 = vpop.f32.mrb[0].mxu0
      %v622 = vadd.f32 %v534, %v621
      %v623 = vpop.f32.mrb[0].mxu0
      %v624 = vpop.f32.mrb[0].mxu0
      %v625 = vadd.f32 %v534, %v624
      %v626 = vpop.f32.mrb[0].mxu0
      %627 = vmatprep.mubr.bf16.mxu0 0
      %628 = vmatmul.mubr.bf16.gmra.mrb[0].mxu0 %v566
      %v629 = vpop.f32.mrb[0].mxu0
      %v630 = vadd.f32 %v534, %v629
      %v631 = vpop.f32.mrb[0].mxu0
      %v632 = vpop.f32.mrb[0].mxu0
      %v633 = vadd.f32 %v534, %v632
      %v634 = vpop.f32.mrb[0].mxu0
      %635 = vdwg.mxu0
      %636 = vst [vmem:[#allocation3] sm:$0xff] %v606
      %637 = vst [vmem:[#allocation3 + $0x8] sm:$0xff] %v609
      %638 = vst [vmem:[#allocation3 + $0x10] sm:$0xff] %v614
      %639 = vst [vmem:[#allocation3 + $0x18] sm:$0xff] %v617
      %640 = vst [vmem:[#allocation3 + $0x20] sm:$0xff] %v622
      %641 = vst [vmem:[#allocation3 + $0x28] sm:$0xff] %v625
      %642 = vst [vmem:[#allocation3 + $0x30] sm:$0xff] %v630
      %643 = vst [vmem:[#allocation3 + $0x38] sm:$0xff] %v633
      %v644 = vld [vmem:[%s6] sm:$0xf]
      %v645 = vld [vmem:[%s6 + $0x4] sm:$0xf]
      %v646 = vld [vmem:[%s6 + $0x8] sm:$0xf]
      %v647 = vld [vmem:[%s6 + $0xc] sm:$0xf]
      %v648 = vld [vmem:[%s7] sm:$0xf]
      %v649 = vld [vmem:[%s7 + $0x4] sm:$0xf]
      %v650 = vld [vmem:[%s7 + $0x8] sm:$0xf]
      %v651 = vld [vmem:[%s7 + $0xc] sm:$0xf]
      %v652 = vld [vmem:[#allocation4] sm:$0x3]
      %v653 = vld [vmem:[#allocation5] sm:$0x3]
      %v654 = vld [vmem:[#allocation6] sm:$0x3]
      %v655 = vld [vmem:[#allocation7] sm:$0x3]
      %v656 = vld [vmem:[#allocation2] sm:$0x3]
      %v657 = vpack.c.bf16 %v652, %v652
      %v662 = vunpack.c.l.b16 %v644
      %v663 = vunpack.c.l.b16 %v645
      %v664 = vunpack.c.l.b16 %v646
      %v665 = vunpack.c.l.b16 %v647
      %v666 = vpack.c.b16 %v663, %v662
      %v667 = vpack.c.b16 %v665, %v664
      %vm670 = vcmask 261120
      %v672 = vsel %vm670, %v657, 0
      %674 = vmatprep.subr.bf16.mxu0 0
      %675 = vmatpush1.bf16.msra.mxu0 %v666
      %676 = vmatprep.subr.bf16.mxu0 0
      %677 = vmatpush1.bf16.msra.mxu0 %v667
      %678 = vmatprep.subr.bf16.mxu0 0
      %679 = vmatpush1.bf16.msra.mxu0 0
      %680 = vmatprep.subr.bf16.mxu0 0
      %681 = vmatpush1.bf16.msra.mxu0 0
      %682 = vmatprep.subr.bf16.mxu0 0
      %683 = vmatpush1.bf16.msra.mxu0 0
      %684 = vmatprep.subr.bf16.mxu0 0
      %685 = vmatpush1.bf16.msra.mxu0 0
      %686 = vmatprep.subr.bf16.mxu0 0
      %687 = vmatpush1.bf16.msra.mxu0 0
      %688 = vmatprep.subr.bf16.mxu0 0
      %689 = vmatpush1.bf16.msra.mxu0 0
      %690 = vmatprep.subr.bf16.mxu0 0
      %691 = vmatpush1.bf16.msra.mxu0 0
      %692 = vmatprep.subr.bf16.mxu0 0
      %693 = vmatpush1.bf16.msra.mxu0 0
      %694 = vmatprep.subr.bf16.mxu0 0
      %695 = vmatpush1.bf16.msra.mxu0 0
      %696 = vmatprep.subr.bf16.mxu0 0
      %697 = vmatpush1.bf16.msra.mxu0 0
      %698 = vmatprep.subr.bf16.mxu0 0
      %699 = vmatpush1.bf16.msra.mxu0 0
      %700 = vmatprep.subr.bf16.mxu0 0
      %701 = vmatpush1.bf16.msra.mxu0 0
      %702 = vmatprep.subr.bf16.mxu0 0
      %703 = vmatpush1.bf16.msra.mxu0 0
      %704 = vmatprep.subr.bf16.mxu0 0
      %705 = vmatpush1.bf16.msra.mxu0 0
      %706 = vmatprep.mubr.bf16.mxu0 0
      %707 = vmatmul.mubr.bf16.gmra.mrb[0].mxu0 %v672
      %v708 = vpop.f32.mrb[0].mxu0
      %v709 = vadd.f32 0.0, %v708
      %v710 = vpop.f32.mrb[0].mxu0
      %v711 = vpop.f32.mrb[0].mxu0
      %v712 = vpop.f32.mrb[0].mxu0
      %713 = vdwg.mxu0
      %v714 = vadd.f32 %v656, %v709
      %v715 = vld [vmem:[#allocation3 + $0x3e] sm:$0x3]
      %v716 = vpack.c.bf16 %v654, %v654
      %v721 = vunpack.c.l.b16 %v648
      %v722 = vunpack.c.l.b16 %v649
      %v723 = vunpack.c.l.b16 %v650
      %v724 = vunpack.c.l.b16 %v651
      %v725 = vpack.c.b16 %v722, %v721
      %v726 = vpack.c.b16 %v724, %v723
      %v730 = vsel %vm670, %v716, 0
      %732 = vmatprep.subr.bf16.mxu0 0
      %733 = vmatpush1.bf16.msra.mxu0 %v725
      %734 = vmatprep.subr.bf16.mxu0 0
      %735 = vmatpush1.bf16.msra.mxu0 %v726
      %736 = vmatprep.subr.bf16.mxu0 0
      %737 = vmatpush1.bf16.msra.mxu0 0
      %738 = vmatprep.subr.bf16.mxu0 0
      %739 = vmatpush1.bf16.msra.mxu0 0
      %740 = vmatprep.subr.bf16.mxu0 0
      %741 = vmatpush1.bf16.msra.mxu0 0
      %742 = vmatprep.subr.bf16.mxu0 0
      %743 = vmatpush1.bf16.msra.mxu0 0
      %744 = vmatprep.subr.bf16.mxu0 0
      %745 = vmatpush1.bf16.msra.mxu0 0
      %746 = vmatprep.subr.bf16.mxu0 0
      %747 = vmatpush1.bf16.msra.mxu0 0
      %748 = vmatprep.subr.bf16.mxu0 0
      %749 = vmatpush1.bf16.msra.mxu0 0
      %750 = vmatprep.subr.bf16.mxu0 0
      %751 = vmatpush1.bf16.msra.mxu0 0
      %752 = vmatprep.subr.bf16.mxu0 0
      %753 = vmatpush1.bf16.msra.mxu0 0
      %754 = vmatprep.subr.bf16.mxu0 0
      %755 = vmatpush1.bf16.msra.mxu0 0
      %756 = vmatprep.subr.bf16.mxu0 0
      %757 = vmatpush1.bf16.msra.mxu0 0
      %758 = vmatprep.subr.bf16.mxu0 0
      %759 = vmatpush1.bf16.msra.mxu0 0
      %760 = vmatprep.subr.bf16.mxu0 0
      %761 = vmatpush1.bf16.msra.mxu0 0
      %762 = vmatprep.subr.bf16.mxu0 0
      %763 = vmatpush1.bf16.msra.mxu0 0
      %764 = vmatprep.mubr.bf16.mxu0 0
      %765 = vmatmul.mubr.bf16.gmra.mrb[0].mxu0 %v730
      %v766 = vpop.f32.mrb[0].mxu0
      %v767 = vadd.f32 0.0, %v766
      %v768 = vpop.f32.mrb[0].mxu0
      %v769 = vpop.f32.mrb[0].mxu0
      %v770 = vpop.f32.mrb[0].mxu0
      %771 = vdwg.mxu0
      %v772 = vadd.f32 %v715, %v767
      %v773 = vxor.u32 %v714, 2147483648
      %v774 = vmul.f32 %v773, 1.442695
      %v775 = vpow.pop %v774
      %v776 = vadd.f32 %v775, 1.0
      %v777 = vrcp.pop %v776
      %v778 = vmul.f32 1.0, %v777
      %v779 = vtanh.pop %v714
      %781 = vrot.lane.b32.xlu0 %v653, 32
      %v782 = vpop.permute.xlu0 %781
      %v784 = vmul.f32 %v778, %v782
      %786 = vrot.lane.b32.xlu0 %v779, 64
      %v787 = vpop.permute.xlu0 %786
      %v789 = vmul.f32 %v778, %v787
      %791 = vrot.lane.b32.xlu0 %v789, 32
      %v792 = vpop.permute.xlu0 %791
      %v794 = vadd.f32 %v784, %v792
      %v795 = vtanh.pop %v794
      %797 = vrot.lane.b32.xlu0 %v795, 64
      %v798 = vpop.permute.xlu0 %797
      %v800 = vmul.f32 %v778, %v798
      %v801 = vxor.u32 %v772, 2147483648
      %v802 = vmul.f32 %v801, 1.442695
      %v803 = vpow.pop %v802
      %v804 = vadd.f32 %v803, 1.0
      %v805 = vrcp.pop %v804
      %v806 = vmul.f32 1.0, %v805
      %v807 = vtanh.pop %v772
      %809 = vrot.lane.b32.xlu0 %v655, 32
      %v810 = vpop.permute.xlu0 %809
      %v812 = vmul.f32 %v806, %v810
      %814 = vrot.lane.b32.xlu0 %v807, 64
      %v815 = vpop.permute.xlu0 %814
      %v817 = vmul.f32 %v806, %v815
      %819 = vrot.lane.b32.xlu0 %v817, 32
      %v820 = vpop.permute.xlu0 %819
      %v822 = vadd.f32 %v812, %v820
      %v823 = vtanh.pop %v822
      %825 = vrot.lane.b32.xlu0 %v823, 64
      %v826 = vpop.permute.xlu0 %825
      %v828 = vmul.f32 %v806, %v826
      %v829 = vpack.c.bf16 %v800, %v800
      %v831 = vunpack.c.l.b16 %v829
      %v832 = vpack.c.b16 %v831, %v831
      %833 = vrot.lane.b32.xlu0 %v832, 32
      %v834 = vpop.permute.xlu0 %833
      %vm836 = vcmask 253952
      %837 = vst.msk [vmem:[%s374] sm:$0x1] %vm836, %v834
      %v838 = vpack.c.bf16 %v828, %v828
      %v840 = vunpack.c.l.b16 %v838
      %v841 = vpack.c.b16 %v840, %v840
      %v842 = vrot.slane %v841, 5
      %843 = vrot.lane.b32.xlu0 %v842, 32
      %v844 = vpop.permute.xlu0 %843
      %vm846 = vcmask 257027
      %847 = vst.msk [vmem:[%s381 + $0x1c] sm:$0x8] %vm846, %v844
      %v848 = vld [vmem:[#allocation2 + $0x2] sm:$0x3]
      %849 = vrot.lane.b32.xlu0 %v829, 32
      %v850 = vpop.permute.xlu0 %849
      %v852 = vsel %vm670, %v850, 0
      %854 = vmatprep.subr.bf16.mxu0 0
      %855 = vmatpush1.bf16.msra.mxu0 %v666
      %856 = vmatprep.subr.bf16.mxu0 0
      %857 = vmatpush1.bf16.msra.mxu0 %v667
      %858 = vmatprep.subr.bf16.mxu0 0
      %859 = vmatpush1.bf16.msra.mxu0 0
      %860 = vmatprep.subr.bf16.mxu0 0
      %861 = vmatpush1.bf16.msra.mxu0 0
      %862 = vmatprep.subr.bf16.mxu0 0
      %863 = vmatpush1.bf16.msra.mxu0 0
      %864 = vmatprep.subr.bf16.mxu0 0
      %865 = vmatpush1.bf16.msra.mxu0 0
      %866 = vmatprep.subr.bf16.mxu0 0
      %867 = vmatpush1.bf16.msra.mxu0 0
      %868 = vmatprep.subr.bf16.mxu0 0
      %869 = vmatpush1.bf16.msra.mxu0 0
      %870 = vmatprep.subr.bf16.mxu0 0
      %871 = vmatpush1.bf16.msra.mxu0 0
      %872 = vmatprep.subr.bf16.mxu0 0
      %873 = vmatpush1.bf16.msra.mxu0 0
      %874 = vmatprep.subr.bf16.mxu0 0
      %875 = vmatpush1.bf16.msra.mxu0 0
      %876 = vmatprep.subr.bf16.mxu0 0
      %877 = vmatpush1.bf16.msra.mxu0 0
      %878 = vmatprep.subr.bf16.mxu0 0
      %879 = vmatpush1.bf16.msra.mxu0 0
      %880 = vmatprep.subr.bf16.mxu0 0
      %881 = vmatpush1.bf16.msra.mxu0 0
      %882 = vmatprep.subr.bf16.mxu0 0
      %883 = vmatpush1.bf16.msra.mxu0 0
      %884 = vmatprep.subr.bf16.mxu0 0
      %885 = vmatpush1.bf16.msra.mxu0 0
      %886 = vmatprep.mubr.bf16.mxu0 0
      %887 = vmatmul.mubr.bf16.gmra.mrb[0].mxu0 %v852
      %v888 = vpop.f32.mrb[0].mxu0
      %v889 = vadd.f32 0.0, %v888
      %v890 = vpop.f32.mrb[0].mxu0
      %v891 = vpop.f32.mrb[0].mxu0
      %v892 = vpop.f32.mrb[0].mxu0
      %893 = vdwg.mxu0
      %v894 = vadd.f32 %v848, %v889
      %v895 = vld [vmem:[#allocation3 + $0x3c] sm:$0x3]
      %896 = vrot.lane.b32.xlu0 %v838, 32
      %v897 = vpop.permute.xlu0 %896
      %v899 = vsel %vm670, %v897, 0
      %901 = vmatprep.subr.bf16.mxu0 0
      %902 = vmatpush1.bf16.msra.mxu0 %v725
      %903 = vmatprep.subr.bf16.mxu0 0
      %904 = vmatpush1.bf16.msra.mxu0 %v726
      %905 = vmatprep.subr.bf16.mxu0 0
      %906 = vmatpush1.bf16.msra.mxu0 0
      %907 = vmatprep.subr.bf16.mxu0 0
      %908 = vmatpush1.bf16.msra.mxu0 0
      %909 = vmatprep.subr.bf16.mxu0 0
      %910 = vmatpush1.bf16.msra.mxu0 0
      %911 = vmatprep.subr.bf16.mxu0 0
      %912 = vmatpush1.bf16.msra.mxu0 0
      %913 = vmatprep.subr.bf16.mxu0 0
      %914 = vmatpush1.bf16.msra.mxu0 0
      %915 = vmatprep.subr.bf16.mxu0 0
      %916 = vmatpush1.bf16.msra.mxu0 0
      %917 = vmatprep.subr.bf16.mxu0 0
      %918 = vmatpush1.bf16.msra.mxu0 0
      %919 = vmatprep.subr.bf16.mxu0 0
      %920 = vmatpush1.bf16.msra.mxu0 0
      %921 = vmatprep.subr.bf16.mxu0 0
      %922 = vmatpush1.bf16.msra.mxu0 0
      %923 = vmatprep.subr.bf16.mxu0 0
      %924 = vmatpush1.bf16.msra.mxu0 0
      %925 = vmatprep.subr.bf16.mxu0 0
      %926 = vmatpush1.bf16.msra.mxu0 0
      %927 = vmatprep.subr.bf16.mxu0 0
      %928 = vmatpush1.bf16.msra.mxu0 0
      %929 = vmatprep.subr.bf16.mxu0 0
      %930 = vmatpush1.bf16.msra.mxu0 0
      %931 = vmatprep.subr.bf16.mxu0 0
      %932 = vmatpush1.bf16.msra.mxu0 0
      %933 = vmatprep.mubr.bf16.mxu0 0
      %934 = vmatmul.mubr.bf16.gmra.mrb[0].mxu0 %v899
      %v935 = vpop.f32.mrb[0].mxu0
      %v936 = vadd.f32 0.0, %v935
      %v937 = vpop.f32.mrb[0].mxu0
      %v938 = vpop.f32.mrb[0].mxu0
      %v939 = vpop.f32.mrb[0].mxu0
      %940 = vdwg.mxu0
      %v941 = vadd.f32 %v895, %v936
      %v942 = vxor.u32 %v894, 2147483648
      %v943 = vmul.f32 %v942, 1.442695
      %v944 = vpow.pop %v943
      %v945 = vadd.f32 %v944, 1.0
      %v946 = vrcp.pop %v945
      %v947 = vmul.f32 1.0, %v946
      %v948 = vtanh.pop %v894
      %v949 = vmul.f32 %v947, %v794
      %951 = vrot.lane.b32.xlu0 %v948, 64
      %v952 = vpop.permute.xlu0 %951
      %v954 = vmul.f32 %v947, %v952
      %956 = vrot.lane.b32.xlu0 %v954, 32
      %v957 = vpop.permute.xlu0 %956
      %v959 = vadd.f32 %v949, %v957
      %v960 = vtanh.pop %v959
      %962 = vrot.lane.b32.xlu0 %v960, 64
      %v963 = vpop.permute.xlu0 %962
      %v965 = vmul.f32 %v947, %v963
      %v966 = vxor.u32 %v941, 2147483648
      %v967 = vmul.f32 %v966, 1.442695
      %v968 = vpow.pop %v967
      %v969 = vadd.f32 %v968, 1.0
      %v970 = vrcp.pop %v969
      %v971 = vmul.f32 1.0, %v970
      %v972 = vtanh.pop %v941
      %v973 = vmul.f32 %v971, %v822
      %975 = vrot.lane.b32.xlu0 %v972, 64
      %v976 = vpop.permute.xlu0 %975
      %v978 = vmul.f32 %v971, %v976
      %980 = vrot.lane.b32.xlu0 %v978, 32
      %v981 = vpop.permute.xlu0 %980
      %v983 = vadd.f32 %v973, %v981
      %v984 = vtanh.pop %v983
      %986 = vrot.lane.b32.xlu0 %v984, 64
      %v987 = vpop.permute.xlu0 %986
      %v989 = vmul.f32 %v971, %v987
      %v990 = vpack.c.bf16 %v965, %v965
      %v992 = vunpack.c.l.b16 %v990
      %v993 = vpack.c.b16 %v992, %v992
      %v994 = vrot.slane %v993, 7
      %995 = vrot.lane.b32.xlu0 %v994, 32
      %v996 = vpop.permute.xlu0 %995
      %vm998 = vcmask 254977
      %999 = vst.msk [vmem:[%s374] sm:$0x2] %vm998, %v996
      %v1000 = vpack.c.bf16 %v989, %v989
      %v1002 = vunpack.c.l.b16 %v1000
      %v1003 = vpack.c.b16 %v1002, %v1002
      %v1004 = vrot.slane %v1003, 6
      %1005 = vrot.lane.b32.xlu0 %v1004, 32
      %v1006 = vpop.permute.xlu0 %1005
      %vm1008 = vcmask 256002
      %1009 = vst.msk [vmem:[%s381 + $0x1c] sm:$0x4] %vm1008, %v1006
      %v1010 = vld [vmem:[#allocation2 + $0x4] sm:$0x3]
      %1011 = vrot.lane.b32.xlu0 %v990, 32
      %v1012 = vpop.permute.xlu0 %1011
      %v1014 = vsel %vm670, %v1012, 0
      %1016 = vmatprep.subr.bf16.mxu0 0
      %1017 = vmatpush1.bf16.msra.mxu0 %v666
      %1018 = vmatprep.subr.bf16.mxu0 0
      %1019 = vmatpush1.bf16.msra.mxu0 %v667
      %1020 = vmatprep.subr.bf16.mxu0 0
      %1021 = vmatpush1.bf16.msra.mxu0 0
      %1022 = vmatprep.subr.bf16.mxu0 0
      %1023 = vmatpush1.bf16.msra.mxu0 0
      %1024 = vmatprep.subr.bf16.mxu0 0
      %1025 = vmatpush1.bf16.msra.mxu0 0
      %1026 = vmatprep.subr.bf16.mxu0 0
      %1027 = vmatpush1.bf16.msra.mxu0 0
      %1028 = vmatprep.subr.bf16.mxu0 0
      %1029 = vmatpush1.bf16.msra.mxu0 0
      %1030 = vmatprep.subr.bf16.mxu0 0
      %1031 = vmatpush1.bf16.msra.mxu0 0
      %1032 = vmatprep.subr.bf16.mxu0 0
      %1033 = vmatpush1.bf16.msra.mxu0 0
      %1034 = vmatprep.subr.bf16.mxu0 0
      %1035 = vmatpush1.bf16.msra.mxu0 0
      %1036 = vmatprep.subr.bf16.mxu0 0
      %1037 = vmatpush1.bf16.msra.mxu0 0
      %1038 = vmatprep.subr.bf16.mxu0 0
      %1039 = vmatpush1.bf16.msra.mxu0 0
      %1040 = vmatprep.subr.bf16.mxu0 0
      %1041 = vmatpush1.bf16.msra.mxu0 0
      %1042 = vmatprep.subr.bf16.mxu0 0
      %1043 = vmatpush1.bf16.msra.mxu0 0
      %1044 = vmatprep.subr.bf16.mxu0 0
      %1045 = vmatpush1.bf16.msra.mxu0 0
      %1046 = vmatprep.subr.bf16.mxu0 0
      %1047 = vmatpush1.bf16.msra.mxu0 0
      %1048 = vmatprep.mubr.bf16.mxu0 0
      %1049 = vmatmul.mubr.bf16.gmra.mrb[0].mxu0 %v1014
      %v1050 = vpop.f32.mrb[0].mxu0
      %v1051 = vadd.f32 0.0, %v1050
      %v1052 = vpop.f32.mrb[0].mxu0
      %v1053 = vpop.f32.mrb[0].mxu0
      %v1054 = vpop.f32.mrb[0].mxu0
      %1055 = vdwg.mxu0
      %v1056 = vadd.f32 %v1010, %v1051
      %v1057 = vld [vmem:[#allocation3 + $0x3a] sm:$0x3]
      %1058 = vrot.lane.b32.xlu0 %v1000, 32
      %v1059 = vpop.permute.xlu0 %1058
      %v1061 = vsel %vm670, %v1059, 0
      %1063 = vmatprep.subr.bf16.mxu0 0
      %1064 = vmatpush1.bf16.msra.mxu0 %v725
      %1065 = vmatprep.subr.bf16.mxu0 0
      %1066 = vmatpush1.bf16.msra.mxu0 %v726
      %1067 = vmatprep.subr.bf16.mxu0 0
      %1068 = vmatpush1.bf16.msra.mxu0 0
      %1069 = vmatprep.subr.bf16.mxu0 0
      %1070 = vmatpush1.bf16.msra.mxu0 0
      %1071 = vmatprep.subr.bf16.mxu0 0
      %1072 = vmatpush1.bf16.msra.mxu0 0
      %1073 = vmatprep.subr.bf16.mxu0 0
      %1074 = vmatpush1.bf16.msra.mxu0 0
      %1075 = vmatprep.subr.bf16.mxu0 0
      %1076 = vmatpush1.bf16.msra.mxu0 0
      %1077 = vmatprep.subr.bf16.mxu0 0
      %1078 = vmatpush1.bf16.msra.mxu0 0
      %1079 = vmatprep.subr.bf16.mxu0 0
      %1080 = vmatpush1.bf16.msra.mxu0 0
      %1081 = vmatprep.subr.bf16.mxu0 0
      %1082 = vmatpush1.bf16.msra.mxu0 0
      %1083 = vmatprep.subr.bf16.mxu0 0
      %1084 = vmatpush1.bf16.msra.mxu0 0
      %1085 = vmatprep.subr.bf16.mxu0 0
      %1086 = vmatpush1.bf16.msra.mxu0 0
      %1087 = vmatprep.subr.bf16.mxu0 0
      %1088 = vmatpush1.bf16.msra.mxu0 0
      %1089 = vmatprep.subr.bf16.mxu0 0
      %1090 = vmatpush1.bf16.msra.mxu0 0
      %1091 = vmatprep.subr.bf16.mxu0 0
      %1092 = vmatpush1.bf16.msra.mxu0 0
      %1093 = vmatprep.subr.bf16.mxu0 0
      %1094 = vmatpush1.bf16.msra.mxu0 0
      %1095 = vmatprep.mubr.bf16.mxu0 0
      %1096 = vmatmul.mubr.bf16.gmra.mrb[0].mxu0 %v1061
      %v1097 = vpop.f32.mrb[0].mxu0
      %v1098 = vadd.f32 0.0, %v1097
      %v1099 = vpop.f32.mrb[0].mxu0
      %v1100 = vpop.f32.mrb[0].mxu0
      %v1101 = vpop.f32.mrb[0].mxu0
      %1102 = vdwg.mxu0
      %v1103 = vadd.f32 %v1057, %v1098
      %v1104 = vxor.u32 %v1056, 2147483648
      %v1105 = vmul.f32 %v1104, 1.442695
      %v1106 = vpow.pop %v1105
      %v1107 = vadd.f32 %v1106, 1.0
      %v1108 = vrcp.pop %v1107
      %v1109 = vmul.f32 1.0, %v1108
      %v1110 = vtanh.pop %v1056
      %v1111 = vmul.f32 %v1109, %v959
      %1113 = vrot.lane.b32.xlu0 %v1110, 64
      %v1114 = vpop.permute.xlu0 %1113
      %v1116 = vmul.f32 %v1109, %v1114
      %1118 = vrot.lane.b32.xlu0 %v1116, 32
      %v1119 = vpop.permute.xlu0 %1118
      %v1121 = vadd.f32 %v1111, %v1119
      %v1122 = vtanh.pop %v1121
      %1124 = vrot.lane.b32.xlu0 %v1122, 64
      %v1125 = vpop.permute.xlu0 %1124
      %v1127 = vmul.f32 %v1109, %v1125
      %v1128 = vxor.u32 %v1103, 2147483648
      %v1129 = vmul.f32 %v1128, 1.442695
      %v1130 = vpow.pop %v1129
      %v1131 = vadd.f32 %v1130, 1.0
      %v1132 = vrcp.pop %v1131
      %v1133 = vmul.f32 1.0, %v1132
      %v1134 = vtanh.pop %v1103
      %v1135 = vmul.f32 %v1133, %v983
      %1137 = vrot.lane.b32.xlu0 %v1134, 64
      %v1138 = vpop.permute.xlu0 %1137
      %v1140 = vmul.f32 %v1133, %v1138
      %1142 = vrot.lane.b32.xlu0 %v1140, 32
      %v1143 = vpop.permute.xlu0 %1142
      %v1145 = vadd.f32 %v1135, %v1143
      %v1146 = vtanh.pop %v1145
      %1148 = vrot.lane.b32.xlu0 %v1146, 64
      %v1149 = vpop.permute.xlu0 %1148
      %v1151 = vmul.f32 %v1133, %v1149
      %v1152 = vpack.c.bf16 %v1127, %v1127
      %v1154 = vunpack.c.l.b16 %v1152
      %v1155 = vpack.c.b16 %v1154, %v1154
      %v1156 = vrot.slane %v1155, 6
      %1157 = vrot.lane.b32.xlu0 %v1156, 32
      %v1158 = vpop.permute.xlu0 %1157
      %1160 = vst.msk [vmem:[%s374] sm:$0x4] %vm1008, %v1158
      %v1161 = vpack.c.bf16 %v1151, %v1151
      %v1163 = vunpack.c.l.b16 %v1161
      %v1164 = vpack.c.b16 %v1163, %v1163
      %v1165 = vrot.slane %v1164, 7
      %1166 = vrot.lane.b32.xlu0 %v1165, 32
      %v1167 = vpop.permute.xlu0 %1166
      %1169 = vst.msk [vmem:[%s381 + $0x1c] sm:$0x2] %vm998, %v1167
      %v1170 = vld [vmem:[#allocation2 + $0x6] sm:$0x3]
      %1171 = vrot.lane.b32.xlu0 %v1152, 32
      %v1172 = vpop.permute.xlu0 %1171
      %v1174 = vsel %vm670, %v1172, 0
      %1176 = vmatprep.subr.bf16.mxu0 0
      %1177 = vmatpush1.bf16.msra.mxu0 %v666
      %1178 = vmatprep.subr.bf16.mxu0 0
      %1179 = vmatpush1.bf16.msra.mxu0 %v667
      %1180 = vmatprep.subr.bf16.mxu0 0
      %1181 = vmatpush1.bf16.msra.mxu0 0
      %1182 = vmatprep.subr.bf16.mxu0 0
      %1183 = vmatpush1.bf16.msra.mxu0 0
      %1184 = vmatprep.subr.bf16.mxu0 0
      %1185 = vmatpush1.bf16.msra.mxu0 0
      %1186 = vmatprep.subr.bf16.mxu0 0
      %1187 = vmatpush1.bf16.msra.mxu0 0
      %1188 = vmatprep.subr.bf16.mxu0 0
      %1189 = vmatpush1.bf16.msra.mxu0 0
      %1190 = vmatprep.subr.bf16.mxu0 0
      %1191 = vmatpush1.bf16.msra.mxu0 0
      %1192 = vmatprep.subr.bf16.mxu0 0
      %1193 = vmatpush1.bf16.msra.mxu0 0
      %1194 = vmatprep.subr.bf16.mxu0 0
      %1195 = vmatpush1.bf16.msra.mxu0 0
      %1196 = vmatprep.subr.bf16.mxu0 0
      %1197 = vmatpush1.bf16.msra.mxu0 0
      %1198 = vmatprep.subr.bf16.mxu0 0
      %1199 = vmatpush1.bf16.msra.mxu0 0
      %1200 = vmatprep.subr.bf16.mxu0 0
      %1201 = vmatpush1.bf16.msra.mxu0 0
      %1202 = vmatprep.subr.bf16.mxu0 0
      %1203 = vmatpush1.bf16.msra.mxu0 0
      %1204 = vmatprep.subr.bf16.mxu0 0
      %1205 = vmatpush1.bf16.msra.mxu0 0
      %1206 = vmatprep.subr.bf16.mxu0 0
      %1207 = vmatpush1.bf16.msra.mxu0 0
      %1208 = vmatprep.mubr.bf16.mxu0 0
      %1209 = vmatmul.mubr.bf16.gmra.mrb[0].mxu0 %v1174
      %v1210 = vpop.f32.mrb[0].mxu0
      %v1211 = vadd.f32 0.0, %v1210
      %v1212 = vpop.f32.mrb[0].mxu0
      %v1213 = vpop.f32.mrb[0].mxu0
      %v1214 = vpop.f32.mrb[0].mxu0
      %1215 = vdwg.mxu0
      %v1216 = vadd.f32 %v1170, %v1211
      %v1217 = vld [vmem:[#allocation3 + $0x38] sm:$0x3]
      %1218 = vrot.lane.b32.xlu0 %v1161, 32
      %v1219 = vpop.permute.xlu0 %1218
      %v1221 = vsel %vm670, %v1219, 0
      %1223 = vmatprep.subr.bf16.mxu0 0
      %1224 = vmatpush1.bf16.msra.mxu0 %v725
      %1225 = vmatprep.subr.bf16.mxu0 0
      %1226 = vmatpush1.bf16.msra.mxu0 %v726
      %1227 = vmatprep.subr.bf16.mxu0 0
      %1228 = vmatpush1.bf16.msra.mxu0 0
      %1229 = vmatprep.subr.bf16.mxu0 0
      %1230 = vmatpush1.bf16.msra.mxu0 0
      %1231 = vmatprep.subr.bf16.mxu0 0
      %1232 = vmatpush1.bf16.msra.mxu0 0
      %1233 = vmatprep.subr.bf16.mxu0 0
      %1234 = vmatpush1.bf16.msra.mxu0 0
      %1235 = vmatprep.subr.bf16.mxu0 0
      %1236 = vmatpush1.bf16.msra.mxu0 0
      %1237 = vmatprep.subr.bf16.mxu0 0
      %1238 = vmatpush1.bf16.msra.mxu0 0
      %1239 = vmatprep.subr.bf16.mxu0 0
      %1240 = vmatpush1.bf16.msra.mxu0 0
      %1241 = vmatprep.subr.bf16.mxu0 0
      %1242 = vmatpush1.bf16.msra.mxu0 0
      %1243 = vmatprep.subr.bf16.mxu0 0
      %1244 = vmatpush1.bf16.msra.mxu0 0
      %1245 = vmatprep.subr.bf16.mxu0 0
      %1246 = vmatpush1.bf16.msra.mxu0 0
      %1247 = vmatprep.subr.bf16.mxu0 0
      %1248 = vmatpush1.bf16.msra.mxu0 0
      %1249 = vmatprep.subr.bf16.mxu0 0
      %1250 = vmatpush1.bf16.msra.mxu0 0
      %1251 = vmatprep.subr.bf16.mxu0 0
      %1252 = vmatpush1.bf16.msra.mxu0 0
      %1253 = vmatprep.subr.bf16.mxu0 0
      %1254 = vmatpush1.bf16.msra.mxu0 0
      %1255 = vmatprep.mubr.bf16.mxu0 0
      %1256 = vmatmul.mubr.bf16.gmra.mrb[0].mxu0 %v1221
      %v1257 = vpop.f32.mrb[0].mxu0
      %v1258 = vadd.f32 0.0, %v1257
      %v1259 = vpop.f32.mrb[0].mxu0
      %v1260 = vpop.f32.mrb[0].mxu0
      %v1261 = vpop.f32.mrb[0].mxu0
      %1262 = vdwg.mxu0
      %v1263 = vadd.f32 %v1217, %v1258
      %v1264 = vxor.u32 %v1216, 2147483648
      %v1265 = vmul.f32 %v1264, 1.442695
      %v1266 = vpow.pop %v1265
      %v1267 = vadd.f32 %v1266, 1.0
      %v1268 = vrcp.pop %v1267
      %v1269 = vmul.f32 1.0, %v1268
      %v1270 = vtanh.pop %v1216
      %v1271 = vmul.f32 %v1269, %v1121
      %1273 = vrot.lane.b32.xlu0 %v1270, 64
      %v1274 = vpop.permute.xlu0 %1273
      %v1276 = vmul.f32 %v1269, %v1274
      %1278 = vrot.lane.b32.xlu0 %v1276, 32
      %v1279 = vpop.permute.xlu0 %1278
      %v1281 = vadd.f32 %v1271, %v1279
      %v1282 = vtanh.pop %v1281
      %1284 = vrot.lane.b32.xlu0 %v1282, 64
      %v1285 = vpop.permute.xlu0 %1284
      %v1287 = vmul.f32 %v1269, %v1285
      %v1288 = vxor.u32 %v1263, 2147483648
      %v1289 = vmul.f32 %v1288, 1.442695
      %v1290 = vpow.pop %v1289
      %v1291 = vadd.f32 %v1290, 1.0
      %v1292 = vrcp.pop %v1291
      %v1293 = vmul.f32 1.0, %v1292
      %v1294 = vtanh.pop %v1263
      %v1295 = vmul.f32 %v1293, %v1145
      %1297 = vrot.lane.b32.xlu0 %v1294, 64
      %v1298 = vpop.permute.xlu0 %1297
      %v1300 = vmul.f32 %v1293, %v1298
      %1302 = vrot.lane.b32.xlu0 %v1300, 32
      %v1303 = vpop.permute.xlu0 %1302
      %v1305 = vadd.f32 %v1295, %v1303
      %v1306 = vtanh.pop %v1305
      %1308 = vrot.lane.b32.xlu0 %v1306, 64
      %v1309 = vpop.permute.xlu0 %1308
      %v1311 = vmul.f32 %v1293, %v1309
      %v1312 = vpack.c.bf16 %v1287, %v1287
      %v1314 = vunpack.c.l.b16 %v1312
      %v1315 = vpack.c.b16 %v1314, %v1314
      %v1316 = vrot.slane %v1315, 5
      %1317 = vrot.lane.b32.xlu0 %v1316, 32
      %v1318 = vpop.permute.xlu0 %1317
      %1320 = vst.msk [vmem:[%s374] sm:$0x8] %vm846, %v1318
      %v1321 = vpack.c.bf16 %v1311, %v1311
      %v1323 = vunpack.c.l.b16 %v1321
      %v1324 = vpack.c.b16 %v1323, %v1323
      %1325 = vrot.lane.b32.xlu0 %v1324, 32
      %v1326 = vpop.permute.xlu0 %1325
      %1328 = vst.msk [vmem:[%s381 + $0x1c] sm:$0x1] %vm836, %v1326
      %v1329 = vld [vmem:[#allocation2 + $0x8] sm:$0x3]
      %1330 = vrot.lane.b32.xlu0 %v1312, 32
      %v1331 = vpop.permute.xlu0 %1330
      %v1333 = vsel %vm670, %v1331, 0
      %1335 = vmatprep.subr.bf16.mxu0 0
      %1336 = vmatpush1.bf16.msra.mxu0 %v666
      %1337 = vmatprep.subr.bf16.mxu0 0
      %1338 = vmatpush1.bf16.msra.mxu0 %v667
      %1339 = vmatprep.subr.bf16.mxu0 0
      %1340 = vmatpush1.bf16.msra.mxu0 0
      %1341 = vmatprep.subr.bf16.mxu0 0
      %1342 = vmatpush1.bf16.msra.mxu0 0
      %1343 = vmatprep.subr.bf16.mxu0 0
      %1344 = vmatpush1.bf16.msra.mxu0 0
      %1345 = vmatprep.subr.bf16.mxu0 0
      %1346 = vmatpush1.bf16.msra.mxu0 0
      %1347 = vmatprep.subr.bf16.mxu0 0
      %1348 = vmatpush1.bf16.msra.mxu0 0
      %1349 = vmatprep.subr.bf16.mxu0 0
      %1350 = vmatpush1.bf16.msra.mxu0 0
      %1351 = vmatprep.subr.bf16.mxu0 0
      %1352 = vmatpush1.bf16.msra.mxu0 0
      %1353 = vmatprep.subr.bf16.mxu0 0
      %1354 = vmatpush1.bf16.msra.mxu0 0
      %1355 = vmatprep.subr.bf16.mxu0 0
      %1356 = vmatpush1.bf16.msra.mxu0 0
      %1357 = vmatprep.subr.bf16.mxu0 0
      %1358 = vmatpush1.bf16.msra.mxu0 0
      %1359 = vmatprep.subr.bf16.mxu0 0
      %1360 = vmatpush1.bf16.msra.mxu0 0
      %1361 = vmatprep.subr.bf16.mxu0 0
      %1362 = vmatpush1.bf16.msra.mxu0 0
      %1363 = vmatprep.subr.bf16.mxu0 0
      %1364 = vmatpush1.bf16.msra.mxu0 0
      %1365 = vmatprep.subr.bf16.mxu0 0
      %1366 = vmatpush1.bf16.msra.mxu0 0
      %1367 = vmatprep.mubr.bf16.mxu0 0
      %1368 = vmatmul.mubr.bf16.gmra.mrb[0].mxu0 %v1333
      %v1369 = vpop.f32.mrb[0].mxu0
      %v1370 = vadd.f32 0.0, %v1369
      %v1371 = vpop.f32.mrb[0].mxu0
      %v1372 = vpop.f32.mrb[0].mxu0
      %v1373 = vpop.f32.mrb[0].mxu0
      %1374 = vdwg.mxu0
      %v1375 = vadd.f32 %v1329, %v1370
      %v1376 = vld [vmem:[#allocation3 + $0x36] sm:$0x3]
      %1377 = vrot.lane.b32.xlu0 %v1321, 32
      %v1378 = vpop.permute.xlu0 %1377
      %v1380 = vsel %vm670, %v1378, 0
      %1382 = vmatprep.subr.bf16.mxu0 0
      %1383 = vmatpush1.bf16.msra.mxu0 %v725
      %1384 = vmatprep.subr.bf16.mxu0 0
      %1385 = vmatpush1.bf16.msra.mxu0 %v726
      %1386 = vmatprep.subr.bf16.mxu0 0
      %1387 = vmatpush1.bf16.msra.mxu0 0
      %1388 = vmatprep.subr.bf16.mxu0 0
      %1389 = vmatpush1.bf16.msra.mxu0 0
      %1390 = vmatprep.subr.bf16.mxu0 0
      %1391 = vmatpush1.bf16.msra.mxu0 0
      %1392 = vmatprep.subr.bf16.mxu0 0
      %1393 = vmatpush1.bf16.msra.mxu0 0
      %1394 = vmatprep.subr.bf16.mxu0 0
      %1395 = vmatpush1.bf16.msra.mxu0 0
      %1396 = vmatprep.subr.bf16.mxu0 0
      %1397 = vmatpush1.bf16.msra.mxu0 0
      %1398 = vmatprep.subr.bf16.mxu0 0
      %1399 = vmatpush1.bf16.msra.mxu0 0
      %1400 = vmatprep.subr.bf16.mxu0 0
      %1401 = vmatpush1.bf16.msra.mxu0 0
      %1402 = vmatprep.subr.bf16.mxu0 0
      %1403 = vmatpush1.bf16.msra.mxu0 0
      %1404 = vmatprep.subr.bf16.mxu0 0
      %1405 = vmatpush1.bf16.msra.mxu0 0
      %1406 = vmatprep.subr.bf16.mxu0 0
      %1407 = vmatpush1.bf16.msra.mxu0 0
      %1408 = vmatprep.subr.bf16.mxu0 0
      %1409 = vmatpush1.bf16.msra.mxu0 0
      %1410 = vmatprep.subr.bf16.mxu0 0
      %1411 = vmatpush1.bf16.msra.mxu0 0
      %1412 = vmatprep.subr.bf16.mxu0 0
      %1413 = vmatpush1.bf16.msra.mxu0 0
      %1414 = vmatprep.mubr.bf16.mxu0 0
      %1415 = vmatmul.mubr.bf16.gmra.mrb[0].mxu0 %v1380
      %v1416 = vpop.f32.mrb[0].mxu0
      %v1417 = vadd.f32 0.0, %v1416
      %v1418 = vpop.f32.mrb[0].mxu0
      %v1419 = vpop.f32.mrb[0].mxu0
      %v1420 = vpop.f32.mrb[0].mxu0
      %1421 = vdwg.mxu0
      %v1422 = vadd.f32 %v1376, %v1417
      %v1423 = vxor.u32 %v1375, 2147483648
      %v1424 = vmul.f32 %v1423, 1.442695
      %v1425 = vpow.pop %v1424
      %v1426 = vadd.f32 %v1425, 1.0
      %v1427 = vrcp.pop %v1426
      %v1428 = vmul.f32 1.0, %v1427
      %v1429 = vtanh.pop %v1375
      %v1430 = vmul.f32 %v1428, %v1281
      %1432 = vrot.lane.b32.xlu0 %v1429, 64
      %v1433 = vpop.permute.xlu0 %1432
      %v1435 = vmul.f32 %v1428, %v1433
      %1437 = vrot.lane.b32.xlu0 %v1435, 32
      %v1438 = vpop.permute.xlu0 %1437
      %v1440 = vadd.f32 %v1430, %v1438
      %v1441 = vtanh.pop %v1440
      %1443 = vrot.lane.b32.xlu0 %v1441, 64
      %v1444 = vpop.permute.xlu0 %1443
      %v1446 = vmul.f32 %v1428, %v1444
      %v1447 = vxor.u32 %v1422, 2147483648
      %v1448 = vmul.f32 %v1447, 1.442695
      %v1449 = vpow.pop %v1448
      %v1450 = vadd.f32 %v1449, 1.0
      %v1451 = vrcp.pop %v1450
      %v1452 = vmul.f32 1.0, %v1451
      %v1453 = vtanh.pop %v1422
      %v1454 = vmul.f32 %v1452, %v1305
      %1456 = vrot.lane.b32.xlu0 %v1453, 64
      %v1457 = vpop.permute.xlu0 %1456
      %v1459 = vmul.f32 %v1452, %v1457
      %1461 = vrot.lane.b32.xlu0 %v1459, 32
      %v1462 = vpop.permute.xlu0 %1461
      %v1464 = vadd.f32 %v1454, %v1462
      %v1465 = vtanh.pop %v1464
      %1467 = vrot.lane.b32.xlu0 %v1465, 64
      %v1468 = vpop.permute.xlu0 %1467
      %v1470 = vmul.f32 %v1452, %v1468
      %v1471 = vpack.c.bf16 %v1446, %v1446
      %v1473 = vunpack.c.l.b16 %v1471
      %v1474 = vpack.c.b16 %v1473, %v1473
      %1475 = vrot.lane.b32.xlu0 %v1474, 32
      %v1476 = vpop.permute.xlu0 %1475
      %1478 = vst.msk [vmem:[%s374 + $0x4] sm:$0x1] %vm836, %v1476
      %v1479 = vpack.c.bf16 %v1470, %v1470
      %v1481 = vunpack.c.l.b16 %v1479
      %v1482 = vpack.c.b16 %v1481, %v1481
      %v1483 = vrot.slane %v1482, 5
      %1484 = vrot.lane.b32.xlu0 %v1483, 32
      %v1485 = vpop.permute.xlu0 %1484
      %1487 = vst.msk [vmem:[%s381 + $0x18] sm:$0x8] %vm846, %v1485
      %v1488 = vld [vmem:[#allocation2 + $0xa] sm:$0x3]
      %1489 = vrot.lane.b32.xlu0 %v1471, 32
      %v1490 = vpop.permute.xlu0 %1489
      %v1492 = vsel %vm670, %v1490, 0
      %1494 = vmatprep.subr.bf16.mxu0 0
      %1495 = vmatpush1.bf16.msra.mxu0 %v666
      %1496 = vmatprep.subr.bf16.mxu0 0
      %1497 = vmatpush1.bf16.msra.mxu0 %v667
      %1498 = vmatprep.subr.bf16.mxu0 0
      %1499 = vmatpush1.bf16.msra.mxu0 0
      %1500 = vmatprep.subr.bf16.mxu0 0
      %1501 = vmatpush1.bf16.msra.mxu0 0
      %1502 = vmatprep.subr.bf16.mxu0 0
      %1503 = vmatpush1.bf16.msra.mxu0 0
      %1504 = vmatprep.subr.bf16.mxu0 0
      %1505 = vmatpush1.bf16.msra.mxu0 0
      %1506 = vmatprep.subr.bf16.mxu0 0
      %1507 = vmatpush1.bf16.msra.mxu0 0
      %1508 = vmatprep.subr.bf16.mxu0 0
      %1509 = vmatpush1.bf16.msra.mxu0 0
      %1510 = vmatprep.subr.bf16.mxu0 0
      %1511 = vmatpush1.bf16.msra.mxu0 0
      %1512 = vmatprep.subr.bf16.mxu0 0
      %1513 = vmatpush1.bf16.msra.mxu0 0
      %1514 = vmatprep.subr.bf16.mxu0 0
      %1515 = vmatpush1.bf16.msra.mxu0 0
      %1516 = vmatprep.subr.bf16.mxu0 0
      %1517 = vmatpush1.bf16.msra.mxu0 0
      %1518 = vmatprep.subr.bf16.mxu0 0
      %1519 = vmatpush1.bf16.msra.mxu0 0
      %1520 = vmatprep.subr.bf16.mxu0 0
      %1521 = vmatpush1.bf16.msra.mxu0 0
      %1522 = vmatprep.subr.bf16.mxu0 0
      %1523 = vmatpush1.bf16.msra.mxu0 0
      %1524 = vmatprep.subr.bf16.mxu0 0
      %1525 = vmatpush1.bf16.msra.mxu0 0
      %1526 = vmatprep.mubr.bf16.mxu0 0
      %1527 = vmatmul.mubr.bf16.gmra.mrb[0].mxu0 %v1492
      %v1528 = vpop.f32.mrb[0].mxu0
      %v1529 = vadd.f32 0.0, %v1528
      %v1530 = vpop.f32.mrb[0].mxu0
      %v1531 = vpop.f32.mrb[0].mxu0
      %v1532 = vpop.f32.mrb[0].mxu0
      %1533 = vdwg.mxu0
      %v1534 = vadd.f32 %v1488, %v1529
      %v1535 = vld [vmem:[#allocation3 + $0x34] sm:$0x3]
      %1536 = vrot.lane.b32.xlu0 %v1479, 32
      %v1537 = vpop.permute.xlu0 %1536
      %v1539 = vsel %vm670, %v1537, 0
      %1541 = vmatprep.subr.bf16.mxu0 0
      %1542 = vmatpush1.bf16.msra.mxu0 %v725
      %1543 = vmatprep.subr.bf16.mxu0 0
      %1544 = vmatpush1.bf16.msra.mxu0 %v726
      %1545 = vmatprep.subr.bf16.mxu0 0
      %1546 = vmatpush1.bf16.msra.mxu0 0
      %1547 = vmatprep.subr.bf16.mxu0 0
      %1548 = vmatpush1.bf16.msra.mxu0 0
      %1549 = vmatprep.subr.bf16.mxu0 0
      %1550 = vmatpush1.bf16.msra.mxu0 0
      %1551 = vmatprep.subr.bf16.mxu0 0
      %1552 = vmatpush1.bf16.msra.mxu0 0
      %1553 = vmatprep.subr.bf16.mxu0 0
      %1554 = vmatpush1.bf16.msra.mxu0 0
      %1555 = vmatprep.subr.bf16.mxu0 0
      %1556 = vmatpush1.bf16.msra.mxu0 0
      %1557 = vmatprep.subr.bf16.mxu0 0
      %1558 = vmatpush1.bf16.msra.mxu0 0
      %1559 = vmatprep.subr.bf16.mxu0 0
      %1560 = vmatpush1.bf16.msra.mxu0 0
      %1561 = vmatprep.subr.bf16.mxu0 0
      %1562 = vmatpush1.bf16.msra.mxu0 0
      %1563 = vmatprep.subr.bf16.mxu0 0
      %1564 = vmatpush1.bf16.msra.mxu0 0
      %1565 = vmatprep.subr.bf16.mxu0 0
      %1566 = vmatpush1.bf16.msra.mxu0 0
      %1567 = vmatprep.subr.bf16.mxu0 0
      %1568 = vmatpush1.bf16.msra.mxu0 0
      %1569 = vmatprep.subr.bf16.mxu0 0
      %1570 = vmatpush1.bf16.msra.mxu0 0
      %1571 = vmatprep.subr.bf16.mxu0 0
      %1572 = vmatpush1.bf16.msra.mxu0 0
      %1573 = vmatprep.mubr.bf16.mxu0 0
      %1574 = vmatmul.mubr.bf16.gmra.mrb[0].mxu0 %v1539
      %v1575 = vpop.f32.mrb[0].mxu0
      %v1576 = vadd.f32 0.0, %v1575
      %v1577 = vpop.f32.mrb[0].mxu0
      %v1578 = vpop.f32.mrb[0].mxu0
      %v1579 = vpop.f32.mrb[0].mxu0
      %1580 = vdwg.mxu0
      %v1581 = vadd.f32 %v1535, %v1576
      %v1582 = vxor.u32 %v1534, 2147483648
      %v1583 = vmul.f32 %v1582, 1.442695
      %v1584 = vpow.pop %v1583
      %v1585 = vadd.f32 %v1584, 1.0
      %v1586 = vrcp.pop %v1585
      %v1587 = vmul.f32 1.0, %v1586
      %v1588 = vtanh.pop %v1534
      %v1589 = vmul.f32 %v1587, %v1440
      %1591 = vrot.lane.b32.xlu0 %v1588, 64
      %v1592 = vpop.permute.xlu0 %1591
      %v1594 = vmul.f32 %v1587, %v1592
      %1596 = vrot.lane.b32.xlu0 %v1594, 32
      %v1597 = vpop.permute.xlu0 %1596
      %v1599 = vadd.f32 %v1589, %v1597
      %v1600 = vtanh.pop %v1599
      %1602 = vrot.lane.b32.xlu0 %v1600, 64
      %v1603 = vpop.permute.xlu0 %1602
      %v1605 = vmul.f32 %v1587, %v1603
      %v1606 = vxor.u32 %v1581, 2147483648
      %v1607 = vmul.f32 %v1606, 1.442695
      %v1608 = vpow.pop %v1607
      %v1609 = vadd.f32 %v1608, 1.0
      %v1610 = vrcp.pop %v1609
      %v1611 = vmul.f32 1.0, %v1610
      %v1612 = vtanh.pop %v1581
      %v1613 = vmul.f32 %v1611, %v1464
      %1615 = vrot.lane.b32.xlu0 %v1612, 64
      %v1616 = vpop.permute.xlu0 %1615
      %v1618 = vmul.f32 %v1611, %v1616
      %1620 = vrot.lane.b32.xlu0 %v1618, 32
      %v1621 = vpop.permute.xlu0 %1620
      %v1623 = vadd.f32 %v1613, %v1621
      %v1624 = vtanh.pop %v1623
      %1626 = vrot.lane.b32.xlu0 %v1624, 64
      %v1627 = vpop.permute.xlu0 %1626
      %v1629 = vmul.f32 %v1611, %v1627
      %v1630 = vpack.c.bf16 %v1605, %v1605
      %v1632 = vunpack.c.l.b16 %v1630
      %v1633 = vpack.c.b16 %v1632, %v1632
      %v1634 = vrot.slane %v1633, 7
      %1635 = vrot.lane.b32.xlu0 %v1634, 32
      %v1636 = vpop.permute.xlu0 %1635
      %1638 = vst.msk [vmem:[%s374 + $0x4] sm:$0x2] %vm998, %v1636
      %v1639 = vpack.c.bf16 %v1629, %v1629
      %v1641 = vunpack.c.l.b16 %v1639
      %v1642 = vpack.c.b16 %v1641, %v1641
      %v1643 = vrot.slane %v1642, 6
      %1644 = vrot.lane.b32.xlu0 %v1643, 32
      %v1645 = vpop.permute.xlu0 %1644
      %1647 = vst.msk [vmem:[%s381 + $0x18] sm:$0x4] %vm1008, %v1645
      %v1648 = vld [vmem:[#allocation2 + $0xc] sm:$0x3]
      %1649 = vrot.lane.b32.xlu0 %v1630, 32
      %v1650 = vpop.permute.xlu0 %1649
      %v1652 = vsel %vm670, %v1650, 0
      %1654 = vmatprep.subr.bf16.mxu0 0
      %1655 = vmatpush1.bf16.msra.mxu0 %v666
      %1656 = vmatprep.subr.bf16.mxu0 0
      %1657 = vmatpush1.bf16.msra.mxu0 %v667
      %1658 = vmatprep.subr.bf16.mxu0 0
      %1659 = vmatpush1.bf16.msra.mxu0 0
      %1660 = vmatprep.subr.bf16.mxu0 0
      %1661 = vmatpush1.bf16.msra.mxu0 0
      %1662 = vmatprep.subr.bf16.mxu0 0
      %1663 = vmatpush1.bf16.msra.mxu0 0
      %1664 = vmatprep.subr.bf16.mxu0 0
      %1665 = vmatpush1.bf16.msra.mxu0 0
      %1666 = vmatprep.subr.bf16.mxu0 0
      %1667 = vmatpush1.bf16.msra.mxu0 0
      %1668 = vmatprep.subr.bf16.mxu0 0
      %1669 = vmatpush1.bf16.msra.mxu0 0
      %1670 = vmatprep.subr.bf16.mxu0 0
      %1671 = vmatpush1.bf16.msra.mxu0 0
      %1672 = vmatprep.subr.bf16.mxu0 0
      %1673 = vmatpush1.bf16.msra.mxu0 0
      %1674 = vmatprep.subr.bf16.mxu0 0
      %1675 = vmatpush1.bf16.msra.mxu0 0
      %1676 = vmatprep.subr.bf16.mxu0 0
      %1677 = vmatpush1.bf16.msra.mxu0 0
      %1678 = vmatprep.subr.bf16.mxu0 0
      %1679 = vmatpush1.bf16.msra.mxu0 0
      %1680 = vmatprep.subr.bf16.mxu0 0
      %1681 = vmatpush1.bf16.msra.mxu0 0
      %1682 = vmatprep.subr.bf16.mxu0 0
      %1683 = vmatpush1.bf16.msra.mxu0 0
      %1684 = vmatprep.subr.bf16.mxu0 0
      %1685 = vmatpush1.bf16.msra.mxu0 0
      %1686 = vmatprep.mubr.bf16.mxu0 0
      %1687 = vmatmul.mubr.bf16.gmra.mrb[0].mxu0 %v1652
      %v1688 = vpop.f32.mrb[0].mxu0
      %v1689 = vadd.f32 0.0, %v1688
      %v1690 = vpop.f32.mrb[0].mxu0
      %v1691 = vpop.f32.mrb[0].mxu0
      %v1692 = vpop.f32.mrb[0].mxu0
      %1693 = vdwg.mxu0
      %v1694 = vadd.f32 %v1648, %v1689
      %v1695 = vld [vmem:[#allocation3 + $0x32] sm:$0x3]
      %1696 = vrot.lane.b32.xlu0 %v1639, 32
      %v1697 = vpop.permute.xlu0 %1696
      %v1699 = vsel %vm670, %v1697, 0
      %1701 = vmatprep.subr.bf16.mxu0 0
      %1702 = vmatpush1.bf16.msra.mxu0 %v725
      %1703 = vmatprep.subr.bf16.mxu0 0
      %1704 = vmatpush1.bf16.msra.mxu0 %v726
      %1705 = vmatprep.subr.bf16.mxu0 0
      %1706 = vmatpush1.bf16.msra.mxu0 0
      %1707 = vmatprep.subr.bf16.mxu0 0
      %1708 = vmatpush1.bf16.msra.mxu0 0
      %1709 = vmatprep.subr.bf16.mxu0 0
      %1710 = vmatpush1.bf16.msra.mxu0 0
      %1711 = vmatprep.subr.bf16.mxu0 0
      %1712 = vmatpush1.bf16.msra.mxu0 0
      %1713 = vmatprep.subr.bf16.mxu0 0
      %1714 = vmatpush1.bf16.msra.mxu0 0
      %1715 = vmatprep.subr.bf16.mxu0 0
      %1716 = vmatpush1.bf16.msra.mxu0 0
      %1717 = vmatprep.subr.bf16.mxu0 0
      %1718 = vmatpush1.bf16.msra.mxu0 0
      %1719 = vmatprep.subr.bf16.mxu0 0
      %1720 = vmatpush1.bf16.msra.mxu0 0
      %1721 = vmatprep.subr.bf16.mxu0 0
      %1722 = vmatpush1.bf16.msra.mxu0 0
      %1723 = vmatprep.subr.bf16.mxu0 0
      %1724 = vmatpush1.bf16.msra.mxu0 0
      %1725 = vmatprep.subr.bf16.mxu0 0
      %1726 = vmatpush1.bf16.msra.mxu0 0
      %1727 = vmatprep.subr.bf16.mxu0 0
      %1728 = vmatpush1.bf16.msra.mxu0 0
      %1729 = vmatprep.subr.bf16.mxu0 0
      %1730 = vmatpush1.bf16.msra.mxu0 0
      %1731 = vmatprep.subr.bf16.mxu0 0
      %1732 = vmatpush1.bf16.msra.mxu0 0
      %1733 = vmatprep.mubr.bf16.mxu0 0
      %1734 = vmatmul.mubr.bf16.gmra.mrb[0].mxu0 %v1699
      %v1735 = vpop.f32.mrb[0].mxu0
      %v1736 = vadd.f32 0.0, %v1735
      %v1737 = vpop.f32.mrb[0].mxu0
      %v1738 = vpop.f32.mrb[0].mxu0
      %v1739 = vpop.f32.mrb[0].mxu0
      %1740 = vdwg.mxu0
      %v1741 = vadd.f32 %v1695, %v1736
      %v1742 = vxor.u32 %v1694, 2147483648
      %v1743 = vmul.f32 %v1742, 1.442695
      %v1744 = vpow.pop %v1743
      %v1745 = vadd.f32 %v1744, 1.0
      %v1746 = vrcp.pop %v1745
      %v1747 = vmul.f32 1.0, %v1746
      %v1748 = vtanh.pop %v1694
      %v1749 = vmul.f32 %v1747, %v1599
      %1751 = vrot.lane.b32.xlu0 %v1748, 64
      %v1752 = vpop.permute.xlu0 %1751
      %v1754 = vmul.f32 %v1747, %v1752
      %1756 = vrot.lane.b32.xlu0 %v1754, 32
      %v1757 = vpop.permute.xlu0 %1756
      %v1759 = vadd.f32 %v1749, %v1757
      %v1760 = vtanh.pop %v1759
      %1762 = vrot.lane.b32.xlu0 %v1760, 64
      %v1763 = vpop.permute.xlu0 %1762
      %v1765 = vmul.f32 %v1747, %v1763
      %v1766 = vxor.u32 %v1741, 2147483648
      %v1767 = vmul.f32 %v1766, 1.442695
      %v1768 = vpow.pop %v1767
      %v1769 = vadd.f32 %v1768, 1.0
      %v1770 = vrcp.pop %v1769
      %v1771 = vmul.f32 1.0, %v1770
      %v1772 = vtanh.pop %v1741
      %v1773 = vmul.f32 %v1771, %v1623
      %1775 = vrot.lane.b32.xlu0 %v1772, 64
      %v1776 = vpop.permute.xlu0 %1775
      %v1778 = vmul.f32 %v1771, %v1776
      %1780 = vrot.lane.b32.xlu0 %v1778, 32
      %v1781 = vpop.permute.xlu0 %1780
      %v1783 = vadd.f32 %v1773, %v1781
      %v1784 = vtanh.pop %v1783
      %1786 = vrot.lane.b32.xlu0 %v1784, 64
      %v1787 = vpop.permute.xlu0 %1786
      %v1789 = vmul.f32 %v1771, %v1787
      %v1790 = vpack.c.bf16 %v1765, %v1765
      %v1792 = vunpack.c.l.b16 %v1790
      %v1793 = vpack.c.b16 %v1792, %v1792
      %v1794 = vrot.slane %v1793, 6
      %1795 = vrot.lane.b32.xlu0 %v1794, 32
      %v1796 = vpop.permute.xlu0 %1795
      %1798 = vst.msk [vmem:[%s374 + $0x4] sm:$0x4] %vm1008, %v1796
      %v1799 = vpack.c.bf16 %v1789, %v1789
      %v1801 = vunpack.c.l.b16 %v1799
      %v1802 = vpack.c.b16 %v1801, %v1801
      %v1803 = vrot.slane %v1802, 7
      %1804 = vrot.lane.b32.xlu0 %v1803, 32
      %v1805 = vpop.permute.xlu0 %1804
      %1807 = vst.msk [vmem:[%s381 + $0x18] sm:$0x2] %vm998, %v1805
      %v1808 = vld [vmem:[#allocation2 + $0xe] sm:$0x3]
      %1809 = vrot.lane.b32.xlu0 %v1790, 32
      %v1810 = vpop.permute.xlu0 %1809
      %v1812 = vsel %vm670, %v1810, 0
      %1814 = vmatprep.subr.bf16.mxu0 0
      %1815 = vmatpush1.bf16.msra.mxu0 %v666
      %1816 = vmatprep.subr.bf16.mxu0 0
      %1817 = vmatpush1.bf16.msra.mxu0 %v667
      %1818 = vmatprep.subr.bf16.mxu0 0
      %1819 = vmatpush1.bf16.msra.mxu0 0
      %1820 = vmatprep.subr.bf16.mxu0 0
      %1821 = vmatpush1.bf16.msra.mxu0 0
      %1822 = vmatprep.subr.bf16.mxu0 0
      %1823 = vmatpush1.bf16.msra.mxu0 0
      %1824 = vmatprep.subr.bf16.mxu0 0
      %1825 = vmatpush1.bf16.msra.mxu0 0
      %1826 = vmatprep.subr.bf16.mxu0 0
      %1827 = vmatpush1.bf16.msra.mxu0 0
      %1828 = vmatprep.subr.bf16.mxu0 0
      %1829 = vmatpush1.bf16.msra.mxu0 0
      %1830 = vmatprep.subr.bf16.mxu0 0
      %1831 = vmatpush1.bf16.msra.mxu0 0
      %1832 = vmatprep.subr.bf16.mxu0 0
      %1833 = vmatpush1.bf16.msra.mxu0 0
      %1834 = vmatprep.subr.bf16.mxu0 0
      %1835 = vmatpush1.bf16.msra.mxu0 0
      %1836 = vmatprep.subr.bf16.mxu0 0
      %1837 = vmatpush1.bf16.msra.mxu0 0
      %1838 = vmatprep.subr.bf16.mxu0 0
      %1839 = vmatpush1.bf16.msra.mxu0 0
      %1840 = vmatprep.subr.bf16.mxu0 0
      %1841 = vmatpush1.bf16.msra.mxu0 0
      %1842 = vmatprep.subr.bf16.mxu0 0
      %1843 = vmatpush1.bf16.msra.mxu0 0
      %1844 = vmatprep.subr.bf16.mxu0 0
      %1845 = vmatpush1.bf16.msra.mxu0 0
      %1846 = vmatprep.mubr.bf16.mxu0 0
      %1847 = vmatmul.mubr.bf16.gmra.mrb[0].mxu0 %v1812
      %v1848 = vpop.f32.mrb[0].mxu0
      %v1849 = vadd.f32 0.0, %v1848
      %v1850 = vpop.f32.mrb[0].mxu0
      %v1851 = vpop.f32.mrb[0].mxu0
      %v1852 = vpop.f32.mrb[0].mxu0
      %1853 = vdwg.mxu0
      %v1854 = vadd.f32 %v1808, %v1849
      %v1855 = vld [vmem:[#allocation3 + $0x30] sm:$0x3]
      %1856 = vrot.lane.b32.xlu0 %v1799, 32
      %v1857 = vpop.permute.xlu0 %1856
      %v1859 = vsel %vm670, %v1857, 0
      %1861 = vmatprep.subr.bf16.mxu0 0
      %1862 = vmatpush1.bf16.msra.mxu0 %v725
      %1863 = vmatprep.subr.bf16.mxu0 0
      %1864 = vmatpush1.bf16.msra.mxu0 %v726
      %1865 = vmatprep.subr.bf16.mxu0 0
      %1866 = vmatpush1.bf16.msra.mxu0 0
      %1867 = vmatprep.subr.bf16.mxu0 0
      %1868 = vmatpush1.bf16.msra.mxu0 0
      %1869 = vmatprep.subr.bf16.mxu0 0
      %1870 = vmatpush1.bf16.msra.mxu0 0
      %1871 = vmatprep.subr.bf16.mxu0 0
      %1872 = vmatpush1.bf16.msra.mxu0 0
      %1873 = vmatprep.subr.bf16.mxu0 0
      %1874 = vmatpush1.bf16.msra.mxu0 0
      %1875 = vmatprep.subr.bf16.mxu0 0
      %1876 = vmatpush1.bf16.msra.mxu0 0
      %1877 = vmatprep.subr.bf16.mxu0 0
      %1878 = vmatpush1.bf16.msra.mxu0 0
      %1879 = vmatprep.subr.bf16.mxu0 0
      %1880 = vmatpush1.bf16.msra.mxu0 0
      %1881 = vmatprep.subr.bf16.mxu0 0
      %1882 = vmatpush1.bf16.msra.mxu0 0
      %1883 = vmatprep.subr.bf16.mxu0 0
      %1884 = vmatpush1.bf16.msra.mxu0 0
      %1885 = vmatprep.subr.bf16.mxu0 0
      %1886 = vmatpush1.bf16.msra.mxu0 0
      %1887 = vmatprep.subr.bf16.mxu0 0
      %1888 = vmatpush1.bf16.msra.mxu0 0
      %1889 = vmatprep.subr.bf16.mxu0 0
      %1890 = vmatpush1.bf16.msra.mxu0 0
      %1891 = vmatprep.subr.bf16.mxu0 0
      %1892 = vmatpush1.bf16.msra.mxu0 0
      %1893 = vmatprep.mubr.bf16.mxu0 0
      %1894 = vmatmul.mubr.bf16.gmra.mrb[0].mxu0 %v1859
      %v1895 = vpop.f32.mrb[0].mxu0
      %v1896 = vadd.f32 0.0, %v1895
      %v1897 = vpop.f32.mrb[0].mxu0
      %v1898 = vpop.f32.mrb[0].mxu0
      %v1899 = vpop.f32.mrb[0].mxu0
      %1900 = vdwg.mxu0
      %v1901 = vadd.f32 %v1855, %v1896
      %v1902 = vxor.u32 %v1854, 2147483648
      %v1903 = vmul.f32 %v1902, 1.442695
      %v1904 = vpow.pop %v1903
      %v1905 = vadd.f32 %v1904, 1.0
      %v1906 = vrcp.pop %v1905
      %v1907 = vmul.f32 1.0, %v1906
      %v1908 = vtanh.pop %v1854
      %v1909 = vmul.f32 %v1907, %v1759
      %1911 = vrot.lane.b32.xlu0 %v1908, 64
      %v1912 = vpop.permute.xlu0 %1911
      %v1914 = vmul.f32 %v1907, %v1912
      %1916 = vrot.lane.b32.xlu0 %v1914, 32
      %v1917 = vpop.permute.xlu0 %1916
      %v1919 = vadd.f32 %v1909, %v1917
      %v1920 = vtanh.pop %v1919
      %1922 = vrot.lane.b32.xlu0 %v1920, 64
      %v1923 = vpop.permute.xlu0 %1922
      %v1925 = vmul.f32 %v1907, %v1923
      %v1926 = vxor.u32 %v1901, 2147483648
      %v1927 = vmul.f32 %v1926, 1.442695
      %v1928 = vpow.pop %v1927
      %v1929 = vadd.f32 %v1928, 1.0
      %v1930 = vrcp.pop %v1929
      %v1931 = vmul.f32 1.0, %v1930
      %v1932 = vtanh.pop %v1901
      %v1933 = vmul.f32 %v1931, %v1783
      %1935 = vrot.lane.b32.xlu0 %v1932, 64
      %v1936 = vpop.permute.xlu0 %1935
      %v1938 = vmul.f32 %v1931, %v1936
      %1940 = vrot.lane.b32.xlu0 %v1938, 32
      %v1941 = vpop.permute.xlu0 %1940
      %v1943 = vadd.f32 %v1933, %v1941
      %v1944 = vtanh.pop %v1943
      %1946 = vrot.lane.b32.xlu0 %v1944, 64
      %v1947 = vpop.permute.xlu0 %1946
      %v1949 = vmul.f32 %v1931, %v1947
      %v1950 = vpack.c.bf16 %v1925, %v1925
      %v1952 = vunpack.c.l.b16 %v1950
      %v1953 = vpack.c.b16 %v1952, %v1952
      %v1954 = vrot.slane %v1953, 5
      %1955 = vrot.lane.b32.xlu0 %v1954, 32
      %v1956 = vpop.permute.xlu0 %1955
      %1958 = vst.msk [vmem:[%s374 + $0x4] sm:$0x8] %vm846, %v1956
      %v1959 = vpack.c.bf16 %v1949, %v1949
      %v1961 = vunpack.c.l.b16 %v1959
      %v1962 = vpack.c.b16 %v1961, %v1961
      %1963 = vrot.lane.b32.xlu0 %v1962, 32
      %v1964 = vpop.permute.xlu0 %1963
      %1966 = vst.msk [vmem:[%s381 + $0x18] sm:$0x1] %vm836, %v1964
      %v1967 = vld [vmem:[#allocation2 + $0x10] sm:$0x3]
      %1968 = vrot.lane.b32.xlu0 %v1950, 32
      %v1969 = vpop.permute.xlu0 %1968
      %v1971 = vsel %vm670, %v1969, 0
      %1973 = vmatprep.subr.bf16.mxu0 0
      %1974 = vmatpush1.bf16.msra.mxu0 %v666
      %1975 = vmatprep.subr.bf16.mxu0 0
      %1976 = vmatpush1.bf16.msra.mxu0 %v667
      %1977 = vmatprep.subr.bf16.mxu0 0
      %1978 = vmatpush1.bf16.msra.mxu0 0
      %1979 = vmatprep.subr.bf16.mxu0 0
      %1980 = vmatpush1.bf16.msra.mxu0 0
      %1981 = vmatprep.subr.bf16.mxu0 0
      %1982 = vmatpush1.bf16.msra.mxu0 0
      %1983 = vmatprep.subr.bf16.mxu0 0
      %1984 = vmatpush1.bf16.msra.mxu0 0
      %1985 = vmatprep.subr.bf16.mxu0 0
      %1986 = vmatpush1.bf16.msra.mxu0 0
      %1987 = vmatprep.subr.bf16.mxu0 0
      %1988 = vmatpush1.bf16.msra.mxu0 0
      %1989 = vmatprep.subr.bf16.mxu0 0
      %1990 = vmatpush1.bf16.msra.mxu0 0
      %1991 = vmatprep.subr.bf16.mxu0 0
      %1992 = vmatpush1.bf16.msra.mxu0 0
      %1993 = vmatprep.subr.bf16.mxu0 0
      %1994 = vmatpush1.bf16.msra.mxu0 0
      %1995 = vmatprep.subr.bf16.mxu0 0
      %1996 = vmatpush1.bf16.msra.mxu0 0
      %1997 = vmatprep.subr.bf16.mxu0 0
      %1998 = vmatpush1.bf16.msra.mxu0 0
      %1999 = vmatprep.subr.bf16.mxu0 0
      %2000 = vmatpush1.bf16.msra.mxu0 0
      %2001 = vmatprep.subr.bf16.mxu0 0
      %2002 = vmatpush1.bf16.msra.mxu0 0
      %2003 = vmatprep.subr.bf16.mxu0 0
      %2004 = vmatpush1.bf16.msra.mxu0 0
      %2005 = vmatprep.mubr.bf16.mxu0 0
      %2006 = vmatmul.mubr.bf16.gmra.mrb[0].mxu0 %v1971
      %v2007 = vpop.f32.mrb[0].mxu0
      %v2008 = vadd.f32 0.0, %v2007
      %v2009 = vpop.f32.mrb[0].mxu0
      %v2010 = vpop.f32.mrb[0].mxu0
      %v2011 = vpop.f32.mrb[0].mxu0
      %2012 = vdwg.mxu0
      %v2013 = vadd.f32 %v1967, %v2008
      %v2014 = vld [vmem:[#allocation3 + $0x2e] sm:$0x3]
      %2015 = vrot.lane.b32.xlu0 %v1959, 32
      %v2016 = vpop.permute.xlu0 %2015
      %v2018 = vsel %vm670, %v2016, 0
      %2020 = vmatprep.subr.bf16.mxu0 0
      %2021 = vmatpush1.bf16.msra.mxu0 %v725
      %2022 = vmatprep.subr.bf16.mxu0 0
      %2023 = vmatpush1.bf16.msra.mxu0 %v726
      %2024 = vmatprep.subr.bf16.mxu0 0
      %2025 = vmatpush1.bf16.msra.mxu0 0
      %2026 = vmatprep.subr.bf16.mxu0 0
      %2027 = vmatpush1.bf16.msra.mxu0 0
      %2028 = vmatprep.subr.bf16.mxu0 0
      %2029 = vmatpush1.bf16.msra.mxu0 0
      %2030 = vmatprep.subr.bf16.mxu0 0
      %2031 = vmatpush1.bf16.msra.mxu0 0
      %2032 = vmatprep.subr.bf16.mxu0 0
      %2033 = vmatpush1.bf16.msra.mxu0 0
      %2034 = vmatprep.subr.bf16.mxu0 0
      %2035 = vmatpush1.bf16.msra.mxu0 0
      %2036 = vmatprep.subr.bf16.mxu0 0
      %2037 = vmatpush1.bf16.msra.mxu0 0
      %2038 = vmatprep.subr.bf16.mxu0 0
      %2039 = vmatpush1.bf16.msra.mxu0 0
      %2040 = vmatprep.subr.bf16.mxu0 0
      %2041 = vmatpush1.bf16.msra.mxu0 0
      %2042 = vmatprep.subr.bf16.mxu0 0
      %2043 = vmatpush1.bf16.msra.mxu0 0
      %2044 = vmatprep.subr.bf16.mxu0 0
      %2045 = vmatpush1.bf16.msra.mxu0 0
      %2046 = vmatprep.subr.bf16.mxu0 0
      %2047 = vmatpush1.bf16.msra.mxu0 0
      %2048 = vmatprep.subr.bf16.mxu0 0
      %2049 = vmatpush1.bf16.msra.mxu0 0
      %2050 = vmatprep.subr.bf16.mxu0 0
      %2051 = vmatpush1.bf16.msra.mxu0 0
      %2052 = vmatprep.mubr.bf16.mxu0 0
      %2053 = vmatmul.mubr.bf16.gmra.mrb[0].mxu0 %v2018
      %v2054 = vpop.f32.mrb[0].mxu0
      %v2055 = vadd.f32 0.0, %v2054
      %v2056 = vpop.f32.mrb[0].mxu0
      %v2057 = vpop.f32.mrb[0].mxu0
      %v2058 = vpop.f32.mrb[0].mxu0
      %2059 = vdwg.mxu0
      %v2060 = vadd.f32 %v2014, %v2055
      %v2061 = vxor.u32 %v2013, 2147483648
      %v2062 = vmul.f32 %v2061, 1.442695
      %v2063 = vpow.pop %v2062
      %v2064 = vadd.f32 %v2063, 1.0
      %v2065 = vrcp.pop %v2064
      %v2066 = vmul.f32 1.0, %v2065
      %v2067 = vtanh.pop %v2013
      %v2068 = vmul.f32 %v2066, %v1919
      %2070 = vrot.lane.b32.xlu0 %v2067, 64
      %v2071 = vpop.permute.xlu0 %2070
      %v2073 = vmul.f32 %v2066, %v2071
      %2075 = vrot.lane.b32.xlu0 %v2073, 32
      %v2076 = vpop.permute.xlu0 %2075
      %v2078 = vadd.f32 %v2068, %v2076
      %v2079 = vtanh.pop %v2078
      %2081 = vrot.lane.b32.xlu0 %v2079, 64
      %v2082 = vpop.permute.xlu0 %2081
      %v2084 = vmul.f32 %v2066, %v2082
      %v2085 = vxor.u32 %v2060, 2147483648
      %v2086 = vmul.f32 %v2085, 1.442695
      %v2087 = vpow.pop %v2086
      %v2088 = vadd.f32 %v2087, 1.0
      %v2089 = vrcp.pop %v2088
      %v2090 = vmul.f32 1.0, %v2089
      %v2091 = vtanh.pop %v2060
      %v2092 = vmul.f32 %v2090, %v1943
      %2094 = vrot.lane.b32.xlu0 %v2091, 64
      %v2095 = vpop.permute.xlu0 %2094
      %v2097 = vmul.f32 %v2090, %v2095
      %2099 = vrot.lane.b32.xlu0 %v2097, 32
      %v2100 = vpop.permute.xlu0 %2099
      %v2102 = vadd.f32 %v2092, %v2100
      %v2103 = vtanh.pop %v2102
      %2105 = vrot.lane.b32.xlu0 %v2103, 64
      %v2106 = vpop.permute.xlu0 %2105
      %v2108 = vmul.f32 %v2090, %v2106
      %v2109 = vpack.c.bf16 %v2084, %v2084
      %v2111 = vunpack.c.l.b16 %v2109
      %v2112 = vpack.c.b16 %v2111, %v2111
      %2113 = vrot.lane.b32.xlu0 %v2112, 32
      %v2114 = vpop.permute.xlu0 %2113
      %2116 = vst.msk [vmem:[%s374 + $0x8] sm:$0x1] %vm836, %v2114
      %v2117 = vpack.c.bf16 %v2108, %v2108
      %v2119 = vunpack.c.l.b16 %v2117
      %v2120 = vpack.c.b16 %v2119, %v2119
      %v2121 = vrot.slane %v2120, 5
      %2122 = vrot.lane.b32.xlu0 %v2121, 32
      %v2123 = vpop.permute.xlu0 %2122
      %2125 = vst.msk [vmem:[%s381 + $0x14] sm:$0x8] %vm846, %v2123
      %v2126 = vld [vmem:[#allocation2 + $0x12] sm:$0x3]
      %2127 = vrot.lane.b32.xlu0 %v2109, 32
      %v2128 = vpop.permute.xlu0 %2127
      %v2130 = vsel %vm670, %v2128, 0
      %2132 = vmatprep.subr.bf16.mxu0 0
      %2133 = vmatpush1.bf16.msra.mxu0 %v666
      %2134 = vmatprep.subr.bf16.mxu0 0
      %2135 = vmatpush1.bf16.msra.mxu0 %v667
      %2136 = vmatprep.subr.bf16.mxu0 0
      %2137 = vmatpush1.bf16.msra.mxu0 0
      %2138 = vmatprep.subr.bf16.mxu0 0
      %2139 = vmatpush1.bf16.msra.mxu0 0
      %2140 = vmatprep.subr.bf16.mxu0 0
      %2141 = vmatpush1.bf16.msra.mxu0 0
      %2142 = vmatprep.subr.bf16.mxu0 0
      %2143 = vmatpush1.bf16.msra.mxu0 0
      %2144 = vmatprep.subr.bf16.mxu0 0
      %2145 = vmatpush1.bf16.msra.mxu0 0
      %2146 = vmatprep.subr.bf16.mxu0 0
      %2147 = vmatpush1.bf16.msra.mxu0 0
      %2148 = vmatprep.subr.bf16.mxu0 0
      %2149 = vmatpush1.bf16.msra.mxu0 0
      %2150 = vmatprep.subr.bf16.mxu0 0
      %2151 = vmatpush1.bf16.msra.mxu0 0
      %2152 = vmatprep.subr.bf16.mxu0 0
      %2153 = vmatpush1.bf16.msra.mxu0 0
      %2154 = vmatprep.subr.bf16.mxu0 0
      %2155 = vmatpush1.bf16.msra.mxu0 0
      %2156 = vmatprep.subr.bf16.mxu0 0
      %2157 = vmatpush1.bf16.msra.mxu0 0
      %2158 = vmatprep.subr.bf16.mxu0 0
      %2159 = vmatpush1.bf16.msra.mxu0 0
      %2160 = vmatprep.subr.bf16.mxu0 0
      %2161 = vmatpush1.bf16.msra.mxu0 0
      %2162 = vmatprep.subr.bf16.mxu0 0
      %2163 = vmatpush1.bf16.msra.mxu0 0
      %2164 = vmatprep.mubr.bf16.mxu0 0
      %2165 = vmatmul.mubr.bf16.gmra.mrb[0].mxu0 %v2130
      %v2166 = vpop.f32.mrb[0].mxu0
      %v2167 = vadd.f32 0.0, %v2166
      %v2168 = vpop.f32.mrb[0].mxu0
      %v2169 = vpop.f32.mrb[0].mxu0
      %v2170 = vpop.f32.mrb[0].mxu0
      %2171 = vdwg.mxu0
      %v2172 = vadd.f32 %v2126, %v2167
      %v2173 = vld [vmem:[#allocation3 + $0x2c] sm:$0x3]
      %2174 = vrot.lane.b32.xlu0 %v2117, 32
      %v2175 = vpop.permute.xlu0 %2174
      %v2177 = vsel %vm670, %v2175, 0
      %2179 = vmatprep.subr.bf16.mxu0 0
      %2180 = vmatpush1.bf16.msra.mxu0 %v725
      %2181 = vmatprep.subr.bf16.mxu0 0
      %2182 = vmatpush1.bf16.msra.mxu0 %v726
      %2183 = vmatprep.subr.bf16.mxu0 0
      %2184 = vmatpush1.bf16.msra.mxu0 0
      %2185 = vmatprep.subr.bf16.mxu0 0
      %2186 = vmatpush1.bf16.msra.mxu0 0
      %2187 = vmatprep.subr.bf16.mxu0 0
      %2188 = vmatpush1.bf16.msra.mxu0 0
      %2189 = vmatprep.subr.bf16.mxu0 0
      %2190 = vmatpush1.bf16.msra.mxu0 0
      %2191 = vmatprep.subr.bf16.mxu0 0
      %2192 = vmatpush1.bf16.msra.mxu0 0
      %2193 = vmatprep.subr.bf16.mxu0 0
      %2194 = vmatpush1.bf16.msra.mxu0 0
      %2195 = vmatprep.subr.bf16.mxu0 0
      %2196 = vmatpush1.bf16.msra.mxu0 0
      %2197 = vmatprep.subr.bf16.mxu0 0
      %2198 = vmatpush1.bf16.msra.mxu0 0
      %2199 = vmatprep.subr.bf16.mxu0 0
      %2200 = vmatpush1.bf16.msra.mxu0 0
      %2201 = vmatprep.subr.bf16.mxu0 0
      %2202 = vmatpush1.bf16.msra.mxu0 0
      %2203 = vmatprep.subr.bf16.mxu0 0
      %2204 = vmatpush1.bf16.msra.mxu0 0
      %2205 = vmatprep.subr.bf16.mxu0 0
      %2206 = vmatpush1.bf16.msra.mxu0 0
      %2207 = vmatprep.subr.bf16.mxu0 0
      %2208 = vmatpush1.bf16.msra.mxu0 0
      %2209 = vmatprep.subr.bf16.mxu0 0
      %2210 = vmatpush1.bf16.msra.mxu0 0
      %2211 = vmatprep.mubr.bf16.mxu0 0
      %2212 = vmatmul.mubr.bf16.gmra.mrb[0].mxu0 %v2177
      %v2213 = vpop.f32.mrb[0].mxu0
      %v2214 = vadd.f32 0.0, %v2213
      %v2215 = vpop.f32.mrb[0].mxu0
      %v2216 = vpop.f32.mrb[0].mxu0
      %v2217 = vpop.f32.mrb[0].mxu0
      %2218 = vdwg.mxu0
      %v2219 = vadd.f32 %v2173, %v2214
      %v2220 = vxor.u32 %v2172, 2147483648
      %v2221 = vmul.f32 %v2220, 1.442695
      %v2222 = vpow.pop %v2221
      %v2223 = vadd.f32 %v2222, 1.0
      %v2224 = vrcp.pop %v2223
      %v2225 = vmul.f32 1.0, %v2224
      %v2226 = vtanh.pop %v2172
      %v2227 = vmul.f32 %v2225, %v2078
      %2229 = vrot.lane.b32.xlu0 %v2226, 64
      %v2230 = vpop.permute.xlu0 %2229
      %v2232 = vmul.f32 %v2225, %v2230
      %2234 = vrot.lane.b32.xlu0 %v2232, 32
      %v2235 = vpop.permute.xlu0 %2234
      %v2237 = vadd.f32 %v2227, %v2235
      %v2238 = vtanh.pop %v2237
      %2240 = vrot.lane.b32.xlu0 %v2238, 64
      %v2241 = vpop.permute.xlu0 %2240
      %v2243 = vmul.f32 %v2225, %v2241
      %v2244 = vxor.u32 %v2219, 2147483648
      %v2245 = vmul.f32 %v2244, 1.442695
      %v2246 = vpow.pop %v2245
      %v2247 = vadd.f32 %v2246, 1.0
      %v2248 = vrcp.pop %v2247
      %v2249 = vmul.f32 1.0, %v2248
      %v2250 = vtanh.pop %v2219
      %v2251 = vmul.f32 %v2249, %v2102
      %2253 = vrot.lane.b32.xlu0 %v2250, 64
      %v2254 = vpop.permute.xlu0 %2253
      %v2256 = vmul.f32 %v2249, %v2254
      %2258 = vrot.lane.b32.xlu0 %v2256, 32
      %v2259 = vpop.permute.xlu0 %2258
      %v2261 = vadd.f32 %v2251, %v2259
      %v2262 = vtanh.pop %v2261
      %2264 = vrot.lane.b32.xlu0 %v2262, 64
      %v2265 = vpop.permute.xlu0 %2264
      %v2267 = vmul.f32 %v2249, %v2265
      %v2268 = vpack.c.bf16 %v2243, %v2243
      %v2270 = vunpack.c.l.b16 %v2268
      %v2271 = vpack.c.b16 %v2270, %v2270
      %v2272 = vrot.slane %v2271, 7
      %2273 = vrot.lane.b32.xlu0 %v2272, 32
      %v2274 = vpop.permute.xlu0 %2273
      %2276 = vst.msk [vmem:[%s374 + $0x8] sm:$0x2] %vm998, %v2274
      %v2277 = vpack.c.bf16 %v2267, %v2267
      %v2279 = vunpack.c.l.b16 %v2277
      %v2280 = vpack.c.b16 %v2279, %v2279
      %v2281 = vrot.slane %v2280, 6
      %2282 = vrot.lane.b32.xlu0 %v2281, 32
      %v2283 = vpop.permute.xlu0 %2282
      %2285 = vst.msk [vmem:[%s381 + $0x14] sm:$0x4] %vm1008, %v2283
      %v2286 = vld [vmem:[#allocation2 + $0x14] sm:$0x3]
      %2287 = vrot.lane.b32.xlu0 %v2268, 32
      %v2288 = vpop.permute.xlu0 %2287
      %v2290 = vsel %vm670, %v2288, 0
      %2292 = vmatprep.subr.bf16.mxu0 0
      %2293 = vmatpush1.bf16.msra.mxu0 %v666
      %2294 = vmatprep.subr.bf16.mxu0 0
      %2295 = vmatpush1.bf16.msra.mxu0 %v667
      %2296 = vmatprep.subr.bf16.mxu0 0
      %2297 = vmatpush1.bf16.msra.mxu0 0
      %2298 = vmatprep.subr.bf16.mxu0 0
      %2299 = vmatpush1.bf16.msra.mxu0 0
      %2300 = vmatprep.subr.bf16.mxu0 0
      %2301 = vmatpush1.bf16.msra.mxu0 0
      %2302 = vmatprep.subr.bf16.mxu0 0
      %2303 = vmatpush1.bf16.msra.mxu0 0
      %2304 = vmatprep.subr.bf16.mxu0 0
      %2305 = vmatpush1.bf16.msra.mxu0 0
      %2306 = vmatprep.subr.bf16.mxu0 0
      %2307 = vmatpush1.bf16.msra.mxu0 0
      %2308 = vmatprep.subr.bf16.mxu0 0
      %2309 = vmatpush1.bf16.msra.mxu0 0
      %2310 = vmatprep.subr.bf16.mxu0 0
      %2311 = vmatpush1.bf16.msra.mxu0 0
      %2312 = vmatprep.subr.bf16.mxu0 0
      %2313 = vmatpush1.bf16.msra.mxu0 0
      %2314 = vmatprep.subr.bf16.mxu0 0
      %2315 = vmatpush1.bf16.msra.mxu0 0
      %2316 = vmatprep.subr.bf16.mxu0 0
      %2317 = vmatpush1.bf16.msra.mxu0 0
      %2318 = vmatprep.subr.bf16.mxu0 0
      %2319 = vmatpush1.bf16.msra.mxu0 0
      %2320 = vmatprep.subr.bf16.mxu0 0
      %2321 = vmatpush1.bf16.msra.mxu0 0
      %2322 = vmatprep.subr.bf16.mxu0 0
      %2323 = vmatpush1.bf16.msra.mxu0 0
      %2324 = vmatprep.mubr.bf16.mxu0 0
      %2325 = vmatmul.mubr.bf16.gmra.mrb[0].mxu0 %v2290
      %v2326 = vpop.f32.mrb[0].mxu0
      %v2327 = vadd.f32 0.0, %v2326
      %v2328 = vpop.f32.mrb[0].mxu0
      %v2329 = vpop.f32.mrb[0].mxu0
      %v2330 = vpop.f32.mrb[0].mxu0
      %2331 = vdwg.mxu0
      %v2332 = vadd.f32 %v2286, %v2327
      %v2333 = vld [vmem:[#allocation3 + $0x2a] sm:$0x3]
      %2334 = vrot.lane.b32.xlu0 %v2277, 32
      %v2335 = vpop.permute.xlu0 %2334
      %v2337 = vsel %vm670, %v2335, 0
      %2339 = vmatprep.subr.bf16.mxu0 0
      %2340 = vmatpush1.bf16.msra.mxu0 %v725
      %2341 = vmatprep.subr.bf16.mxu0 0
      %2342 = vmatpush1.bf16.msra.mxu0 %v726
      %2343 = vmatprep.subr.bf16.mxu0 0
      %2344 = vmatpush1.bf16.msra.mxu0 0
      %2345 = vmatprep.subr.bf16.mxu0 0
      %2346 = vmatpush1.bf16.msra.mxu0 0
      %2347 = vmatprep.subr.bf16.mxu0 0
      %2348 = vmatpush1.bf16.msra.mxu0 0
      %2349 = vmatprep.subr.bf16.mxu0 0
      %2350 = vmatpush1.bf16.msra.mxu0 0
      %2351 = vmatprep.subr.bf16.mxu0 0
      %2352 = vmatpush1.bf16.msra.mxu0 0
      %2353 = vmatprep.subr.bf16.mxu0 0
      %2354 = vmatpush1.bf16.msra.mxu0 0
      %2355 = vmatprep.subr.bf16.mxu0 0
      %2356 = vmatpush1.bf16.msra.mxu0 0
      %2357 = vmatprep.subr.bf16.mxu0 0
      %2358 = vmatpush1.bf16.msra.mxu0 0
      %2359 = vmatprep.subr.bf16.mxu0 0
      %2360 = vmatpush1.bf16.msra.mxu0 0
      %2361 = vmatprep.subr.bf16.mxu0 0
      %2362 = vmatpush1.bf16.msra.mxu0 0
      %2363 = vmatprep.subr.bf16.mxu0 0
      %2364 = vmatpush1.bf16.msra.mxu0 0
      %2365 = vmatprep.subr.bf16.mxu0 0
      %2366 = vmatpush1.bf16.msra.mxu0 0
      %2367 = vmatprep.subr.bf16.mxu0 0
      %2368 = vmatpush1.bf16.msra.mxu0 0
      %2369 = vmatprep.subr.bf16.mxu0 0
      %2370 = vmatpush1.bf16.msra.mxu0 0
      %2371 = vmatprep.mubr.bf16.mxu0 0
      %2372 = vmatmul.mubr.bf16.gmra.mrb[0].mxu0 %v2337
      %v2373 = vpop.f32.mrb[0].mxu0
      %v2374 = vadd.f32 0.0, %v2373
      %v2375 = vpop.f32.mrb[0].mxu0
      %v2376 = vpop.f32.mrb[0].mxu0
      %v2377 = vpop.f32.mrb[0].mxu0
      %2378 = vdwg.mxu0
      %v2379 = vadd.f32 %v2333, %v2374
      %v2380 = vxor.u32 %v2332, 2147483648
      %v2381 = vmul.f32 %v2380, 1.442695
      %v2382 = vpow.pop %v2381
      %v2383 = vadd.f32 %v2382, 1.0
      %v2384 = vrcp.pop %v2383
      %v2385 = vmul.f32 1.0, %v2384
      %v2386 = vtanh.pop %v2332
      %v2387 = vmul.f32 %v2385, %v2237
      %2389 = vrot.lane.b32.xlu0 %v2386, 64
      %v2390 = vpop.permute.xlu0 %2389
      %v2392 = vmul.f32 %v2385, %v2390
      %2394 = vrot.lane.b32.xlu0 %v2392, 32
      %v2395 = vpop.permute.xlu0 %2394
      %v2397 = vadd.f32 %v2387, %v2395
      %v2398 = vtanh.pop %v2397
      %2400 = vrot.lane.b32.xlu0 %v2398, 64
      %v2401 = vpop.permute.xlu0 %2400
      %v2403 = vmul.f32 %v2385, %v2401
      %v2404 = vxor.u32 %v2379, 2147483648
      %v2405 = vmul.f32 %v2404, 1.442695
      %v2406 = vpow.pop %v2405
      %v2407 = vadd.f32 %v2406, 1.0
      %v2408 = vrcp.pop %v2407
      %v2409 = vmul.f32 1.0, %v2408
      %v2410 = vtanh.pop %v2379
      %v2411 = vmul.f32 %v2409, %v2261
      %2413 = vrot.lane.b32.xlu0 %v2410, 64
      %v2414 = vpop.permute.xlu0 %2413
      %v2416 = vmul.f32 %v2409, %v2414
      %2418 = vrot.lane.b32.xlu0 %v2416, 32
      %v2419 = vpop.permute.xlu0 %2418
      %v2421 = vadd.f32 %v2411, %v2419
      %v2422 = vtanh.pop %v2421
      %2424 = vrot.lane.b32.xlu0 %v2422, 64
      %v2425 = vpop.permute.xlu0 %2424
      %v2427 = vmul.f32 %v2409, %v2425
      %v2428 = vpack.c.bf16 %v2403, %v2403
      %v2430 = vunpack.c.l.b16 %v2428
      %v2431 = vpack.c.b16 %v2430, %v2430
      %v2432 = vrot.slane %v2431, 6
      %2433 = vrot.lane.b32.xlu0 %v2432, 32
      %v2434 = vpop.permute.xlu0 %2433
      %2436 = vst.msk [vmem:[%s374 + $0x8] sm:$0x4] %vm1008, %v2434
      %v2437 = vpack.c.bf16 %v2427, %v2427
      %v2439 = vunpack.c.l.b16 %v2437
      %v2440 = vpack.c.b16 %v2439, %v2439
      %v2441 = vrot.slane %v2440, 7
      %2442 = vrot.lane.b32.xlu0 %v2441, 32
      %v2443 = vpop.permute.xlu0 %2442
      %2445 = vst.msk [vmem:[%s381 + $0x14] sm:$0x2] %vm998, %v2443
      %v2446 = vld [vmem:[#allocation2 + $0x16] sm:$0x3]
      %2447 = vrot.lane.b32.xlu0 %v2428, 32
      %v2448 = vpop.permute.xlu0 %2447
      %v2450 = vsel %vm670, %v2448, 0
      %2452 = vmatprep.subr.bf16.mxu0 0
      %2453 = vmatpush1.bf16.msra.mxu0 %v666
      %2454 = vmatprep.subr.bf16.mxu0 0
      %2455 = vmatpush1.bf16.msra.mxu0 %v667
      %2456 = vmatprep.subr.bf16.mxu0 0
      %2457 = vmatpush1.bf16.msra.mxu0 0
      %2458 = vmatprep.subr.bf16.mxu0 0
      %2459 = vmatpush1.bf16.msra.mxu0 0
      %2460 = vmatprep.subr.bf16.mxu0 0
      %2461 = vmatpush1.bf16.msra.mxu0 0
      %2462 = vmatprep.subr.bf16.mxu0 0
      %2463 = vmatpush1.bf16.msra.mxu0 0
      %2464 = vmatprep.subr.bf16.mxu0 0
      %2465 = vmatpush1.bf16.msra.mxu0 0
      %2466 = vmatprep.subr.bf16.mxu0 0
      %2467 = vmatpush1.bf16.msra.mxu0 0
      %2468 = vmatprep.subr.bf16.mxu0 0
      %2469 = vmatpush1.bf16.msra.mxu0 0
      %2470 = vmatprep.subr.bf16.mxu0 0
      %2471 = vmatpush1.bf16.msra.mxu0 0
      %2472 = vmatprep.subr.bf16.mxu0 0
      %2473 = vmatpush1.bf16.msra.mxu0 0
      %2474 = vmatprep.subr.bf16.mxu0 0
      %2475 = vmatpush1.bf16.msra.mxu0 0
      %2476 = vmatprep.subr.bf16.mxu0 0
      %2477 = vmatpush1.bf16.msra.mxu0 0
      %2478 = vmatprep.subr.bf16.mxu0 0
      %2479 = vmatpush1.bf16.msra.mxu0 0
      %2480 = vmatprep.subr.bf16.mxu0 0
      %2481 = vmatpush1.bf16.msra.mxu0 0
      %2482 = vmatprep.subr.bf16.mxu0 0
      %2483 = vmatpush1.bf16.msra.mxu0 0
      %2484 = vmatprep.mubr.bf16.mxu0 0
      %2485 = vmatmul.mubr.bf16.gmra.mrb[0].mxu0 %v2450
      %v2486 = vpop.f32.mrb[0].mxu0
      %v2487 = vadd.f32 0.0, %v2486
      %v2488 = vpop.f32.mrb[0].mxu0
      %v2489 = vpop.f32.mrb[0].mxu0
      %v2490 = vpop.f32.mrb[0].mxu0
      %2491 = vdwg.mxu0
      %v2492 = vadd.f32 %v2446, %v2487
      %v2493 = vld [vmem:[#allocation3 + $0x28] sm:$0x3]
      %2494 = vrot.lane.b32.xlu0 %v2437, 32
      %v2495 = vpop.permute.xlu0 %2494
      %v2497 = vsel %vm670, %v2495, 0
      %2499 = vmatprep.subr.bf16.mxu0 0
      %2500 = vmatpush1.bf16.msra.mxu0 %v725
      %2501 = vmatprep.subr.bf16.mxu0 0
      %2502 = vmatpush1.bf16.msra.mxu0 %v726
      %2503 = vmatprep.subr.bf16.mxu0 0
      %2504 = vmatpush1.bf16.msra.mxu0 0
      %2505 = vmatprep.subr.bf16.mxu0 0
      %2506 = vmatpush1.bf16.msra.mxu0 0
      %2507 = vmatprep.subr.bf16.mxu0 0
      %2508 = vmatpush1.bf16.msra.mxu0 0
      %2509 = vmatprep.subr.bf16.mxu0 0
      %2510 = vmatpush1.bf16.msra.mxu0 0
      %2511 = vmatprep.subr.bf16.mxu0 0
      %2512 = vmatpush1.bf16.msra.mxu0 0
      %2513 = vmatprep.subr.bf16.mxu0 0
      %2514 = vmatpush1.bf16.msra.mxu0 0
      %2515 = vmatprep.subr.bf16.mxu0 0
      %2516 = vmatpush1.bf16.msra.mxu0 0
      %2517 = vmatprep.subr.bf16.mxu0 0
      %2518 = vmatpush1.bf16.msra.mxu0 0
      %2519 = vmatprep.subr.bf16.mxu0 0
      %2520 = vmatpush1.bf16.msra.mxu0 0
      %2521 = vmatprep.subr.bf16.mxu0 0
      %2522 = vmatpush1.bf16.msra.mxu0 0
      %2523 = vmatprep.subr.bf16.mxu0 0
      %2524 = vmatpush1.bf16.msra.mxu0 0
      %2525 = vmatprep.subr.bf16.mxu0 0
      %2526 = vmatpush1.bf16.msra.mxu0 0
      %2527 = vmatprep.subr.bf16.mxu0 0
      %2528 = vmatpush1.bf16.msra.mxu0 0
      %2529 = vmatprep.subr.bf16.mxu0 0
      %2530 = vmatpush1.bf16.msra.mxu0 0
      %2531 = vmatprep.mubr.bf16.mxu0 0
      %2532 = vmatmul.mubr.bf16.gmra.mrb[0].mxu0 %v2497
      %v2533 = vpop.f32.mrb[0].mxu0
      %v2534 = vadd.f32 0.0, %v2533
      %v2535 = vpop.f32.mrb[0].mxu0
      %v2536 = vpop.f32.mrb[0].mxu0
      %v2537 = vpop.f32.mrb[0].mxu0
      %2538 = vdwg.mxu0
      %v2539 = vadd.f32 %v2493, %v2534
      %v2540 = vxor.u32 %v2492, 2147483648
      %v2541 = vmul.f32 %v2540, 1.442695
      %v2542 = vpow.pop %v2541
      %v2543 = vadd.f32 %v2542, 1.0
      %v2544 = vrcp.pop %v2543
      %v2545 = vmul.f32 1.0, %v2544
      %v2546 = vtanh.pop %v2492
      %v2547 = vmul.f32 %v2545, %v2397
      %2549 = vrot.lane.b32.xlu0 %v2546, 64
      %v2550 = vpop.permute.xlu0 %2549
      %v2552 = vmul.f32 %v2545, %v2550
      %2554 = vrot.lane.b32.xlu0 %v2552, 32
      %v2555 = vpop.permute.xlu0 %2554
      %v2557 = vadd.f32 %v2547, %v2555
      %v2558 = vtanh.pop %v2557
      %2560 = vrot.lane.b32.xlu0 %v2558, 64
      %v2561 = vpop.permute.xlu0 %2560
      %v2563 = vmul.f32 %v2545, %v2561
      %v2564 = vxor.u32 %v2539, 2147483648
      %v2565 = vmul.f32 %v2564, 1.442695
      %v2566 = vpow.pop %v2565
      %v2567 = vadd.f32 %v2566, 1.0
      %v2568 = vrcp.pop %v2567
      %v2569 = vmul.f32 1.0, %v2568
      %v2570 = vtanh.pop %v2539
      %v2571 = vmul.f32 %v2569, %v2421
      %2573 = vrot.lane.b32.xlu0 %v2570, 64
      %v2574 = vpop.permute.xlu0 %2573
      %v2576 = vmul.f32 %v2569, %v2574
      %2578 = vrot.lane.b32.xlu0 %v2576, 32
      %v2579 = vpop.permute.xlu0 %2578
      %v2581 = vadd.f32 %v2571, %v2579
      %v2582 = vtanh.pop %v2581
      %2584 = vrot.lane.b32.xlu0 %v2582, 64
      %v2585 = vpop.permute.xlu0 %2584
      %v2587 = vmul.f32 %v2569, %v2585
      %v2588 = vpack.c.bf16 %v2563, %v2563
      %v2590 = vunpack.c.l.b16 %v2588
      %v2591 = vpack.c.b16 %v2590, %v2590
      %v2592 = vrot.slane %v2591, 5
      %2593 = vrot.lane.b32.xlu0 %v2592, 32
      %v2594 = vpop.permute.xlu0 %2593
      %2596 = vst.msk [vmem:[%s374 + $0x8] sm:$0x8] %vm846, %v2594
      %v2597 = vpack.c.bf16 %v2587, %v2587
      %v2599 = vunpack.c.l.b16 %v2597
      %v2600 = vpack.c.b16 %v2599, %v2599
      %2601 = vrot.lane.b32.xlu0 %v2600, 32
      %v2602 = vpop.permute.xlu0 %2601
      %2604 = vst.msk [vmem:[%s381 + $0x14] sm:$0x1] %vm836, %v2602
      %v2605 = vld [vmem:[#allocation2 + $0x18] sm:$0x3]
      %2606 = vrot.lane.b32.xlu0 %v2588, 32
      %v2607 = vpop.permute.xlu0 %2606
      %v2609 = vsel %vm670, %v2607, 0
      %2611 = vmatprep.subr.bf16.mxu0 0
      %2612 = vmatpush1.bf16.msra.mxu0 %v666
      %2613 = vmatprep.subr.bf16.mxu0 0
      %2614 = vmatpush1.bf16.msra.mxu0 %v667
      %2615 = vmatprep.subr.bf16.mxu0 0
      %2616 = vmatpush1.bf16.msra.mxu0 0
      %2617 = vmatprep.subr.bf16.mxu0 0
      %2618 = vmatpush1.bf16.msra.mxu0 0
      %2619 = vmatprep.subr.bf16.mxu0 0
      %2620 = vmatpush1.bf16.msra.mxu0 0
      %2621 = vmatprep.subr.bf16.mxu0 0
      %2622 = vmatpush1.bf16.msra.mxu0 0
      %2623 = vmatprep.subr.bf16.mxu0 0
      %2624 = vmatpush1.bf16.msra.mxu0 0
      %2625 = vmatprep.subr.bf16.mxu0 0
      %2626 = vmatpush1.bf16.msra.mxu0 0
      %2627 = vmatprep.subr.bf16.mxu0 0
      %2628 = vmatpush1.bf16.msra.mxu0 0
      %2629 = vmatprep.subr.bf16.mxu0 0
      %2630 = vmatpush1.bf16.msra.mxu0 0
      %2631 = vmatprep.subr.bf16.mxu0 0
      %2632 = vmatpush1.bf16.msra.mxu0 0
      %2633 = vmatprep.subr.bf16.mxu0 0
      %2634 = vmatpush1.bf16.msra.mxu0 0
      %2635 = vmatprep.subr.bf16.mxu0 0
      %2636 = vmatpush1.bf16.msra.mxu0 0
      %2637 = vmatprep.subr.bf16.mxu0 0
      %2638 = vmatpush1.bf16.msra.mxu0 0
      %2639 = vmatprep.subr.bf16.mxu0 0
      %2640 = vmatpush1.bf16.msra.mxu0 0
      %2641 = vmatprep.subr.bf16.mxu0 0
      %2642 = vmatpush1.bf16.msra.mxu0 0
      %2643 = vmatprep.mubr.bf16.mxu0 0
      %2644 = vmatmul.mubr.bf16.gmra.mrb[0].mxu0 %v2609
      %v2645 = vpop.f32.mrb[0].mxu0
      %v2646 = vadd.f32 0.0, %v2645
      %v2647 = vpop.f32.mrb[0].mxu0
      %v2648 = vpop.f32.mrb[0].mxu0
      %v2649 = vpop.f32.mrb[0].mxu0
      %2650 = vdwg.mxu0
      %v2651 = vadd.f32 %v2605, %v2646
      %v2652 = vld [vmem:[#allocation3 + $0x26] sm:$0x3]
      %2653 = vrot.lane.b32.xlu0 %v2597, 32
      %v2654 = vpop.permute.xlu0 %2653
      %v2656 = vsel %vm670, %v2654, 0
      %2658 = vmatprep.subr.bf16.mxu0 0
      %2659 = vmatpush1.bf16.msra.mxu0 %v725
      %2660 = vmatprep.subr.bf16.mxu0 0
      %2661 = vmatpush1.bf16.msra.mxu0 %v726
      %2662 = vmatprep.subr.bf16.mxu0 0
      %2663 = vmatpush1.bf16.msra.mxu0 0
      %2664 = vmatprep.subr.bf16.mxu0 0
      %2665 = vmatpush1.bf16.msra.mxu0 0
      %2666 = vmatprep.subr.bf16.mxu0 0
      %2667 = vmatpush1.bf16.msra.mxu0 0
      %2668 = vmatprep.subr.bf16.mxu0 0
      %2669 = vmatpush1.bf16.msra.mxu0 0
      %2670 = vmatprep.subr.bf16.mxu0 0
      %2671 = vmatpush1.bf16.msra.mxu0 0
      %2672 = vmatprep.subr.bf16.mxu0 0
      %2673 = vmatpush1.bf16.msra.mxu0 0
      %2674 = vmatprep.subr.bf16.mxu0 0
      %2675 = vmatpush1.bf16.msra.mxu0 0
      %2676 = vmatprep.subr.bf16.mxu0 0
      %2677 = vmatpush1.bf16.msra.mxu0 0
      %2678 = vmatprep.subr.bf16.mxu0 0
      %2679 = vmatpush1.bf16.msra.mxu0 0
      %2680 = vmatprep.subr.bf16.mxu0 0
      %2681 = vmatpush1.bf16.msra.mxu0 0
      %2682 = vmatprep.subr.bf16.mxu0 0
      %2683 = vmatpush1.bf16.msra.mxu0 0
      %2684 = vmatprep.subr.bf16.mxu0 0
      %2685 = vmatpush1.bf16.msra.mxu0 0
      %2686 = vmatprep.subr.bf16.mxu0 0
      %2687 = vmatpush1.bf16.msra.mxu0 0
      %2688 = vmatprep.subr.bf16.mxu0 0
      %2689 = vmatpush1.bf16.msra.mxu0 0
      %2690 = vmatprep.mubr.bf16.mxu0 0
      %2691 = vmatmul.mubr.bf16.gmra.mrb[0].mxu0 %v2656
      %v2692 = vpop.f32.mrb[0].mxu0
      %v2693 = vadd.f32 0.0, %v2692
      %v2694 = vpop.f32.mrb[0].mxu0
      %v2695 = vpop.f32.mrb[0].mxu0
      %v2696 = vpop.f32.mrb[0].mxu0
      %2697 = vdwg.mxu0
      %v2698 = vadd.f32 %v2652, %v2693
      %v2699 = vxor.u32 %v2651, 2147483648
      %v2700 = vmul.f32 %v2699, 1.442695
      %v2701 = vpow.pop %v2700
      %v2702 = vadd.f32 %v2701, 1.0
      %v2703 = vrcp.pop %v2702
      %v2704 = vmul.f32 1.0, %v2703
      %v2705 = vtanh.pop %v2651
      %v2706 = vmul.f32 %v2704, %v2557
      %2708 = vrot.lane.b32.xlu0 %v2705, 64
      %v2709 = vpop.permute.xlu0 %2708
      %v2711 = vmul.f32 %v2704, %v2709
      %2713 = vrot.lane.b32.xlu0 %v2711, 32
      %v2714 = vpop.permute.xlu0 %2713
      %v2716 = vadd.f32 %v2706, %v2714
      %v2717 = vtanh.pop %v2716
      %2719 = vrot.lane.b32.xlu0 %v2717, 64
      %v2720 = vpop.permute.xlu0 %2719
      %v2722 = vmul.f32 %v2704, %v2720
      %v2723 = vxor.u32 %v2698, 2147483648
      %v2724 = vmul.f32 %v2723, 1.442695
      %v2725 = vpow.pop %v2724
      %v2726 = vadd.f32 %v2725, 1.0
      %v2727 = vrcp.pop %v2726
      %v2728 = vmul.f32 1.0, %v2727
      %v2729 = vtanh.pop %v2698
      %v2730 = vmul.f32 %v2728, %v2581
      %2732 = vrot.lane.b32.xlu0 %v2729, 64
      %v2733 = vpop.permute.xlu0 %2732
      %v2735 = vmul.f32 %v2728, %v2733
      %2737 = vrot.lane.b32.xlu0 %v2735, 32
      %v2738 = vpop.permute.xlu0 %2737
      %v2740 = vadd.f32 %v2730, %v2738
      %v2741 = vtanh.pop %v2740
      %2743 = vrot.lane.b32.xlu0 %v2741, 64
      %v2744 = vpop.permute.xlu0 %2743
      %v2746 = vmul.f32 %v2728, %v2744
      %v2747 = vpack.c.bf16 %v2722, %v2722
      %v2749 = vunpack.c.l.b16 %v2747
      %v2750 = vpack.c.b16 %v2749, %v2749
      %2751 = vrot.lane.b32.xlu0 %v2750, 32
      %v2752 = vpop.permute.xlu0 %2751
      %2754 = vst.msk [vmem:[%s374 + $0xc] sm:$0x1] %vm836, %v2752
      %v2755 = vpack.c.bf16 %v2746, %v2746
      %v2757 = vunpack.c.l.b16 %v2755
      %v2758 = vpack.c.b16 %v2757, %v2757
      %v2759 = vrot.slane %v2758, 5
      %2760 = vrot.lane.b32.xlu0 %v2759, 32
      %v2761 = vpop.permute.xlu0 %2760
      %2763 = vst.msk [vmem:[%s381 + $0x10] sm:$0x8] %vm846, %v2761
      %v2764 = vld [vmem:[#allocation2 + $0x1a] sm:$0x3]
      %2765 = vrot.lane.b32.xlu0 %v2747, 32
      %v2766 = vpop.permute.xlu0 %2765
      %v2768 = vsel %vm670, %v2766, 0
      %2770 = vmatprep.subr.bf16.mxu0 0
      %2771 = vmatpush1.bf16.msra.mxu0 %v666
      %2772 = vmatprep.subr.bf16.mxu0 0
      %2773 = vmatpush1.bf16.msra.mxu0 %v667
      %2774 = vmatprep.subr.bf16.mxu0 0
      %2775 = vmatpush1.bf16.msra.mxu0 0
      %2776 = vmatprep.subr.bf16.mxu0 0
      %2777 = vmatpush1.bf16.msra.mxu0 0
      %2778 = vmatprep.subr.bf16.mxu0 0
      %2779 = vmatpush1.bf16.msra.mxu0 0
      %2780 = vmatprep.subr.bf16.mxu0 0
      %2781 = vmatpush1.bf16.msra.mxu0 0
      %2782 = vmatprep.subr.bf16.mxu0 0
      %2783 = vmatpush1.bf16.msra.mxu0 0
      %2784 = vmatprep.subr.bf16.mxu0 0
      %2785 = vmatpush1.bf16.msra.mxu0 0
      %2786 = vmatprep.subr.bf16.mxu0 0
      %2787 = vmatpush1.bf16.msra.mxu0 0
      %2788 = vmatprep.subr.bf16.mxu0 0
      %2789 = vmatpush1.bf16.msra.mxu0 0
      %2790 = vmatprep.subr.bf16.mxu0 0
      %2791 = vmatpush1.bf16.msra.mxu0 0
      %2792 = vmatprep.subr.bf16.mxu0 0
      %2793 = vmatpush1.bf16.msra.mxu0 0
      %2794 = vmatprep.subr.bf16.mxu0 0
      %2795 = vmatpush1.bf16.msra.mxu0 0
      %2796 = vmatprep.subr.bf16.mxu0 0
      %2797 = vmatpush1.bf16.msra.mxu0 0
      %2798 = vmatprep.subr.bf16.mxu0 0
      %2799 = vmatpush1.bf16.msra.mxu0 0
      %2800 = vmatprep.subr.bf16.mxu0 0
      %2801 = vmatpush1.bf16.msra.mxu0 0
      %2802 = vmatprep.mubr.bf16.mxu0 0
      %2803 = vmatmul.mubr.bf16.gmra.mrb[0].mxu0 %v2768
      %v2804 = vpop.f32.mrb[0].mxu0
      %v2805 = vadd.f32 0.0, %v2804
      %v2806 = vpop.f32.mrb[0].mxu0
      %v2807 = vpop.f32.mrb[0].mxu0
      %v2808 = vpop.f32.mrb[0].mxu0
      %2809 = vdwg.mxu0
      %v2810 = vadd.f32 %v2764, %v2805
      %v2811 = vld [vmem:[#allocation3 + $0x24] sm:$0x3]
      %2812 = vrot.lane.b32.xlu0 %v2755, 32
      %v2813 = vpop.permute.xlu0 %2812
      %v2815 = vsel %vm670, %v2813, 0
      %2817 = vmatprep.subr.bf16.mxu0 0
      %2818 = vmatpush1.bf16.msra.mxu0 %v725
      %2819 = vmatprep.subr.bf16.mxu0 0
      %2820 = vmatpush1.bf16.msra.mxu0 %v726
      %2821 = vmatprep.subr.bf16.mxu0 0
      %2822 = vmatpush1.bf16.msra.mxu0 0
      %2823 = vmatprep.subr.bf16.mxu0 0
      %2824 = vmatpush1.bf16.msra.mxu0 0
      %2825 = vmatprep.subr.bf16.mxu0 0
      %2826 = vmatpush1.bf16.msra.mxu0 0
      %2827 = vmatprep.subr.bf16.mxu0 0
      %2828 = vmatpush1.bf16.msra.mxu0 0
      %2829 = vmatprep.subr.bf16.mxu0 0
      %2830 = vmatpush1.bf16.msra.mxu0 0
      %2831 = vmatprep.subr.bf16.mxu0 0
      %2832 = vmatpush1.bf16.msra.mxu0 0
      %2833 = vmatprep.subr.bf16.mxu0 0
      %2834 = vmatpush1.bf16.msra.mxu0 0
      %2835 = vmatprep.subr.bf16.mxu0 0
      %2836 = vmatpush1.bf16.msra.mxu0 0
      %2837 = vmatprep.subr.bf16.mxu0 0
      %2838 = vmatpush1.bf16.msra.mxu0 0
      %2839 = vmatprep.subr.bf16.mxu0 0
      %2840 = vmatpush1.bf16.msra.mxu0 0
      %2841 = vmatprep.subr.bf16.mxu0 0
      %2842 = vmatpush1.bf16.msra.mxu0 0
      %2843 = vmatprep.subr.bf16.mxu0 0
      %2844 = vmatpush1.bf16.msra.mxu0 0
      %2845 = vmatprep.subr.bf16.mxu0 0
      %2846 = vmatpush1.bf16.msra.mxu0 0
      %2847 = vmatprep.subr.bf16.mxu0 0
      %2848 = vmatpush1.bf16.msra.mxu0 0
      %2849 = vmatprep.mubr.bf16.mxu0 0
      %2850 = vmatmul.mubr.bf16.gmra.mrb[0].mxu0 %v2815
      %v2851 = vpop.f32.mrb[0].mxu0
      %v2852 = vadd.f32 0.0, %v2851
      %v2853 = vpop.f32.mrb[0].mxu0
      %v2854 = vpop.f32.mrb[0].mxu0
      %v2855 = vpop.f32.mrb[0].mxu0
      %2856 = vdwg.mxu0
      %v2857 = vadd.f32 %v2811, %v2852
      %v2858 = vxor.u32 %v2810, 2147483648
      %v2859 = vmul.f32 %v2858, 1.442695
      %v2860 = vpow.pop %v2859
      %v2861 = vadd.f32 %v2860, 1.0
      %v2862 = vrcp.pop %v2861
      %v2863 = vmul.f32 1.0, %v2862
      %v2864 = vtanh.pop %v2810
      %v2865 = vmul.f32 %v2863, %v2716
      %2867 = vrot.lane.b32.xlu0 %v2864, 64
      %v2868 = vpop.permute.xlu0 %2867
      %v2870 = vmul.f32 %v2863, %v2868
      %2872 = vrot.lane.b32.xlu0 %v2870, 32
      %v2873 = vpop.permute.xlu0 %2872
      %v2875 = vadd.f32 %v2865, %v2873
      %v2876 = vtanh.pop %v2875
      %2878 = vrot.lane.b32.xlu0 %v2876, 64
      %v2879 = vpop.permute.xlu0 %2878
      %v2881 = vmul.f32 %v2863, %v2879
      %v2882 = vxor.u32 %v2857, 2147483648
      %v2883 = vmul.f32 %v2882, 1.442695
      %v2884 = vpow.pop %v2883
      %v2885 = vadd.f32 %v2884, 1.0
      %v2886 = vrcp.pop %v2885
      %v2887 = vmul.f32 1.0, %v2886
      %v2888 = vtanh.pop %v2857
      %v2889 = vmul.f32 %v2887, %v2740
      %2891 = vrot.lane.b32.xlu0 %v2888, 64
      %v2892 = vpop.permute.xlu0 %2891
      %v2894 = vmul.f32 %v2887, %v2892
      %2896 = vrot.lane.b32.xlu0 %v2894, 32
      %v2897 = vpop.permute.xlu0 %2896
      %v2899 = vadd.f32 %v2889, %v2897
      %v2900 = vtanh.pop %v2899
      %2902 = vrot.lane.b32.xlu0 %v2900, 64
      %v2903 = vpop.permute.xlu0 %2902
      %v2905 = vmul.f32 %v2887, %v2903
      %v2906 = vpack.c.bf16 %v2881, %v2881
      %v2908 = vunpack.c.l.b16 %v2906
      %v2909 = vpack.c.b16 %v2908, %v2908
      %v2910 = vrot.slane %v2909, 7
      %2911 = vrot.lane.b32.xlu0 %v2910, 32
      %v2912 = vpop.permute.xlu0 %2911
      %2914 = vst.msk [vmem:[%s374 + $0xc] sm:$0x2] %vm998, %v2912
      %v2915 = vpack.c.bf16 %v2905, %v2905
      %v2917 = vunpack.c.l.b16 %v2915
      %v2918 = vpack.c.b16 %v2917, %v2917
      %v2919 = vrot.slane %v2918, 6
      %2920 = vrot.lane.b32.xlu0 %v2919, 32
      %v2921 = vpop.permute.xlu0 %2920
      %2923 = vst.msk [vmem:[%s381 + $0x10] sm:$0x4] %vm1008, %v2921
      %v2924 = vld [vmem:[#allocation2 + $0x1c] sm:$0x3]
      %2925 = vrot.lane.b32.xlu0 %v2906, 32
      %v2926 = vpop.permute.xlu0 %2925
      %v2928 = vsel %vm670, %v2926, 0
      %2930 = vmatprep.subr.bf16.mxu0 0
      %2931 = vmatpush1.bf16.msra.mxu0 %v666
      %2932 = vmatprep.subr.bf16.mxu0 0
      %2933 = vmatpush1.bf16.msra.mxu0 %v667
      %2934 = vmatprep.subr.bf16.mxu0 0
      %2935 = vmatpush1.bf16.msra.mxu0 0
      %2936 = vmatprep.subr.bf16.mxu0 0
      %2937 = vmatpush1.bf16.msra.mxu0 0
      %2938 = vmatprep.subr.bf16.mxu0 0
      %2939 = vmatpush1.bf16.msra.mxu0 0
      %2940 = vmatprep.subr.bf16.mxu0 0
      %2941 = vmatpush1.bf16.msra.mxu0 0
      %2942 = vmatprep.subr.bf16.mxu0 0
      %2943 = vmatpush1.bf16.msra.mxu0 0
      %2944 = vmatprep.subr.bf16.mxu0 0
      %2945 = vmatpush1.bf16.msra.mxu0 0
      %2946 = vmatprep.subr.bf16.mxu0 0
      %2947 = vmatpush1.bf16.msra.mxu0 0
      %2948 = vmatprep.subr.bf16.mxu0 0
      %2949 = vmatpush1.bf16.msra.mxu0 0
      %2950 = vmatprep.subr.bf16.mxu0 0
      %2951 = vmatpush1.bf16.msra.mxu0 0
      %2952 = vmatprep.subr.bf16.mxu0 0
      %2953 = vmatpush1.bf16.msra.mxu0 0
      %2954 = vmatprep.subr.bf16.mxu0 0
      %2955 = vmatpush1.bf16.msra.mxu0 0
      %2956 = vmatprep.subr.bf16.mxu0 0
      %2957 = vmatpush1.bf16.msra.mxu0 0
      %2958 = vmatprep.subr.bf16.mxu0 0
      %2959 = vmatpush1.bf16.msra.mxu0 0
      %2960 = vmatprep.subr.bf16.mxu0 0
      %2961 = vmatpush1.bf16.msra.mxu0 0
      %2962 = vmatprep.mubr.bf16.mxu0 0
      %2963 = vmatmul.mubr.bf16.gmra.mrb[0].mxu0 %v2928
      %v2964 = vpop.f32.mrb[0].mxu0
      %v2965 = vadd.f32 0.0, %v2964
      %v2966 = vpop.f32.mrb[0].mxu0
      %v2967 = vpop.f32.mrb[0].mxu0
      %v2968 = vpop.f32.mrb[0].mxu0
      %2969 = vdwg.mxu0
      %v2970 = vadd.f32 %v2924, %v2965
      %v2971 = vld [vmem:[#allocation3 + $0x22] sm:$0x3]
      %2972 = vrot.lane.b32.xlu0 %v2915, 32
      %v2973 = vpop.permute.xlu0 %2972
      %v2975 = vsel %vm670, %v2973, 0
      %2977 = vmatprep.subr.bf16.mxu0 0
      %2978 = vmatpush1.bf16.msra.mxu0 %v725
      %2979 = vmatprep.subr.bf16.mxu0 0
      %2980 = vmatpush1.bf16.msra.mxu0 %v726
      %2981 = vmatprep.subr.bf16.mxu0 0
      %2982 = vmatpush1.bf16.msra.mxu0 0
      %2983 = vmatprep.subr.bf16.mxu0 0
      %2984 = vmatpush1.bf16.msra.mxu0 0
      %2985 = vmatprep.subr.bf16.mxu0 0
      %2986 = vmatpush1.bf16.msra.mxu0 0
      %2987 = vmatprep.subr.bf16.mxu0 0
      %2988 = vmatpush1.bf16.msra.mxu0 0
      %2989 = vmatprep.subr.bf16.mxu0 0
      %2990 = vmatpush1.bf16.msra.mxu0 0
      %2991 = vmatprep.subr.bf16.mxu0 0
      %2992 = vmatpush1.bf16.msra.mxu0 0
      %2993 = vmatprep.subr.bf16.mxu0 0
      %2994 = vmatpush1.bf16.msra.mxu0 0
      %2995 = vmatprep.subr.bf16.mxu0 0
      %2996 = vmatpush1.bf16.msra.mxu0 0
      %2997 = vmatprep.subr.bf16.mxu0 0
      %2998 = vmatpush1.bf16.msra.mxu0 0
      %2999 = vmatprep.subr.bf16.mxu0 0
      %3000 = vmatpush1.bf16.msra.mxu0 0
      %3001 = vmatprep.subr.bf16.mxu0 0
      %3002 = vmatpush1.bf16.msra.mxu0 0
      %3003 = vmatprep.subr.bf16.mxu0 0
      %3004 = vmatpush1.bf16.msra.mxu0 0
      %3005 = vmatprep.subr.bf16.mxu0 0
      %3006 = vmatpush1.bf16.msra.mxu0 0
      %3007 = vmatprep.subr.bf16.mxu0 0
      %3008 = vmatpush1.bf16.msra.mxu0 0
      %3009 = vmatprep.mubr.bf16.mxu0 0
      %3010 = vmatmul.mubr.bf16.gmra.mrb[0].mxu0 %v2975
      %v3011 = vpop.f32.mrb[0].mxu0
      %v3012 = vadd.f32 0.0, %v3011
      %v3013 = vpop.f32.mrb[0].mxu0
      %v3014 = vpop.f32.mrb[0].mxu0
      %v3015 = vpop.f32.mrb[0].mxu0
      %3016 = vdwg.mxu0
      %v3017 = vadd.f32 %v2971, %v3012
      %v3018 = vxor.u32 %v2970, 2147483648
      %v3019 = vmul.f32 %v3018, 1.442695
      %v3020 = vpow.pop %v3019
      %v3021 = vadd.f32 %v3020, 1.0
      %v3022 = vrcp.pop %v3021
      %v3023 = vmul.f32 1.0, %v3022
      %v3024 = vtanh.pop %v2970
      %v3025 = vmul.f32 %v3023, %v2875
      %3027 = vrot.lane.b32.xlu0 %v3024, 64
      %v3028 = vpop.permute.xlu0 %3027
      %v3030 = vmul.f32 %v3023, %v3028
      %3032 = vrot.lane.b32.xlu0 %v3030, 32
      %v3033 = vpop.permute.xlu0 %3032
      %v3035 = vadd.f32 %v3025, %v3033
      %v3036 = vtanh.pop %v3035
      %3038 = vrot.lane.b32.xlu0 %v3036, 64
      %v3039 = vpop.permute.xlu0 %3038
      %v3041 = vmul.f32 %v3023, %v3039
      %v3042 = vxor.u32 %v3017, 2147483648
      %v3043 = vmul.f32 %v3042, 1.442695
      %v3044 = vpow.pop %v3043
      %v3045 = vadd.f32 %v3044, 1.0
      %v3046 = vrcp.pop %v3045
      %v3047 = vmul.f32 1.0, %v3046
      %v3048 = vtanh.pop %v3017
      %v3049 = vmul.f32 %v3047, %v2899
      %3051 = vrot.lane.b32.xlu0 %v3048, 64
      %v3052 = vpop.permute.xlu0 %3051
      %v3054 = vmul.f32 %v3047, %v3052
      %3056 = vrot.lane.b32.xlu0 %v3054, 32
      %v3057 = vpop.permute.xlu0 %3056
      %v3059 = vadd.f32 %v3049, %v3057
      %v3060 = vtanh.pop %v3059
      %3062 = vrot.lane.b32.xlu0 %v3060, 64
      %v3063 = vpop.permute.xlu0 %3062
      %v3065 = vmul.f32 %v3047, %v3063
      %v3066 = vpack.c.bf16 %v3041, %v3041
      %v3068 = vunpack.c.l.b16 %v3066
      %v3069 = vpack.c.b16 %v3068, %v3068
      %v3070 = vrot.slane %v3069, 6
      %3071 = vrot.lane.b32.xlu0 %v3070, 32
      %v3072 = vpop.permute.xlu0 %3071
      %3074 = vst.msk [vmem:[%s374 + $0xc] sm:$0x4] %vm1008, %v3072
      %v3075 = vpack.c.bf16 %v3065, %v3065
      %v3077 = vunpack.c.l.b16 %v3075
      %v3078 = vpack.c.b16 %v3077, %v3077
      %v3079 = vrot.slane %v3078, 7
      %3080 = vrot.lane.b32.xlu0 %v3079, 32
      %v3081 = vpop.permute.xlu0 %3080
      %3083 = vst.msk [vmem:[%s381 + $0x10] sm:$0x2] %vm998, %v3081
      %v3084 = vld [vmem:[#allocation2 + $0x1e] sm:$0x3]
      %3085 = vrot.lane.b32.xlu0 %v3066, 32
      %v3086 = vpop.permute.xlu0 %3085
      %v3088 = vsel %vm670, %v3086, 0
      %3090 = vmatprep.subr.bf16.mxu0 0
      %3091 = vmatpush1.bf16.msra.mxu0 %v666
      %3092 = vmatprep.subr.bf16.mxu0 0
      %3093 = vmatpush1.bf16.msra.mxu0 %v667
      %3094 = vmatprep.subr.bf16.mxu0 0
      %3095 = vmatpush1.bf16.msra.mxu0 0
      %3096 = vmatprep.subr.bf16.mxu0 0
      %3097 = vmatpush1.bf16.msra.mxu0 0
      %3098 = vmatprep.subr.bf16.mxu0 0
      %3099 = vmatpush1.bf16.msra.mxu0 0
      %3100 = vmatprep.subr.bf16.mxu0 0
      %3101 = vmatpush1.bf16.msra.mxu0 0
      %3102 = vmatprep.subr.bf16.mxu0 0
      %3103 = vmatpush1.bf16.msra.mxu0 0
      %3104 = vmatprep.subr.bf16.mxu0 0
      %3105 = vmatpush1.bf16.msra.mxu0 0
      %3106 = vmatprep.subr.bf16.mxu0 0
      %3107 = vmatpush1.bf16.msra.mxu0 0
      %3108 = vmatprep.subr.bf16.mxu0 0
      %3109 = vmatpush1.bf16.msra.mxu0 0
      %3110 = vmatprep.subr.bf16.mxu0 0
      %3111 = vmatpush1.bf16.msra.mxu0 0
      %3112 = vmatprep.subr.bf16.mxu0 0
      %3113 = vmatpush1.bf16.msra.mxu0 0
      %3114 = vmatprep.subr.bf16.mxu0 0
      %3115 = vmatpush1.bf16.msra.mxu0 0
      %3116 = vmatprep.subr.bf16.mxu0 0
      %3117 = vmatpush1.bf16.msra.mxu0 0
      %3118 = vmatprep.subr.bf16.mxu0 0
      %3119 = vmatpush1.bf16.msra.mxu0 0
      %3120 = vmatprep.subr.bf16.mxu0 0
      %3121 = vmatpush1.bf16.msra.mxu0 0
      %3122 = vmatprep.mubr.bf16.mxu0 0
      %3123 = vmatmul.mubr.bf16.gmra.mrb[0].mxu0 %v3088
      %v3124 = vpop.f32.mrb[0].mxu0
      %v3125 = vadd.f32 0.0, %v3124
      %v3126 = vpop.f32.mrb[0].mxu0
      %v3127 = vpop.f32.mrb[0].mxu0
      %v3128 = vpop.f32.mrb[0].mxu0
      %3129 = vdwg.mxu0
      %v3130 = vadd.f32 %v3084, %v3125
      %v3131 = vld [vmem:[#allocation3 + $0x20] sm:$0x3]
      %3132 = vrot.lane.b32.xlu0 %v3075, 32
      %v3133 = vpop.permute.xlu0 %3132
      %v3135 = vsel %vm670, %v3133, 0
      %3137 = vmatprep.subr.bf16.mxu0 0
      %3138 = vmatpush1.bf16.msra.mxu0 %v725
      %3139 = vmatprep.subr.bf16.mxu0 0
      %3140 = vmatpush1.bf16.msra.mxu0 %v726
      %3141 = vmatprep.subr.bf16.mxu0 0
      %3142 = vmatpush1.bf16.msra.mxu0 0
      %3143 = vmatprep.subr.bf16.mxu0 0
      %3144 = vmatpush1.bf16.msra.mxu0 0
      %3145 = vmatprep.subr.bf16.mxu0 0
      %3146 = vmatpush1.bf16.msra.mxu0 0
      %3147 = vmatprep.subr.bf16.mxu0 0
      %3148 = vmatpush1.bf16.msra.mxu0 0
      %3149 = vmatprep.subr.bf16.mxu0 0
      %3150 = vmatpush1.bf16.msra.mxu0 0
      %3151 = vmatprep.subr.bf16.mxu0 0
      %3152 = vmatpush1.bf16.msra.mxu0 0
      %3153 = vmatprep.subr.bf16.mxu0 0
      %3154 = vmatpush1.bf16.msra.mxu0 0
      %3155 = vmatprep.subr.bf16.mxu0 0
      %3156 = vmatpush1.bf16.msra.mxu0 0
      %3157 = vmatprep.subr.bf16.mxu0 0
      %3158 = vmatpush1.bf16.msra.mxu0 0
      %3159 = vmatprep.subr.bf16.mxu0 0
      %3160 = vmatpush1.bf16.msra.mxu0 0
      %3161 = vmatprep.subr.bf16.mxu0 0
      %3162 = vmatpush1.bf16.msra.mxu0 0
      %3163 = vmatprep.subr.bf16.mxu0 0
      %3164 = vmatpush1.bf16.msra.mxu0 0
      %3165 = vmatprep.subr.bf16.mxu0 0
      %3166 = vmatpush1.bf16.msra.mxu0 0
      %3167 = vmatprep.subr.bf16.mxu0 0
      %3168 = vmatpush1.bf16.msra.mxu0 0
      %3169 = vmatprep.mubr.bf16.mxu0 0
      %3170 = vmatmul.mubr.bf16.gmra.mrb[0].mxu0 %v3135
      %v3171 = vpop.f32.mrb[0].mxu0
      %v3172 = vadd.f32 0.0, %v3171
      %v3173 = vpop.f32.mrb[0].mxu0
      %v3174 = vpop.f32.mrb[0].mxu0
      %v3175 = vpop.f32.mrb[0].mxu0
      %3176 = vdwg.mxu0
      %v3177 = vadd.f32 %v3131, %v3172
      %v3178 = vxor.u32 %v3130, 2147483648
      %v3179 = vmul.f32 %v3178, 1.442695
      %v3180 = vpow.pop %v3179
      %v3181 = vadd.f32 %v3180, 1.0
      %v3182 = vrcp.pop %v3181
      %v3183 = vmul.f32 1.0, %v3182
      %v3184 = vtanh.pop %v3130
      %v3185 = vmul.f32 %v3183, %v3035
      %3187 = vrot.lane.b32.xlu0 %v3184, 64
      %v3188 = vpop.permute.xlu0 %3187
      %v3190 = vmul.f32 %v3183, %v3188
      %3192 = vrot.lane.b32.xlu0 %v3190, 32
      %v3193 = vpop.permute.xlu0 %3192
      %v3195 = vadd.f32 %v3185, %v3193
      %v3196 = vtanh.pop %v3195
      %3198 = vrot.lane.b32.xlu0 %v3196, 64
      %v3199 = vpop.permute.xlu0 %3198
      %v3201 = vmul.f32 %v3183, %v3199
      %v3202 = vxor.u32 %v3177, 2147483648
      %v3203 = vmul.f32 %v3202, 1.442695
      %v3204 = vpow.pop %v3203
      %v3205 = vadd.f32 %v3204, 1.0
      %v3206 = vrcp.pop %v3205
      %v3207 = vmul.f32 1.0, %v3206
      %v3208 = vtanh.pop %v3177
      %v3209 = vmul.f32 %v3207, %v3059
      %3211 = vrot.lane.b32.xlu0 %v3208, 64
      %v3212 = vpop.permute.xlu0 %3211
      %v3214 = vmul.f32 %v3207, %v3212
      %3216 = vrot.lane.b32.xlu0 %v3214, 32
      %v3217 = vpop.permute.xlu0 %3216
      %v3219 = vadd.f32 %v3209, %v3217
      %v3220 = vtanh.pop %v3219
      %3222 = vrot.lane.b32.xlu0 %v3220, 64
      %v3223 = vpop.permute.xlu0 %3222
      %v3225 = vmul.f32 %v3207, %v3223
      %v3226 = vpack.c.bf16 %v3201, %v3201
      %v3228 = vunpack.c.l.b16 %v3226
      %v3229 = vpack.c.b16 %v3228, %v3228
      %v3230 = vrot.slane %v3229, 5
      %3231 = vrot.lane.b32.xlu0 %v3230, 32
      %v3232 = vpop.permute.xlu0 %3231
      %3234 = vst.msk [vmem:[%s374 + $0xc] sm:$0x8] %vm846, %v3232
      %v3235 = vpack.c.bf16 %v3225, %v3225
      %v3237 = vunpack.c.l.b16 %v3235
      %v3238 = vpack.c.b16 %v3237, %v3237
      %3239 = vrot.lane.b32.xlu0 %v3238, 32
      %v3240 = vpop.permute.xlu0 %3239
      %3242 = vst.msk [vmem:[%s381 + $0x10] sm:$0x1] %vm836, %v3240
      %v3243 = vld [vmem:[#allocation2 + $0x20] sm:$0x3]
      %3244 = vrot.lane.b32.xlu0 %v3226, 32
      %v3245 = vpop.permute.xlu0 %3244
      %v3247 = vsel %vm670, %v3245, 0
      %3249 = vmatprep.subr.bf16.mxu0 0
      %3250 = vmatpush1.bf16.msra.mxu0 %v666
      %3251 = vmatprep.subr.bf16.mxu0 0
      %3252 = vmatpush1.bf16.msra.mxu0 %v667
      %3253 = vmatprep.subr.bf16.mxu0 0
      %3254 = vmatpush1.bf16.msra.mxu0 0
      %3255 = vmatprep.subr.bf16.mxu0 0
      %3256 = vmatpush1.bf16.msra.mxu0 0
      %3257 = vmatprep.subr.bf16.mxu0 0
      %3258 = vmatpush1.bf16.msra.mxu0 0
      %3259 = vmatprep.subr.bf16.mxu0 0
      %3260 = vmatpush1.bf16.msra.mxu0 0
      %3261 = vmatprep.subr.bf16.mxu0 0
      %3262 = vmatpush1.bf16.msra.mxu0 0
      %3263 = vmatprep.subr.bf16.mxu0 0
      %3264 = vmatpush1.bf16.msra.mxu0 0
      %3265 = vmatprep.subr.bf16.mxu0 0
      %3266 = vmatpush1.bf16.msra.mxu0 0
      %3267 = vmatprep.subr.bf16.mxu0 0
      %3268 = vmatpush1.bf16.msra.mxu0 0
      %3269 = vmatprep.subr.bf16.mxu0 0
      %3270 = vmatpush1.bf16.msra.mxu0 0
      %3271 = vmatprep.subr.bf16.mxu0 0
      %3272 = vmatpush1.bf16.msra.mxu0 0
      %3273 = vmatprep.subr.bf16.mxu0 0
      %3274 = vmatpush1.bf16.msra.mxu0 0
      %3275 = vmatprep.subr.bf16.mxu0 0
      %3276 = vmatpush1.bf16.msra.mxu0 0
      %3277 = vmatprep.subr.bf16.mxu0 0
      %3278 = vmatpush1.bf16.msra.mxu0 0
      %3279 = vmatprep.subr.bf16.mxu0 0
      %3280 = vmatpush1.bf16.msra.mxu0 0
      %3281 = vmatprep.mubr.bf16.mxu0 0
      %3282 = vmatmul.mubr.bf16.gmra.mrb[0].mxu0 %v3247
      %v3283 = vpop.f32.mrb[0].mxu0
      %v3284 = vadd.f32 0.0, %v3283
      %v3285 = vpop.f32.mrb[0].mxu0
      %v3286 = vpop.f32.mrb[0].mxu0
      %v3287 = vpop.f32.mrb[0].mxu0
      %3288 = vdwg.mxu0
      %v3289 = vadd.f32 %v3243, %v3284
      %v3290 = vld [vmem:[#allocation3 + $0x1e] sm:$0x3]
      %3291 = vrot.lane.b32.xlu0 %v3235, 32
      %v3292 = vpop.permute.xlu0 %3291
      %v3294 = vsel %vm670, %v3292, 0
      %3296 = vmatprep.subr.bf16.mxu0 0
      %3297 = vmatpush1.bf16.msra.mxu0 %v725
      %3298 = vmatprep.subr.bf16.mxu0 0
      %3299 = vmatpush1.bf16.msra.mxu0 %v726
      %3300 = vmatprep.subr.bf16.mxu0 0
      %3301 = vmatpush1.bf16.msra.mxu0 0
      %3302 = vmatprep.subr.bf16.mxu0 0
      %3303 = vmatpush1.bf16.msra.mxu0 0
      %3304 = vmatprep.subr.bf16.mxu0 0
      %3305 = vmatpush1.bf16.msra.mxu0 0
      %3306 = vmatprep.subr.bf16.mxu0 0
      %3307 = vmatpush1.bf16.msra.mxu0 0
      %3308 = vmatprep.subr.bf16.mxu0 0
      %3309 = vmatpush1.bf16.msra.mxu0 0
      %3310 = vmatprep.subr.bf16.mxu0 0
      %3311 = vmatpush1.bf16.msra.mxu0 0
      %3312 = vmatprep.subr.bf16.mxu0 0
      %3313 = vmatpush1.bf16.msra.mxu0 0
      %3314 = vmatprep.subr.bf16.mxu0 0
      %3315 = vmatpush1.bf16.msra.mxu0 0
      %3316 = vmatprep.subr.bf16.mxu0 0
      %3317 = vmatpush1.bf16.msra.mxu0 0
      %3318 = vmatprep.subr.bf16.mxu0 0
      %3319 = vmatpush1.bf16.msra.mxu0 0
      %3320 = vmatprep.subr.bf16.mxu0 0
      %3321 = vmatpush1.bf16.msra.mxu0 0
      %3322 = vmatprep.subr.bf16.mxu0 0
      %3323 = vmatpush1.bf16.msra.mxu0 0
      %3324 = vmatprep.subr.bf16.mxu0 0
      %3325 = vmatpush1.bf16.msra.mxu0 0
      %3326 = vmatprep.subr.bf16.mxu0 0
      %3327 = vmatpush1.bf16.msra.mxu0 0
      %3328 = vmatprep.mubr.bf16.mxu0 0
      %3329 = vmatmul.mubr.bf16.gmra.mrb[0].mxu0 %v3294
      %v3330 = vpop.f32.mrb[0].mxu0
      %v3331 = vadd.f32 0.0, %v3330
      %v3332 = vpop.f32.mrb[0].mxu0
      %v3333 = vpop.f32.mrb[0].mxu0
      %v3334 = vpop.f32.mrb[0].mxu0
      %3335 = vdwg.mxu0
      %v3336 = vadd.f32 %v3290, %v3331
      %v3337 = vxor.u32 %v3289, 2147483648
      %v3338 = vmul.f32 %v3337, 1.442695
      %v3339 = vpow.pop %v3338
      %v3340 = vadd.f32 %v3339, 1.0
      %v3341 = vrcp.pop %v3340
      %v3342 = vmul.f32 1.0, %v3341
      %v3343 = vtanh.pop %v3289
      %v3344 = vmul.f32 %v3342, %v3195
      %3346 = vrot.lane.b32.xlu0 %v3343, 64
      %v3347 = vpop.permute.xlu0 %3346
      %v3349 = vmul.f32 %v3342, %v3347
      %3351 = vrot.lane.b32.xlu0 %v3349, 32
      %v3352 = vpop.permute.xlu0 %3351
      %v3354 = vadd.f32 %v3344, %v3352
      %v3355 = vtanh.pop %v3354
      %3357 = vrot.lane.b32.xlu0 %v3355, 64
      %v3358 = vpop.permute.xlu0 %3357
      %v3360 = vmul.f32 %v3342, %v3358
      %v3361 = vxor.u32 %v3336, 2147483648
      %v3362 = vmul.f32 %v3361, 1.442695
      %v3363 = vpow.pop %v3362
      %v3364 = vadd.f32 %v3363, 1.0
      %v3365 = vrcp.pop %v3364
      %v3366 = vmul.f32 1.0, %v3365
      %v3367 = vtanh.pop %v3336
      %v3368 = vmul.f32 %v3366, %v3219
      %3370 = vrot.lane.b32.xlu0 %v3367, 64
      %v3371 = vpop.permute.xlu0 %3370
      %v3373 = vmul.f32 %v3366, %v3371
      %3375 = vrot.lane.b32.xlu0 %v3373, 32
      %v3376 = vpop.permute.xlu0 %3375
      %v3378 = vadd.f32 %v3368, %v3376
      %v3379 = vtanh.pop %v3378
      %3381 = vrot.lane.b32.xlu0 %v3379, 64
      %v3382 = vpop.permute.xlu0 %3381
      %v3384 = vmul.f32 %v3366, %v3382
      %v3385 = vpack.c.bf16 %v3360, %v3360
      %v3387 = vunpack.c.l.b16 %v3385
      %v3388 = vpack.c.b16 %v3387, %v3387
      %3389 = vrot.lane.b32.xlu0 %v3388, 32
      %v3390 = vpop.permute.xlu0 %3389
      %3392 = vst.msk [vmem:[%s374 + $0x10] sm:$0x1] %vm836, %v3390
      %v3393 = vpack.c.bf16 %v3384, %v3384
      %v3395 = vunpack.c.l.b16 %v3393
      %v3396 = vpack.c.b16 %v3395, %v3395
      %v3397 = vrot.slane %v3396, 5
      %3398 = vrot.lane.b32.xlu0 %v3397, 32
      %v3399 = vpop.permute.xlu0 %3398
      %3401 = vst.msk [vmem:[%s381 + $0xc] sm:$0x8] %vm846, %v3399
      %v3402 = vld [vmem:[#allocation2 + $0x22] sm:$0x3]
      %3403 = vrot.lane.b32.xlu0 %v3385, 32
      %v3404 = vpop.permute.xlu0 %3403
      %v3406 = vsel %vm670, %v3404, 0
      %3408 = vmatprep.subr.bf16.mxu0 0
      %3409 = vmatpush1.bf16.msra.mxu0 %v666
      %3410 = vmatprep.subr.bf16.mxu0 0
      %3411 = vmatpush1.bf16.msra.mxu0 %v667
      %3412 = vmatprep.subr.bf16.mxu0 0
      %3413 = vmatpush1.bf16.msra.mxu0 0
      %3414 = vmatprep.subr.bf16.mxu0 0
      %3415 = vmatpush1.bf16.msra.mxu0 0
      %3416 = vmatprep.subr.bf16.mxu0 0
      %3417 = vmatpush1.bf16.msra.mxu0 0
      %3418 = vmatprep.subr.bf16.mxu0 0
      %3419 = vmatpush1.bf16.msra.mxu0 0
      %3420 = vmatprep.subr.bf16.mxu0 0
      %3421 = vmatpush1.bf16.msra.mxu0 0
      %3422 = vmatprep.subr.bf16.mxu0 0
      %3423 = vmatpush1.bf16.msra.mxu0 0
      %3424 = vmatprep.subr.bf16.mxu0 0
      %3425 = vmatpush1.bf16.msra.mxu0 0
      %3426 = vmatprep.subr.bf16.mxu0 0
      %3427 = vmatpush1.bf16.msra.mxu0 0
      %3428 = vmatprep.subr.bf16.mxu0 0
      %3429 = vmatpush1.bf16.msra.mxu0 0
      %3430 = vmatprep.subr.bf16.mxu0 0
      %3431 = vmatpush1.bf16.msra.mxu0 0
      %3432 = vmatprep.subr.bf16.mxu0 0
      %3433 = vmatpush1.bf16.msra.mxu0 0
      %3434 = vmatprep.subr.bf16.mxu0 0
      %3435 = vmatpush1.bf16.msra.mxu0 0
      %3436 = vmatprep.subr.bf16.mxu0 0
      %3437 = vmatpush1.bf16.msra.mxu0 0
      %3438 = vmatprep.subr.bf16.mxu0 0
      %3439 = vmatpush1.bf16.msra.mxu0 0
      %3440 = vmatprep.mubr.bf16.mxu0 0
      %3441 = vmatmul.mubr.bf16.gmra.mrb[0].mxu0 %v3406
      %v3442 = vpop.f32.mrb[0].mxu0
      %v3443 = vadd.f32 0.0, %v3442
      %v3444 = vpop.f32.mrb[0].mxu0
      %v3445 = vpop.f32.mrb[0].mxu0
      %v3446 = vpop.f32.mrb[0].mxu0
      %3447 = vdwg.mxu0
      %v3448 = vadd.f32 %v3402, %v3443
      %v3449 = vld [vmem:[#allocation3 + $0x1c] sm:$0x3]
      %3450 = vrot.lane.b32.xlu0 %v3393, 32
      %v3451 = vpop.permute.xlu0 %3450
      %v3453 = vsel %vm670, %v3451, 0
      %3455 = vmatprep.subr.bf16.mxu0 0
      %3456 = vmatpush1.bf16.msra.mxu0 %v725
      %3457 = vmatprep.subr.bf16.mxu0 0
      %3458 = vmatpush1.bf16.msra.mxu0 %v726
      %3459 = vmatprep.subr.bf16.mxu0 0
      %3460 = vmatpush1.bf16.msra.mxu0 0
      %3461 = vmatprep.subr.bf16.mxu0 0
      %3462 = vmatpush1.bf16.msra.mxu0 0
      %3463 = vmatprep.subr.bf16.mxu0 0
      %3464 = vmatpush1.bf16.msra.mxu0 0
      %3465 = vmatprep.subr.bf16.mxu0 0
      %3466 = vmatpush1.bf16.msra.mxu0 0
      %3467 = vmatprep.subr.bf16.mxu0 0
      %3468 = vmatpush1.bf16.msra.mxu0 0
      %3469 = vmatprep.subr.bf16.mxu0 0
      %3470 = vmatpush1.bf16.msra.mxu0 0
      %3471 = vmatprep.subr.bf16.mxu0 0
      %3472 = vmatpush1.bf16.msra.mxu0 0
      %3473 = vmatprep.subr.bf16.mxu0 0
      %3474 = vmatpush1.bf16.msra.mxu0 0
      %3475 = vmatprep.subr.bf16.mxu0 0
      %3476 = vmatpush1.bf16.msra.mxu0 0
      %3477 = vmatprep.subr.bf16.mxu0 0
      %3478 = vmatpush1.bf16.msra.mxu0 0
      %3479 = vmatprep.subr.bf16.mxu0 0
      %3480 = vmatpush1.bf16.msra.mxu0 0
      %3481 = vmatprep.subr.bf16.mxu0 0
      %3482 = vmatpush1.bf16.msra.mxu0 0
      %3483 = vmatprep.subr.bf16.mxu0 0
      %3484 = vmatpush1.bf16.msra.mxu0 0
      %3485 = vmatprep.subr.bf16.mxu0 0
      %3486 = vmatpush1.bf16.msra.mxu0 0
      %3487 = vmatprep.mubr.bf16.mxu0 0
      %3488 = vmatmul.mubr.bf16.gmra.mrb[0].mxu0 %v3453
      %v3489 = vpop.f32.mrb[0].mxu0
      %v3490 = vadd.f32 0.0, %v3489
      %v3491 = vpop.f32.mrb[0].mxu0
      %v3492 = vpop.f32.mrb[0].mxu0
      %v3493 = vpop.f32.mrb[0].mxu0
      %3494 = vdwg.mxu0
      %v3495 = vadd.f32 %v3449, %v3490
      %v3496 = vxor.u32 %v3448, 2147483648
      %v3497 = vmul.f32 %v3496, 1.442695
      %v3498 = vpow.pop %v3497
      %v3499 = vadd.f32 %v3498, 1.0
      %v3500 = vrcp.pop %v3499
      %v3501 = vmul.f32 1.0, %v3500
      %v3502 = vtanh.pop %v3448
      %v3503 = vmul.f32 %v3501, %v3354
      %3505 = vrot.lane.b32.xlu0 %v3502, 64
      %v3506 = vpop.permute.xlu0 %3505
      %v3508 = vmul.f32 %v3501, %v3506
      %3510 = vrot.lane.b32.xlu0 %v3508, 32
      %v3511 = vpop.permute.xlu0 %3510
      %v3513 = vadd.f32 %v3503, %v3511
      %v3514 = vtanh.pop %v3513
      %3516 = vrot.lane.b32.xlu0 %v3514, 64
      %v3517 = vpop.permute.xlu0 %3516
      %v3519 = vmul.f32 %v3501, %v3517
      %v3520 = vxor.u32 %v3495, 2147483648
      %v3521 = vmul.f32 %v3520, 1.442695
      %v3522 = vpow.pop %v3521
      %v3523 = vadd.f32 %v3522, 1.0
      %v3524 = vrcp.pop %v3523
      %v3525 = vmul.f32 1.0, %v3524
      %v3526 = vtanh.pop %v3495
      %v3527 = vmul.f32 %v3525, %v3378
      %3529 = vrot.lane.b32.xlu0 %v3526, 64
      %v3530 = vpop.permute.xlu0 %3529
      %v3532 = vmul.f32 %v3525, %v3530
      %3534 = vrot.lane.b32.xlu0 %v3532, 32
      %v3535 = vpop.permute.xlu0 %3534
      %v3537 = vadd.f32 %v3527, %v3535
      %v3538 = vtanh.pop %v3537
      %3540 = vrot.lane.b32.xlu0 %v3538, 64
      %v3541 = vpop.permute.xlu0 %3540
      %v3543 = vmul.f32 %v3525, %v3541
      %v3544 = vpack.c.bf16 %v3519, %v3519
      %v3546 = vunpack.c.l.b16 %v3544
      %v3547 = vpack.c.b16 %v3546, %v3546
      %v3548 = vrot.slane %v3547, 7
      %3549 = vrot.lane.b32.xlu0 %v3548, 32
      %v3550 = vpop.permute.xlu0 %3549
      %3552 = vst.msk [vmem:[%s374 + $0x10] sm:$0x2] %vm998, %v3550
      %v3553 = vpack.c.bf16 %v3543, %v3543
      %v3555 = vunpack.c.l.b16 %v3553
      %v3556 = vpack.c.b16 %v3555, %v3555
      %v3557 = vrot.slane %v3556, 6
      %3558 = vrot.lane.b32.xlu0 %v3557, 32
      %v3559 = vpop.permute.xlu0 %3558
      %3561 = vst.msk [vmem:[%s381 + $0xc] sm:$0x4] %vm1008, %v3559
      %v3562 = vld [vmem:[#allocation2 + $0x24] sm:$0x3]
      %3563 = vrot.lane.b32.xlu0 %v3544, 32
      %v3564 = vpop.permute.xlu0 %3563
      %v3566 = vsel %vm670, %v3564, 0
      %3568 = vmatprep.subr.bf16.mxu0 0
      %3569 = vmatpush1.bf16.msra.mxu0 %v666
      %3570 = vmatprep.subr.bf16.mxu0 0
      %3571 = vmatpush1.bf16.msra.mxu0 %v667
      %3572 = vmatprep.subr.bf16.mxu0 0
      %3573 = vmatpush1.bf16.msra.mxu0 0
      %3574 = vmatprep.subr.bf16.mxu0 0
      %3575 = vmatpush1.bf16.msra.mxu0 0
      %3576 = vmatprep.subr.bf16.mxu0 0
      %3577 = vmatpush1.bf16.msra.mxu0 0
      %3578 = vmatprep.subr.bf16.mxu0 0
      %3579 = vmatpush1.bf16.msra.mxu0 0
      %3580 = vmatprep.subr.bf16.mxu0 0
      %3581 = vmatpush1.bf16.msra.mxu0 0
      %3582 = vmatprep.subr.bf16.mxu0 0
      %3583 = vmatpush1.bf16.msra.mxu0 0
      %3584 = vmatprep.subr.bf16.mxu0 0
      %3585 = vmatpush1.bf16.msra.mxu0 0
      %3586 = vmatprep.subr.bf16.mxu0 0
      %3587 = vmatpush1.bf16.msra.mxu0 0
      %3588 = vmatprep.subr.bf16.mxu0 0
      %3589 = vmatpush1.bf16.msra.mxu0 0
      %3590 = vmatprep.subr.bf16.mxu0 0
      %3591 = vmatpush1.bf16.msra.mxu0 0
      %3592 = vmatprep.subr.bf16.mxu0 0
      %3593 = vmatpush1.bf16.msra.mxu0 0
      %3594 = vmatprep.subr.bf16.mxu0 0
      %3595 = vmatpush1.bf16.msra.mxu0 0
      %3596 = vmatprep.subr.bf16.mxu0 0
      %3597 = vmatpush1.bf16.msra.mxu0 0
      %3598 = vmatprep.subr.bf16.mxu0 0
      %3599 = vmatpush1.bf16.msra.mxu0 0
      %3600 = vmatprep.mubr.bf16.mxu0 0
      %3601 = vmatmul.mubr.bf16.gmra.mrb[0].mxu0 %v3566
      %v3602 = vpop.f32.mrb[0].mxu0
      %v3603 = vadd.f32 0.0, %v3602
      %v3604 = vpop.f32.mrb[0].mxu0
      %v3605 = vpop.f32.mrb[0].mxu0
      %v3606 = vpop.f32.mrb[0].mxu0
      %3607 = vdwg.mxu0
      %v3608 = vadd.f32 %v3562, %v3603
      %v3609 = vld [vmem:[#allocation3 + $0x1a] sm:$0x3]
      %3610 = vrot.lane.b32.xlu0 %v3553, 32
      %v3611 = vpop.permute.xlu0 %3610
      %v3613 = vsel %vm670, %v3611, 0
      %3615 = vmatprep.subr.bf16.mxu0 0
      %3616 = vmatpush1.bf16.msra.mxu0 %v725
      %3617 = vmatprep.subr.bf16.mxu0 0
      %3618 = vmatpush1.bf16.msra.mxu0 %v726
      %3619 = vmatprep.subr.bf16.mxu0 0
      %3620 = vmatpush1.bf16.msra.mxu0 0
      %3621 = vmatprep.subr.bf16.mxu0 0
      %3622 = vmatpush1.bf16.msra.mxu0 0
      %3623 = vmatprep.subr.bf16.mxu0 0
      %3624 = vmatpush1.bf16.msra.mxu0 0
      %3625 = vmatprep.subr.bf16.mxu0 0
      %3626 = vmatpush1.bf16.msra.mxu0 0
      %3627 = vmatprep.subr.bf16.mxu0 0
      %3628 = vmatpush1.bf16.msra.mxu0 0
      %3629 = vmatprep.subr.bf16.mxu0 0
      %3630 = vmatpush1.bf16.msra.mxu0 0
      %3631 = vmatprep.subr.bf16.mxu0 0
      %3632 = vmatpush1.bf16.msra.mxu0 0
      %3633 = vmatprep.subr.bf16.mxu0 0
      %3634 = vmatpush1.bf16.msra.mxu0 0
      %3635 = vmatprep.subr.bf16.mxu0 0
      %3636 = vmatpush1.bf16.msra.mxu0 0
      %3637 = vmatprep.subr.bf16.mxu0 0
      %3638 = vmatpush1.bf16.msra.mxu0 0
      %3639 = vmatprep.subr.bf16.mxu0 0
      %3640 = vmatpush1.bf16.msra.mxu0 0
      %3641 = vmatprep.subr.bf16.mxu0 0
      %3642 = vmatpush1.bf16.msra.mxu0 0
      %3643 = vmatprep.subr.bf16.mxu0 0
      %3644 = vmatpush1.bf16.msra.mxu0 0
      %3645 = vmatprep.subr.bf16.mxu0 0
      %3646 = vmatpush1.bf16.msra.mxu0 0
      %3647 = vmatprep.mubr.bf16.mxu0 0
      %3648 = vmatmul.mubr.bf16.gmra.mrb[0].mxu0 %v3613
      %v3649 = vpop.f32.mrb[0].mxu0
      %v3650 = vadd.f32 0.0, %v3649
      %v3651 = vpop.f32.mrb[0].mxu0
      %v3652 = vpop.f32.mrb[0].mxu0
      %v3653 = vpop.f32.mrb[0].mxu0
      %3654 = vdwg.mxu0
      %v3655 = vadd.f32 %v3609, %v3650
      %v3656 = vxor.u32 %v3608, 2147483648
      %v3657 = vmul.f32 %v3656, 1.442695
      %v3658 = vpow.pop %v3657
      %v3659 = vadd.f32 %v3658, 1.0
      %v3660 = vrcp.pop %v3659
      %v3661 = vmul.f32 1.0, %v3660
      %v3662 = vtanh.pop %v3608
      %v3663 = vmul.f32 %v3661, %v3513
      %3665 = vrot.lane.b32.xlu0 %v3662, 64
      %v3666 = vpop.permute.xlu0 %3665
      %v3668 = vmul.f32 %v3661, %v3666
      %3670 = vrot.lane.b32.xlu0 %v3668, 32
      %v3671 = vpop.permute.xlu0 %3670
      %v3673 = vadd.f32 %v3663, %v3671
      %v3674 = vtanh.pop %v3673
      %3676 = vrot.lane.b32.xlu0 %v3674, 64
      %v3677 = vpop.permute.xlu0 %3676
      %v3679 = vmul.f32 %v3661, %v3677
      %v3680 = vxor.u32 %v3655, 2147483648
      %v3681 = vmul.f32 %v3680, 1.442695
      %v3682 = vpow.pop %v3681
      %v3683 = vadd.f32 %v3682, 1.0
      %v3684 = vrcp.pop %v3683
      %v3685 = vmul.f32 1.0, %v3684
      %v3686 = vtanh.pop %v3655
      %v3687 = vmul.f32 %v3685, %v3537
      %3689 = vrot.lane.b32.xlu0 %v3686, 64
      %v3690 = vpop.permute.xlu0 %3689
      %v3692 = vmul.f32 %v3685, %v3690
      %3694 = vrot.lane.b32.xlu0 %v3692, 32
      %v3695 = vpop.permute.xlu0 %3694
      %v3697 = vadd.f32 %v3687, %v3695
      %v3698 = vtanh.pop %v3697
      %3700 = vrot.lane.b32.xlu0 %v3698, 64
      %v3701 = vpop.permute.xlu0 %3700
      %v3703 = vmul.f32 %v3685, %v3701
      %v3704 = vpack.c.bf16 %v3679, %v3679
      %v3706 = vunpack.c.l.b16 %v3704
      %v3707 = vpack.c.b16 %v3706, %v3706
      %v3708 = vrot.slane %v3707, 6
      %3709 = vrot.lane.b32.xlu0 %v3708, 32
      %v3710 = vpop.permute.xlu0 %3709
      %3712 = vst.msk [vmem:[%s374 + $0x10] sm:$0x4] %vm1008, %v3710
      %v3713 = vpack.c.bf16 %v3703, %v3703
      %v3715 = vunpack.c.l.b16 %v3713
      %v3716 = vpack.c.b16 %v3715, %v3715
      %v3717 = vrot.slane %v3716, 7
      %3718 = vrot.lane.b32.xlu0 %v3717, 32
      %v3719 = vpop.permute.xlu0 %3718
      %3721 = vst.msk [vmem:[%s381 + $0xc] sm:$0x2] %vm998, %v3719
      %v3722 = vld [vmem:[#allocation2 + $0x26] sm:$0x3]
      %3723 = vrot.lane.b32.xlu0 %v3704, 32
      %v3724 = vpop.permute.xlu0 %3723
      %v3726 = vsel %vm670, %v3724, 0
      %3728 = vmatprep.subr.bf16.mxu0 0
      %3729 = vmatpush1.bf16.msra.mxu0 %v666
      %3730 = vmatprep.subr.bf16.mxu0 0
      %3731 = vmatpush1.bf16.msra.mxu0 %v667
      %3732 = vmatprep.subr.bf16.mxu0 0
      %3733 = vmatpush1.bf16.msra.mxu0 0
      %3734 = vmatprep.subr.bf16.mxu0 0
      %3735 = vmatpush1.bf16.msra.mxu0 0
      %3736 = vmatprep.subr.bf16.mxu0 0
      %3737 = vmatpush1.bf16.msra.mxu0 0
      %3738 = vmatprep.subr.bf16.mxu0 0
      %3739 = vmatpush1.bf16.msra.mxu0 0
      %3740 = vmatprep.subr.bf16.mxu0 0
      %3741 = vmatpush1.bf16.msra.mxu0 0
      %3742 = vmatprep.subr.bf16.mxu0 0
      %3743 = vmatpush1.bf16.msra.mxu0 0
      %3744 = vmatprep.subr.bf16.mxu0 0
      %3745 = vmatpush1.bf16.msra.mxu0 0
      %3746 = vmatprep.subr.bf16.mxu0 0
      %3747 = vmatpush1.bf16.msra.mxu0 0
      %3748 = vmatprep.subr.bf16.mxu0 0
      %3749 = vmatpush1.bf16.msra.mxu0 0
      %3750 = vmatprep.subr.bf16.mxu0 0
      %3751 = vmatpush1.bf16.msra.mxu0 0
      %3752 = vmatprep.subr.bf16.mxu0 0
      %3753 = vmatpush1.bf16.msra.mxu0 0
      %3754 = vmatprep.subr.bf16.mxu0 0
      %3755 = vmatpush1.bf16.msra.mxu0 0
      %3756 = vmatprep.subr.bf16.mxu0 0
      %3757 = vmatpush1.bf16.msra.mxu0 0
      %3758 = vmatprep.subr.bf16.mxu0 0
      %3759 = vmatpush1.bf16.msra.mxu0 0
      %3760 = vmatprep.mubr.bf16.mxu0 0
      %3761 = vmatmul.mubr.bf16.gmra.mrb[0].mxu0 %v3726
      %v3762 = vpop.f32.mrb[0].mxu0
      %v3763 = vadd.f32 0.0, %v3762
      %v3764 = vpop.f32.mrb[0].mxu0
      %v3765 = vpop.f32.mrb[0].mxu0
      %v3766 = vpop.f32.mrb[0].mxu0
      %3767 = vdwg.mxu0
      %v3768 = vadd.f32 %v3722, %v3763
      %v3769 = vld [vmem:[#allocation3 + $0x18] sm:$0x3]
      %3770 = vrot.lane.b32.xlu0 %v3713, 32
      %v3771 = vpop.permute.xlu0 %3770
      %v3773 = vsel %vm670, %v3771, 0
      %3775 = vmatprep.subr.bf16.mxu0 0
      %3776 = vmatpush1.bf16.msra.mxu0 %v725
      %3777 = vmatprep.subr.bf16.mxu0 0
      %3778 = vmatpush1.bf16.msra.mxu0 %v726
      %3779 = vmatprep.subr.bf16.mxu0 0
      %3780 = vmatpush1.bf16.msra.mxu0 0
      %3781 = vmatprep.subr.bf16.mxu0 0
      %3782 = vmatpush1.bf16.msra.mxu0 0
      %3783 = vmatprep.subr.bf16.mxu0 0
      %3784 = vmatpush1.bf16.msra.mxu0 0
      %3785 = vmatprep.subr.bf16.mxu0 0
      %3786 = vmatpush1.bf16.msra.mxu0 0
      %3787 = vmatprep.subr.bf16.mxu0 0
      %3788 = vmatpush1.bf16.msra.mxu0 0
      %3789 = vmatprep.subr.bf16.mxu0 0
      %3790 = vmatpush1.bf16.msra.mxu0 0
      %3791 = vmatprep.subr.bf16.mxu0 0
      %3792 = vmatpush1.bf16.msra.mxu0 0
      %3793 = vmatprep.subr.bf16.mxu0 0
      %3794 = vmatpush1.bf16.msra.mxu0 0
      %3795 = vmatprep.subr.bf16.mxu0 0
      %3796 = vmatpush1.bf16.msra.mxu0 0
      %3797 = vmatprep.subr.bf16.mxu0 0
      %3798 = vmatpush1.bf16.msra.mxu0 0
      %3799 = vmatprep.subr.bf16.mxu0 0
      %3800 = vmatpush1.bf16.msra.mxu0 0
      %3801 = vmatprep.subr.bf16.mxu0 0
      %3802 = vmatpush1.bf16.msra.mxu0 0
      %3803 = vmatprep.subr.bf16.mxu0 0
      %3804 = vmatpush1.bf16.msra.mxu0 0
      %3805 = vmatprep.subr.bf16.mxu0 0
      %3806 = vmatpush1.bf16.msra.mxu0 0
      %3807 = vmatprep.mubr.bf16.mxu0 0
      %3808 = vmatmul.mubr.bf16.gmra.mrb[0].mxu0 %v3773
      %v3809 = vpop.f32.mrb[0].mxu0
      %v3810 = vadd.f32 0.0, %v3809
      %v3811 = vpop.f32.mrb[0].mxu0
      %v3812 = vpop.f32.mrb[0].mxu0
      %v3813 = vpop.f32.mrb[0].mxu0
      %3814 = vdwg.mxu0
      %v3815 = vadd.f32 %v3769, %v3810
      %v3816 = vxor.u32 %v3768, 2147483648
      %v3817 = vmul.f32 %v3816, 1.442695
      %v3818 = vpow.pop %v3817
      %v3819 = vadd.f32 %v3818, 1.0
      %v3820 = vrcp.pop %v3819
      %v3821 = vmul.f32 1.0, %v3820
      %v3822 = vtanh.pop %v3768
      %v3823 = vmul.f32 %v3821, %v3673
      %3825 = vrot.lane.b32.xlu0 %v3822, 64
      %v3826 = vpop.permute.xlu0 %3825
      %v3828 = vmul.f32 %v3821, %v3826
      %3830 = vrot.lane.b32.xlu0 %v3828, 32
      %v3831 = vpop.permute.xlu0 %3830
      %v3833 = vadd.f32 %v3823, %v3831
      %v3834 = vtanh.pop %v3833
      %3836 = vrot.lane.b32.xlu0 %v3834, 64
      %v3837 = vpop.permute.xlu0 %3836
      %v3839 = vmul.f32 %v3821, %v3837
      %v3840 = vxor.u32 %v3815, 2147483648
      %v3841 = vmul.f32 %v3840, 1.442695
      %v3842 = vpow.pop %v3841
      %v3843 = vadd.f32 %v3842, 1.0
      %v3844 = vrcp.pop %v3843
      %v3845 = vmul.f32 1.0, %v3844
      %v3846 = vtanh.pop %v3815
      %v3847 = vmul.f32 %v3845, %v3697
      %3849 = vrot.lane.b32.xlu0 %v3846, 64
      %v3850 = vpop.permute.xlu0 %3849
      %v3852 = vmul.f32 %v3845, %v3850
      %3854 = vrot.lane.b32.xlu0 %v3852, 32
      %v3855 = vpop.permute.xlu0 %3854
      %v3857 = vadd.f32 %v3847, %v3855
      %v3858 = vtanh.pop %v3857
      %3860 = vrot.lane.b32.xlu0 %v3858, 64
      %v3861 = vpop.permute.xlu0 %3860
      %v3863 = vmul.f32 %v3845, %v3861
      %v3864 = vpack.c.bf16 %v3839, %v3839
      %v3866 = vunpack.c.l.b16 %v3864
      %v3867 = vpack.c.b16 %v3866, %v3866
      %v3868 = vrot.slane %v3867, 5
      %3869 = vrot.lane.b32.xlu0 %v3868, 32
      %v3870 = vpop.permute.xlu0 %3869
      %3872 = vst.msk [vmem:[%s374 + $0x10] sm:$0x8] %vm846, %v3870
      %v3873 = vpack.c.bf16 %v3863, %v3863
      %v3875 = vunpack.c.l.b16 %v3873
      %v3876 = vpack.c.b16 %v3875, %v3875
      %3877 = vrot.lane.b32.xlu0 %v3876, 32
      %v3878 = vpop.permute.xlu0 %3877
      %3880 = vst.msk [vmem:[%s381 + $0xc] sm:$0x1] %vm836, %v3878
      %v3881 = vld [vmem:[#allocation2 + $0x28] sm:$0x3]
      %3882 = vrot.lane.b32.xlu0 %v3864, 32
      %v3883 = vpop.permute.xlu0 %3882
      %v3885 = vsel %vm670, %v3883, 0
      %3887 = vmatprep.subr.bf16.mxu0 0
      %3888 = vmatpush1.bf16.msra.mxu0 %v666
      %3889 = vmatprep.subr.bf16.mxu0 0
      %3890 = vmatpush1.bf16.msra.mxu0 %v667
      %3891 = vmatprep.subr.bf16.mxu0 0
      %3892 = vmatpush1.bf16.msra.mxu0 0
      %3893 = vmatprep.subr.bf16.mxu0 0
      %3894 = vmatpush1.bf16.msra.mxu0 0
      %3895 = vmatprep.subr.bf16.mxu0 0
      %3896 = vmatpush1.bf16.msra.mxu0 0
      %3897 = vmatprep.subr.bf16.mxu0 0
      %3898 = vmatpush1.bf16.msra.mxu0 0
      %3899 = vmatprep.subr.bf16.mxu0 0
      %3900 = vmatpush1.bf16.msra.mxu0 0
      %3901 = vmatprep.subr.bf16.mxu0 0
      %3902 = vmatpush1.bf16.msra.mxu0 0
      %3903 = vmatprep.subr.bf16.mxu0 0
      %3904 = vmatpush1.bf16.msra.mxu0 0
      %3905 = vmatprep.subr.bf16.mxu0 0
      %3906 = vmatpush1.bf16.msra.mxu0 0
      %3907 = vmatprep.subr.bf16.mxu0 0
      %3908 = vmatpush1.bf16.msra.mxu0 0
      %3909 = vmatprep.subr.bf16.mxu0 0
      %3910 = vmatpush1.bf16.msra.mxu0 0
      %3911 = vmatprep.subr.bf16.mxu0 0
      %3912 = vmatpush1.bf16.msra.mxu0 0
      %3913 = vmatprep.subr.bf16.mxu0 0
      %3914 = vmatpush1.bf16.msra.mxu0 0
      %3915 = vmatprep.subr.bf16.mxu0 0
      %3916 = vmatpush1.bf16.msra.mxu0 0
      %3917 = vmatprep.subr.bf16.mxu0 0
      %3918 = vmatpush1.bf16.msra.mxu0 0
      %3919 = vmatprep.mubr.bf16.mxu0 0
      %3920 = vmatmul.mubr.bf16.gmra.mrb[0].mxu0 %v3885
      %v3921 = vpop.f32.mrb[0].mxu0
      %v3922 = vadd.f32 0.0, %v3921
      %v3923 = vpop.f32.mrb[0].mxu0
      %v3924 = vpop.f32.mrb[0].mxu0
      %v3925 = vpop.f32.mrb[0].mxu0
      %3926 = vdwg.mxu0
      %v3927 = vadd.f32 %v3881, %v3922
      %v3928 = vld [vmem:[#allocation3 + $0x16] sm:$0x3]
      %3929 = vrot.lane.b32.xlu0 %v3873, 32
      %v3930 = vpop.permute.xlu0 %3929
      %v3932 = vsel %vm670, %v3930, 0
      %3934 = vmatprep.subr.bf16.mxu0 0
      %3935 = vmatpush1.bf16.msra.mxu0 %v725
      %3936 = vmatprep.subr.bf16.mxu0 0
      %3937 = vmatpush1.bf16.msra.mxu0 %v726
      %3938 = vmatprep.subr.bf16.mxu0 0
      %3939 = vmatpush1.bf16.msra.mxu0 0
      %3940 = vmatprep.subr.bf16.mxu0 0
      %3941 = vmatpush1.bf16.msra.mxu0 0
      %3942 = vmatprep.subr.bf16.mxu0 0
      %3943 = vmatpush1.bf16.msra.mxu0 0
      %3944 = vmatprep.subr.bf16.mxu0 0
      %3945 = vmatpush1.bf16.msra.mxu0 0
      %3946 = vmatprep.subr.bf16.mxu0 0
      %3947 = vmatpush1.bf16.msra.mxu0 0
      %3948 = vmatprep.subr.bf16.mxu0 0
      %3949 = vmatpush1.bf16.msra.mxu0 0
      %3950 = vmatprep.subr.bf16.mxu0 0
      %3951 = vmatpush1.bf16.msra.mxu0 0
      %3952 = vmatprep.subr.bf16.mxu0 0
      %3953 = vmatpush1.bf16.msra.mxu0 0
      %3954 = vmatprep.subr.bf16.mxu0 0
      %3955 = vmatpush1.bf16.msra.mxu0 0
      %3956 = vmatprep.subr.bf16.mxu0 0
      %3957 = vmatpush1.bf16.msra.mxu0 0
      %3958 = vmatprep.subr.bf16.mxu0 0
      %3959 = vmatpush1.bf16.msra.mxu0 0
      %3960 = vmatprep.subr.bf16.mxu0 0
      %3961 = vmatpush1.bf16.msra.mxu0 0
      %3962 = vmatprep.subr.bf16.mxu0 0
      %3963 = vmatpush1.bf16.msra.mxu0 0
      %3964 = vmatprep.subr.bf16.mxu0 0
      %3965 = vmatpush1.bf16.msra.mxu0 0
      %3966 = vmatprep.mubr.bf16.mxu0 0
      %3967 = vmatmul.mubr.bf16.gmra.mrb[0].mxu0 %v3932
      %v3968 = vpop.f32.mrb[0].mxu0
      %v3969 = vadd.f32 0.0, %v3968
      %v3970 = vpop.f32.mrb[0].mxu0
      %v3971 = vpop.f32.mrb[0].mxu0
      %v3972 = vpop.f32.mrb[0].mxu0
      %3973 = vdwg.mxu0
      %v3974 = vadd.f32 %v3928, %v3969
      %v3975 = vxor.u32 %v3927, 2147483648
      %v3976 = vmul.f32 %v3975, 1.442695
      %v3977 = vpow.pop %v3976
      %v3978 = vadd.f32 %v3977, 1.0
      %v3979 = vrcp.pop %v3978
      %v3980 = vmul.f32 1.0, %v3979
      %v3981 = vtanh.pop %v3927
      %v3982 = vmul.f32 %v3980, %v3833
      %3984 = vrot.lane.b32.xlu0 %v3981, 64
      %v3985 = vpop.permute.xlu0 %3984
      %v3987 = vmul.f32 %v3980, %v3985
      %3989 = vrot.lane.b32.xlu0 %v3987, 32
      %v3990 = vpop.permute.xlu0 %3989
      %v3992 = vadd.f32 %v3982, %v3990
      %v3993 = vtanh.pop %v3992
      %3995 = vrot.lane.b32.xlu0 %v3993, 64
      %v3996 = vpop.permute.xlu0 %3995
      %v3998 = vmul.f32 %v3980, %v3996
      %v3999 = vxor.u32 %v3974, 2147483648
      %v4000 = vmul.f32 %v3999, 1.442695
      %v4001 = vpow.pop %v4000
      %v4002 = vadd.f32 %v4001, 1.0
      %v4003 = vrcp.pop %v4002
      %v4004 = vmul.f32 1.0, %v4003
      %v4005 = vtanh.pop %v3974
      %v4006 = vmul.f32 %v4004, %v3857
      %4008 = vrot.lane.b32.xlu0 %v4005, 64
      %v4009 = vpop.permute.xlu0 %4008
      %v4011 = vmul.f32 %v4004, %v4009
      %4013 = vrot.lane.b32.xlu0 %v4011, 32
      %v4014 = vpop.permute.xlu0 %4013
      %v4016 = vadd.f32 %v4006, %v4014
      %v4017 = vtanh.pop %v4016
      %4019 = vrot.lane.b32.xlu0 %v4017, 64
      %v4020 = vpop.permute.xlu0 %4019
      %v4022 = vmul.f32 %v4004, %v4020
      %v4023 = vpack.c.bf16 %v3998, %v3998
      %v4025 = vunpack.c.l.b16 %v4023
      %v4026 = vpack.c.b16 %v4025, %v4025
      %4027 = vrot.lane.b32.xlu0 %v4026, 32
      %v4028 = vpop.permute.xlu0 %4027
      %4030 = vst.msk [vmem:[%s374 + $0x14] sm:$0x1] %vm836, %v4028
      %v4031 = vpack.c.bf16 %v4022, %v4022
      %v4033 = vunpack.c.l.b16 %v4031
      %v4034 = vpack.c.b16 %v4033, %v4033
      %v4035 = vrot.slane %v4034, 5
      %4036 = vrot.lane.b32.xlu0 %v4035, 32
      %v4037 = vpop.permute.xlu0 %4036
      %4039 = vst.msk [vmem:[%s381 + $0x8] sm:$0x8] %vm846, %v4037
      %v4040 = vld [vmem:[#allocation2 + $0x2a] sm:$0x3]
      %4041 = vrot.lane.b32.xlu0 %v4023, 32
      %v4042 = vpop.permute.xlu0 %4041
      %v4044 = vsel %vm670, %v4042, 0
      %4046 = vmatprep.subr.bf16.mxu0 0
      %4047 = vmatpush1.bf16.msra.mxu0 %v666
      %4048 = vmatprep.subr.bf16.mxu0 0
      %4049 = vmatpush1.bf16.msra.mxu0 %v667
      %4050 = vmatprep.subr.bf16.mxu0 0
      %4051 = vmatpush1.bf16.msra.mxu0 0
      %4052 = vmatprep.subr.bf16.mxu0 0
      %4053 = vmatpush1.bf16.msra.mxu0 0
      %4054 = vmatprep.subr.bf16.mxu0 0
      %4055 = vmatpush1.bf16.msra.mxu0 0
      %4056 = vmatprep.subr.bf16.mxu0 0
      %4057 = vmatpush1.bf16.msra.mxu0 0
      %4058 = vmatprep.subr.bf16.mxu0 0
      %4059 = vmatpush1.bf16.msra.mxu0 0
      %4060 = vmatprep.subr.bf16.mxu0 0
      %4061 = vmatpush1.bf16.msra.mxu0 0
      %4062 = vmatprep.subr.bf16.mxu0 0
      %4063 = vmatpush1.bf16.msra.mxu0 0
      %4064 = vmatprep.subr.bf16.mxu0 0
      %4065 = vmatpush1.bf16.msra.mxu0 0
      %4066 = vmatprep.subr.bf16.mxu0 0
      %4067 = vmatpush1.bf16.msra.mxu0 0
      %4068 = vmatprep.subr.bf16.mxu0 0
      %4069 = vmatpush1.bf16.msra.mxu0 0
      %4070 = vmatprep.subr.bf16.mxu0 0
      %4071 = vmatpush1.bf16.msra.mxu0 0
      %4072 = vmatprep.subr.bf16.mxu0 0
      %4073 = vmatpush1.bf16.msra.mxu0 0
      %4074 = vmatprep.subr.bf16.mxu0 0
      %4075 = vmatpush1.bf16.msra.mxu0 0
      %4076 = vmatprep.subr.bf16.mxu0 0
      %4077 = vmatpush1.bf16.msra.mxu0 0
      %4078 = vmatprep.mubr.bf16.mxu0 0
      %4079 = vmatmul.mubr.bf16.gmra.mrb[0].mxu0 %v4044
      %v4080 = vpop.f32.mrb[0].mxu0
      %v4081 = vadd.f32 0.0, %v4080
      %v4082 = vpop.f32.mrb[0].mxu0
      %v4083 = vpop.f32.mrb[0].mxu0
      %v4084 = vpop.f32.mrb[0].mxu0
      %4085 = vdwg.mxu0
      %v4086 = vadd.f32 %v4040, %v4081
      %v4087 = vld [vmem:[#allocation3 + $0x14] sm:$0x3]
      %4088 = vrot.lane.b32.xlu0 %v4031, 32
      %v4089 = vpop.permute.xlu0 %4088
      %v4091 = vsel %vm670, %v4089, 0
      %4093 = vmatprep.subr.bf16.mxu0 0
      %4094 = vmatpush1.bf16.msra.mxu0 %v725
      %4095 = vmatprep.subr.bf16.mxu0 0
      %4096 = vmatpush1.bf16.msra.mxu0 %v726
      %4097 = vmatprep.subr.bf16.mxu0 0
      %4098 = vmatpush1.bf16.msra.mxu0 0
      %4099 = vmatprep.subr.bf16.mxu0 0
      %4100 = vmatpush1.bf16.msra.mxu0 0
      %4101 = vmatprep.subr.bf16.mxu0 0
      %4102 = vmatpush1.bf16.msra.mxu0 0
      %4103 = vmatprep.subr.bf16.mxu0 0
      %4104 = vmatpush1.bf16.msra.mxu0 0
      %4105 = vmatprep.subr.bf16.mxu0 0
      %4106 = vmatpush1.bf16.msra.mxu0 0
      %4107 = vmatprep.subr.bf16.mxu0 0
      %4108 = vmatpush1.bf16.msra.mxu0 0
      %4109 = vmatprep.subr.bf16.mxu0 0
      %4110 = vmatpush1.bf16.msra.mxu0 0
      %4111 = vmatprep.subr.bf16.mxu0 0
      %4112 = vmatpush1.bf16.msra.mxu0 0
      %4113 = vmatprep.subr.bf16.mxu0 0
      %4114 = vmatpush1.bf16.msra.mxu0 0
      %4115 = vmatprep.subr.bf16.mxu0 0
      %4116 = vmatpush1.bf16.msra.mxu0 0
      %4117 = vmatprep.subr.bf16.mxu0 0
      %4118 = vmatpush1.bf16.msra.mxu0 0
      %4119 = vmatprep.subr.bf16.mxu0 0
      %4120 = vmatpush1.bf16.msra.mxu0 0
      %4121 = vmatprep.subr.bf16.mxu0 0
      %4122 = vmatpush1.bf16.msra.mxu0 0
      %4123 = vmatprep.subr.bf16.mxu0 0
      %4124 = vmatpush1.bf16.msra.mxu0 0
      %4125 = vmatprep.mubr.bf16.mxu0 0
      %4126 = vmatmul.mubr.bf16.gmra.mrb[0].mxu0 %v4091
      %v4127 = vpop.f32.mrb[0].mxu0
      %v4128 = vadd.f32 0.0, %v4127
      %v4129 = vpop.f32.mrb[0].mxu0
      %v4130 = vpop.f32.mrb[0].mxu0
      %v4131 = vpop.f32.mrb[0].mxu0
      %4132 = vdwg.mxu0
      %v4133 = vadd.f32 %v4087, %v4128
      %v4134 = vxor.u32 %v4086, 2147483648
      %v4135 = vmul.f32 %v4134, 1.442695
      %v4136 = vpow.pop %v4135
      %v4137 = vadd.f32 %v4136, 1.0
      %v4138 = vrcp.pop %v4137
      %v4139 = vmul.f32 1.0, %v4138
      %v4140 = vtanh.pop %v4086
      %v4141 = vmul.f32 %v4139, %v3992
      %4143 = vrot.lane.b32.xlu0 %v4140, 64
      %v4144 = vpop.permute.xlu0 %4143
      %v4146 = vmul.f32 %v4139, %v4144
      %4148 = vrot.lane.b32.xlu0 %v4146, 32
      %v4149 = vpop.permute.xlu0 %4148
      %v4151 = vadd.f32 %v4141, %v4149
      %v4152 = vtanh.pop %v4151
      %4154 = vrot.lane.b32.xlu0 %v4152, 64
      %v4155 = vpop.permute.xlu0 %4154
      %v4157 = vmul.f32 %v4139, %v4155
      %v4158 = vxor.u32 %v4133, 2147483648
      %v4159 = vmul.f32 %v4158, 1.442695
      %v4160 = vpow.pop %v4159
      %v4161 = vadd.f32 %v4160, 1.0
      %v4162 = vrcp.pop %v4161
      %v4163 = vmul.f32 1.0, %v4162
      %v4164 = vtanh.pop %v4133
      %v4165 = vmul.f32 %v4163, %v4016
      %4167 = vrot.lane.b32.xlu0 %v4164, 64
      %v4168 = vpop.permute.xlu0 %4167
      %v4170 = vmul.f32 %v4163, %v4168
      %4172 = vrot.lane.b32.xlu0 %v4170, 32
      %v4173 = vpop.permute.xlu0 %4172
      %v4175 = vadd.f32 %v4165, %v4173
      %v4176 = vtanh.pop %v4175
      %4178 = vrot.lane.b32.xlu0 %v4176, 64
      %v4179 = vpop.permute.xlu0 %4178
      %v4181 = vmul.f32 %v4163, %v4179
      %v4182 = vpack.c.bf16 %v4157, %v4157
      %v4184 = vunpack.c.l.b16 %v4182
      %v4185 = vpack.c.b16 %v4184, %v4184
      %v4186 = vrot.slane %v4185, 7
      %4187 = vrot.lane.b32.xlu0 %v4186, 32
      %v4188 = vpop.permute.xlu0 %4187
      %4190 = vst.msk [vmem:[%s374 + $0x14] sm:$0x2] %vm998, %v4188
      %v4191 = vpack.c.bf16 %v4181, %v4181
      %v4193 = vunpack.c.l.b16 %v4191
      %v4194 = vpack.c.b16 %v4193, %v4193
      %v4195 = vrot.slane %v4194, 6
      %4196 = vrot.lane.b32.xlu0 %v4195, 32
      %v4197 = vpop.permute.xlu0 %4196
      %4199 = vst.msk [vmem:[%s381 + $0x8] sm:$0x4] %vm1008, %v4197
      %v4200 = vld [vmem:[#allocation2 + $0x2c] sm:$0x3]
      %4201 = vrot.lane.b32.xlu0 %v4182, 32
      %v4202 = vpop.permute.xlu0 %4201
      %v4204 = vsel %vm670, %v4202, 0
      %4206 = vmatprep.subr.bf16.mxu0 0
      %4207 = vmatpush1.bf16.msra.mxu0 %v666
      %4208 = vmatprep.subr.bf16.mxu0 0
      %4209 = vmatpush1.bf16.msra.mxu0 %v667
      %4210 = vmatprep.subr.bf16.mxu0 0
      %4211 = vmatpush1.bf16.msra.mxu0 0
      %4212 = vmatprep.subr.bf16.mxu0 0
      %4213 = vmatpush1.bf16.msra.mxu0 0
      %4214 = vmatprep.subr.bf16.mxu0 0
      %4215 = vmatpush1.bf16.msra.mxu0 0
      %4216 = vmatprep.subr.bf16.mxu0 0
      %4217 = vmatpush1.bf16.msra.mxu0 0
      %4218 = vmatprep.subr.bf16.mxu0 0
      %4219 = vmatpush1.bf16.msra.mxu0 0
      %4220 = vmatprep.subr.bf16.mxu0 0
      %4221 = vmatpush1.bf16.msra.mxu0 0
      %4222 = vmatprep.subr.bf16.mxu0 0
      %4223 = vmatpush1.bf16.msra.mxu0 0
      %4224 = vmatprep.subr.bf16.mxu0 0
      %4225 = vmatpush1.bf16.msra.mxu0 0
      %4226 = vmatprep.subr.bf16.mxu0 0
      %4227 = vmatpush1.bf16.msra.mxu0 0
      %4228 = vmatprep.subr.bf16.mxu0 0
      %4229 = vmatpush1.bf16.msra.mxu0 0
      %4230 = vmatprep.subr.bf16.mxu0 0
      %4231 = vmatpush1.bf16.msra.mxu0 0
      %4232 = vmatprep.subr.bf16.mxu0 0
      %4233 = vmatpush1.bf16.msra.mxu0 0
      %4234 = vmatprep.subr.bf16.mxu0 0
      %4235 = vmatpush1.bf16.msra.mxu0 0
      %4236 = vmatprep.subr.bf16.mxu0 0
      %4237 = vmatpush1.bf16.msra.mxu0 0
      %4238 = vmatprep.mubr.bf16.mxu0 0
      %4239 = vmatmul.mubr.bf16.gmra.mrb[0].mxu0 %v4204
      %v4240 = vpop.f32.mrb[0].mxu0
      %v4241 = vadd.f32 0.0, %v4240
      %v4242 = vpop.f32.mrb[0].mxu0
      %v4243 = vpop.f32.mrb[0].mxu0
      %v4244 = vpop.f32.mrb[0].mxu0
      %4245 = vdwg.mxu0
      %v4246 = vadd.f32 %v4200, %v4241
      %v4247 = vld [vmem:[#allocation3 + $0x12] sm:$0x3]
      %4248 = vrot.lane.b32.xlu0 %v4191, 32
      %v4249 = vpop.permute.xlu0 %4248
      %v4251 = vsel %vm670, %v4249, 0
      %4253 = vmatprep.subr.bf16.mxu0 0
      %4254 = vmatpush1.bf16.msra.mxu0 %v725
      %4255 = vmatprep.subr.bf16.mxu0 0
      %4256 = vmatpush1.bf16.msra.mxu0 %v726
      %4257 = vmatprep.subr.bf16.mxu0 0
      %4258 = vmatpush1.bf16.msra.mxu0 0
      %4259 = vmatprep.subr.bf16.mxu0 0
      %4260 = vmatpush1.bf16.msra.mxu0 0
      %4261 = vmatprep.subr.bf16.mxu0 0
      %4262 = vmatpush1.bf16.msra.mxu0 0
      %4263 = vmatprep.subr.bf16.mxu0 0
      %4264 = vmatpush1.bf16.msra.mxu0 0
      %4265 = vmatprep.subr.bf16.mxu0 0
      %4266 = vmatpush1.bf16.msra.mxu0 0
      %4267 = vmatprep.subr.bf16.mxu0 0
      %4268 = vmatpush1.bf16.msra.mxu0 0
      %4269 = vmatprep.subr.bf16.mxu0 0
      %4270 = vmatpush1.bf16.msra.mxu0 0
      %4271 = vmatprep.subr.bf16.mxu0 0
      %4272 = vmatpush1.bf16.msra.mxu0 0
      %4273 = vmatprep.subr.bf16.mxu0 0
      %4274 = vmatpush1.bf16.msra.mxu0 0
      %4275 = vmatprep.subr.bf16.mxu0 0
      %4276 = vmatpush1.bf16.msra.mxu0 0
      %4277 = vmatprep.subr.bf16.mxu0 0
      %4278 = vmatpush1.bf16.msra.mxu0 0
      %4279 = vmatprep.subr.bf16.mxu0 0
      %4280 = vmatpush1.bf16.msra.mxu0 0
      %4281 = vmatprep.subr.bf16.mxu0 0
      %4282 = vmatpush1.bf16.msra.mxu0 0
      %4283 = vmatprep.subr.bf16.mxu0 0
      %4284 = vmatpush1.bf16.msra.mxu0 0
      %4285 = vmatprep.mubr.bf16.mxu0 0
      %4286 = vmatmul.mubr.bf16.gmra.mrb[0].mxu0 %v4251
      %v4287 = vpop.f32.mrb[0].mxu0
      %v4288 = vadd.f32 0.0, %v4287
      %v4289 = vpop.f32.mrb[0].mxu0
      %v4290 = vpop.f32.mrb[0].mxu0
      %v4291 = vpop.f32.mrb[0].mxu0
      %4292 = vdwg.mxu0
      %v4293 = vadd.f32 %v4247, %v4288
      %v4294 = vxor.u32 %v4246, 2147483648
      %v4295 = vmul.f32 %v4294, 1.442695
      %v4296 = vpow.pop %v4295
      %v4297 = vadd.f32 %v4296, 1.0
      %v4298 = vrcp.pop %v4297
      %v4299 = vmul.f32 1.0, %v4298
      %v4300 = vtanh.pop %v4246
      %v4301 = vmul.f32 %v4299, %v4151
      %4303 = vrot.lane.b32.xlu0 %v4300, 64
      %v4304 = vpop.permute.xlu0 %4303
      %v4306 = vmul.f32 %v4299, %v4304
      %4308 = vrot.lane.b32.xlu0 %v4306, 32
      %v4309 = vpop.permute.xlu0 %4308
      %v4311 = vadd.f32 %v4301, %v4309
      %v4312 = vtanh.pop %v4311
      %4314 = vrot.lane.b32.xlu0 %v4312, 64
      %v4315 = vpop.permute.xlu0 %4314
      %v4317 = vmul.f32 %v4299, %v4315
      %v4318 = vxor.u32 %v4293, 2147483648
      %v4319 = vmul.f32 %v4318, 1.442695
      %v4320 = vpow.pop %v4319
      %v4321 = vadd.f32 %v4320, 1.0
      %v4322 = vrcp.pop %v4321
      %v4323 = vmul.f32 1.0, %v4322
      %v4324 = vtanh.pop %v4293
      %v4325 = vmul.f32 %v4323, %v4175
      %4327 = vrot.lane.b32.xlu0 %v4324, 64
      %v4328 = vpop.permute.xlu0 %4327
      %v4330 = vmul.f32 %v4323, %v4328
      %4332 = vrot.lane.b32.xlu0 %v4330, 32
      %v4333 = vpop.permute.xlu0 %4332
      %v4335 = vadd.f32 %v4325, %v4333
      %v4336 = vtanh.pop %v4335
      %4338 = vrot.lane.b32.xlu0 %v4336, 64
      %v4339 = vpop.permute.xlu0 %4338
      %v4341 = vmul.f32 %v4323, %v4339
      %v4342 = vpack.c.bf16 %v4317, %v4317
      %v4344 = vunpack.c.l.b16 %v4342
      %v4345 = vpack.c.b16 %v4344, %v4344
      %v4346 = vrot.slane %v4345, 6
      %4347 = vrot.lane.b32.xlu0 %v4346, 32
      %v4348 = vpop.permute.xlu0 %4347
      %4350 = vst.msk [vmem:[%s374 + $0x14] sm:$0x4] %vm1008, %v4348
      %v4351 = vpack.c.bf16 %v4341, %v4341
      %v4353 = vunpack.c.l.b16 %v4351
      %v4354 = vpack.c.b16 %v4353, %v4353
      %v4355 = vrot.slane %v4354, 7
      %4356 = vrot.lane.b32.xlu0 %v4355, 32
      %v4357 = vpop.permute.xlu0 %4356
      %4359 = vst.msk [vmem:[%s381 + $0x8] sm:$0x2] %vm998, %v4357
      %v4360 = vld [vmem:[#allocation2 + $0x2e] sm:$0x3]
      %4361 = vrot.lane.b32.xlu0 %v4342, 32
      %v4362 = vpop.permute.xlu0 %4361
      %v4364 = vsel %vm670, %v4362, 0
      %4366 = vmatprep.subr.bf16.mxu0 0
      %4367 = vmatpush1.bf16.msra.mxu0 %v666
      %4368 = vmatprep.subr.bf16.mxu0 0
      %4369 = vmatpush1.bf16.msra.mxu0 %v667
      %4370 = vmatprep.subr.bf16.mxu0 0
      %4371 = vmatpush1.bf16.msra.mxu0 0
      %4372 = vmatprep.subr.bf16.mxu0 0
      %4373 = vmatpush1.bf16.msra.mxu0 0
      %4374 = vmatprep.subr.bf16.mxu0 0
      %4375 = vmatpush1.bf16.msra.mxu0 0
      %4376 = vmatprep.subr.bf16.mxu0 0
      %4377 = vmatpush1.bf16.msra.mxu0 0
      %4378 = vmatprep.subr.bf16.mxu0 0
      %4379 = vmatpush1.bf16.msra.mxu0 0
      %4380 = vmatprep.subr.bf16.mxu0 0
      %4381 = vmatpush1.bf16.msra.mxu0 0
      %4382 = vmatprep.subr.bf16.mxu0 0
      %4383 = vmatpush1.bf16.msra.mxu0 0
      %4384 = vmatprep.subr.bf16.mxu0 0
      %4385 = vmatpush1.bf16.msra.mxu0 0
      %4386 = vmatprep.subr.bf16.mxu0 0
      %4387 = vmatpush1.bf16.msra.mxu0 0
      %4388 = vmatprep.subr.bf16.mxu0 0
      %4389 = vmatpush1.bf16.msra.mxu0 0
      %4390 = vmatprep.subr.bf16.mxu0 0
      %4391 = vmatpush1.bf16.msra.mxu0 0
      %4392 = vmatprep.subr.bf16.mxu0 0
      %4393 = vmatpush1.bf16.msra.mxu0 0
      %4394 = vmatprep.subr.bf16.mxu0 0
      %4395 = vmatpush1.bf16.msra.mxu0 0
      %4396 = vmatprep.subr.bf16.mxu0 0
      %4397 = vmatpush1.bf16.msra.mxu0 0
      %4398 = vmatprep.mubr.bf16.mxu0 0
      %4399 = vmatmul.mubr.bf16.gmra.mrb[0].mxu0 %v4364
      %v4400 = vpop.f32.mrb[0].mxu0
      %v4401 = vadd.f32 0.0, %v4400
      %v4402 = vpop.f32.mrb[0].mxu0
      %v4403 = vpop.f32.mrb[0].mxu0
      %v4404 = vpop.f32.mrb[0].mxu0
      %4405 = vdwg.mxu0
      %v4406 = vadd.f32 %v4360, %v4401
      %v4407 = vld [vmem:[#allocation3 + $0x10] sm:$0x3]
      %4408 = vrot.lane.b32.xlu0 %v4351, 32
      %v4409 = vpop.permute.xlu0 %4408
      %v4411 = vsel %vm670, %v4409, 0
      %4413 = vmatprep.subr.bf16.mxu0 0
      %4414 = vmatpush1.bf16.msra.mxu0 %v725
      %4415 = vmatprep.subr.bf16.mxu0 0
      %4416 = vmatpush1.bf16.msra.mxu0 %v726
      %4417 = vmatprep.subr.bf16.mxu0 0
      %4418 = vmatpush1.bf16.msra.mxu0 0
      %4419 = vmatprep.subr.bf16.mxu0 0
      %4420 = vmatpush1.bf16.msra.mxu0 0
      %4421 = vmatprep.subr.bf16.mxu0 0
      %4422 = vmatpush1.bf16.msra.mxu0 0
      %4423 = vmatprep.subr.bf16.mxu0 0
      %4424 = vmatpush1.bf16.msra.mxu0 0
      %4425 = vmatprep.subr.bf16.mxu0 0
      %4426 = vmatpush1.bf16.msra.mxu0 0
      %4427 = vmatprep.subr.bf16.mxu0 0
      %4428 = vmatpush1.bf16.msra.mxu0 0
      %4429 = vmatprep.subr.bf16.mxu0 0
      %4430 = vmatpush1.bf16.msra.mxu0 0
      %4431 = vmatprep.subr.bf16.mxu0 0
      %4432 = vmatpush1.bf16.msra.mxu0 0
      %4433 = vmatprep.subr.bf16.mxu0 0
      %4434 = vmatpush1.bf16.msra.mxu0 0
      %4435 = vmatprep.subr.bf16.mxu0 0
      %4436 = vmatpush1.bf16.msra.mxu0 0
      %4437 = vmatprep.subr.bf16.mxu0 0
      %4438 = vmatpush1.bf16.msra.mxu0 0
      %4439 = vmatprep.subr.bf16.mxu0 0
      %4440 = vmatpush1.bf16.msra.mxu0 0
      %4441 = vmatprep.subr.bf16.mxu0 0
      %4442 = vmatpush1.bf16.msra.mxu0 0
      %4443 = vmatprep.subr.bf16.mxu0 0
      %4444 = vmatpush1.bf16.msra.mxu0 0
      %4445 = vmatprep.mubr.bf16.mxu0 0
      %4446 = vmatmul.mubr.bf16.gmra.mrb[0].mxu0 %v4411
      %v4447 = vpop.f32.mrb[0].mxu0
      %v4448 = vadd.f32 0.0, %v4447
      %v4449 = vpop.f32.mrb[0].mxu0
      %v4450 = vpop.f32.mrb[0].mxu0
      %v4451 = vpop.f32.mrb[0].mxu0
      %4452 = vdwg.mxu0
      %v4453 = vadd.f32 %v4407, %v4448
      %v4454 = vxor.u32 %v4406, 2147483648
      %v4455 = vmul.f32 %v4454, 1.442695
      %v4456 = vpow.pop %v4455
      %v4457 = vadd.f32 %v4456, 1.0
      %v4458 = vrcp.pop %v4457
      %v4459 = vmul.f32 1.0, %v4458
      %v4460 = vtanh.pop %v4406
      %v4461 = vmul.f32 %v4459, %v4311
      %4463 = vrot.lane.b32.xlu0 %v4460, 64
      %v4464 = vpop.permute.xlu0 %4463
      %v4466 = vmul.f32 %v4459, %v4464
      %4468 = vrot.lane.b32.xlu0 %v4466, 32
      %v4469 = vpop.permute.xlu0 %4468
      %v4471 = vadd.f32 %v4461, %v4469
      %v4472 = vtanh.pop %v4471
      %4474 = vrot.lane.b32.xlu0 %v4472, 64
      %v4475 = vpop.permute.xlu0 %4474
      %v4477 = vmul.f32 %v4459, %v4475
      %v4478 = vxor.u32 %v4453, 2147483648
      %v4479 = vmul.f32 %v4478, 1.442695
      %v4480 = vpow.pop %v4479
      %v4481 = vadd.f32 %v4480, 1.0
      %v4482 = vrcp.pop %v4481
      %v4483 = vmul.f32 1.0, %v4482
      %v4484 = vtanh.pop %v4453
      %v4485 = vmul.f32 %v4483, %v4335
      %4487 = vrot.lane.b32.xlu0 %v4484, 64
      %v4488 = vpop.permute.xlu0 %4487
      %v4490 = vmul.f32 %v4483, %v4488
      %4492 = vrot.lane.b32.xlu0 %v4490, 32
      %v4493 = vpop.permute.xlu0 %4492
      %v4495 = vadd.f32 %v4485, %v4493
      %v4496 = vtanh.pop %v4495
      %4498 = vrot.lane.b32.xlu0 %v4496, 64
      %v4499 = vpop.permute.xlu0 %4498
      %v4501 = vmul.f32 %v4483, %v4499
      %v4502 = vpack.c.bf16 %v4477, %v4477
      %v4504 = vunpack.c.l.b16 %v4502
      %v4505 = vpack.c.b16 %v4504, %v4504
      %v4506 = vrot.slane %v4505, 5
      %4507 = vrot.lane.b32.xlu0 %v4506, 32
      %v4508 = vpop.permute.xlu0 %4507
      %4510 = vst.msk [vmem:[%s374 + $0x14] sm:$0x8] %vm846, %v4508
      %v4511 = vpack.c.bf16 %v4501, %v4501
      %v4513 = vunpack.c.l.b16 %v4511
      %v4514 = vpack.c.b16 %v4513, %v4513
      %4515 = vrot.lane.b32.xlu0 %v4514, 32
      %v4516 = vpop.permute.xlu0 %4515
      %4518 = vst.msk [vmem:[%s381 + $0x8] sm:$0x1] %vm836, %v4516
      %v4519 = vld [vmem:[#allocation2 + $0x30] sm:$0x3]
      %4520 = vrot.lane.b32.xlu0 %v4502, 32
      %v4521 = vpop.permute.xlu0 %4520
      %v4523 = vsel %vm670, %v4521, 0
      %4525 = vmatprep.subr.bf16.mxu0 0
      %4526 = vmatpush1.bf16.msra.mxu0 %v666
      %4527 = vmatprep.subr.bf16.mxu0 0
      %4528 = vmatpush1.bf16.msra.mxu0 %v667
      %4529 = vmatprep.subr.bf16.mxu0 0
      %4530 = vmatpush1.bf16.msra.mxu0 0
      %4531 = vmatprep.subr.bf16.mxu0 0
      %4532 = vmatpush1.bf16.msra.mxu0 0
      %4533 = vmatprep.subr.bf16.mxu0 0
      %4534 = vmatpush1.bf16.msra.mxu0 0
      %4535 = vmatprep.subr.bf16.mxu0 0
      %4536 = vmatpush1.bf16.msra.mxu0 0
      %4537 = vmatprep.subr.bf16.mxu0 0
      %4538 = vmatpush1.bf16.msra.mxu0 0
      %4539 = vmatprep.subr.bf16.mxu0 0
      %4540 = vmatpush1.bf16.msra.mxu0 0
      %4541 = vmatprep.subr.bf16.mxu0 0
      %4542 = vmatpush1.bf16.msra.mxu0 0
      %4543 = vmatprep.subr.bf16.mxu0 0
      %4544 = vmatpush1.bf16.msra.mxu0 0
      %4545 = vmatprep.subr.bf16.mxu0 0
      %4546 = vmatpush1.bf16.msra.mxu0 0
      %4547 = vmatprep.subr.bf16.mxu0 0
      %4548 = vmatpush1.bf16.msra.mxu0 0
      %4549 = vmatprep.subr.bf16.mxu0 0
      %4550 = vmatpush1.bf16.msra.mxu0 0
      %4551 = vmatprep.subr.bf16.mxu0 0
      %4552 = vmatpush1.bf16.msra.mxu0 0
      %4553 = vmatprep.subr.bf16.mxu0 0
      %4554 = vmatpush1.bf16.msra.mxu0 0
      %4555 = vmatprep.subr.bf16.mxu0 0
      %4556 = vmatpush1.bf16.msra.mxu0 0
      %4557 = vmatprep.mubr.bf16.mxu0 0
      %4558 = vmatmul.mubr.bf16.gmra.mrb[0].mxu0 %v4523
      %v4559 = vpop.f32.mrb[0].mxu0
      %v4560 = vadd.f32 0.0, %v4559
      %v4561 = vpop.f32.mrb[0].mxu0
      %v4562 = vpop.f32.mrb[0].mxu0
      %v4563 = vpop.f32.mrb[0].mxu0
      %4564 = vdwg.mxu0
      %v4565 = vadd.f32 %v4519, %v4560
      %v4566 = vld [vmem:[#allocation3 + $0xe] sm:$0x3]
      %4567 = vrot.lane.b32.xlu0 %v4511, 32
      %v4568 = vpop.permute.xlu0 %4567
      %v4570 = vsel %vm670, %v4568, 0
      %4572 = vmatprep.subr.bf16.mxu0 0
      %4573 = vmatpush1.bf16.msra.mxu0 %v725
      %4574 = vmatprep.subr.bf16.mxu0 0
      %4575 = vmatpush1.bf16.msra.mxu0 %v726
      %4576 = vmatprep.subr.bf16.mxu0 0
      %4577 = vmatpush1.bf16.msra.mxu0 0
      %4578 = vmatprep.subr.bf16.mxu0 0
      %4579 = vmatpush1.bf16.msra.mxu0 0
      %4580 = vmatprep.subr.bf16.mxu0 0
      %4581 = vmatpush1.bf16.msra.mxu0 0
      %4582 = vmatprep.subr.bf16.mxu0 0
      %4583 = vmatpush1.bf16.msra.mxu0 0
      %4584 = vmatprep.subr.bf16.mxu0 0
      %4585 = vmatpush1.bf16.msra.mxu0 0
      %4586 = vmatprep.subr.bf16.mxu0 0
      %4587 = vmatpush1.bf16.msra.mxu0 0
      %4588 = vmatprep.subr.bf16.mxu0 0
      %4589 = vmatpush1.bf16.msra.mxu0 0
      %4590 = vmatprep.subr.bf16.mxu0 0
      %4591 = vmatpush1.bf16.msra.mxu0 0
      %4592 = vmatprep.subr.bf16.mxu0 0
      %4593 = vmatpush1.bf16.msra.mxu0 0
      %4594 = vmatprep.subr.bf16.mxu0 0
      %4595 = vmatpush1.bf16.msra.mxu0 0
      %4596 = vmatprep.subr.bf16.mxu0 0
      %4597 = vmatpush1.bf16.msra.mxu0 0
      %4598 = vmatprep.subr.bf16.mxu0 0
      %4599 = vmatpush1.bf16.msra.mxu0 0
      %4600 = vmatprep.subr.bf16.mxu0 0
      %4601 = vmatpush1.bf16.msra.mxu0 0
      %4602 = vmatprep.subr.bf16.mxu0 0
      %4603 = vmatpush1.bf16.msra.mxu0 0
      %4604 = vmatprep.mubr.bf16.mxu0 0
      %4605 = vmatmul.mubr.bf16.gmra.mrb[0].mxu0 %v4570
      %v4606 = vpop.f32.mrb[0].mxu0
      %v4607 = vadd.f32 0.0, %v4606
      %v4608 = vpop.f32.mrb[0].mxu0
      %v4609 = vpop.f32.mrb[0].mxu0
      %v4610 = vpop.f32.mrb[0].mxu0
      %4611 = vdwg.mxu0
      %v4612 = vadd.f32 %v4566, %v4607
      %v4613 = vxor.u32 %v4565, 2147483648
      %v4614 = vmul.f32 %v4613, 1.442695
      %v4615 = vpow.pop %v4614
      %v4616 = vadd.f32 %v4615, 1.0
      %v4617 = vrcp.pop %v4616
      %v4618 = vmul.f32 1.0, %v4617
      %v4619 = vtanh.pop %v4565
      %v4620 = vmul.f32 %v4618, %v4471
      %4622 = vrot.lane.b32.xlu0 %v4619, 64
      %v4623 = vpop.permute.xlu0 %4622
      %v4625 = vmul.f32 %v4618, %v4623
      %4627 = vrot.lane.b32.xlu0 %v4625, 32
      %v4628 = vpop.permute.xlu0 %4627
      %v4630 = vadd.f32 %v4620, %v4628
      %v4631 = vtanh.pop %v4630
      %4633 = vrot.lane.b32.xlu0 %v4631, 64
      %v4634 = vpop.permute.xlu0 %4633
      %v4636 = vmul.f32 %v4618, %v4634
      %v4637 = vxor.u32 %v4612, 2147483648
      %v4638 = vmul.f32 %v4637, 1.442695
      %v4639 = vpow.pop %v4638
      %v4640 = vadd.f32 %v4639, 1.0
      %v4641 = vrcp.pop %v4640
      %v4642 = vmul.f32 1.0, %v4641
      %v4643 = vtanh.pop %v4612
      %v4644 = vmul.f32 %v4642, %v4495
      %4646 = vrot.lane.b32.xlu0 %v4643, 64
      %v4647 = vpop.permute.xlu0 %4646
      %v4649 = vmul.f32 %v4642, %v4647
      %4651 = vrot.lane.b32.xlu0 %v4649, 32
      %v4652 = vpop.permute.xlu0 %4651
      %v4654 = vadd.f32 %v4644, %v4652
      %v4655 = vtanh.pop %v4654
      %4657 = vrot.lane.b32.xlu0 %v4655, 64
      %v4658 = vpop.permute.xlu0 %4657
      %v4660 = vmul.f32 %v4642, %v4658
      %v4661 = vpack.c.bf16 %v4636, %v4636
      %v4663 = vunpack.c.l.b16 %v4661
      %v4664 = vpack.c.b16 %v4663, %v4663
      %4665 = vrot.lane.b32.xlu0 %v4664, 32
      %v4666 = vpop.permute.xlu0 %4665
      %4668 = vst.msk [vmem:[%s374 + $0x18] sm:$0x1] %vm836, %v4666
      %v4669 = vpack.c.bf16 %v4660, %v4660
      %v4671 = vunpack.c.l.b16 %v4669
      %v4672 = vpack.c.b16 %v4671, %v4671
      %v4673 = vrot.slane %v4672, 5
      %4674 = vrot.lane.b32.xlu0 %v4673, 32
      %v4675 = vpop.permute.xlu0 %4674
      %4677 = vst.msk [vmem:[%s381 + $0x4] sm:$0x8] %vm846, %v4675
      %v4678 = vld [vmem:[#allocation2 + $0x32] sm:$0x3]
      %4679 = vrot.lane.b32.xlu0 %v4661, 32
      %v4680 = vpop.permute.xlu0 %4679
      %v4682 = vsel %vm670, %v4680, 0
      %4684 = vmatprep.subr.bf16.mxu0 0
      %4685 = vmatpush1.bf16.msra.mxu0 %v666
      %4686 = vmatprep.subr.bf16.mxu0 0
      %4687 = vmatpush1.bf16.msra.mxu0 %v667
      %4688 = vmatprep.subr.bf16.mxu0 0
      %4689 = vmatpush1.bf16.msra.mxu0 0
      %4690 = vmatprep.subr.bf16.mxu0 0
      %4691 = vmatpush1.bf16.msra.mxu0 0
      %4692 = vmatprep.subr.bf16.mxu0 0
      %4693 = vmatpush1.bf16.msra.mxu0 0
      %4694 = vmatprep.subr.bf16.mxu0 0
      %4695 = vmatpush1.bf16.msra.mxu0 0
      %4696 = vmatprep.subr.bf16.mxu0 0
      %4697 = vmatpush1.bf16.msra.mxu0 0
      %4698 = vmatprep.subr.bf16.mxu0 0
      %4699 = vmatpush1.bf16.msra.mxu0 0
      %4700 = vmatprep.subr.bf16.mxu0 0
      %4701 = vmatpush1.bf16.msra.mxu0 0
      %4702 = vmatprep.subr.bf16.mxu0 0
      %4703 = vmatpush1.bf16.msra.mxu0 0
      %4704 = vmatprep.subr.bf16.mxu0 0
      %4705 = vmatpush1.bf16.msra.mxu0 0
      %4706 = vmatprep.subr.bf16.mxu0 0
      %4707 = vmatpush1.bf16.msra.mxu0 0
      %4708 = vmatprep.subr.bf16.mxu0 0
      %4709 = vmatpush1.bf16.msra.mxu0 0
      %4710 = vmatprep.subr.bf16.mxu0 0
      %4711 = vmatpush1.bf16.msra.mxu0 0
      %4712 = vmatprep.subr.bf16.mxu0 0
      %4713 = vmatpush1.bf16.msra.mxu0 0
      %4714 = vmatprep.subr.bf16.mxu0 0
      %4715 = vmatpush1.bf16.msra.mxu0 0
      %4716 = vmatprep.mubr.bf16.mxu0 0
      %4717 = vmatmul.mubr.bf16.gmra.mrb[0].mxu0 %v4682
      %v4718 = vpop.f32.mrb[0].mxu0
      %v4719 = vadd.f32 0.0, %v4718
      %v4720 = vpop.f32.mrb[0].mxu0
      %v4721 = vpop.f32.mrb[0].mxu0
      %v4722 = vpop.f32.mrb[0].mxu0
      %4723 = vdwg.mxu0
      %v4724 = vadd.f32 %v4678, %v4719
      %v4725 = vld [vmem:[#allocation3 + $0xc] sm:$0x3]
      %4726 = vrot.lane.b32.xlu0 %v4669, 32
      %v4727 = vpop.permute.xlu0 %4726
      %v4729 = vsel %vm670, %v4727, 0
      %4731 = vmatprep.subr.bf16.mxu0 0
      %4732 = vmatpush1.bf16.msra.mxu0 %v725
      %4733 = vmatprep.subr.bf16.mxu0 0
      %4734 = vmatpush1.bf16.msra.mxu0 %v726
      %4735 = vmatprep.subr.bf16.mxu0 0
      %4736 = vmatpush1.bf16.msra.mxu0 0
      %4737 = vmatprep.subr.bf16.mxu0 0
      %4738 = vmatpush1.bf16.msra.mxu0 0
      %4739 = vmatprep.subr.bf16.mxu0 0
      %4740 = vmatpush1.bf16.msra.mxu0 0
      %4741 = vmatprep.subr.bf16.mxu0 0
      %4742 = vmatpush1.bf16.msra.mxu0 0
      %4743 = vmatprep.subr.bf16.mxu0 0
      %4744 = vmatpush1.bf16.msra.mxu0 0
      %4745 = vmatprep.subr.bf16.mxu0 0
      %4746 = vmatpush1.bf16.msra.mxu0 0
      %4747 = vmatprep.subr.bf16.mxu0 0
      %4748 = vmatpush1.bf16.msra.mxu0 0
      %4749 = vmatprep.subr.bf16.mxu0 0
      %4750 = vmatpush1.bf16.msra.mxu0 0
      %4751 = vmatprep.subr.bf16.mxu0 0
      %4752 = vmatpush1.bf16.msra.mxu0 0
      %4753 = vmatprep.subr.bf16.mxu0 0
      %4754 = vmatpush1.bf16.msra.mxu0 0
      %4755 = vmatprep.subr.bf16.mxu0 0
      %4756 = vmatpush1.bf16.msra.mxu0 0
      %4757 = vmatprep.subr.bf16.mxu0 0
      %4758 = vmatpush1.bf16.msra.mxu0 0
      %4759 = vmatprep.subr.bf16.mxu0 0
      %4760 = vmatpush1.bf16.msra.mxu0 0
      %4761 = vmatprep.subr.bf16.mxu0 0
      %4762 = vmatpush1.bf16.msra.mxu0 0
      %4763 = vmatprep.mubr.bf16.mxu0 0
      %4764 = vmatmul.mubr.bf16.gmra.mrb[0].mxu0 %v4729
      %v4765 = vpop.f32.mrb[0].mxu0
      %v4766 = vadd.f32 0.0, %v4765
      %v4767 = vpop.f32.mrb[0].mxu0
      %v4768 = vpop.f32.mrb[0].mxu0
      %v4769 = vpop.f32.mrb[0].mxu0
      %4770 = vdwg.mxu0
      %v4771 = vadd.f32 %v4725, %v4766
      %v4772 = vxor.u32 %v4724, 2147483648
      %v4773 = vmul.f32 %v4772, 1.442695
      %v4774 = vpow.pop %v4773
      %v4775 = vadd.f32 %v4774, 1.0
      %v4776 = vrcp.pop %v4775
      %v4777 = vmul.f32 1.0, %v4776
      %v4778 = vtanh.pop %v4724
      %v4779 = vmul.f32 %v4777, %v4630
      %4781 = vrot.lane.b32.xlu0 %v4778, 64
      %v4782 = vpop.permute.xlu0 %4781
      %v4784 = vmul.f32 %v4777, %v4782
      %4786 = vrot.lane.b32.xlu0 %v4784, 32
      %v4787 = vpop.permute.xlu0 %4786
      %v4789 = vadd.f32 %v4779, %v4787
      %v4790 = vtanh.pop %v4789
      %4792 = vrot.lane.b32.xlu0 %v4790, 64
      %v4793 = vpop.permute.xlu0 %4792
      %v4795 = vmul.f32 %v4777, %v4793
      %v4796 = vxor.u32 %v4771, 2147483648
      %v4797 = vmul.f32 %v4796, 1.442695
      %v4798 = vpow.pop %v4797
      %v4799 = vadd.f32 %v4798, 1.0
      %v4800 = vrcp.pop %v4799
      %v4801 = vmul.f32 1.0, %v4800
      %v4802 = vtanh.pop %v4771
      %v4803 = vmul.f32 %v4801, %v4654
      %4805 = vrot.lane.b32.xlu0 %v4802, 64
      %v4806 = vpop.permute.xlu0 %4805
      %v4808 = vmul.f32 %v4801, %v4806
      %4810 = vrot.lane.b32.xlu0 %v4808, 32
      %v4811 = vpop.permute.xlu0 %4810
      %v4813 = vadd.f32 %v4803, %v4811
      %v4814 = vtanh.pop %v4813
      %4816 = vrot.lane.b32.xlu0 %v4814, 64
      %v4817 = vpop.permute.xlu0 %4816
      %v4819 = vmul.f32 %v4801, %v4817
      %v4820 = vpack.c.bf16 %v4795, %v4795
      %v4822 = vunpack.c.l.b16 %v4820
      %v4823 = vpack.c.b16 %v4822, %v4822
      %v4824 = vrot.slane %v4823, 7
      %4825 = vrot.lane.b32.xlu0 %v4824, 32
      %v4826 = vpop.permute.xlu0 %4825
      %4828 = vst.msk [vmem:[%s374 + $0x18] sm:$0x2] %vm998, %v4826
      %v4829 = vpack.c.bf16 %v4819, %v4819
      %v4831 = vunpack.c.l.b16 %v4829
      %v4832 = vpack.c.b16 %v4831, %v4831
      %v4833 = vrot.slane %v4832, 6
      %4834 = vrot.lane.b32.xlu0 %v4833, 32
      %v4835 = vpop.permute.xlu0 %4834
      %4837 = vst.msk [vmem:[%s381 + $0x4] sm:$0x4] %vm1008, %v4835
      %v4838 = vld [vmem:[#allocation2 + $0x34] sm:$0x3]
      %4839 = vrot.lane.b32.xlu0 %v4820, 32
      %v4840 = vpop.permute.xlu0 %4839
      %v4842 = vsel %vm670, %v4840, 0
      %4844 = vmatprep.subr.bf16.mxu0 0
      %4845 = vmatpush1.bf16.msra.mxu0 %v666
      %4846 = vmatprep.subr.bf16.mxu0 0
      %4847 = vmatpush1.bf16.msra.mxu0 %v667
      %4848 = vmatprep.subr.bf16.mxu0 0
      %4849 = vmatpush1.bf16.msra.mxu0 0
      %4850 = vmatprep.subr.bf16.mxu0 0
      %4851 = vmatpush1.bf16.msra.mxu0 0
      %4852 = vmatprep.subr.bf16.mxu0 0
      %4853 = vmatpush1.bf16.msra.mxu0 0
      %4854 = vmatprep.subr.bf16.mxu0 0
      %4855 = vmatpush1.bf16.msra.mxu0 0
      %4856 = vmatprep.subr.bf16.mxu0 0
      %4857 = vmatpush1.bf16.msra.mxu0 0
      %4858 = vmatprep.subr.bf16.mxu0 0
      %4859 = vmatpush1.bf16.msra.mxu0 0
      %4860 = vmatprep.subr.bf16.mxu0 0
      %4861 = vmatpush1.bf16.msra.mxu0 0
      %4862 = vmatprep.subr.bf16.mxu0 0
      %4863 = vmatpush1.bf16.msra.mxu0 0
      %4864 = vmatprep.subr.bf16.mxu0 0
      %4865 = vmatpush1.bf16.msra.mxu0 0
      %4866 = vmatprep.subr.bf16.mxu0 0
      %4867 = vmatpush1.bf16.msra.mxu0 0
      %4868 = vmatprep.subr.bf16.mxu0 0
      %4869 = vmatpush1.bf16.msra.mxu0 0
      %4870 = vmatprep.subr.bf16.mxu0 0
      %4871 = vmatpush1.bf16.msra.mxu0 0
      %4872 = vmatprep.subr.bf16.mxu0 0
      %4873 = vmatpush1.bf16.msra.mxu0 0
      %4874 = vmatprep.subr.bf16.mxu0 0
      %4875 = vmatpush1.bf16.msra.mxu0 0
      %4876 = vmatprep.mubr.bf16.mxu0 0
      %4877 = vmatmul.mubr.bf16.gmra.mrb[0].mxu0 %v4842
      %v4878 = vpop.f32.mrb[0].mxu0
      %v4879 = vadd.f32 0.0, %v4878
      %v4880 = vpop.f32.mrb[0].mxu0
      %v4881 = vpop.f32.mrb[0].mxu0
      %v4882 = vpop.f32.mrb[0].mxu0
      %4883 = vdwg.mxu0
      %v4884 = vadd.f32 %v4838, %v4879
      %v4885 = vld [vmem:[#allocation3 + $0xa] sm:$0x3]
      %4886 = vrot.lane.b32.xlu0 %v4829, 32
      %v4887 = vpop.permute.xlu0 %4886
      %v4889 = vsel %vm670, %v4887, 0
      %4891 = vmatprep.subr.bf16.mxu0 0
      %4892 = vmatpush1.bf16.msra.mxu0 %v725
      %4893 = vmatprep.subr.bf16.mxu0 0
      %4894 = vmatpush1.bf16.msra.mxu0 %v726
      %4895 = vmatprep.subr.bf16.mxu0 0
      %4896 = vmatpush1.bf16.msra.mxu0 0
      %4897 = vmatprep.subr.bf16.mxu0 0
      %4898 = vmatpush1.bf16.msra.mxu0 0
      %4899 = vmatprep.subr.bf16.mxu0 0
      %4900 = vmatpush1.bf16.msra.mxu0 0
      %4901 = vmatprep.subr.bf16.mxu0 0
      %4902 = vmatpush1.bf16.msra.mxu0 0
      %4903 = vmatprep.subr.bf16.mxu0 0
      %4904 = vmatpush1.bf16.msra.mxu0 0
      %4905 = vmatprep.subr.bf16.mxu0 0
      %4906 = vmatpush1.bf16.msra.mxu0 0
      %4907 = vmatprep.subr.bf16.mxu0 0
      %4908 = vmatpush1.bf16.msra.mxu0 0
      %4909 = vmatprep.subr.bf16.mxu0 0
      %4910 = vmatpush1.bf16.msra.mxu0 0
      %4911 = vmatprep.subr.bf16.mxu0 0
      %4912 = vmatpush1.bf16.msra.mxu0 0
      %4913 = vmatprep.subr.bf16.mxu0 0
      %4914 = vmatpush1.bf16.msra.mxu0 0
      %4915 = vmatprep.subr.bf16.mxu0 0
      %4916 = vmatpush1.bf16.msra.mxu0 0
      %4917 = vmatprep.subr.bf16.mxu0 0
      %4918 = vmatpush1.bf16.msra.mxu0 0
      %4919 = vmatprep.subr.bf16.mxu0 0
      %4920 = vmatpush1.bf16.msra.mxu0 0
      %4921 = vmatprep.subr.bf16.mxu0 0
      %4922 = vmatpush1.bf16.msra.mxu0 0
      %4923 = vmatprep.mubr.bf16.mxu0 0
      %4924 = vmatmul.mubr.bf16.gmra.mrb[0].mxu0 %v4889
      %v4925 = vpop.f32.mrb[0].mxu0
      %v4926 = vadd.f32 0.0, %v4925
      %v4927 = vpop.f32.mrb[0].mxu0
      %v4928 = vpop.f32.mrb[0].mxu0
      %v4929 = vpop.f32.mrb[0].mxu0
      %4930 = vdwg.mxu0
      %v4931 = vadd.f32 %v4885, %v4926
      %v4932 = vxor.u32 %v4884, 2147483648
      %v4933 = vmul.f32 %v4932, 1.442695
      %v4934 = vpow.pop %v4933
      %v4935 = vadd.f32 %v4934, 1.0
      %v4936 = vrcp.pop %v4935
      %v4937 = vmul.f32 1.0, %v4936
      %v4938 = vtanh.pop %v4884
      %v4939 = vmul.f32 %v4937, %v4789
      %4941 = vrot.lane.b32.xlu0 %v4938, 64
      %v4942 = vpop.permute.xlu0 %4941
      %v4944 = vmul.f32 %v4937, %v4942
      %4946 = vrot.lane.b32.xlu0 %v4944, 32
      %v4947 = vpop.permute.xlu0 %4946
      %v4949 = vadd.f32 %v4939, %v4947
      %v4950 = vtanh.pop %v4949
      %4952 = vrot.lane.b32.xlu0 %v4950, 64
      %v4953 = vpop.permute.xlu0 %4952
      %v4955 = vmul.f32 %v4937, %v4953
      %v4956 = vxor.u32 %v4931, 2147483648
      %v4957 = vmul.f32 %v4956, 1.442695
      %v4958 = vpow.pop %v4957
      %v4959 = vadd.f32 %v4958, 1.0
      %v4960 = vrcp.pop %v4959
      %v4961 = vmul.f32 1.0, %v4960
      %v4962 = vtanh.pop %v4931
      %v4963 = vmul.f32 %v4961, %v4813
      %4965 = vrot.lane.b32.xlu0 %v4962, 64
      %v4966 = vpop.permute.xlu0 %4965
      %v4968 = vmul.f32 %v4961, %v4966
      %4970 = vrot.lane.b32.xlu0 %v4968, 32
      %v4971 = vpop.permute.xlu0 %4970
      %v4973 = vadd.f32 %v4963, %v4971
      %v4974 = vtanh.pop %v4973
      %4976 = vrot.lane.b32.xlu0 %v4974, 64
      %v4977 = vpop.permute.xlu0 %4976
      %v4979 = vmul.f32 %v4961, %v4977
      %v4980 = vpack.c.bf16 %v4955, %v4955
      %v4982 = vunpack.c.l.b16 %v4980
      %v4983 = vpack.c.b16 %v4982, %v4982
      %v4984 = vrot.slane %v4983, 6
      %4985 = vrot.lane.b32.xlu0 %v4984, 32
      %v4986 = vpop.permute.xlu0 %4985
      %4988 = vst.msk [vmem:[%s374 + $0x18] sm:$0x4] %vm1008, %v4986
      %v4989 = vpack.c.bf16 %v4979, %v4979
      %v4991 = vunpack.c.l.b16 %v4989
      %v4992 = vpack.c.b16 %v4991, %v4991
      %v4993 = vrot.slane %v4992, 7
      %4994 = vrot.lane.b32.xlu0 %v4993, 32
      %v4995 = vpop.permute.xlu0 %4994
      %4997 = vst.msk [vmem:[%s381 + $0x4] sm:$0x2] %vm998, %v4995
      %v4998 = vld [vmem:[#allocation2 + $0x36] sm:$0x3]
      %4999 = vrot.lane.b32.xlu0 %v4980, 32
      %v5000 = vpop.permute.xlu0 %4999
      %v5002 = vsel %vm670, %v5000, 0
      %5004 = vmatprep.subr.bf16.mxu0 0
      %5005 = vmatpush1.bf16.msra.mxu0 %v666
      %5006 = vmatprep.subr.bf16.mxu0 0
      %5007 = vmatpush1.bf16.msra.mxu0 %v667
      %5008 = vmatprep.subr.bf16.mxu0 0
      %5009 = vmatpush1.bf16.msra.mxu0 0
      %5010 = vmatprep.subr.bf16.mxu0 0
      %5011 = vmatpush1.bf16.msra.mxu0 0
      %5012 = vmatprep.subr.bf16.mxu0 0
      %5013 = vmatpush1.bf16.msra.mxu0 0
      %5014 = vmatprep.subr.bf16.mxu0 0
      %5015 = vmatpush1.bf16.msra.mxu0 0
      %5016 = vmatprep.subr.bf16.mxu0 0
      %5017 = vmatpush1.bf16.msra.mxu0 0
      %5018 = vmatprep.subr.bf16.mxu0 0
      %5019 = vmatpush1.bf16.msra.mxu0 0
      %5020 = vmatprep.subr.bf16.mxu0 0
      %5021 = vmatpush1.bf16.msra.mxu0 0
      %5022 = vmatprep.subr.bf16.mxu0 0
      %5023 = vmatpush1.bf16.msra.mxu0 0
      %5024 = vmatprep.subr.bf16.mxu0 0
      %5025 = vmatpush1.bf16.msra.mxu0 0
      %5026 = vmatprep.subr.bf16.mxu0 0
      %5027 = vmatpush1.bf16.msra.mxu0 0
      %5028 = vmatprep.subr.bf16.mxu0 0
      %5029 = vmatpush1.bf16.msra.mxu0 0
      %5030 = vmatprep.subr.bf16.mxu0 0
      %5031 = vmatpush1.bf16.msra.mxu0 0
      %5032 = vmatprep.subr.bf16.mxu0 0
      %5033 = vmatpush1.bf16.msra.mxu0 0
      %5034 = vmatprep.subr.bf16.mxu0 0
      %5035 = vmatpush1.bf16.msra.mxu0 0
      %5036 = vmatprep.mubr.bf16.mxu0 0
      %5037 = vmatmul.mubr.bf16.gmra.mrb[0].mxu0 %v5002
      %v5038 = vpop.f32.mrb[0].mxu0
      %v5039 = vadd.f32 0.0, %v5038
      %v5040 = vpop.f32.mrb[0].mxu0
      %v5041 = vpop.f32.mrb[0].mxu0
      %v5042 = vpop.f32.mrb[0].mxu0
      %5043 = vdwg.mxu0
      %v5044 = vadd.f32 %v4998, %v5039
      %v5045 = vld [vmem:[#allocation3 + $0x8] sm:$0x3]
      %5046 = vrot.lane.b32.xlu0 %v4989, 32
      %v5047 = vpop.permute.xlu0 %5046
      %v5049 = vsel %vm670, %v5047, 0
      %5051 = vmatprep.subr.bf16.mxu0 0
      %5052 = vmatpush1.bf16.msra.mxu0 %v725
      %5053 = vmatprep.subr.bf16.mxu0 0
      %5054 = vmatpush1.bf16.msra.mxu0 %v726
      %5055 = vmatprep.subr.bf16.mxu0 0
      %5056 = vmatpush1.bf16.msra.mxu0 0
      %5057 = vmatprep.subr.bf16.mxu0 0
      %5058 = vmatpush1.bf16.msra.mxu0 0
      %5059 = vmatprep.subr.bf16.mxu0 0
      %5060 = vmatpush1.bf16.msra.mxu0 0
      %5061 = vmatprep.subr.bf16.mxu0 0
      %5062 = vmatpush1.bf16.msra.mxu0 0
      %5063 = vmatprep.subr.bf16.mxu0 0
      %5064 = vmatpush1.bf16.msra.mxu0 0
      %5065 = vmatprep.subr.bf16.mxu0 0
      %5066 = vmatpush1.bf16.msra.mxu0 0
      %5067 = vmatprep.subr.bf16.mxu0 0
      %5068 = vmatpush1.bf16.msra.mxu0 0
      %5069 = vmatprep.subr.bf16.mxu0 0
      %5070 = vmatpush1.bf16.msra.mxu0 0
      %5071 = vmatprep.subr.bf16.mxu0 0
      %5072 = vmatpush1.bf16.msra.mxu0 0
      %5073 = vmatprep.subr.bf16.mxu0 0
      %5074 = vmatpush1.bf16.msra.mxu0 0
      %5075 = vmatprep.subr.bf16.mxu0 0
      %5076 = vmatpush1.bf16.msra.mxu0 0
      %5077 = vmatprep.subr.bf16.mxu0 0
      %5078 = vmatpush1.bf16.msra.mxu0 0
      %5079 = vmatprep.subr.bf16.mxu0 0
      %5080 = vmatpush1.bf16.msra.mxu0 0
      %5081 = vmatprep.subr.bf16.mxu0 0
      %5082 = vmatpush1.bf16.msra.mxu0 0
      %5083 = vmatprep.mubr.bf16.mxu0 0
      %5084 = vmatmul.mubr.bf16.gmra.mrb[0].mxu0 %v5049
      %v5085 = vpop.f32.mrb[0].mxu0
      %v5086 = vadd.f32 0.0, %v5085
      %v5087 = vpop.f32.mrb[0].mxu0
      %v5088 = vpop.f32.mrb[0].mxu0
      %v5089 = vpop.f32.mrb[0].mxu0
      %5090 = vdwg.mxu0
      %v5091 = vadd.f32 %v5045, %v5086
      %v5092 = vxor.u32 %v5044, 2147483648
      %v5093 = vmul.f32 %v5092, 1.442695
      %v5094 = vpow.pop %v5093
      %v5095 = vadd.f32 %v5094, 1.0
      %v5096 = vrcp.pop %v5095
      %v5097 = vmul.f32 1.0, %v5096
      %v5098 = vtanh.pop %v5044
      %v5099 = vmul.f32 %v5097, %v4949
      %5101 = vrot.lane.b32.xlu0 %v5098, 64
      %v5102 = vpop.permute.xlu0 %5101
      %v5104 = vmul.f32 %v5097, %v5102
      %5106 = vrot.lane.b32.xlu0 %v5104, 32
      %v5107 = vpop.permute.xlu0 %5106
      %v5109 = vadd.f32 %v5099, %v5107
      %v5110 = vtanh.pop %v5109
      %5112 = vrot.lane.b32.xlu0 %v5110, 64
      %v5113 = vpop.permute.xlu0 %5112
      %v5115 = vmul.f32 %v5097, %v5113
      %v5116 = vxor.u32 %v5091, 2147483648
      %v5117 = vmul.f32 %v5116, 1.442695
      %v5118 = vpow.pop %v5117
      %v5119 = vadd.f32 %v5118, 1.0
      %v5120 = vrcp.pop %v5119
      %v5121 = vmul.f32 1.0, %v5120
      %v5122 = vtanh.pop %v5091
      %v5123 = vmul.f32 %v5121, %v4973
      %5125 = vrot.lane.b32.xlu0 %v5122, 64
      %v5126 = vpop.permute.xlu0 %5125
      %v5128 = vmul.f32 %v5121, %v5126
      %5130 = vrot.lane.b32.xlu0 %v5128, 32
      %v5131 = vpop.permute.xlu0 %5130
      %v5133 = vadd.f32 %v5123, %v5131
      %v5134 = vtanh.pop %v5133
      %5136 = vrot.lane.b32.xlu0 %v5134, 64
      %v5137 = vpop.permute.xlu0 %5136
      %v5139 = vmul.f32 %v5121, %v5137
      %v5140 = vpack.c.bf16 %v5115, %v5115
      %v5142 = vunpack.c.l.b16 %v5140
      %v5143 = vpack.c.b16 %v5142, %v5142
      %v5144 = vrot.slane %v5143, 5
      %5145 = vrot.lane.b32.xlu0 %v5144, 32
      %v5146 = vpop.permute.xlu0 %5145
      %5148 = vst.msk [vmem:[%s374 + $0x18] sm:$0x8] %vm846, %v5146
      %v5149 = vpack.c.bf16 %v5139, %v5139
      %v5151 = vunpack.c.l.b16 %v5149
      %v5152 = vpack.c.b16 %v5151, %v5151
      %5153 = vrot.lane.b32.xlu0 %v5152, 32
      %v5154 = vpop.permute.xlu0 %5153
      %5156 = vst.msk [vmem:[%s381 + $0x4] sm:$0x1] %vm836, %v5154
      %v5157 = vld [vmem:[#allocation2 + $0x38] sm:$0x3]
      %5158 = vrot.lane.b32.xlu0 %v5140, 32
      %v5159 = vpop.permute.xlu0 %5158
      %v5161 = vsel %vm670, %v5159, 0
      %5163 = vmatprep.subr.bf16.mxu0 0
      %5164 = vmatpush1.bf16.msra.mxu0 %v666
      %5165 = vmatprep.subr.bf16.mxu0 0
      %5166 = vmatpush1.bf16.msra.mxu0 %v667
      %5167 = vmatprep.subr.bf16.mxu0 0
      %5168 = vmatpush1.bf16.msra.mxu0 0
      %5169 = vmatprep.subr.bf16.mxu0 0
      %5170 = vmatpush1.bf16.msra.mxu0 0
      %5171 = vmatprep.subr.bf16.mxu0 0
      %5172 = vmatpush1.bf16.msra.mxu0 0
      %5173 = vmatprep.subr.bf16.mxu0 0
      %5174 = vmatpush1.bf16.msra.mxu0 0
      %5175 = vmatprep.subr.bf16.mxu0 0
      %5176 = vmatpush1.bf16.msra.mxu0 0
      %5177 = vmatprep.subr.bf16.mxu0 0
      %5178 = vmatpush1.bf16.msra.mxu0 0
      %5179 = vmatprep.subr.bf16.mxu0 0
      %5180 = vmatpush1.bf16.msra.mxu0 0
      %5181 = vmatprep.subr.bf16.mxu0 0
      %5182 = vmatpush1.bf16.msra.mxu0 0
      %5183 = vmatprep.subr.bf16.mxu0 0
      %5184 = vmatpush1.bf16.msra.mxu0 0
      %5185 = vmatprep.subr.bf16.mxu0 0
      %5186 = vmatpush1.bf16.msra.mxu0 0
      %5187 = vmatprep.subr.bf16.mxu0 0
      %5188 = vmatpush1.bf16.msra.mxu0 0
      %5189 = vmatprep.subr.bf16.mxu0 0
      %5190 = vmatpush1.bf16.msra.mxu0 0
      %5191 = vmatprep.subr.bf16.mxu0 0
      %5192 = vmatpush1.bf16.msra.mxu0 0
      %5193 = vmatprep.subr.bf16.mxu0 0
      %5194 = vmatpush1.bf16.msra.mxu0 0
      %5195 = vmatprep.mubr.bf16.mxu0 0
      %5196 = vmatmul.mubr.bf16.gmra.mrb[0].mxu0 %v5161
      %v5197 = vpop.f32.mrb[0].mxu0
      %v5198 = vadd.f32 0.0, %v5197
      %v5199 = vpop.f32.mrb[0].mxu0
      %v5200 = vpop.f32.mrb[0].mxu0
      %v5201 = vpop.f32.mrb[0].mxu0
      %5202 = vdwg.mxu0
      %v5203 = vadd.f32 %v5157, %v5198
      %v5204 = vld [vmem:[#allocation3 + $0x6] sm:$0x3]
      %5205 = vrot.lane.b32.xlu0 %v5149, 32
      %v5206 = vpop.permute.xlu0 %5205
      %v5208 = vsel %vm670, %v5206, 0
      %5210 = vmatprep.subr.bf16.mxu0 0
      %5211 = vmatpush1.bf16.msra.mxu0 %v725
      %5212 = vmatprep.subr.bf16.mxu0 0
      %5213 = vmatpush1.bf16.msra.mxu0 %v726
      %5214 = vmatprep.subr.bf16.mxu0 0
      %5215 = vmatpush1.bf16.msra.mxu0 0
      %5216 = vmatprep.subr.bf16.mxu0 0
      %5217 = vmatpush1.bf16.msra.mxu0 0
      %5218 = vmatprep.subr.bf16.mxu0 0
      %5219 = vmatpush1.bf16.msra.mxu0 0
      %5220 = vmatprep.subr.bf16.mxu0 0
      %5221 = vmatpush1.bf16.msra.mxu0 0
      %5222 = vmatprep.subr.bf16.mxu0 0
      %5223 = vmatpush1.bf16.msra.mxu0 0
      %5224 = vmatprep.subr.bf16.mxu0 0
      %5225 = vmatpush1.bf16.msra.mxu0 0
      %5226 = vmatprep.subr.bf16.mxu0 0
      %5227 = vmatpush1.bf16.msra.mxu0 0
      %5228 = vmatprep.subr.bf16.mxu0 0
      %5229 = vmatpush1.bf16.msra.mxu0 0
      %5230 = vmatprep.subr.bf16.mxu0 0
      %5231 = vmatpush1.bf16.msra.mxu0 0
      %5232 = vmatprep.subr.bf16.mxu0 0
      %5233 = vmatpush1.bf16.msra.mxu0 0
      %5234 = vmatprep.subr.bf16.mxu0 0
      %5235 = vmatpush1.bf16.msra.mxu0 0
      %5236 = vmatprep.subr.bf16.mxu0 0
      %5237 = vmatpush1.bf16.msra.mxu0 0
      %5238 = vmatprep.subr.bf16.mxu0 0
      %5239 = vmatpush1.bf16.msra.mxu0 0
      %5240 = vmatprep.subr.bf16.mxu0 0
      %5241 = vmatpush1.bf16.msra.mxu0 0
      %5242 = vmatprep.mubr.bf16.mxu0 0
      %5243 = vmatmul.mubr.bf16.gmra.mrb[0].mxu0 %v5208
      %v5244 = vpop.f32.mrb[0].mxu0
      %v5245 = vadd.f32 0.0, %v5244
      %v5246 = vpop.f32.mrb[0].mxu0
      %v5247 = vpop.f32.mrb[0].mxu0
      %v5248 = vpop.f32.mrb[0].mxu0
      %5249 = vdwg.mxu0
      %v5250 = vadd.f32 %v5204, %v5245
      %v5251 = vxor.u32 %v5203, 2147483648
      %v5252 = vmul.f32 %v5251, 1.442695
      %v5253 = vpow.pop %v5252
      %v5254 = vadd.f32 %v5253, 1.0
      %v5255 = vrcp.pop %v5254
      %v5256 = vmul.f32 1.0, %v5255
      %v5257 = vtanh.pop %v5203
      %v5258 = vmul.f32 %v5256, %v5109
      %5260 = vrot.lane.b32.xlu0 %v5257, 64
      %v5261 = vpop.permute.xlu0 %5260
      %v5263 = vmul.f32 %v5256, %v5261
      %5265 = vrot.lane.b32.xlu0 %v5263, 32
      %v5266 = vpop.permute.xlu0 %5265
      %v5268 = vadd.f32 %v5258, %v5266
      %v5269 = vtanh.pop %v5268
      %5271 = vrot.lane.b32.xlu0 %v5269, 64
      %v5272 = vpop.permute.xlu0 %5271
      %v5274 = vmul.f32 %v5256, %v5272
      %v5275 = vxor.u32 %v5250, 2147483648
      %v5276 = vmul.f32 %v5275, 1.442695
      %v5277 = vpow.pop %v5276
      %v5278 = vadd.f32 %v5277, 1.0
      %v5279 = vrcp.pop %v5278
      %v5280 = vmul.f32 1.0, %v5279
      %v5281 = vtanh.pop %v5250
      %v5282 = vmul.f32 %v5280, %v5133
      %5284 = vrot.lane.b32.xlu0 %v5281, 64
      %v5285 = vpop.permute.xlu0 %5284
      %v5287 = vmul.f32 %v5280, %v5285
      %5289 = vrot.lane.b32.xlu0 %v5287, 32
      %v5290 = vpop.permute.xlu0 %5289
      %v5292 = vadd.f32 %v5282, %v5290
      %v5293 = vtanh.pop %v5292
      %5295 = vrot.lane.b32.xlu0 %v5293, 64
      %v5296 = vpop.permute.xlu0 %5295
      %v5298 = vmul.f32 %v5280, %v5296
      %v5299 = vpack.c.bf16 %v5274, %v5274
      %v5301 = vunpack.c.l.b16 %v5299
      %v5302 = vpack.c.b16 %v5301, %v5301
      %5303 = vrot.lane.b32.xlu0 %v5302, 32
      %v5304 = vpop.permute.xlu0 %5303
      %5306 = vst.msk [vmem:[%s374 + $0x1c] sm:$0x1] %vm836, %v5304
      %v5307 = vpack.c.bf16 %v5298, %v5298
      %v5309 = vunpack.c.l.b16 %v5307
      %v5310 = vpack.c.b16 %v5309, %v5309
      %v5311 = vrot.slane %v5310, 5
      %5312 = vrot.lane.b32.xlu0 %v5311, 32
      %v5313 = vpop.permute.xlu0 %5312
      %5315 = vst.msk [vmem:[%s381] sm:$0x8] %vm846, %v5313
      %v5316 = vld [vmem:[#allocation2 + $0x3a] sm:$0x3]
      %5317 = vrot.lane.b32.xlu0 %v5299, 32
      %v5318 = vpop.permute.xlu0 %5317
      %v5320 = vsel %vm670, %v5318, 0
      %5322 = vmatprep.subr.bf16.mxu0 0
      %5323 = vmatpush1.bf16.msra.mxu0 %v666
      %5324 = vmatprep.subr.bf16.mxu0 0
      %5325 = vmatpush1.bf16.msra.mxu0 %v667
      %5326 = vmatprep.subr.bf16.mxu0 0
      %5327 = vmatpush1.bf16.msra.mxu0 0
      %5328 = vmatprep.subr.bf16.mxu0 0
      %5329 = vmatpush1.bf16.msra.mxu0 0
      %5330 = vmatprep.subr.bf16.mxu0 0
      %5331 = vmatpush1.bf16.msra.mxu0 0
      %5332 = vmatprep.subr.bf16.mxu0 0
      %5333 = vmatpush1.bf16.msra.mxu0 0
      %5334 = vmatprep.subr.bf16.mxu0 0
      %5335 = vmatpush1.bf16.msra.mxu0 0
      %5336 = vmatprep.subr.bf16.mxu0 0
      %5337 = vmatpush1.bf16.msra.mxu0 0
      %5338 = vmatprep.subr.bf16.mxu0 0
      %5339 = vmatpush1.bf16.msra.mxu0 0
      %5340 = vmatprep.subr.bf16.mxu0 0
      %5341 = vmatpush1.bf16.msra.mxu0 0
      %5342 = vmatprep.subr.bf16.mxu0 0
      %5343 = vmatpush1.bf16.msra.mxu0 0
      %5344 = vmatprep.subr.bf16.mxu0 0
      %5345 = vmatpush1.bf16.msra.mxu0 0
      %5346 = vmatprep.subr.bf16.mxu0 0
      %5347 = vmatpush1.bf16.msra.mxu0 0
      %5348 = vmatprep.subr.bf16.mxu0 0
      %5349 = vmatpush1.bf16.msra.mxu0 0
      %5350 = vmatprep.subr.bf16.mxu0 0
      %5351 = vmatpush1.bf16.msra.mxu0 0
      %5352 = vmatprep.subr.bf16.mxu0 0
      %5353 = vmatpush1.bf16.msra.mxu0 0
      %5354 = vmatprep.mubr.bf16.mxu0 0
      %5355 = vmatmul.mubr.bf16.gmra.mrb[0].mxu0 %v5320
      %v5356 = vpop.f32.mrb[0].mxu0
      %v5357 = vadd.f32 0.0, %v5356
      %v5358 = vpop.f32.mrb[0].mxu0
      %v5359 = vpop.f32.mrb[0].mxu0
      %v5360 = vpop.f32.mrb[0].mxu0
      %5361 = vdwg.mxu0
      %v5362 = vadd.f32 %v5316, %v5357
      %v5363 = vld [vmem:[#allocation3 + $0x4] sm:$0x3]
      %5364 = vrot.lane.b32.xlu0 %v5307, 32
      %v5365 = vpop.permute.xlu0 %5364
      %v5367 = vsel %vm670, %v5365, 0
      %5369 = vmatprep.subr.bf16.mxu0 0
      %5370 = vmatpush1.bf16.msra.mxu0 %v725
      %5371 = vmatprep.subr.bf16.mxu0 0
      %5372 = vmatpush1.bf16.msra.mxu0 %v726
      %5373 = vmatprep.subr.bf16.mxu0 0
      %5374 = vmatpush1.bf16.msra.mxu0 0
      %5375 = vmatprep.subr.bf16.mxu0 0
      %5376 = vmatpush1.bf16.msra.mxu0 0
      %5377 = vmatprep.subr.bf16.mxu0 0
      %5378 = vmatpush1.bf16.msra.mxu0 0
      %5379 = vmatprep.subr.bf16.mxu0 0
      %5380 = vmatpush1.bf16.msra.mxu0 0
      %5381 = vmatprep.subr.bf16.mxu0 0
      %5382 = vmatpush1.bf16.msra.mxu0 0
      %5383 = vmatprep.subr.bf16.mxu0 0
      %5384 = vmatpush1.bf16.msra.mxu0 0
      %5385 = vmatprep.subr.bf16.mxu0 0
      %5386 = vmatpush1.bf16.msra.mxu0 0
      %5387 = vmatprep.subr.bf16.mxu0 0
      %5388 = vmatpush1.bf16.msra.mxu0 0
      %5389 = vmatprep.subr.bf16.mxu0 0
      %5390 = vmatpush1.bf16.msra.mxu0 0
      %5391 = vmatprep.subr.bf16.mxu0 0
      %5392 = vmatpush1.bf16.msra.mxu0 0
      %5393 = vmatprep.subr.bf16.mxu0 0
      %5394 = vmatpush1.bf16.msra.mxu0 0
      %5395 = vmatprep.subr.bf16.mxu0 0
      %5396 = vmatpush1.bf16.msra.mxu0 0
      %5397 = vmatprep.subr.bf16.mxu0 0
      %5398 = vmatpush1.bf16.msra.mxu0 0
      %5399 = vmatprep.subr.bf16.mxu0 0
      %5400 = vmatpush1.bf16.msra.mxu0 0
      %5401 = vmatprep.mubr.bf16.mxu0 0
      %5402 = vmatmul.mubr.bf16.gmra.mrb[0].mxu0 %v5367
      %v5403 = vpop.f32.mrb[0].mxu0
      %v5404 = vadd.f32 0.0, %v5403
      %v5405 = vpop.f32.mrb[0].mxu0
      %v5406 = vpop.f32.mrb[0].mxu0
      %v5407 = vpop.f32.mrb[0].mxu0
      %5408 = vdwg.mxu0
      %v5409 = vadd.f32 %v5363, %v5404
      %v5410 = vxor.u32 %v5362, 2147483648
      %v5411 = vmul.f32 %v5410, 1.442695
      %v5412 = vpow.pop %v5411
      %v5413 = vadd.f32 %v5412, 1.0
      %v5414 = vrcp.pop %v5413
      %v5415 = vmul.f32 1.0, %v5414
      %v5416 = vtanh.pop %v5362
      %v5417 = vmul.f32 %v5415, %v5268
      %5419 = vrot.lane.b32.xlu0 %v5416, 64
      %v5420 = vpop.permute.xlu0 %5419
      %v5422 = vmul.f32 %v5415, %v5420
      %5424 = vrot.lane.b32.xlu0 %v5422, 32
      %v5425 = vpop.permute.xlu0 %5424
      %v5427 = vadd.f32 %v5417, %v5425
      %v5428 = vtanh.pop %v5427
      %5430 = vrot.lane.b32.xlu0 %v5428, 64
      %v5431 = vpop.permute.xlu0 %5430
      %v5433 = vmul.f32 %v5415, %v5431
      %v5434 = vxor.u32 %v5409, 2147483648
      %v5435 = vmul.f32 %v5434, 1.442695
      %v5436 = vpow.pop %v5435
      %v5437 = vadd.f32 %v5436, 1.0
      %v5438 = vrcp.pop %v5437
      %v5439 = vmul.f32 1.0, %v5438
      %v5440 = vtanh.pop %v5409
      %v5441 = vmul.f32 %v5439, %v5292
      %5443 = vrot.lane.b32.xlu0 %v5440, 64
      %v5444 = vpop.permute.xlu0 %5443
      %v5446 = vmul.f32 %v5439, %v5444
      %5448 = vrot.lane.b32.xlu0 %v5446, 32
      %v5449 = vpop.permute.xlu0 %5448
      %v5451 = vadd.f32 %v5441, %v5449
      %v5452 = vtanh.pop %v5451
      %5454 = vrot.lane.b32.xlu0 %v5452, 64
      %v5455 = vpop.permute.xlu0 %5454
      %v5457 = vmul.f32 %v5439, %v5455
      %v5458 = vpack.c.bf16 %v5433, %v5433
      %v5460 = vunpack.c.l.b16 %v5458
      %v5461 = vpack.c.b16 %v5460, %v5460
      %v5462 = vrot.slane %v5461, 7
      %5463 = vrot.lane.b32.xlu0 %v5462, 32
      %v5464 = vpop.permute.xlu0 %5463
      %5466 = vst.msk [vmem:[%s374 + $0x1c] sm:$0x2] %vm998, %v5464
      %v5467 = vpack.c.bf16 %v5457, %v5457
      %v5469 = vunpack.c.l.b16 %v5467
      %v5470 = vpack.c.b16 %v5469, %v5469
      %v5471 = vrot.slane %v5470, 6
      %5472 = vrot.lane.b32.xlu0 %v5471, 32
      %v5473 = vpop.permute.xlu0 %5472
      %5475 = vst.msk [vmem:[%s381] sm:$0x4] %vm1008, %v5473
      %v5476 = vld [vmem:[#allocation2 + $0x3c] sm:$0x3]
      %5477 = vrot.lane.b32.xlu0 %v5458, 32
      %v5478 = vpop.permute.xlu0 %5477
      %v5480 = vsel %vm670, %v5478, 0
      %5482 = vmatprep.subr.bf16.mxu0 0
      %5483 = vmatpush1.bf16.msra.mxu0 %v666
      %5484 = vmatprep.subr.bf16.mxu0 0
      %5485 = vmatpush1.bf16.msra.mxu0 %v667
      %5486 = vmatprep.subr.bf16.mxu0 0
      %5487 = vmatpush1.bf16.msra.mxu0 0
      %5488 = vmatprep.subr.bf16.mxu0 0
      %5489 = vmatpush1.bf16.msra.mxu0 0
      %5490 = vmatprep.subr.bf16.mxu0 0
      %5491 = vmatpush1.bf16.msra.mxu0 0
      %5492 = vmatprep.subr.bf16.mxu0 0
      %5493 = vmatpush1.bf16.msra.mxu0 0
      %5494 = vmatprep.subr.bf16.mxu0 0
      %5495 = vmatpush1.bf16.msra.mxu0 0
      %5496 = vmatprep.subr.bf16.mxu0 0
      %5497 = vmatpush1.bf16.msra.mxu0 0
      %5498 = vmatprep.subr.bf16.mxu0 0
      %5499 = vmatpush1.bf16.msra.mxu0 0
      %5500 = vmatprep.subr.bf16.mxu0 0
      %5501 = vmatpush1.bf16.msra.mxu0 0
      %5502 = vmatprep.subr.bf16.mxu0 0
      %5503 = vmatpush1.bf16.msra.mxu0 0
      %5504 = vmatprep.subr.bf16.mxu0 0
      %5505 = vmatpush1.bf16.msra.mxu0 0
      %5506 = vmatprep.subr.bf16.mxu0 0
      %5507 = vmatpush1.bf16.msra.mxu0 0
      %5508 = vmatprep.subr.bf16.mxu0 0
      %5509 = vmatpush1.bf16.msra.mxu0 0
      %5510 = vmatprep.subr.bf16.mxu0 0
      %5511 = vmatpush1.bf16.msra.mxu0 0
      %5512 = vmatprep.subr.bf16.mxu0 0
      %5513 = vmatpush1.bf16.msra.mxu0 0
      %5514 = vmatprep.mubr.bf16.mxu0 0
      %5515 = vmatmul.mubr.bf16.gmra.mrb[0].mxu0 %v5480
      %v5516 = vpop.f32.mrb[0].mxu0
      %v5517 = vadd.f32 0.0, %v5516
      %v5518 = vpop.f32.mrb[0].mxu0
      %v5519 = vpop.f32.mrb[0].mxu0
      %v5520 = vpop.f32.mrb[0].mxu0
      %5521 = vdwg.mxu0
      %v5522 = vadd.f32 %v5476, %v5517
      %v5523 = vld [vmem:[#allocation3 + $0x2] sm:$0x3]
      %5524 = vrot.lane.b32.xlu0 %v5467, 32
      %v5525 = vpop.permute.xlu0 %5524
      %v5527 = vsel %vm670, %v5525, 0
      %5529 = vmatprep.subr.bf16.mxu0 0
      %5530 = vmatpush1.bf16.msra.mxu0 %v725
      %5531 = vmatprep.subr.bf16.mxu0 0
      %5532 = vmatpush1.bf16.msra.mxu0 %v726
      %5533 = vmatprep.subr.bf16.mxu0 0
      %5534 = vmatpush1.bf16.msra.mxu0 0
      %5535 = vmatprep.subr.bf16.mxu0 0
      %5536 = vmatpush1.bf16.msra.mxu0 0
      %5537 = vmatprep.subr.bf16.mxu0 0
      %5538 = vmatpush1.bf16.msra.mxu0 0
      %5539 = vmatprep.subr.bf16.mxu0 0
      %5540 = vmatpush1.bf16.msra.mxu0 0
      %5541 = vmatprep.subr.bf16.mxu0 0
      %5542 = vmatpush1.bf16.msra.mxu0 0
      %5543 = vmatprep.subr.bf16.mxu0 0
      %5544 = vmatpush1.bf16.msra.mxu0 0
      %5545 = vmatprep.subr.bf16.mxu0 0
      %5546 = vmatpush1.bf16.msra.mxu0 0
      %5547 = vmatprep.subr.bf16.mxu0 0
      %5548 = vmatpush1.bf16.msra.mxu0 0
      %5549 = vmatprep.subr.bf16.mxu0 0
      %5550 = vmatpush1.bf16.msra.mxu0 0
      %5551 = vmatprep.subr.bf16.mxu0 0
      %5552 = vmatpush1.bf16.msra.mxu0 0
      %5553 = vmatprep.subr.bf16.mxu0 0
      %5554 = vmatpush1.bf16.msra.mxu0 0
      %5555 = vmatprep.subr.bf16.mxu0 0
      %5556 = vmatpush1.bf16.msra.mxu0 0
      %5557 = vmatprep.subr.bf16.mxu0 0
      %5558 = vmatpush1.bf16.msra.mxu0 0
      %5559 = vmatprep.subr.bf16.mxu0 0
      %5560 = vmatpush1.bf16.msra.mxu0 0
      %5561 = vmatprep.mubr.bf16.mxu0 0
      %5562 = vmatmul.mubr.bf16.gmra.mrb[0].mxu0 %v5527
      %v5563 = vpop.f32.mrb[0].mxu0
      %v5564 = vadd.f32 0.0, %v5563
      %v5565 = vpop.f32.mrb[0].mxu0
      %v5566 = vpop.f32.mrb[0].mxu0
      %v5567 = vpop.f32.mrb[0].mxu0
      %5568 = vdwg.mxu0
      %v5569 = vadd.f32 %v5523, %v5564
      %v5570 = vxor.u32 %v5522, 2147483648
      %v5571 = vmul.f32 %v5570, 1.442695
      %v5572 = vpow.pop %v5571
      %v5573 = vadd.f32 %v5572, 1.0
      %v5574 = vrcp.pop %v5573
      %v5575 = vmul.f32 1.0, %v5574
      %v5576 = vtanh.pop %v5522
      %v5577 = vmul.f32 %v5575, %v5427
      %5579 = vrot.lane.b32.xlu0 %v5576, 64
      %v5580 = vpop.permute.xlu0 %5579
      %v5582 = vmul.f32 %v5575, %v5580
      %5584 = vrot.lane.b32.xlu0 %v5582, 32
      %v5585 = vpop.permute.xlu0 %5584
      %v5587 = vadd.f32 %v5577, %v5585
      %v5588 = vtanh.pop %v5587
      %5590 = vrot.lane.b32.xlu0 %v5588, 64
      %v5591 = vpop.permute.xlu0 %5590
      %v5593 = vmul.f32 %v5575, %v5591
      %v5594 = vxor.u32 %v5569, 2147483648
      %v5595 = vmul.f32 %v5594, 1.442695
      %v5596 = vpow.pop %v5595
      %v5597 = vadd.f32 %v5596, 1.0
      %v5598 = vrcp.pop %v5597
      %v5599 = vmul.f32 1.0, %v5598
      %v5600 = vtanh.pop %v5569
      %v5601 = vmul.f32 %v5599, %v5451
      %5603 = vrot.lane.b32.xlu0 %v5600, 64
      %v5604 = vpop.permute.xlu0 %5603
      %v5606 = vmul.f32 %v5599, %v5604
      %5608 = vrot.lane.b32.xlu0 %v5606, 32
      %v5609 = vpop.permute.xlu0 %5608
      %v5611 = vadd.f32 %v5601, %v5609
      %v5612 = vtanh.pop %v5611
      %5614 = vrot.lane.b32.xlu0 %v5612, 64
      %v5615 = vpop.permute.xlu0 %5614
      %v5617 = vmul.f32 %v5599, %v5615
      %v5618 = vpack.c.bf16 %v5593, %v5593
      %v5620 = vunpack.c.l.b16 %v5618
      %v5621 = vpack.c.b16 %v5620, %v5620
      %v5622 = vrot.slane %v5621, 6
      %5623 = vrot.lane.b32.xlu0 %v5622, 32
      %v5624 = vpop.permute.xlu0 %5623
      %5626 = vst.msk [vmem:[%s374 + $0x1c] sm:$0x4] %vm1008, %v5624
      %v5627 = vpack.c.bf16 %v5617, %v5617
      %v5629 = vunpack.c.l.b16 %v5627
      %v5630 = vpack.c.b16 %v5629, %v5629
      %v5631 = vrot.slane %v5630, 7
      %5632 = vrot.lane.b32.xlu0 %v5631, 32
      %v5633 = vpop.permute.xlu0 %5632
      %5635 = vst.msk [vmem:[%s381] sm:$0x2] %vm998, %v5633
      %v5636 = vld [vmem:[#allocation2 + $0x3e] sm:$0x3]
      %5637 = vrot.lane.b32.xlu0 %v5618, 32
      %v5638 = vpop.permute.xlu0 %5637
      %v5640 = vsel %vm670, %v5638, 0
      %5642 = vmatprep.subr.bf16.mxu0 0
      %5643 = vmatpush1.bf16.msra.mxu0 %v666
      %5644 = vmatprep.subr.bf16.mxu0 0
      %5645 = vmatpush1.bf16.msra.mxu0 %v667
      %5646 = vmatprep.subr.bf16.mxu0 0
      %5647 = vmatpush1.bf16.msra.mxu0 0
      %5648 = vmatprep.subr.bf16.mxu0 0
      %5649 = vmatpush1.bf16.msra.mxu0 0
      %5650 = vmatprep.subr.bf16.mxu0 0
      %5651 = vmatpush1.bf16.msra.mxu0 0
      %5652 = vmatprep.subr.bf16.mxu0 0
      %5653 = vmatpush1.bf16.msra.mxu0 0
      %5654 = vmatprep.subr.bf16.mxu0 0
      %5655 = vmatpush1.bf16.msra.mxu0 0
      %5656 = vmatprep.subr.bf16.mxu0 0
      %5657 = vmatpush1.bf16.msra.mxu0 0
      %5658 = vmatprep.subr.bf16.mxu0 0
      %5659 = vmatpush1.bf16.msra.mxu0 0
      %5660 = vmatprep.subr.bf16.mxu0 0
      %5661 = vmatpush1.bf16.msra.mxu0 0
      %5662 = vmatprep.subr.bf16.mxu0 0
      %5663 = vmatpush1.bf16.msra.mxu0 0
      %5664 = vmatprep.subr.bf16.mxu0 0
      %5665 = vmatpush1.bf16.msra.mxu0 0
      %5666 = vmatprep.subr.bf16.mxu0 0
      %5667 = vmatpush1.bf16.msra.mxu0 0
      %5668 = vmatprep.subr.bf16.mxu0 0
      %5669 = vmatpush1.bf16.msra.mxu0 0
      %5670 = vmatprep.subr.bf16.mxu0 0
      %5671 = vmatpush1.bf16.msra.mxu0 0
      %5672 = vmatprep.subr.bf16.mxu0 0
      %5673 = vmatpush1.bf16.msra.mxu0 0
      %5674 = vmatprep.mubr.bf16.mxu0 0
      %5675 = vmatmul.mubr.bf16.gmra.mrb[0].mxu0 %v5640
      %v5676 = vpop.f32.mrb[0].mxu0
      %v5677 = vadd.f32 0.0, %v5676
      %v5678 = vpop.f32.mrb[0].mxu0
      %v5679 = vpop.f32.mrb[0].mxu0
      %v5680 = vpop.f32.mrb[0].mxu0
      %5681 = vdwg.mxu0
      %v5682 = vadd.f32 %v5636, %v5677
      %v5683 = vld [vmem:[#allocation3] sm:$0x3]
      %5684 = vrot.lane.b32.xlu0 %v5627, 32
      %v5685 = vpop.permute.xlu0 %5684
      %v5687 = vsel %vm670, %v5685, 0
      %5689 = vmatprep.subr.bf16.mxu0 0
      %5690 = vmatpush1.bf16.msra.mxu0 %v725
      %5691 = vmatprep.subr.bf16.mxu0 0
      %5692 = vmatpush1.bf16.msra.mxu0 %v726
      %5693 = vmatprep.subr.bf16.mxu0 0
      %5694 = vmatpush1.bf16.msra.mxu0 0
      %5695 = vmatprep.subr.bf16.mxu0 0
      %5696 = vmatpush1.bf16.msra.mxu0 0
      %5697 = vmatprep.subr.bf16.mxu0 0
      %5698 = vmatpush1.bf16.msra.mxu0 0
      %5699 = vmatprep.subr.bf16.mxu0 0
      %5700 = vmatpush1.bf16.msra.mxu0 0
      %5701 = vmatprep.subr.bf16.mxu0 0
      %5702 = vmatpush1.bf16.msra.mxu0 0
      %5703 = vmatprep.subr.bf16.mxu0 0
      %5704 = vmatpush1.bf16.msra.mxu0 0
      %5705 = vmatprep.subr.bf16.mxu0 0
      %5706 = vmatpush1.bf16.msra.mxu0 0
      %5707 = vmatprep.subr.bf16.mxu0 0
      %5708 = vmatpush1.bf16.msra.mxu0 0
      %5709 = vmatprep.subr.bf16.mxu0 0
      %5710 = vmatpush1.bf16.msra.mxu0 0
      %5711 = vmatprep.subr.bf16.mxu0 0
      %5712 = vmatpush1.bf16.msra.mxu0 0
      %5713 = vmatprep.subr.bf16.mxu0 0
      %5714 = vmatpush1.bf16.msra.mxu0 0
      %5715 = vmatprep.subr.bf16.mxu0 0
      %5716 = vmatpush1.bf16.msra.mxu0 0
      %5717 = vmatprep.subr.bf16.mxu0 0
      %5718 = vmatpush1.bf16.msra.mxu0 0
      %5719 = vmatprep.subr.bf16.mxu0 0
      %5720 = vmatpush1.bf16.msra.mxu0 0
      %5721 = vmatprep.mubr.bf16.mxu0 0
      %5722 = vmatmul.mubr.bf16.gmra.mrb[0].mxu0 %v5687
      %v5723 = vpop.f32.mrb[0].mxu0
      %v5724 = vadd.f32 0.0, %v5723
      %v5725 = vpop.f32.mrb[0].mxu0
      %v5726 = vpop.f32.mrb[0].mxu0
      %v5727 = vpop.f32.mrb[0].mxu0
      %5728 = vdwg.mxu0
      %v5729 = vadd.f32 %v5683, %v5724
      %v5730 = vxor.u32 %v5682, 2147483648
      %v5731 = vmul.f32 %v5730, 1.442695
      %v5732 = vpow.pop %v5731
      %v5733 = vadd.f32 %v5732, 1.0
      %v5734 = vrcp.pop %v5733
      %v5735 = vmul.f32 1.0, %v5734
      %v5736 = vtanh.pop %v5682
      %v5737 = vmul.f32 %v5735, %v5587
      %5739 = vrot.lane.b32.xlu0 %v5736, 64
      %v5740 = vpop.permute.xlu0 %5739
      %v5742 = vmul.f32 %v5735, %v5740
      %5744 = vrot.lane.b32.xlu0 %v5742, 32
      %v5745 = vpop.permute.xlu0 %5744
      %v5747 = vadd.f32 %v5737, %v5745
      %v5748 = vtanh.pop %v5747
      %5750 = vrot.lane.b32.xlu0 %v5748, 64
      %v5751 = vpop.permute.xlu0 %5750
      %v5753 = vmul.f32 %v5735, %v5751
      %v5754 = vxor.u32 %v5729, 2147483648
      %v5755 = vmul.f32 %v5754, 1.442695
      %v5756 = vpow.pop %v5755
      %v5757 = vadd.f32 %v5756, 1.0
      %v5758 = vrcp.pop %v5757
      %v5759 = vmul.f32 1.0, %v5758
      %v5760 = vtanh.pop %v5729
      %v5761 = vmul.f32 %v5759, %v5611
      %5763 = vrot.lane.b32.xlu0 %v5760, 64
      %v5764 = vpop.permute.xlu0 %5763
      %v5766 = vmul.f32 %v5759, %v5764
      %5768 = vrot.lane.b32.xlu0 %v5766, 32
      %v5769 = vpop.permute.xlu0 %5768
      %v5771 = vadd.f32 %v5761, %v5769
      %v5772 = vtanh.pop %v5771
      %5774 = vrot.lane.b32.xlu0 %v5772, 64
      %v5775 = vpop.permute.xlu0 %5774
      %v5777 = vmul.f32 %v5759, %v5775
      %v5778 = vpack.c.bf16 %v5753, %v5753
      %v5780 = vunpack.c.l.b16 %v5778
      %v5781 = vpack.c.b16 %v5780, %v5780
      %v5782 = vrot.slane %v5781, 5
      %5783 = vrot.lane.b32.xlu0 %v5782, 32
      %v5784 = vpop.permute.xlu0 %5783
      %5786 = vst.msk [vmem:[%s374 + $0x1c] sm:$0x8] %vm846, %v5784
      %v5787 = vpack.c.bf16 %v5777, %v5777
      %v5789 = vunpack.c.l.b16 %v5787
      %v5790 = vpack.c.b16 %v5789, %v5789
      %5791 = vrot.lane.b32.xlu0 %v5790, 32
      %v5792 = vpop.permute.xlu0 %5791
      %5794 = vst.msk [vmem:[%s381] sm:$0x1] %vm836, %v5792
      %5796 = vrot.lane.b32.xlu0 %v5753, 32
      %v5797 = vpop.permute.xlu0 %5796
      %vm5799 = vcmask 254976
      %5800 = vst.msk [vmem:[#allocation4] sm:$0x3] %vm5799, %v5797
      %5802 = vrot.lane.b32.xlu0 %v5747, 96
      %v5803 = vpop.permute.xlu0 %5802
      %5805 = vst.msk [vmem:[#allocation5] sm:$0x3] %vm5799, %v5803
      %5807 = vrot.lane.b32.xlu0 %v5777, 32
      %v5808 = vpop.permute.xlu0 %5807
      %5810 = vst.msk [vmem:[#allocation6] sm:$0x3] %vm5799, %v5808
      %5812 = vrot.lane.b32.xlu0 %v5771, 96
      %v5813 = vpop.permute.xlu0 %5812
      %5815 = vst.msk [vmem:[#allocation7] sm:$0x3] %vm5799, %v5813
      %s5816 = smul.u32 8, %s21
      %p5817 = scmp.lt.s32.totalorder %s5816, 127
      %s5818 = scalar_select %p5817, %s5816, 127
      %s5819 = smul.addr %s5818, 4
      %s5820 = scalar_lea.vmem %s8, %s5819
      %s5821 = ssub.s32 15, %s21
      %s5822 = smul.u32 8, %s5821
      %p5823 = scmp.lt.s32.totalorder %s5822, 127
      %s5824 = scalar_select %p5823, %s5822, 127
      %s5825 = smul.addr %s5824, 4
      %s5826 = scalar_lea.vmem %s9, %s5825
      // Predicated region
      $region57: #{tpu_custom_call.1} parent=51 // pred_check
        %p5827 = pneg %p219
      $region58: #{tpu_custom_call.1} parent=51 // pred_check_branch
        %5829 = sbr.rel (%p5827) target = $region60
      $region59: #{tpu_custom_call.1} parent=51 // pred_region
        %s5830 = smul.u32 8, %s21
      $region60: #{tpu_custom_call.1} parent=51 // pred_fallthru
        _
      // Predicated region
      $region61: #{tpu_custom_call.1} parent=51 // pred_check
        %p5831 = pneg %p247
      $region62: #{tpu_custom_call.1} parent=51 // pred_check_branch
        %5833 = sbr.rel (%p5831) target = $region64
      $region63: #{tpu_custom_call.1} parent=51 // pred_region
        %s5834 = ssub.s32 15, %s21
        %s5835 = smul.u32 8, %s5834
      $region64: #{tpu_custom_call.1} parent=51 // pred_fallthru
        _
    $region52: #{tpu_custom_call.1} parent=5 // pred_fallthru
      _
    %p5836 = scmp.le.s32.totalorder 2, %s16
    // Predicated region
    $region65: #{tpu_custom_call.1} parent=5 // pred_check
      %p5837 = pneg %p5836
    $region66: #{tpu_custom_call.1} parent=5 // pred_check_branch
      %5839 = sbr.rel (%p5837) target = $region68
    $region67: #{tpu_custom_call.1} parent=5 // pred_region
      %s5840 = ssub.s32 %s16, 2
      // Predicated region
      $region69: #{tpu_custom_call.1} parent=67 // pred_check
        %p5841 = pneg %p225
      $region70: #{tpu_custom_call.1} parent=67 // pred_check_branch
        %5843 = sbr.rel (%p5841) target = $region72
      $region71: #{tpu_custom_call.1} parent=67 // pred_region
        %s5844 = smul.u32 8, %s22
        %p5845 = scmp.lt.s32.totalorder %s5844, 127
        %s5846 = scalar_select %p5845, %s5844, 127
        %s5847 = smul.addr %s5846, 4
        %s5848 = scalar_lea.vmem %s8, %s5847
      $region72: #{tpu_custom_call.1} parent=67 // pred_fallthru
        _
      // Predicated region
      $region73: #{tpu_custom_call.1} parent=67 // pred_check
        %p5849 = pneg %p253
      $region74: #{tpu_custom_call.1} parent=67 // pred_check_branch
        %5851 = sbr.rel (%p5849) target = $region76
      $region75: #{tpu_custom_call.1} parent=67 // pred_region
        %s5852 = ssub.s32 15, %s22
        %s5853 = smul.u32 8, %s5852
        %p5854 = scmp.lt.s32.totalorder %s5853, 127
        %s5855 = scalar_select %p5854, %s5853, 127
        %s5856 = smul.addr %s5855, 4
        %s5857 = scalar_lea.vmem %s9, %s5856
      $region76: #{tpu_custom_call.1} parent=67 // pred_fallthru
        _
    $region68: #{tpu_custom_call.1} parent=5 // pred_fallthru
      _
  $region6: #{tpu_custom_call.1} parent=0 // loop_footer
    %s20 = sadd.s32 1, %s16
  $region7: #{tpu_custom_call.1} parent=0 // loop_footer_branch
    %15 = sbr.rel target = $region3
  $region8: #{tpu_custom_call.1} parent=0 // loop_exit
    _

</llo_original>
